<compile_context>
chip_gen: v7x
topology: tpu7x:2x2x1
jax: 0.10.0
libtpu: 0.0.40
codegen_flags: <defaults>
</compile_context>

<pallas_src>
import functools
import math

import numpy as np
import jax
import jax.numpy as jnp
from jax.experimental import pallas as pl
from jax.experimental.pallas import tpu as pltpu

# ----------------------------- dimensions (consistent with the module) ------------------------
B        = 2                  # batch
C_IN     = 3                  # input image channels
IMG_HW   = 14                 # input spatial -> conv 3x3 s2 p1 -> 7x7
CONV_HW  = 7
NREG     = CONV_HW * CONV_HW  # 49 image regions
R        = 6                  # encoder.max_role_count
C        = 32                 # conv feature channels (v dim)
E        = 16                 # role / verb embedding dim
Q        = 32                 # query dim (query_composer output)
A        = 32                 # v_att hidden dim
H        = 32                 # q_net / v_net joint (MFB) dim
L        = 24                 # number of labels (classifier output)
N_VERBS  = 10
N_ROLES  = 20
ERASE    = 2                  # erase_size

_P_ANCH  = CONV_HW - ERASE + 1       # 6  (avg_pool2d output size)
NANCH    = _P_ANCH * _P_ANCH         # 36 pooled anchors


# --------------------------- static erase constants (small, lane-friendly) --------------------
def _build_constants():
    pool = np.zeros((NREG, NANCH), np.float32)           # avg_pool2d(erase,stride=1) as matmul
    for ai in range(_P_ANCH):
        for aj in range(_P_ANCH):
            k = ai * _P_ANCH + aj
            for di in range(ERASE):
                for dj in range(ERASE):
                    pool[(ai + di) * CONV_HW + (aj + dj), k] = 1.0 / (ERASE * ERASE)
    reg = np.arange(NREG)
    row49 = (reg // CONV_HW).astype(np.float32).reshape(1, NREG)
    col49 = (reg % CONV_HW).astype(np.float32).reshape(1, NREG)
    return pool, row49, col49


_POOL_MAT, _ROW49, _COL49 = _build_constants()


# ---------------------------------------- fused kernel ----------------------------------------
def _cr_kernel(
    patches_ref, rve_ref,
    conv_w_ref, conv_b_ref, ref_w_ref, ref_b_ref,
    qc_w_ref, qc_b_ref,
    va_w1v_ref, va_w1q_ref, va_b1_ref, va_w2_ref, va_b2_ref,
    qn_w_ref, qn_b_ref, vn_w_ref, vn_b_ref,
    na_wqkv_ref, na_bqkv_ref, na_wo_ref, na_bo_ref,
    uqc_wc_ref, uqc_wr_ref, uqc_b_ref,
    rc_wo_ref, rc_wi_ref, rc_b_ref,
    pool_ref, row49_ref, col49_ref,
    fc_w3_ref, fc_b_ref,
    cls_w1_ref, cls_b1_ref, cls_w2_ref, cls_b2_ref,
    logits_ref,
):
    """One grid step == one batch element (all R roles)."""
    f32 = jnp.float32

    def dot(a, b):
        return jnp.dot(a, b, preferred_element_type=f32)

    def dot_t(a, b):      # a @ b.T via transposed contraction (no materialized transpose)
        return jax.lax.dot_general(a, b, (((1,), (1,)), ((), ())),
                                   preferred_element_type=f32)

    def relu(x):
        return jnp.maximum(x, 0.0)

    # ---- convnet (3x3 s2 conv as matmul) + ReLU, then img_refiner (Linear + ReLU) ----
    v_conv = relu(dot(patches_ref[...], conv_w_ref[...]) + conv_b_ref[...])    # (NREG, C)
    img = relu(dot(v_conv, ref_w_ref[...]) + ref_b_ref[...])                   # (NREG, C)

    rve = rve_ref[...]                                                         # (R, 2E)
    q_emb = relu(dot(rve, qc_w_ref[...]) + qc_b_ref[...])                      # (R, Q)

    # image part of the v_att hidden layer, shared by both attention passes (hoisted)
    img_w1 = dot(img, va_w1v_ref[...])                                         # (NREG, A)
    va_b1 = va_b1_ref[...]                                                     # (1, A)
    va_w2 = va_w2_ref[...]                                                     # (1, A)

    def v_att_pool(q):
        """Lane-dense attention pool: (R, NREG) logits, softmax over regions (lane axis),
        then one MXU matmul with the image features."""
        qw1 = dot(q, va_w1q_ref[...])                                          # (R, A)
        rows = []
        for r in range(R):                                                     # static, R=6
            h_r = relu(img_w1 + qw1[r:r + 1, :] + va_b1)                       # (NREG, A)
            rows.append(dot_t(va_w2, h_r))                                     # (1, NREG)
        logit = jnp.concatenate(rows, axis=0) + va_b2_ref[...]                 # (R, NREG)
        logit = logit - jnp.max(logit, axis=1, keepdims=True)
        e = jnp.exp(logit)
        att = e / jnp.sum(e, axis=1, keepdims=True)                            # (R, NREG)
        return dot(att, img)                                                   # (R, C)

    def mfb(q_r, v_r):
        # eltwise mul, sum over n_heads=1 (no-op), signed sqrt, L2 normalize (dim=1).
        x = q_r * v_r
        s = jnp.sqrt(relu(x)) - jnp.sqrt(relu(-x))
        nrm = jnp.sqrt(jnp.sum(s * s, axis=1, keepdims=True))
        return s / jnp.maximum(nrm, 1e-12)

    # ---- first attention pooling + MFB ----
    v_emb = v_att_pool(q_emb)                                                  # (R, C)
    v_repr = relu(dot(v_emb, vn_w_ref[...]) + vn_b_ref[...])                   # (R, H)
    q_repr = relu(dot(q_emb, qn_w_ref[...]) + qn_b_ref[...])                   # (R, H)
    out1 = mfb(q_repr, v_repr)                                                 # (R, H)

    # ---- neighbour attention over the R roles (single head, no-self adjacency) ----
    qkv = dot(out1, na_wqkv_ref[...]) + na_bqkv_ref[...]                       # (R, 3H)
    qh = qkv[:, 0:H]
    kh = qkv[:, H:2 * H]
    vh = qkv[:, 2 * H:3 * H]
    sc = dot_t(qh, kh) * (1.0 / math.sqrt(H))                                  # (R, R)
    rows_i = jax.lax.broadcasted_iota(jnp.int32, (R, R), 0)
    cols_i = jax.lax.broadcasted_iota(jnp.int32, (R, R), 1)
    sc = jnp.where(rows_i == cols_i, -1e9, sc)                                 # mask self-edges
    sc = sc - jnp.max(sc, axis=1, keepdims=True)
    esc = jnp.exp(sc)
    prob = esc / jnp.sum(esc, axis=1, keepdims=True)
    withctx = dot(dot(prob, vh), na_wo_ref[...]) + na_bo_ref[...]              # (R, H)

    # ---- updated query composer (concat realised as split weights) ----
    updated_q_emb = relu(dot(withctx, uqc_wc_ref[...]) +
                         dot(rve, uqc_wr_ref[...]) + uqc_b_ref[...])           # (R, Q)

    # ---- second attention pooling + MFB (uses the un-erased refined img, as in the module) ----
    v_emb_q = v_att_pool(updated_q_emb)
    v_repr_q = relu(dot(v_emb_q, vn_w_ref[...]) + vn_b_ref[...])
    q_repr_q = relu(dot(updated_q_emb, qn_w_ref[...]) + qn_b_ref[...])
    mfb_t = mfb(q_repr_q, v_repr_q)                                            # (R, H)

    # ---- erase branch: resize_ctx scores (lane-dense), avg-pool, per-role argmax + window ----
    out_score = dot(out1, rc_wo_ref[...])                                      # (R, 1)
    img_row = dot_t(rc_wi_ref[...], img)                                       # (1, NREG)
    region_vals = out_score + img_row + rc_b_ref[...]                          # (R, NREG)
    pooled = dot(region_vals, pool_ref[...])                                   # (R, NANCH)

    maxv = jnp.max(pooled, axis=1, keepdims=True)
    lin = jax.lax.broadcasted_iota(jnp.int32, (R, NANCH), 1)
    cand = jnp.where(pooled >= maxv, lin, jnp.full_like(lin, 10 ** 6))
    sel = jnp.min(cand, axis=1, keepdims=True).astype(f32)                     # first max idx
    srow = jnp.floor(sel * (1.0 / _P_ANCH))                                    # exact for <36
    scol = sel - srow * _P_ANCH

    row49 = row49_ref[...]                                                     # (1, NREG)
    col49 = col49_ref[...]
    erased = ((row49 >= srow) & (row49 <= srow + (ERASE - 1)) &
              (col49 >= scol) & (col49 <= scol + (ERASE - 1)))                 # (R, NREG)
    z = jnp.where(erased, 1.0, 0.0)
    s_all = jnp.sum(z, axis=0, keepdims=True)                                  # (1, NREG)
    # product of the other R-1 role masks (entries in {0,1}) == "no other role erased here"
    updated_mask = jnp.where((s_all - z) == 0.0, 1.0, 0.0)                     # (R, NREG)

    # ---- flattened_ctx_img on the masked image, without materializing (R, NREG*C) ----
    # g_t[h, n] = sum_c img[n, c] * fc_w[n*C + c, h]   (fc_w3 pre-laid-out as (H, NREG, C))
    g_t = jnp.sum(img[None, :, :] * fc_w3_ref[...], axis=2)                    # (H, NREG)
    flat_ctx = dot_t(updated_mask, g_t) + fc_b_ref[...]                        # (R, H)

    # ---- gate + classifier ----
    out_new = mfb_t + flat_ctx
    gate = jax.nn.sigmoid(q_repr * q_repr_q)
    out = gate * out1 + (1.0 - gate) * out_new

    hcls = relu(dot(out, cls_w1_ref[...]) + cls_b1_ref[...])                   # (R, 2H)
    logits_ref[...] = dot(hcls, cls_w2_ref[...]) + cls_b2_ref[...]             # (R, L)


# ----------------------------------- plain-JAX glue -------------------------------------------
def im2col(x, k=3, stride=2, pad=1):
    """NCHW -> (B, Ho*Wo, C*k*k) patches (conv as matmul)."""
    Bz, Cc, Hh, Ww = x.shape
    xp = jnp.pad(x, ((0, 0), (0, 0), (pad, pad), (pad, pad)))
    Ho = (Hh + 2 * pad - k) // stride + 1
    Wo = (Ww + 2 * pad - k) // stride + 1
    cols = []
    for di in range(k):
        for dj in range(k):
            cols.append(xp[:, :, di:di + stride * Ho:stride, dj:dj + stride * Wo:stride])
    patches = jnp.stack(cols, axis=2)                    # (B, C, k*k, Ho, Wo)
    patches = patches.reshape(Bz, Cc * k * k, Ho * Wo)
    return patches.transpose(0, 2, 1)                    # (B, Ho*Wo, C*k*k)


def init_params(key):
    ks = jax.random.split(key, 30)

    def w(k, shape):
        return jax.random.normal(k, shape, jnp.float32) * (1.0 / math.sqrt(shape[0]))

    p = {}
    p["conv_w"] = w(ks[0], (C_IN * 9, C));      p["conv_b"] = jnp.zeros((C,), jnp.float32)
    p["ref_w"]  = w(ks[1], (C, C));             p["ref_b"]  = jnp.zeros((C,), jnp.float32)
    p["verb_emb"] = jax.random.normal(ks[2], (N_VERBS, E), jnp.float32) * 0.5
    p["role_emb"] = jax.random.normal(ks[3], (N_ROLES, E), jnp.float32) * 0.5
    p["role_table"] = jax.random.randint(ks[4], (N_VERBS, R), 0, N_ROLES)
    p["qc_w"]  = w(ks[5], (2 * E, Q));          p["qc_b"]  = jnp.zeros((Q,), jnp.float32)
    p["va_w1v"] = w(ks[6], (C, A))
    p["va_w1q"] = w(ks[7], (Q, A))
    p["va_b1"]  = jnp.zeros((1, A), jnp.float32)
    p["va_w2"]  = w(ks[8], (1, A))
    p["va_b2"]  = jnp.zeros((1, 1), jnp.float32)
    p["qn_w"]  = w(ks[9], (Q, H));              p["qn_b"]  = jnp.zeros((H,), jnp.float32)
    p["vn_w"]  = w(ks[10], (C, H));             p["vn_b"]  = jnp.zeros((H,), jnp.float32)
    p["rc_w"]  = w(ks[11], (H + C, 1));         p["rc_b"]  = jnp.zeros((1,), jnp.float32)
    p["na_wq"] = w(ks[12], (H, H));             p["na_bq"] = jnp.zeros((1, H), jnp.float32)
    p["na_wk"] = w(ks[13], (H, H));             p["na_bk"] = jnp.zeros((1, H), jnp.float32)
    p["na_wv"] = w(ks[14], (H, H));             p["na_bv"] = jnp.zeros((1, H), jnp.float32)
    p["na_wo"] = w(ks[15], (H, H));             p["na_bo"] = jnp.zeros((1, H), jnp.float32)
    p["uqc_w"] = w(ks[16], (H + 2 * E, Q));     p["uqc_b"] = jnp.zeros((Q,), jnp.float32)
    p["fc_w"]  = w(ks[17], (NREG * C, H));      p["fc_b"]  = jnp.zeros((H,), jnp.float32)
    p["cls_w1"] = w(ks[18], (H, 2 * H));        p["cls_b1"] = jnp.zeros((2 * H,), jnp.float32)
    p["cls_w2"] = w(ks[19], (2 * H, L));        p["cls_b2"] = jnp.zeros((L,), jnp.float32)
    return p


def prep_weights(p):
    """One-time weight massaging (QKV concat, concat-weight splits, fc_w re-layout).

    Done OUTSIDE the jitted forward so it never becomes per-step XLA work.
    """
    na_wqkv = jnp.concatenate([p["na_wq"], p["na_wk"], p["na_wv"]], axis=1)        # (H, 3H)
    na_bqkv = jnp.concatenate([p["na_bq"], p["na_bk"], p["na_bv"]], axis=1)        # (1, 3H)
    uqc_w_ctx = p["uqc_w"][:H, :]                                                  # (H, Q)
    uqc_w_rve = p["uqc_w"][H:, :]                                                  # (2E, Q)
    rc_w_out = p["rc_w"][:H, :]                                                    # (H, 1)
    rc_w_img = p["rc_w"][H:, :].reshape(1, C)                                      # (1, C)
    # fc_w3[h, n, c] = fc_w[n*C + c, h]  (region-major flatten, matching torch .view(M, -1))
    fc_w3 = p["fc_w"].reshape(NREG, C, H).transpose(2, 0, 1)                       # (H, NREG, C)

    weights = (
        p["conv_w"], p["conv_b"].reshape(1, C),
        p["ref_w"], p["ref_b"].reshape(1, C),
        p["qc_w"], p["qc_b"].reshape(1, Q),
        p["va_w1v"], p["va_w1q"], p["va_b1"], p["va_w2"], p["va_b2"],
        p["qn_w"], p["qn_b"].reshape(1, H),
        p["vn_w"], p["vn_b"].reshape(1, H),
        na_wqkv, na_bqkv, p["na_wo"], p["na_bo"],
        uqc_w_ctx, uqc_w_rve, p["uqc_b"].reshape(1, Q),
        rc_w_out, rc_w_img, p["rc_b"].reshape(1, 1),
        jnp.asarray(_POOL_MAT), jnp.asarray(_ROW49), jnp.asarray(_COL49),
        fc_w3, p["fc_b"].reshape(1, H),
        p["cls_w1"], p["cls_b1"].reshape(1, 2 * H),
        p["cls_w2"], p["cls_b2"].reshape(1, L),
    )
    return [jnp.asarray(w, jnp.float32) for w in weights]


def _const_spec(shape):
    nd = len(shape)
    return pl.BlockSpec(tuple(shape), lambda b, _nd=nd: (0,) * _nd)


def forward(params, kernel_weights, v_org, gt_verb):
    """Plain-JAX gather/im2col glue + ONE fused Pallas kernel (grid over the batch)."""
    assert v_org.shape == (B, C_IN, IMG_HW, IMG_HW)   # kernel is specialized for these sizes

    patches = im2col(v_org)                                          # (B, NREG, C_IN*9)
    role_idx = params["role_table"][gt_verb]                         # (B, R)
    verb_embd = params["verb_emb"][gt_verb]                          # (B, E)
    role_embd = params["role_emb"][role_idx]                         # (B, R, E)
    verb_exp = jnp.broadcast_to(verb_embd[:, None, :], (B, R, E))
    rve = jnp.concatenate([verb_exp, role_embd], axis=-1)            # (B, R, 2E)

    in_specs = (
        [pl.BlockSpec((None, NREG, C_IN * 9), lambda b: (b, 0, 0)),
         pl.BlockSpec((None, R, 2 * E), lambda b: (b, 0, 0))]
        + [_const_spec(w.shape) for w in kernel_weights]
    )

    logits = pl.pallas_call(
        _cr_kernel,
        out_shape=jax.ShapeDtypeStruct((B, R, L), jnp.float32),
        grid=(B,),
        in_specs=in_specs,
        out_specs=pl.BlockSpec((None, R, L), lambda b: (b, 0, 0)),
        compiler_params=pltpu.CompilerParams(
            dimension_semantics=("parallel",)),     # v7x: one batch element per TensorCore
    )(patches, rve, *kernel_weights)
    return logits                                                    # (B, R, L)


# TODO(synk): convnet / encoder are injected submodules in the original; here a single
# conv3x3(s2,p1)+ReLU stand-in and a full no-self role adjacency are used. Embedding gathers,
# im2col and the verb/role concat stay in plain JAX (cheap gathers); Dropout_C is identity
# (eval mode); matmuls use default MXU precision with f32 accumulation.

if __name__ == "__main__":
    key = jax.random.PRNGKey(0)
    kp, kx, kv = jax.random.split(key, 3)
    params = init_params(kp)
    kernel_weights = prep_weights(params)

    v_org = jax.random.normal(kx, (B, C_IN, IMG_HW, IMG_HW), jnp.float32)
    gt_verb = jax.random.randint(kv, (B,), 0, N_VERBS)

    fwd = jax.jit(forward)
    role_label_pred = fwd(params, kernel_weights, v_org, gt_verb)
    jax.block_until_ready(role_label_pred)
    assert role_label_pred.shape == (B, R, L)
    assert bool(jnp.all(jnp.isfinite(role_label_pred)))
    print("KERNEL_OK")
</pallas_src>

<mosaic_0001>
module attributes {stable_mosaic.version = 11 : i64} {
  func.func @_cr_kernel(%arg0: i32, %arg1: memref<1x49x27xf32, #tpu.memory_space<vmem>>, %arg2: memref<1x6x32xf32, #tpu.memory_space<vmem>>, %arg3: memref<27x32xf32, #tpu.memory_space<vmem>>, %arg4: memref<1x32xf32, #tpu.memory_space<vmem>>, %arg5: memref<32x32xf32, #tpu.memory_space<vmem>>, %arg6: memref<1x32xf32, #tpu.memory_space<vmem>>, %arg7: memref<32x32xf32, #tpu.memory_space<vmem>>, %arg8: memref<1x32xf32, #tpu.memory_space<vmem>>, %arg9: memref<32x32xf32, #tpu.memory_space<vmem>>, %arg10: memref<32x32xf32, #tpu.memory_space<vmem>>, %arg11: memref<1x32xf32, #tpu.memory_space<vmem>>, %arg12: memref<1x32xf32, #tpu.memory_space<vmem>>, %arg13: memref<1x1xf32, #tpu.memory_space<vmem>>, %arg14: memref<32x32xf32, #tpu.memory_space<vmem>>, %arg15: memref<1x32xf32, #tpu.memory_space<vmem>>, %arg16: memref<32x32xf32, #tpu.memory_space<vmem>>, %arg17: memref<1x32xf32, #tpu.memory_space<vmem>>, %arg18: memref<32x96xf32, #tpu.memory_space<vmem>>, %arg19: memref<1x96xf32, #tpu.memory_space<vmem>>, %arg20: memref<32x32xf32, #tpu.memory_space<vmem>>, %arg21: memref<1x32xf32, #tpu.memory_space<vmem>>, %arg22: memref<32x32xf32, #tpu.memory_space<vmem>>, %arg23: memref<32x32xf32, #tpu.memory_space<vmem>>, %arg24: memref<1x32xf32, #tpu.memory_space<vmem>>, %arg25: memref<32x1xf32, #tpu.memory_space<vmem>>, %arg26: memref<1x32xf32, #tpu.memory_space<vmem>>, %arg27: memref<1x1xf32, #tpu.memory_space<vmem>>, %arg28: memref<49x36xf32, #tpu.memory_space<vmem>>, %arg29: memref<1x49xf32, #tpu.memory_space<vmem>>, %arg30: memref<1x49xf32, #tpu.memory_space<vmem>>, %arg31: memref<32x49x32xf32, #tpu.memory_space<vmem>>, %arg32: memref<1x32xf32, #tpu.memory_space<vmem>>, %arg33: memref<32x64xf32, #tpu.memory_space<vmem>>, %arg34: memref<1x64xf32, #tpu.memory_space<vmem>>, %arg35: memref<64x24xf32, #tpu.memory_space<vmem>>, %arg36: memref<1x24xf32, #tpu.memory_space<vmem>>, %arg37: memref<1x6x24xf32, #tpu.memory_space<vmem>>) attributes {dimension_semantics = [#tpu.dimension_semantics<parallel>], iteration_bounds = array<i64: 2>, scalar_prefetch = 0 : i64, scratch_operands = 0 : i64, tpu.core_type = #tpu.core_type<tc>, window_params = [{transform_indices = @transform_0, window_bounds = array<i64: 1, 49, 27>}, {transform_indices = @transform_1, window_bounds = array<i64: 1, 6, 32>}, {pipeline_mode = #tpu.pipeline_mode<synchronous>, transform_indices = @transform_2, window_bounds = array<i64: 27, 32>}, {pipeline_mode = #tpu.pipeline_mode<synchronous>, transform_indices = @transform_3, window_bounds = array<i64: 1, 32>}, {pipeline_mode = #tpu.pipeline_mode<synchronous>, transform_indices = @transform_4, window_bounds = array<i64: 32, 32>}, {pipeline_mode = #tpu.pipeline_mode<synchronous>, transform_indices = @transform_5, window_bounds = array<i64: 1, 32>}, {pipeline_mode = #tpu.pipeline_mode<synchronous>, transform_indices = @transform_6, window_bounds = array<i64: 32, 32>}, {pipeline_mode = #tpu.pipeline_mode<synchronous>, transform_indices = @transform_7, window_bounds = array<i64: 1, 32>}, {pipeline_mode = #tpu.pipeline_mode<synchronous>, transform_indices = @transform_8, window_bounds = array<i64: 32, 32>}, {pipeline_mode = #tpu.pipeline_mode<synchronous>, transform_indices = @transform_9, window_bounds = array<i64: 32, 32>}, {pipeline_mode = #tpu.pipeline_mode<synchronous>, transform_indices = @transform_10, window_bounds = array<i64: 1, 32>}, {pipeline_mode = #tpu.pipeline_mode<synchronous>, transform_indices = @transform_11, window_bounds = array<i64: 1, 32>}, {pipeline_mode = #tpu.pipeline_mode<synchronous>, transform_indices = @transform_12, window_bounds = array<i64: 1, 1>}, {pipeline_mode = #tpu.pipeline_mode<synchronous>, transform_indices = @transform_13, window_bounds = array<i64: 32, 32>}, {pipeline_mode = #tpu.pipeline_mode<synchronous>, transform_indices = @transform_14, window_bounds = array<i64: 1, 32>}, {pipeline_mode = #tpu.pipeline_mode<synchronous>, transform_indices = @transform_15, window_bounds = array<i64: 32, 32>}, {pipeline_mode = #tpu.pipeline_mode<synchronous>, transform_indices = @transform_16, window_bounds = array<i64: 1, 32>}, {pipeline_mode = #tpu.pipeline_mode<synchronous>, transform_indices = @transform_17, window_bounds = array<i64: 32, 96>}, {pipeline_mode = #tpu.pipeline_mode<synchronous>, transform_indices = @transform_18, window_bounds = array<i64: 1, 96>}, {pipeline_mode = #tpu.pipeline_mode<synchronous>, transform_indices = @transform_19, window_bounds = array<i64: 32, 32>}, {pipeline_mode = #tpu.pipeline_mode<synchronous>, transform_indices = @transform_20, window_bounds = array<i64: 1, 32>}, {pipeline_mode = #tpu.pipeline_mode<synchronous>, transform_indices = @transform_21, window_bounds = array<i64: 32, 32>}, {pipeline_mode = #tpu.pipeline_mode<synchronous>, transform_indices = @transform_22, window_bounds = array<i64: 32, 32>}, {pipeline_mode = #tpu.pipeline_mode<synchronous>, transform_indices = @transform_23, window_bounds = array<i64: 1, 32>}, {pipeline_mode = #tpu.pipeline_mode<synchronous>, transform_indices = @transform_24, window_bounds = array<i64: 32, 1>}, {pipeline_mode = #tpu.pipeline_mode<synchronous>, transform_indices = @transform_25, window_bounds = array<i64: 1, 32>}, {pipeline_mode = #tpu.pipeline_mode<synchronous>, transform_indices = @transform_26, window_bounds = array<i64: 1, 1>}, {pipeline_mode = #tpu.pipeline_mode<synchronous>, transform_indices = @transform_27, window_bounds = array<i64: 49, 36>}, {pipeline_mode = #tpu.pipeline_mode<synchronous>, transform_indices = @transform_28, window_bounds = array<i64: 1, 49>}, {pipeline_mode = #tpu.pipeline_mode<synchronous>, transform_indices = @transform_29, window_bounds = array<i64: 1, 49>}, {pipeline_mode = #tpu.pipeline_mode<synchronous>, transform_indices = @transform_30, window_bounds = array<i64: 32, 49, 32>}, {pipeline_mode = #tpu.pipeline_mode<synchronous>, transform_indices = @transform_31, window_bounds = array<i64: 1, 32>}, {pipeline_mode = #tpu.pipeline_mode<synchronous>, transform_indices = @transform_32, window_bounds = array<i64: 32, 64>}, {pipeline_mode = #tpu.pipeline_mode<synchronous>, transform_indices = @transform_33, window_bounds = array<i64: 1, 64>}, {pipeline_mode = #tpu.pipeline_mode<synchronous>, transform_indices = @transform_34, window_bounds = array<i64: 64, 24>}, {pipeline_mode = #tpu.pipeline_mode<synchronous>, transform_indices = @transform_35, window_bounds = array<i64: 1, 24>}, {transform_indices = @transform_36, window_bounds = array<i64: 1, 6, 24>}]} {
    %c0 = arith.constant 0 : index
    %c0_0 = arith.constant 0 : index
    %c0_1 = arith.constant 0 : index
    %0 = vector.load %arg1[%c0, %c0_0, %c0_1] : memref<1x49x27xf32, #tpu.memory_space<vmem>>, vector<1x49x27xf32>
    %1 = vector.shape_cast %0 : vector<1x49x27xf32> to vector<49x27xf32>
    %c0_2 = arith.constant 0 : index
    %c0_3 = arith.constant 0 : index
    %2 = vector.load %arg3[%c0_2, %c0_3] : memref<27x32xf32, #tpu.memory_space<vmem>>, vector<27x32xf32>
    %cst = arith.constant dense<0.000000e+00> : vector<49x32xf32>
    %3 = tpu.matmul %1, %2, %cst {dimension_numbers = #tpu.dot_dimension_numbers<[1], [0], [0], [1], [0, 0, 1, 1], [], []>} : vector<49x27xf32>, vector<27x32xf32>, vector<49x32xf32> -> vector<49x32xf32>
    %c0_4 = arith.constant 0 : index
    %c0_5 = arith.constant 0 : index
    %4 = vector.load %arg4[%c0_4, %c0_5] : memref<1x32xf32, #tpu.memory_space<vmem>>, vector<1x32xf32>
    %5 = vector.broadcast %4 : vector<1x32xf32> to vector<49x32xf32>
    %6 = arith.addf %3, %5 : vector<49x32xf32>
    %cst_6 = arith.constant 0.000000e+00 : f32
    %7 = vector.broadcast %cst_6 : f32 to vector<49x32xf32>
    %8 = arith.maximumf %6, %7 : vector<49x32xf32>
    %c0_7 = arith.constant 0 : index
    %c0_8 = arith.constant 0 : index
    %9 = vector.load %arg5[%c0_7, %c0_8] : memref<32x32xf32, #tpu.memory_space<vmem>>, vector<32x32xf32>
    %cst_9 = arith.constant dense<0.000000e+00> : vector<49x32xf32>
    %10 = tpu.matmul %8, %9, %cst_9 {dimension_numbers = #tpu.dot_dimension_numbers<[1], [0], [0], [1], [0, 0, 1, 1], [], []>} : vector<49x32xf32>, vector<32x32xf32>, vector<49x32xf32> -> vector<49x32xf32>
    %c0_10 = arith.constant 0 : index
    %c0_11 = arith.constant 0 : index
    %11 = vector.load %arg6[%c0_10, %c0_11] : memref<1x32xf32, #tpu.memory_space<vmem>>, vector<1x32xf32>
    %12 = vector.broadcast %11 : vector<1x32xf32> to vector<49x32xf32>
    %13 = arith.addf %10, %12 : vector<49x32xf32>
    %cst_12 = arith.constant 0.000000e+00 : f32
    %14 = vector.broadcast %cst_12 : f32 to vector<49x32xf32>
    %15 = arith.maximumf %13, %14 : vector<49x32xf32>
    %c0_13 = arith.constant 0 : index
    %c0_14 = arith.constant 0 : index
    %c0_15 = arith.constant 0 : index
    %16 = vector.load %arg2[%c0_13, %c0_14, %c0_15] : memref<1x6x32xf32, #tpu.memory_space<vmem>>, vector<1x6x32xf32>
    %17 = vector.shape_cast %16 : vector<1x6x32xf32> to vector<6x32xf32>
    %c0_16 = arith.constant 0 : index
    %c0_17 = arith.constant 0 : index
    %18 = vector.load %arg7[%c0_16, %c0_17] : memref<32x32xf32, #tpu.memory_space<vmem>>, vector<32x32xf32>
    %cst_18 = arith.constant dense<0.000000e+00> : vector<6x32xf32>
    %19 = tpu.matmul %17, %18, %cst_18 {dimension_numbers = #tpu.dot_dimension_numbers<[1], [0], [0], [1], [0, 0, 1, 1], [], []>} : vector<6x32xf32>, vector<32x32xf32>, vector<6x32xf32> -> vector<6x32xf32>
    %c0_19 = arith.constant 0 : index
    %c0_20 = arith.constant 0 : index
    %20 = vector.load %arg8[%c0_19, %c0_20] : memref<1x32xf32, #tpu.memory_space<vmem>>, vector<1x32xf32>
    %21 = vector.broadcast %20 : vector<1x32xf32> to vector<6x32xf32>
    %22 = arith.addf %19, %21 : vector<6x32xf32>
    %cst_21 = arith.constant 0.000000e+00 : f32
    %23 = vector.broadcast %cst_21 : f32 to vector<6x32xf32>
    %24 = arith.maximumf %22, %23 : vector<6x32xf32>
    %c0_22 = arith.constant 0 : index
    %c0_23 = arith.constant 0 : index
    %25 = vector.load %arg9[%c0_22, %c0_23] : memref<32x32xf32, #tpu.memory_space<vmem>>, vector<32x32xf32>
    %cst_24 = arith.constant dense<0.000000e+00> : vector<49x32xf32>
    %26 = tpu.matmul %15, %25, %cst_24 {dimension_numbers = #tpu.dot_dimension_numbers<[1], [0], [0], [1], [0, 0, 1, 1], [], []>} : vector<49x32xf32>, vector<32x32xf32>, vector<49x32xf32> -> vector<49x32xf32>
    %c0_25 = arith.constant 0 : index
    %c0_26 = arith.constant 0 : index
    %27 = vector.load %arg11[%c0_25, %c0_26] : memref<1x32xf32, #tpu.memory_space<vmem>>, vector<1x32xf32>
    %c0_27 = arith.constant 0 : index
    %c0_28 = arith.constant 0 : index
    %28 = vector.load %arg12[%c0_27, %c0_28] : memref<1x32xf32, #tpu.memory_space<vmem>>, vector<1x32xf32>
    %c0_29 = arith.constant 0 : index
    %c0_30 = arith.constant 0 : index
    %29 = vector.load %arg10[%c0_29, %c0_30] : memref<32x32xf32, #tpu.memory_space<vmem>>, vector<32x32xf32>
    %cst_31 = arith.constant dense<0.000000e+00> : vector<6x32xf32>
    %30 = tpu.matmul %24, %29, %cst_31 {dimension_numbers = #tpu.dot_dimension_numbers<[1], [0], [0], [1], [0, 0, 1, 1], [], []>} : vector<6x32xf32>, vector<32x32xf32>, vector<6x32xf32> -> vector<6x32xf32>
    %31 = vector.extract_strided_slice %30 {offsets = [0, 0], sizes = [1, 32], strides = [1, 1]} : vector<6x32xf32> to vector<1x32xf32>
    %32 = vector.broadcast %31 : vector<1x32xf32> to vector<49x32xf32>
    %33 = arith.addf %26, %32 : vector<49x32xf32>
    %34 = vector.broadcast %27 : vector<1x32xf32> to vector<49x32xf32>
    %35 = arith.addf %33, %34 : vector<49x32xf32>
    %cst_32 = arith.constant 0.000000e+00 : f32
    %36 = vector.broadcast %cst_32 : f32 to vector<49x32xf32>
    %37 = arith.maximumf %35, %36 : vector<49x32xf32>
    %cst_33 = arith.constant dense<0.000000e+00> : vector<1x49xf32>
    %38 = tpu.matmul %28, %37, %cst_33 {dimension_numbers = #tpu.dot_dimension_numbers<[1], [1], [0], [0], [0, 0, 1, 0], [], []>} : vector<1x32xf32>, vector<49x32xf32>, vector<1x49xf32> -> vector<1x49xf32>
    %39 = vector.extract_strided_slice %30 {offsets = [1, 0], sizes = [1, 32], strides = [1, 1]} : vector<6x32xf32> to vector<1x32xf32>
    %40 = vector.broadcast %39 : vector<1x32xf32> to vector<49x32xf32>
    %41 = arith.addf %26, %40 : vector<49x32xf32>
    %42 = vector.broadcast %27 : vector<1x32xf32> to vector<49x32xf32>
    %43 = arith.addf %41, %42 : vector<49x32xf32>
    %cst_34 = arith.constant 0.000000e+00 : f32
    %44 = vector.broadcast %cst_34 : f32 to vector<49x32xf32>
    %45 = arith.maximumf %43, %44 : vector<49x32xf32>
    %cst_35 = arith.constant dense<0.000000e+00> : vector<1x49xf32>
    %46 = tpu.matmul %28, %45, %cst_35 {dimension_numbers = #tpu.dot_dimension_numbers<[1], [1], [0], [0], [0, 0, 1, 0], [], []>} : vector<1x32xf32>, vector<49x32xf32>, vector<1x49xf32> -> vector<1x49xf32>
    %47 = vector.extract_strided_slice %30 {offsets = [2, 0], sizes = [1, 32], strides = [1, 1]} : vector<6x32xf32> to vector<1x32xf32>
    %48 = vector.broadcast %47 : vector<1x32xf32> to vector<49x32xf32>
    %49 = arith.addf %26, %48 : vector<49x32xf32>
    %50 = vector.broadcast %27 : vector<1x32xf32> to vector<49x32xf32>
    %51 = arith.addf %49, %50 : vector<49x32xf32>
    %cst_36 = arith.constant 0.000000e+00 : f32
    %52 = vector.broadcast %cst_36 : f32 to vector<49x32xf32>
    %53 = arith.maximumf %51, %52 : vector<49x32xf32>
    %cst_37 = arith.constant dense<0.000000e+00> : vector<1x49xf32>
    %54 = tpu.matmul %28, %53, %cst_37 {dimension_numbers = #tpu.dot_dimension_numbers<[1], [1], [0], [0], [0, 0, 1, 0], [], []>} : vector<1x32xf32>, vector<49x32xf32>, vector<1x49xf32> -> vector<1x49xf32>
    %55 = vector.extract_strided_slice %30 {offsets = [3, 0], sizes = [1, 32], strides = [1, 1]} : vector<6x32xf32> to vector<1x32xf32>
    %56 = vector.broadcast %55 : vector<1x32xf32> to vector<49x32xf32>
    %57 = arith.addf %26, %56 : vector<49x32xf32>
    %58 = vector.broadcast %27 : vector<1x32xf32> to vector<49x32xf32>
    %59 = arith.addf %57, %58 : vector<49x32xf32>
    %cst_38 = arith.constant 0.000000e+00 : f32
    %60 = vector.broadcast %cst_38 : f32 to vector<49x32xf32>
    %61 = arith.maximumf %59, %60 : vector<49x32xf32>
    %cst_39 = arith.constant dense<0.000000e+00> : vector<1x49xf32>
    %62 = tpu.matmul %28, %61, %cst_39 {dimension_numbers = #tpu.dot_dimension_numbers<[1], [1], [0], [0], [0, 0, 1, 0], [], []>} : vector<1x32xf32>, vector<49x32xf32>, vector<1x49xf32> -> vector<1x49xf32>
    %63 = vector.extract_strided_slice %30 {offsets = [4, 0], sizes = [1, 32], strides = [1, 1]} : vector<6x32xf32> to vector<1x32xf32>
    %64 = vector.broadcast %63 : vector<1x32xf32> to vector<49x32xf32>
    %65 = arith.addf %26, %64 : vector<49x32xf32>
    %66 = vector.broadcast %27 : vector<1x32xf32> to vector<49x32xf32>
    %67 = arith.addf %65, %66 : vector<49x32xf32>
    %cst_40 = arith.constant 0.000000e+00 : f32
    %68 = vector.broadcast %cst_40 : f32 to vector<49x32xf32>
    %69 = arith.maximumf %67, %68 : vector<49x32xf32>
    %cst_41 = arith.constant dense<0.000000e+00> : vector<1x49xf32>
    %70 = tpu.matmul %28, %69, %cst_41 {dimension_numbers = #tpu.dot_dimension_numbers<[1], [1], [0], [0], [0, 0, 1, 0], [], []>} : vector<1x32xf32>, vector<49x32xf32>, vector<1x49xf32> -> vector<1x49xf32>
    %71 = vector.extract_strided_slice %30 {offsets = [5, 0], sizes = [1, 32], strides = [1, 1]} : vector<6x32xf32> to vector<1x32xf32>
    %72 = vector.broadcast %71 : vector<1x32xf32> to vector<49x32xf32>
    %73 = arith.addf %26, %72 : vector<49x32xf32>
    %74 = vector.broadcast %27 : vector<1x32xf32> to vector<49x32xf32>
    %75 = arith.addf %73, %74 : vector<49x32xf32>
    %cst_42 = arith.constant 0.000000e+00 : f32
    %76 = vector.broadcast %cst_42 : f32 to vector<49x32xf32>
    %77 = arith.maximumf %75, %76 : vector<49x32xf32>
    %cst_43 = arith.constant dense<0.000000e+00> : vector<1x49xf32>
    %78 = tpu.matmul %28, %77, %cst_43 {dimension_numbers = #tpu.dot_dimension_numbers<[1], [1], [0], [0], [0, 0, 1, 0], [], []>} : vector<1x32xf32>, vector<49x32xf32>, vector<1x49xf32> -> vector<1x49xf32>
    %79 = tpu.concatenate %38, %46, %54, %62, %70, %78 in 0 : vector<1x49xf32>, vector<1x49xf32>, vector<1x49xf32>, vector<1x49xf32>, vector<1x49xf32>, vector<1x49xf32> -> vector<6x49xf32>
    %c0_44 = arith.constant 0 : index
    %c0_45 = arith.constant 0 : index
    %80 = vector.load %arg13[%c0_44, %c0_45] : memref<1x1xf32, #tpu.memory_space<vmem>>, vector<1x1xf32>
    %81 = vector.broadcast %80 : vector<1x1xf32> to vector<6x49xf32>
    %82 = arith.addf %79, %81 : vector<6x49xf32>
    %cst_46 = arith.constant dense<0xFF800000> : vector<6xf32>
    %83 = vector.multi_reduction <maximumf>, %82, %cst_46 [1] : vector<6x49xf32> to vector<6xf32>
    %84 = vector.shape_cast %83 : vector<6xf32> to vector<6x1xf32>
    %85 = vector.broadcast %84 : vector<6x1xf32> to vector<6x49xf32>
    %86 = arith.subf %82, %85 : vector<6x49xf32>
    %87 = math.exp %86 : vector<6x49xf32>
    %cst_47 = arith.constant dense<0.000000e+00> : vector<6xf32>
    %88 = vector.multi_reduction <add>, %87, %cst_47 [1] : vector<6x49xf32> to vector<6xf32>
    %89 = vector.shape_cast %88 : vector<6xf32> to vector<6x1xf32>
    %90 = vector.broadcast %89 : vector<6x1xf32> to vector<6x49xf32>
    %91 = arith.divf %87, %90 : vector<6x49xf32>
    %cst_48 = arith.constant dense<0.000000e+00> : vector<6x32xf32>
    %92 = tpu.matmul %91, %15, %cst_48 {dimension_numbers = #tpu.dot_dimension_numbers<[1], [0], [0], [1], [0, 0, 1, 1], [], []>} : vector<6x49xf32>, vector<49x32xf32>, vector<6x32xf32> -> vector<6x32xf32>
    %c0_49 = arith.constant 0 : index
    %c0_50 = arith.constant 0 : index
    %93 = vector.load %arg16[%c0_49, %c0_50] : memref<32x32xf32, #tpu.memory_space<vmem>>, vector<32x32xf32>
    %cst_51 = arith.constant dense<0.000000e+00> : vector<6x32xf32>
    %94 = tpu.matmul %92, %93, %cst_51 {dimension_numbers = #tpu.dot_dimension_numbers<[1], [0], [0], [1], [0, 0, 1, 1], [], []>} : vector<6x32xf32>, vector<32x32xf32>, vector<6x32xf32> -> vector<6x32xf32>
    %c0_52 = arith.constant 0 : index
    %c0_53 = arith.constant 0 : index
    %95 = vector.load %arg17[%c0_52, %c0_53] : memref<1x32xf32, #tpu.memory_space<vmem>>, vector<1x32xf32>
    %96 = vector.broadcast %95 : vector<1x32xf32> to vector<6x32xf32>
    %97 = arith.addf %94, %96 : vector<6x32xf32>
    %cst_54 = arith.constant 0.000000e+00 : f32
    %98 = vector.broadcast %cst_54 : f32 to vector<6x32xf32>
    %99 = arith.maximumf %97, %98 : vector<6x32xf32>
    %c0_55 = arith.constant 0 : index
    %c0_56 = arith.constant 0 : index
    %100 = vector.load %arg14[%c0_55, %c0_56] : memref<32x32xf32, #tpu.memory_space<vmem>>, vector<32x32xf32>
    %cst_57 = arith.constant dense<0.000000e+00> : vector<6x32xf32>
    %101 = tpu.matmul %24, %100, %cst_57 {dimension_numbers = #tpu.dot_dimension_numbers<[1], [0], [0], [1], [0, 0, 1, 1], [], []>} : vector<6x32xf32>, vector<32x32xf32>, vector<6x32xf32> -> vector<6x32xf32>
    %c0_58 = arith.constant 0 : index
    %c0_59 = arith.constant 0 : index
    %102 = vector.load %arg15[%c0_58, %c0_59] : memref<1x32xf32, #tpu.memory_space<vmem>>, vector<1x32xf32>
    %103 = vector.broadcast %102 : vector<1x32xf32> to vector<6x32xf32>
    %104 = arith.addf %101, %103 : vector<6x32xf32>
    %cst_60 = arith.constant 0.000000e+00 : f32
    %105 = vector.broadcast %cst_60 : f32 to vector<6x32xf32>
    %106 = arith.maximumf %104, %105 : vector<6x32xf32>
    %107 = arith.mulf %106, %99 : vector<6x32xf32>
    %cst_61 = arith.constant 0.000000e+00 : f32
    %108 = vector.broadcast %cst_61 : f32 to vector<6x32xf32>
    %109 = arith.maximumf %107, %108 : vector<6x32xf32>
    %110 = math.sqrt %109 : vector<6x32xf32>
    %cst_62 = arith.constant 0.000000e+00 : f32
    %111 = vector.broadcast %cst_62 : f32 to vector<6x32xf32>
    %112 = arith.subf %111, %107 : vector<6x32xf32>
    %cst_63 = arith.constant 0.000000e+00 : f32
    %113 = vector.broadcast %cst_63 : f32 to vector<6x32xf32>
    %114 = arith.maximumf %112, %113 : vector<6x32xf32>
    %115 = math.sqrt %114 : vector<6x32xf32>
    %116 = arith.subf %110, %115 : vector<6x32xf32>
    %117 = arith.mulf %116, %116 : vector<6x32xf32>
    %cst_64 = arith.constant dense<0.000000e+00> : vector<6xf32>
    %118 = vector.multi_reduction <add>, %117, %cst_64 [1] : vector<6x32xf32> to vector<6xf32>
    %119 = vector.shape_cast %118 : vector<6xf32> to vector<6x1xf32>
    %120 = math.sqrt %119 : vector<6x1xf32>
    %cst_65 = arith.constant 9.99999996E-13 : f32
    %121 = vector.broadcast %cst_65 : f32 to vector<6x1xf32>
    %122 = arith.maximumf %120, %121 : vector<6x1xf32>
    %123 = vector.broadcast %122 : vector<6x1xf32> to vector<6x32xf32>
    %124 = arith.divf %116, %123 : vector<6x32xf32>
    %c0_66 = arith.constant 0 : index
    %c0_67 = arith.constant 0 : index
    %125 = vector.load %arg18[%c0_66, %c0_67] : memref<32x96xf32, #tpu.memory_space<vmem>>, vector<32x96xf32>
    %cst_68 = arith.constant dense<0.000000e+00> : vector<6x96xf32>
    %126 = tpu.matmul %124, %125, %cst_68 {dimension_numbers = #tpu.dot_dimension_numbers<[1], [0], [0], [1], [0, 0, 1, 1], [], []>} : vector<6x32xf32>, vector<32x96xf32>, vector<6x96xf32> -> vector<6x96xf32>
    %c0_69 = arith.constant 0 : index
    %c0_70 = arith.constant 0 : index
    %127 = vector.load %arg19[%c0_69, %c0_70] : memref<1x96xf32, #tpu.memory_space<vmem>>, vector<1x96xf32>
    %128 = vector.broadcast %127 : vector<1x96xf32> to vector<6x96xf32>
    %129 = arith.addf %126, %128 : vector<6x96xf32>
    %130 = vector.extract_strided_slice %129 {offsets = [0, 0], sizes = [6, 32], strides = [1, 1]} : vector<6x96xf32> to vector<6x32xf32>
    %131 = vector.extract_strided_slice %129 {offsets = [0, 32], sizes = [6, 32], strides = [1, 1]} : vector<6x96xf32> to vector<6x32xf32>
    %132 = vector.extract_strided_slice %129 {offsets = [0, 64], sizes = [6, 32], strides = [1, 1]} : vector<6x96xf32> to vector<6x32xf32>
    %cst_71 = arith.constant dense<0.000000e+00> : vector<6x6xf32>
    %133 = tpu.matmul %130, %131, %cst_71 {dimension_numbers = #tpu.dot_dimension_numbers<[1], [1], [0], [0], [0, 0, 1, 0], [], []>} : vector<6x32xf32>, vector<6x32xf32>, vector<6x6xf32> -> vector<6x6xf32>
    %cst_72 = arith.constant 0.176776692 : f32
    %134 = vector.broadcast %cst_72 : f32 to vector<6x6xf32>
    %135 = arith.mulf %133, %134 : vector<6x6xf32>
    %136 = tpu.iota {dimensions = array<i32: 0>} : vector<6x6xi32>
    %137 = tpu.iota {dimensions = array<i32: 1>} : vector<6x6xi32>
    %138 = arith.cmpi eq, %136, %137 : vector<6x6xi32>
    %cst_73 = arith.constant -1.000000e+09 : f32
    %139 = vector.broadcast %cst_73 : f32 to vector<6x6xf32>
    %140 = arith.select %138, %139, %135 : vector<6x6xi1>, vector<6x6xf32>
    %cst_74 = arith.constant dense<0xFF800000> : vector<6xf32>
    %141 = vector.multi_reduction <maximumf>, %140, %cst_74 [1] : vector<6x6xf32> to vector<6xf32>
    %142 = vector.shape_cast %141 : vector<6xf32> to vector<6x1xf32>
    %143 = vector.broadcast %142 : vector<6x1xf32> to vector<6x6xf32>
    %144 = arith.subf %140, %143 : vector<6x6xf32>
    %145 = math.exp %144 : vector<6x6xf32>
    %cst_75 = arith.constant dense<0.000000e+00> : vector<6xf32>
    %146 = vector.multi_reduction <add>, %145, %cst_75 [1] : vector<6x6xf32> to vector<6xf32>
    %147 = vector.shape_cast %146 : vector<6xf32> to vector<6x1xf32>
    %148 = vector.broadcast %147 : vector<6x1xf32> to vector<6x6xf32>
    %149 = arith.divf %145, %148 : vector<6x6xf32>
    %cst_76 = arith.constant dense<0.000000e+00> : vector<6x32xf32>
    %150 = tpu.matmul %149, %132, %cst_76 {dimension_numbers = #tpu.dot_dimension_numbers<[1], [0], [0], [1], [0, 0, 1, 1], [], []>} : vector<6x6xf32>, vector<6x32xf32>, vector<6x32xf32> -> vector<6x32xf32>
    %c0_77 = arith.constant 0 : index
    %c0_78 = arith.constant 0 : index
    %151 = vector.load %arg20[%c0_77, %c0_78] : memref<32x32xf32, #tpu.memory_space<vmem>>, vector<32x32xf32>
    %cst_79 = arith.constant dense<0.000000e+00> : vector<6x32xf32>
    %152 = tpu.matmul %150, %151, %cst_79 {dimension_numbers = #tpu.dot_dimension_numbers<[1], [0], [0], [1], [0, 0, 1, 1], [], []>} : vector<6x32xf32>, vector<32x32xf32>, vector<6x32xf32> -> vector<6x32xf32>
    %c0_80 = arith.constant 0 : index
    %c0_81 = arith.constant 0 : index
    %153 = vector.load %arg21[%c0_80, %c0_81] : memref<1x32xf32, #tpu.memory_space<vmem>>, vector<1x32xf32>
    %154 = vector.broadcast %153 : vector<1x32xf32> to vector<6x32xf32>
    %155 = arith.addf %152, %154 : vector<6x32xf32>
    %c0_82 = arith.constant 0 : index
    %c0_83 = arith.constant 0 : index
    %156 = vector.load %arg22[%c0_82, %c0_83] : memref<32x32xf32, #tpu.memory_space<vmem>>, vector<32x32xf32>
    %cst_84 = arith.constant dense<0.000000e+00> : vector<6x32xf32>
    %157 = tpu.matmul %155, %156, %cst_84 {dimension_numbers = #tpu.dot_dimension_numbers<[1], [0], [0], [1], [0, 0, 1, 1], [], []>} : vector<6x32xf32>, vector<32x32xf32>, vector<6x32xf32> -> vector<6x32xf32>
    %c0_85 = arith.constant 0 : index
    %c0_86 = arith.constant 0 : index
    %158 = vector.load %arg23[%c0_85, %c0_86] : memref<32x32xf32, #tpu.memory_space<vmem>>, vector<32x32xf32>
    %cst_87 = arith.constant dense<0.000000e+00> : vector<6x32xf32>
    %159 = tpu.matmul %17, %158, %cst_87 {dimension_numbers = #tpu.dot_dimension_numbers<[1], [0], [0], [1], [0, 0, 1, 1], [], []>} : vector<6x32xf32>, vector<32x32xf32>, vector<6x32xf32> -> vector<6x32xf32>
    %160 = arith.addf %157, %159 : vector<6x32xf32>
    %c0_88 = arith.constant 0 : index
    %c0_89 = arith.constant 0 : index
    %161 = vector.load %arg24[%c0_88, %c0_89] : memref<1x32xf32, #tpu.memory_space<vmem>>, vector<1x32xf32>
    %162 = vector.broadcast %161 : vector<1x32xf32> to vector<6x32xf32>
    %163 = arith.addf %160, %162 : vector<6x32xf32>
    %cst_90 = arith.constant 0.000000e+00 : f32
    %164 = vector.broadcast %cst_90 : f32 to vector<6x32xf32>
    %165 = arith.maximumf %163, %164 : vector<6x32xf32>
    %c0_91 = arith.constant 0 : index
    %c0_92 = arith.constant 0 : index
    %166 = vector.load %arg10[%c0_91, %c0_92] : memref<32x32xf32, #tpu.memory_space<vmem>>, vector<32x32xf32>
    %cst_93 = arith.constant dense<0.000000e+00> : vector<6x32xf32>
    %167 = tpu.matmul %165, %166, %cst_93 {dimension_numbers = #tpu.dot_dimension_numbers<[1], [0], [0], [1], [0, 0, 1, 1], [], []>} : vector<6x32xf32>, vector<32x32xf32>, vector<6x32xf32> -> vector<6x32xf32>
    %168 = vector.extract_strided_slice %167 {offsets = [0, 0], sizes = [1, 32], strides = [1, 1]} : vector<6x32xf32> to vector<1x32xf32>
    %169 = vector.broadcast %168 : vector<1x32xf32> to vector<49x32xf32>
    %170 = arith.addf %26, %169 : vector<49x32xf32>
    %171 = vector.broadcast %27 : vector<1x32xf32> to vector<49x32xf32>
    %172 = arith.addf %170, %171 : vector<49x32xf32>
    %cst_94 = arith.constant 0.000000e+00 : f32
    %173 = vector.broadcast %cst_94 : f32 to vector<49x32xf32>
    %174 = arith.maximumf %172, %173 : vector<49x32xf32>
    %cst_95 = arith.constant dense<0.000000e+00> : vector<1x49xf32>
    %175 = tpu.matmul %28, %174, %cst_95 {dimension_numbers = #tpu.dot_dimension_numbers<[1], [1], [0], [0], [0, 0, 1, 0], [], []>} : vector<1x32xf32>, vector<49x32xf32>, vector<1x49xf32> -> vector<1x49xf32>
    %176 = vector.extract_strided_slice %167 {offsets = [1, 0], sizes = [1, 32], strides = [1, 1]} : vector<6x32xf32> to vector<1x32xf32>
    %177 = vector.broadcast %176 : vector<1x32xf32> to vector<49x32xf32>
    %178 = arith.addf %26, %177 : vector<49x32xf32>
    %179 = vector.broadcast %27 : vector<1x32xf32> to vector<49x32xf32>
    %180 = arith.addf %178, %179 : vector<49x32xf32>
    %cst_96 = arith.constant 0.000000e+00 : f32
    %181 = vector.broadcast %cst_96 : f32 to vector<49x32xf32>
    %182 = arith.maximumf %180, %181 : vector<49x32xf32>
    %cst_97 = arith.constant dense<0.000000e+00> : vector<1x49xf32>
    %183 = tpu.matmul %28, %182, %cst_97 {dimension_numbers = #tpu.dot_dimension_numbers<[1], [1], [0], [0], [0, 0, 1, 0], [], []>} : vector<1x32xf32>, vector<49x32xf32>, vector<1x49xf32> -> vector<1x49xf32>
    %184 = vector.extract_strided_slice %167 {offsets = [2, 0], sizes = [1, 32], strides = [1, 1]} : vector<6x32xf32> to vector<1x32xf32>
    %185 = vector.broadcast %184 : vector<1x32xf32> to vector<49x32xf32>
    %186 = arith.addf %26, %185 : vector<49x32xf32>
    %187 = vector.broadcast %27 : vector<1x32xf32> to vector<49x32xf32>
    %188 = arith.addf %186, %187 : vector<49x32xf32>
    %cst_98 = arith.constant 0.000000e+00 : f32
    %189 = vector.broadcast %cst_98 : f32 to vector<49x32xf32>
    %190 = arith.maximumf %188, %189 : vector<49x32xf32>
    %cst_99 = arith.constant dense<0.000000e+00> : vector<1x49xf32>
    %191 = tpu.matmul %28, %190, %cst_99 {dimension_numbers = #tpu.dot_dimension_numbers<[1], [1], [0], [0], [0, 0, 1, 0], [], []>} : vector<1x32xf32>, vector<49x32xf32>, vector<1x49xf32> -> vector<1x49xf32>
    %192 = vector.extract_strided_slice %167 {offsets = [3, 0], sizes = [1, 32], strides = [1, 1]} : vector<6x32xf32> to vector<1x32xf32>
    %193 = vector.broadcast %192 : vector<1x32xf32> to vector<49x32xf32>
    %194 = arith.addf %26, %193 : vector<49x32xf32>
    %195 = vector.broadcast %27 : vector<1x32xf32> to vector<49x32xf32>
    %196 = arith.addf %194, %195 : vector<49x32xf32>
    %cst_100 = arith.constant 0.000000e+00 : f32
    %197 = vector.broadcast %cst_100 : f32 to vector<49x32xf32>
    %198 = arith.maximumf %196, %197 : vector<49x32xf32>
    %cst_101 = arith.constant dense<0.000000e+00> : vector<1x49xf32>
    %199 = tpu.matmul %28, %198, %cst_101 {dimension_numbers = #tpu.dot_dimension_numbers<[1], [1], [0], [0], [0, 0, 1, 0], [], []>} : vector<1x32xf32>, vector<49x32xf32>, vector<1x49xf32> -> vector<1x49xf32>
    %200 = vector.extract_strided_slice %167 {offsets = [4, 0], sizes = [1, 32], strides = [1, 1]} : vector<6x32xf32> to vector<1x32xf32>
    %201 = vector.broadcast %200 : vector<1x32xf32> to vector<49x32xf32>
    %202 = arith.addf %26, %201 : vector<49x32xf32>
    %203 = vector.broadcast %27 : vector<1x32xf32> to vector<49x32xf32>
    %204 = arith.addf %202, %203 : vector<49x32xf32>
    %cst_102 = arith.constant 0.000000e+00 : f32
    %205 = vector.broadcast %cst_102 : f32 to vector<49x32xf32>
    %206 = arith.maximumf %204, %205 : vector<49x32xf32>
    %cst_103 = arith.constant dense<0.000000e+00> : vector<1x49xf32>
    %207 = tpu.matmul %28, %206, %cst_103 {dimension_numbers = #tpu.dot_dimension_numbers<[1], [1], [0], [0], [0, 0, 1, 0], [], []>} : vector<1x32xf32>, vector<49x32xf32>, vector<1x49xf32> -> vector<1x49xf32>
    %208 = vector.extract_strided_slice %167 {offsets = [5, 0], sizes = [1, 32], strides = [1, 1]} : vector<6x32xf32> to vector<1x32xf32>
    %209 = vector.broadcast %208 : vector<1x32xf32> to vector<49x32xf32>
    %210 = arith.addf %26, %209 : vector<49x32xf32>
    %211 = vector.broadcast %27 : vector<1x32xf32> to vector<49x32xf32>
    %212 = arith.addf %210, %211 : vector<49x32xf32>
    %cst_104 = arith.constant 0.000000e+00 : f32
    %213 = vector.broadcast %cst_104 : f32 to vector<49x32xf32>
    %214 = arith.maximumf %212, %213 : vector<49x32xf32>
    %cst_105 = arith.constant dense<0.000000e+00> : vector<1x49xf32>
    %215 = tpu.matmul %28, %214, %cst_105 {dimension_numbers = #tpu.dot_dimension_numbers<[1], [1], [0], [0], [0, 0, 1, 0], [], []>} : vector<1x32xf32>, vector<49x32xf32>, vector<1x49xf32> -> vector<1x49xf32>
    %216 = tpu.concatenate %175, %183, %191, %199, %207, %215 in 0 : vector<1x49xf32>, vector<1x49xf32>, vector<1x49xf32>, vector<1x49xf32>, vector<1x49xf32>, vector<1x49xf32> -> vector<6x49xf32>
    %c0_106 = arith.constant 0 : index
    %c0_107 = arith.constant 0 : index
    %217 = vector.load %arg13[%c0_106, %c0_107] : memref<1x1xf32, #tpu.memory_space<vmem>>, vector<1x1xf32>
    %218 = vector.broadcast %217 : vector<1x1xf32> to vector<6x49xf32>
    %219 = arith.addf %216, %218 : vector<6x49xf32>
    %cst_108 = arith.constant dense<0xFF800000> : vector<6xf32>
    %220 = vector.multi_reduction <maximumf>, %219, %cst_108 [1] : vector<6x49xf32> to vector<6xf32>
    %221 = vector.shape_cast %220 : vector<6xf32> to vector<6x1xf32>
    %222 = vector.broadcast %221 : vector<6x1xf32> to vector<6x49xf32>
    %223 = arith.subf %219, %222 : vector<6x49xf32>
    %224 = math.exp %223 : vector<6x49xf32>
    %cst_109 = arith.constant dense<0.000000e+00> : vector<6xf32>
    %225 = vector.multi_reduction <add>, %224, %cst_109 [1] : vector<6x49xf32> to vector<6xf32>
    %226 = vector.shape_cast %225 : vector<6xf32> to vector<6x1xf32>
    %227 = vector.broadcast %226 : vector<6x1xf32> to vector<6x49xf32>
    %228 = arith.divf %224, %227 : vector<6x49xf32>
    %cst_110 = arith.constant dense<0.000000e+00> : vector<6x32xf32>
    %229 = tpu.matmul %228, %15, %cst_110 {dimension_numbers = #tpu.dot_dimension_numbers<[1], [0], [0], [1], [0, 0, 1, 1], [], []>} : vector<6x49xf32>, vector<49x32xf32>, vector<6x32xf32> -> vector<6x32xf32>
    %c0_111 = arith.constant 0 : index
    %c0_112 = arith.constant 0 : index
    %230 = vector.load %arg16[%c0_111, %c0_112] : memref<32x32xf32, #tpu.memory_space<vmem>>, vector<32x32xf32>
    %cst_113 = arith.constant dense<0.000000e+00> : vector<6x32xf32>
    %231 = tpu.matmul %229, %230, %cst_113 {dimension_numbers = #tpu.dot_dimension_numbers<[1], [0], [0], [1], [0, 0, 1, 1], [], []>} : vector<6x32xf32>, vector<32x32xf32>, vector<6x32xf32> -> vector<6x32xf32>
    %c0_114 = arith.constant 0 : index
    %c0_115 = arith.constant 0 : index
    %232 = vector.load %arg17[%c0_114, %c0_115] : memref<1x32xf32, #tpu.memory_space<vmem>>, vector<1x32xf32>
    %233 = vector.broadcast %232 : vector<1x32xf32> to vector<6x32xf32>
    %234 = arith.addf %231, %233 : vector<6x32xf32>
    %cst_116 = arith.constant 0.000000e+00 : f32
    %235 = vector.broadcast %cst_116 : f32 to vector<6x32xf32>
    %236 = arith.maximumf %234, %235 : vector<6x32xf32>
    %c0_117 = arith.constant 0 : index
    %c0_118 = arith.constant 0 : index
    %237 = vector.load %arg14[%c0_117, %c0_118] : memref<32x32xf32, #tpu.memory_space<vmem>>, vector<32x32xf32>
    %cst_119 = arith.constant dense<0.000000e+00> : vector<6x32xf32>
    %238 = tpu.matmul %165, %237, %cst_119 {dimension_numbers = #tpu.dot_dimension_numbers<[1], [0], [0], [1], [0, 0, 1, 1], [], []>} : vector<6x32xf32>, vector<32x32xf32>, vector<6x32xf32> -> vector<6x32xf32>
    %c0_120 = arith.constant 0 : index
    %c0_121 = arith.constant 0 : index
    %239 = vector.load %arg15[%c0_120, %c0_121] : memref<1x32xf32, #tpu.memory_space<vmem>>, vector<1x32xf32>
    %240 = vector.broadcast %239 : vector<1x32xf32> to vector<6x32xf32>
    %241 = arith.addf %238, %240 : vector<6x32xf32>
    %cst_122 = arith.constant 0.000000e+00 : f32
    %242 = vector.broadcast %cst_122 : f32 to vector<6x32xf32>
    %243 = arith.maximumf %241, %242 : vector<6x32xf32>
    %244 = arith.mulf %243, %236 : vector<6x32xf32>
    %cst_123 = arith.constant 0.000000e+00 : f32
    %245 = vector.broadcast %cst_123 : f32 to vector<6x32xf32>
    %246 = arith.maximumf %244, %245 : vector<6x32xf32>
    %247 = math.sqrt %246 : vector<6x32xf32>
    %cst_124 = arith.constant 0.000000e+00 : f32
    %248 = vector.broadcast %cst_124 : f32 to vector<6x32xf32>
    %249 = arith.subf %248, %244 : vector<6x32xf32>
    %cst_125 = arith.constant 0.000000e+00 : f32
    %250 = vector.broadcast %cst_125 : f32 to vector<6x32xf32>
    %251 = arith.maximumf %249, %250 : vector<6x32xf32>
    %252 = math.sqrt %251 : vector<6x32xf32>
    %253 = arith.subf %247, %252 : vector<6x32xf32>
    %254 = arith.mulf %253, %253 : vector<6x32xf32>
    %cst_126 = arith.constant dense<0.000000e+00> : vector<6xf32>
    %255 = vector.multi_reduction <add>, %254, %cst_126 [1] : vector<6x32xf32> to vector<6xf32>
    %256 = vector.shape_cast %255 : vector<6xf32> to vector<6x1xf32>
    %257 = math.sqrt %256 : vector<6x1xf32>
    %cst_127 = arith.constant 9.99999996E-13 : f32
    %258 = vector.broadcast %cst_127 : f32 to vector<6x1xf32>
    %259 = arith.maximumf %257, %258 : vector<6x1xf32>
    %260 = vector.broadcast %259 : vector<6x1xf32> to vector<6x32xf32>
    %261 = arith.divf %253, %260 : vector<6x32xf32>
    %c0_128 = arith.constant 0 : index
    %c0_129 = arith.constant 0 : index
    %262 = vector.load %arg25[%c0_128, %c0_129] : memref<32x1xf32, #tpu.memory_space<vmem>>, vector<32x1xf32>
    %cst_130 = arith.constant dense<0.000000e+00> : vector<6x1xf32>
    %263 = tpu.matmul %124, %262, %cst_130 {dimension_numbers = #tpu.dot_dimension_numbers<[1], [0], [0], [1], [0, 0, 1, 1], [], []>} : vector<6x32xf32>, vector<32x1xf32>, vector<6x1xf32> -> vector<6x1xf32>
    %c0_131 = arith.constant 0 : index
    %c0_132 = arith.constant 0 : index
    %264 = vector.load %arg26[%c0_131, %c0_132] : memref<1x32xf32, #tpu.memory_space<vmem>>, vector<1x32xf32>
    %cst_133 = arith.constant dense<0.000000e+00> : vector<1x49xf32>
    %265 = tpu.matmul %264, %15, %cst_133 {dimension_numbers = #tpu.dot_dimension_numbers<[1], [1], [0], [0], [0, 0, 1, 0], [], []>} : vector<1x32xf32>, vector<49x32xf32>, vector<1x49xf32> -> vector<1x49xf32>
    %266 = vector.broadcast %263 : vector<6x1xf32> to vector<6x49xf32>
    %267 = vector.broadcast %265 : vector<1x49xf32> to vector<6x49xf32>
    %268 = arith.addf %266, %267 : vector<6x49xf32>
    %c0_134 = arith.constant 0 : index
    %c0_135 = arith.constant 0 : index
    %269 = vector.load %arg27[%c0_134, %c0_135] : memref<1x1xf32, #tpu.memory_space<vmem>>, vector<1x1xf32>
    %270 = vector.broadcast %269 : vector<1x1xf32> to vector<6x49xf32>
    %271 = arith.addf %268, %270 : vector<6x49xf32>
    %c0_136 = arith.constant 0 : index
    %c0_137 = arith.constant 0 : index
    %272 = vector.load %arg28[%c0_136, %c0_137] : memref<49x36xf32, #tpu.memory_space<vmem>>, vector<49x36xf32>
    %cst_138 = arith.constant dense<0.000000e+00> : vector<6x36xf32>
    %273 = tpu.matmul %271, %272, %cst_138 {dimension_numbers = #tpu.dot_dimension_numbers<[1], [0], [0], [1], [0, 0, 1, 1], [], []>} : vector<6x49xf32>, vector<49x36xf32>, vector<6x36xf32> -> vector<6x36xf32>
    %cst_139 = arith.constant dense<0xFF800000> : vector<6xf32>
    %274 = vector.multi_reduction <maximumf>, %273, %cst_139 [1] : vector<6x36xf32> to vector<6xf32>
    %275 = vector.shape_cast %274 : vector<6xf32> to vector<6x1xf32>
    %276 = tpu.iota {dimensions = array<i32: 1>} : vector<6x36xi32>
    %277 = vector.broadcast %275 : vector<6x1xf32> to vector<6x36xf32>
    %278 = arith.cmpf oge, %273, %277 : vector<6x36xf32>
    %c1000000_i32 = arith.constant 1000000 : i32
    %279 = vector.broadcast %c1000000_i32 : i32 to vector<6x36xi32>
    %280 = arith.select %278, %276, %279 : vector<6x36xi1>, vector<6x36xi32>
    %cst_140 = arith.constant dense<2147483647> : vector<6xi32>
    %281 = vector.multi_reduction <minsi>, %280, %cst_140 [1] : vector<6x36xi32> to vector<6xi32>
    %282 = vector.shape_cast %281 : vector<6xi32> to vector<6x1xi32>
    %283 = arith.sitofp %282 : vector<6x1xi32> to vector<6x1xf32>
    %cst_141 = arith.constant 0.166666672 : f32
    %284 = vector.broadcast %cst_141 : f32 to vector<6x1xf32>
    %285 = arith.mulf %283, %284 : vector<6x1xf32>
    %286 = math.floor %285 : vector<6x1xf32>
    %cst_142 = arith.constant 6.000000e+00 : f32
    %287 = vector.broadcast %cst_142 : f32 to vector<6x1xf32>
    %288 = arith.mulf %286, %287 : vector<6x1xf32>
    %289 = arith.subf %283, %288 : vector<6x1xf32>
    %c0_143 = arith.constant 0 : index
    %c0_144 = arith.constant 0 : index
    %290 = vector.load %arg29[%c0_143, %c0_144] : memref<1x49xf32, #tpu.memory_space<vmem>>, vector<1x49xf32>
    %c0_145 = arith.constant 0 : index
    %c0_146 = arith.constant 0 : index
    %291 = vector.load %arg30[%c0_145, %c0_146] : memref<1x49xf32, #tpu.memory_space<vmem>>, vector<1x49xf32>
    %292 = vector.broadcast %290 : vector<1x49xf32> to vector<6x49xf32>
    %293 = vector.broadcast %286 : vector<6x1xf32> to vector<6x49xf32>
    %294 = arith.cmpf oge, %292, %293 : vector<6x49xf32>
    %cst_147 = arith.constant 1.000000e+00 : f32
    %295 = vector.broadcast %cst_147 : f32 to vector<6x1xf32>
    %296 = arith.addf %286, %295 : vector<6x1xf32>
    %297 = vector.broadcast %290 : vector<1x49xf32> to vector<6x49xf32>
    %298 = vector.broadcast %296 : vector<6x1xf32> to vector<6x49xf32>
    %299 = arith.cmpf ole, %297, %298 : vector<6x49xf32>
    %300 = arith.andi %294, %299 : vector<6x49xi1>
    %301 = vector.broadcast %291 : vector<1x49xf32> to vector<6x49xf32>
    %302 = vector.broadcast %289 : vector<6x1xf32> to vector<6x49xf32>
    %303 = arith.cmpf oge, %301, %302 : vector<6x49xf32>
    %304 = arith.andi %300, %303 : vector<6x49xi1>
    %cst_148 = arith.constant 1.000000e+00 : f32
    %305 = vector.broadcast %cst_148 : f32 to vector<6x1xf32>
    %306 = arith.addf %289, %305 : vector<6x1xf32>
    %307 = vector.broadcast %291 : vector<1x49xf32> to vector<6x49xf32>
    %308 = vector.broadcast %306 : vector<6x1xf32> to vector<6x49xf32>
    %309 = arith.cmpf ole, %307, %308 : vector<6x49xf32>
    %310 = arith.andi %304, %309 : vector<6x49xi1>
    %cst_149 = arith.constant 1.000000e+00 : f32
    %cst_150 = arith.constant 0.000000e+00 : f32
    %311 = vector.broadcast %cst_149 : f32 to vector<6x49xf32>
    %312 = vector.broadcast %cst_150 : f32 to vector<6x49xf32>
    %313 = arith.select %310, %311, %312 : vector<6x49xi1>, vector<6x49xf32>
    %cst_151 = arith.constant dense<0.000000e+00> : vector<49xf32>
    %314 = vector.multi_reduction <add>, %313, %cst_151 [0] : vector<6x49xf32> to vector<49xf32>
    %315 = vector.shape_cast %314 : vector<49xf32> to vector<1x49xf32>
    %316 = vector.broadcast %315 : vector<1x49xf32> to vector<6x49xf32>
    %317 = arith.subf %316, %313 : vector<6x49xf32>
    %cst_152 = arith.constant 0.000000e+00 : f32
    %318 = vector.broadcast %cst_152 : f32 to vector<6x49xf32>
    %319 = arith.cmpf oeq, %317, %318 : vector<6x49xf32>
    %cst_153 = arith.constant 1.000000e+00 : f32
    %cst_154 = arith.constant 0.000000e+00 : f32
    %320 = vector.broadcast %cst_153 : f32 to vector<6x49xf32>
    %321 = vector.broadcast %cst_154 : f32 to vector<6x49xf32>
    %322 = arith.select %319, %320, %321 : vector<6x49xi1>, vector<6x49xf32>
    %323 = vector.shape_cast %15 : vector<49x32xf32> to vector<1x49x32xf32>
    %c0_155 = arith.constant 0 : index
    %c0_156 = arith.constant 0 : index
    %c0_157 = arith.constant 0 : index
    %324 = vector.load %arg31[%c0_155, %c0_156, %c0_157] : memref<32x49x32xf32, #tpu.memory_space<vmem>>, vector<32x49x32xf32>
    %325 = vector.broadcast %323 : vector<1x49x32xf32> to vector<32x49x32xf32>
    %326 = arith.mulf %325, %324 : vector<32x49x32xf32>
    %cst_158 = arith.constant dense<0.000000e+00> : vector<32x49xf32>
    %327 = vector.multi_reduction <add>, %326, %cst_158 [2] : vector<32x49x32xf32> to vector<32x49xf32>
    %cst_159 = arith.constant dense<0.000000e+00> : vector<6x32xf32>
    %328 = tpu.matmul %322, %327, %cst_159 {dimension_numbers = #tpu.dot_dimension_numbers<[1], [1], [0], [0], [0, 0, 1, 0], [], []>} : vector<6x49xf32>, vector<32x49xf32>, vector<6x32xf32> -> vector<6x32xf32>
    %c0_160 = arith.constant 0 : index
    %c0_161 = arith.constant 0 : index
    %329 = vector.load %arg32[%c0_160, %c0_161] : memref<1x32xf32, #tpu.memory_space<vmem>>, vector<1x32xf32>
    %330 = vector.broadcast %329 : vector<1x32xf32> to vector<6x32xf32>
    %331 = arith.addf %328, %330 : vector<6x32xf32>
    %332 = arith.addf %261, %331 : vector<6x32xf32>
    %333 = arith.mulf %106, %243 : vector<6x32xf32>
    %334 = arith.negf %333 : vector<6x32xf32>
    %335 = math.exp %334 : vector<6x32xf32>
    %cst_162 = arith.constant 1.000000e+00 : f32
    %336 = vector.broadcast %cst_162 : f32 to vector<6x32xf32>
    %337 = arith.addf %336, %335 : vector<6x32xf32>
    %338 = arith.divf %336, %337 : vector<6x32xf32>
    %339 = arith.mulf %338, %124 : vector<6x32xf32>
    %cst_163 = arith.constant 1.000000e+00 : f32
    %340 = vector.broadcast %cst_163 : f32 to vector<6x32xf32>
    %341 = arith.subf %340, %338 : vector<6x32xf32>
    %342 = arith.mulf %341, %332 : vector<6x32xf32>
    %343 = arith.addf %339, %342 : vector<6x32xf32>
    %c0_164 = arith.constant 0 : index
    %c0_165 = arith.constant 0 : index
    %344 = vector.load %arg33[%c0_164, %c0_165] : memref<32x64xf32, #tpu.memory_space<vmem>>, vector<32x64xf32>
    %cst_166 = arith.constant dense<0.000000e+00> : vector<6x64xf32>
    %345 = tpu.matmul %343, %344, %cst_166 {dimension_numbers = #tpu.dot_dimension_numbers<[1], [0], [0], [1], [0, 0, 1, 1], [], []>} : vector<6x32xf32>, vector<32x64xf32>, vector<6x64xf32> -> vector<6x64xf32>
    %c0_167 = arith.constant 0 : index
    %c0_168 = arith.constant 0 : index
    %346 = vector.load %arg34[%c0_167, %c0_168] : memref<1x64xf32, #tpu.memory_space<vmem>>, vector<1x64xf32>
    %347 = vector.broadcast %346 : vector<1x64xf32> to vector<6x64xf32>
    %348 = arith.addf %345, %347 : vector<6x64xf32>
    %cst_169 = arith.constant 0.000000e+00 : f32
    %349 = vector.broadcast %cst_169 : f32 to vector<6x64xf32>
    %350 = arith.maximumf %348, %349 : vector<6x64xf32>
    %c0_170 = arith.constant 0 : index
    %c0_171 = arith.constant 0 : index
    %351 = vector.load %arg35[%c0_170, %c0_171] : memref<64x24xf32, #tpu.memory_space<vmem>>, vector<64x24xf32>
    %cst_172 = arith.constant dense<0.000000e+00> : vector<6x24xf32>
    %352 = tpu.matmul %350, %351, %cst_172 {dimension_numbers = #tpu.dot_dimension_numbers<[1], [0], [0], [1], [0, 0, 1, 1], [], []>} : vector<6x64xf32>, vector<64x24xf32>, vector<6x24xf32> -> vector<6x24xf32>
    %c0_173 = arith.constant 0 : index
    %c0_174 = arith.constant 0 : index
    %353 = vector.load %arg36[%c0_173, %c0_174] : memref<1x24xf32, #tpu.memory_space<vmem>>, vector<1x24xf32>
    %354 = vector.broadcast %353 : vector<1x24xf32> to vector<6x24xf32>
    %355 = arith.addf %352, %354 : vector<6x24xf32>
    %c0_175 = arith.constant 0 : index
    %c0_176 = arith.constant 0 : index
    %c0_177 = arith.constant 0 : index
    %356 = vector.load %arg37[%c0_175, %c0_176, %c0_177] : memref<1x6x24xf32, #tpu.memory_space<vmem>>, vector<1x6x24xf32>
    %357 = vector.shape_cast %356 : vector<1x6x24xf32> to vector<6x24xf32>
    %358 = vector.shape_cast %355 : vector<6x24xf32> to vector<1x6x24xf32>
    tpu.vector_store %arg37[%c0_175, %c0_176, %c0_177], %358 {strides = array<i32>} : memref<1x6x24xf32, #tpu.memory_space<vmem>>, vector<1x6x24xf32>,
    return
  }
  func.func @transform_0(%arg0: i32) -> (i32, i32, i32) {
    %c0_i32 = arith.constant 0 : i32
    %c0_i32_0 = arith.constant 0 : i32
    %c0_i32_1 = arith.constant 0 : i32
    return %arg0, %c0_i32, %c0_i32_0 : i32, i32, i32
  }
  func.func @transform_1(%arg0: i32) -> (i32, i32, i32) {
    %c0_i32 = arith.constant 0 : i32
    %c0_i32_0 = arith.constant 0 : i32
    %c0_i32_1 = arith.constant 0 : i32
    return %arg0, %c0_i32, %c0_i32_0 : i32, i32, i32
  }
  func.func @transform_2(%arg0: i32) -> (i32, i32) {
    %c0_i32 = arith.constant 0 : i32
    %c0_i32_0 = arith.constant 0 : i32
    %c0_i32_1 = arith.constant 0 : i32
    return %c0_i32, %c0_i32_0 : i32, i32
  }
  func.func @transform_3(%arg0: i32) -> (i32, i32) {
    %c0_i32 = arith.constant 0 : i32
    %c0_i32_0 = arith.constant 0 : i32
    %c0_i32_1 = arith.constant 0 : i32
    return %c0_i32, %c0_i32_0 : i32, i32
  }
  func.func @transform_4(%arg0: i32) -> (i32, i32) {
    %c0_i32 = arith.constant 0 : i32
    %c0_i32_0 = arith.constant 0 : i32
    %c0_i32_1 = arith.constant 0 : i32
    return %c0_i32, %c0_i32_0 : i32, i32
  }
  func.func @transform_5(%arg0: i32) -> (i32, i32) {
    %c0_i32 = arith.constant 0 : i32
    %c0_i32_0 = arith.constant 0 : i32
    %c0_i32_1 = arith.constant 0 : i32
    return %c0_i32, %c0_i32_0 : i32, i32
  }
  func.func @transform_6(%arg0: i32) -> (i32, i32) {
    %c0_i32 = arith.constant 0 : i32
    %c0_i32_0 = arith.constant 0 : i32
    %c0_i32_1 = arith.constant 0 : i32
    return %c0_i32, %c0_i32_0 : i32, i32
  }
  func.func @transform_7(%arg0: i32) -> (i32, i32) {
    %c0_i32 = arith.constant 0 : i32
    %c0_i32_0 = arith.constant 0 : i32
    %c0_i32_1 = arith.constant 0 : i32
    return %c0_i32, %c0_i32_0 : i32, i32
  }
  func.func @transform_8(%arg0: i32) -> (i32, i32) {
    %c0_i32 = arith.constant 0 : i32
    %c0_i32_0 = arith.constant 0 : i32
    %c0_i32_1 = arith.constant 0 : i32
    return %c0_i32, %c0_i32_0 : i32, i32
  }
  func.func @transform_9(%arg0: i32) -> (i32, i32) {
    %c0_i32 = arith.constant 0 : i32
    %c0_i32_0 = arith.constant 0 : i32
    %c0_i32_1 = arith.constant 0 : i32
    return %c0_i32, %c0_i32_0 : i32, i32
  }
  func.func @transform_10(%arg0: i32) -> (i32, i32) {
    %c0_i32 = arith.constant 0 : i32
    %c0_i32_0 = arith.constant 0 : i32
    %c0_i32_1 = arith.constant 0 : i32
    return %c0_i32, %c0_i32_0 : i32, i32
  }
  func.func @transform_11(%arg0: i32) -> (i32, i32) {
    %c0_i32 = arith.constant 0 : i32
    %c0_i32_0 = arith.constant 0 : i32
    %c0_i32_1 = arith.constant 0 : i32
    return %c0_i32, %c0_i32_0 : i32, i32
  }
  func.func @transform_12(%arg0: i32) -> (i32, i32) {
    %c0_i32 = arith.constant 0 : i32
    %c0_i32_0 = arith.constant 0 : i32
    %c0_i32_1 = arith.constant 0 : i32
    return %c0_i32, %c0_i32_0 : i32, i32
  }
  func.func @transform_13(%arg0: i32) -> (i32, i32) {
    %c0_i32 = arith.constant 0 : i32
    %c0_i32_0 = arith.constant 0 : i32
    %c0_i32_1 = arith.constant 0 : i32
    return %c0_i32, %c0_i32_0 : i32, i32
  }
  func.func @transform_14(%arg0: i32) -> (i32, i32) {
    %c0_i32 = arith.constant 0 : i32
    %c0_i32_0 = arith.constant 0 : i32
    %c0_i32_1 = arith.constant 0 : i32
    return %c0_i32, %c0_i32_0 : i32, i32
  }
  func.func @transform_15(%arg0: i32) -> (i32, i32) {
    %c0_i32 = arith.constant 0 : i32
    %c0_i32_0 = arith.constant 0 : i32
    %c0_i32_1 = arith.constant 0 : i32
    return %c0_i32, %c0_i32_0 : i32, i32
  }
  func.func @transform_16(%arg0: i32) -> (i32, i32) {
    %c0_i32 = arith.constant 0 : i32
    %c0_i32_0 = arith.constant 0 : i32
    %c0_i32_1 = arith.constant 0 : i32
    return %c0_i32, %c0_i32_0 : i32, i32
  }
  func.func @transform_17(%arg0: i32) -> (i32, i32) {
    %c0_i32 = arith.constant 0 : i32
    %c0_i32_0 = arith.constant 0 : i32
    %c0_i32_1 = arith.constant 0 : i32
    return %c0_i32, %c0_i32_0 : i32, i32
  }
  func.func @transform_18(%arg0: i32) -> (i32, i32) {
    %c0_i32 = arith.constant 0 : i32
    %c0_i32_0 = arith.constant 0 : i32
    %c0_i32_1 = arith.constant 0 : i32
    return %c0_i32, %c0_i32_0 : i32, i32
  }
  func.func @transform_19(%arg0: i32) -> (i32, i32) {
    %c0_i32 = arith.constant 0 : i32
    %c0_i32_0 = arith.constant 0 : i32
    %c0_i32_1 = arith.constant 0 : i32
    return %c0_i32, %c0_i32_0 : i32, i32
  }
  func.func @transform_20(%arg0: i32) -> (i32, i32) {
    %c0_i32 = arith.constant 0 : i32
    %c0_i32_0 = arith.constant 0 : i32
    %c0_i32_1 = arith.constant 0 : i32
    return %c0_i32, %c0_i32_0 : i32, i32
  }
  func.func @transform_21(%arg0: i32) -> (i32, i32) {
    %c0_i32 = arith.constant 0 : i32
    %c0_i32_0 = arith.constant 0 : i32
    %c0_i32_1 = arith.constant 0 : i32
    return %c0_i32, %c0_i32_0 : i32, i32
  }
  func.func @transform_22(%arg0: i32) -> (i32, i32) {
    %c0_i32 = arith.constant 0 : i32
    %c0_i32_0 = arith.constant 0 : i32
    %c0_i32_1 = arith.constant 0 : i32
    return %c0_i32, %c0_i32_0 : i32, i32
  }
  func.func @transform_23(%arg0: i32) -> (i32, i32) {
    %c0_i32 = arith.constant 0 : i32
    %c0_i32_0 = arith.constant 0 : i32
    %c0_i32_1 = arith.constant 0 : i32
    return %c0_i32, %c0_i32_0 : i32, i32
  }
  func.func @transform_24(%arg0: i32) -> (i32, i32) {
    %c0_i32 = arith.constant 0 : i32
    %c0_i32_0 = arith.constant 0 : i32
    %c0_i32_1 = arith.constant 0 : i32
    return %c0_i32, %c0_i32_0 : i32, i32
  }
  func.func @transform_25(%arg0: i32) -> (i32, i32) {
    %c0_i32 = arith.constant 0 : i32
    %c0_i32_0 = arith.constant 0 : i32
    %c0_i32_1 = arith.constant 0 : i32
    return %c0_i32, %c0_i32_0 : i32, i32
  }
  func.func @transform_26(%arg0: i32) -> (i32, i32) {
    %c0_i32 = arith.constant 0 : i32
    %c0_i32_0 = arith.constant 0 : i32
    %c0_i32_1 = arith.constant 0 : i32
    return %c0_i32, %c0_i32_0 : i32, i32
  }
  func.func @transform_27(%arg0: i32) -> (i32, i32) {
    %c0_i32 = arith.constant 0 : i32
    %c0_i32_0 = arith.constant 0 : i32
    %c0_i32_1 = arith.constant 0 : i32
    return %c0_i32, %c0_i32_0 : i32, i32
  }
  func.func @transform_28(%arg0: i32) -> (i32, i32) {
    %c0_i32 = arith.constant 0 : i32
    %c0_i32_0 = arith.constant 0 : i32
    %c0_i32_1 = arith.constant 0 : i32
    return %c0_i32, %c0_i32_0 : i32, i32
  }
  func.func @transform_29(%arg0: i32) -> (i32, i32) {
    %c0_i32 = arith.constant 0 : i32
    %c0_i32_0 = arith.constant 0 : i32
    %c0_i32_1 = arith.constant 0 : i32
    return %c0_i32, %c0_i32_0 : i32, i32
  }
  func.func @transform_30(%arg0: i32) -> (i32, i32, i32) {
    %c0_i32 = arith.constant 0 : i32
    %c0_i32_0 = arith.constant 0 : i32
    %c0_i32_1 = arith.constant 0 : i32
    %c0_i32_2 = arith.constant 0 : i32
    return %c0_i32, %c0_i32_0, %c0_i32_1 : i32, i32, i32
  }
  func.func @transform_31(%arg0: i32) -> (i32, i32) {
    %c0_i32 = arith.constant 0 : i32
    %c0_i32_0 = arith.constant 0 : i32
    %c0_i32_1 = arith.constant 0 : i32
    return %c0_i32, %c0_i32_0 : i32, i32
  }
  func.func @transform_32(%arg0: i32) -> (i32, i32) {
    %c0_i32 = arith.constant 0 : i32
    %c0_i32_0 = arith.constant 0 : i32
    %c0_i32_1 = arith.constant 0 : i32
    return %c0_i32, %c0_i32_0 : i32, i32
  }
  func.func @transform_33(%arg0: i32) -> (i32, i32) {
    %c0_i32 = arith.constant 0 : i32
    %c0_i32_0 = arith.constant 0 : i32
    %c0_i32_1 = arith.constant 0 : i32
    return %c0_i32, %c0_i32_0 : i32, i32
  }
  func.func @transform_34(%arg0: i32) -> (i32, i32) {
    %c0_i32 = arith.constant 0 : i32
    %c0_i32_0 = arith.constant 0 : i32
    %c0_i32_1 = arith.constant 0 : i32
    return %c0_i32, %c0_i32_0 : i32, i32
  }
  func.func @transform_35(%arg0: i32) -> (i32, i32) {
    %c0_i32 = arith.constant 0 : i32
    %c0_i32_0 = arith.constant 0 : i32
    %c0_i32_1 = arith.constant 0 : i32
    return %c0_i32, %c0_i32_0 : i32, i32
  }
  func.func @transform_36(%arg0: i32) -> (i32, i32, i32) {
    %c0_i32 = arith.constant 0 : i32
    %c0_i32_0 = arith.constant 0 : i32
    %c0_i32_1 = arith.constant 0 : i32
    return %arg0, %c0_i32, %c0_i32_0 : i32, i32, i32
  }
}

</mosaic_0001>

<llo_original>
// kernel: forward.1
$region0: #{forward.1}
  #allocation0 [shape = 'u32[]', space=smem, size = 0x4, offset = 0x4, fixed_abs, tag = 'smem constant byte address 0x4 - core index']
  #allocation1 [shape = 'u32[144,128]{1,0:T(1,128)}', space=vmem, size = 0x12000, scoped, tag = 'internal scratch']
  #allocation2 [shape = 'f32[1,1]{1,0:T(1,128)S(1)}', space=vmem, size = 0x200, scoped, tag = 'scoped memory for forward.1']
  #allocation3 [shape = 'f32[1,1]{1,0:T(1,128)S(1)}', space=vmem, size = 0x200, scoped, tag = 'scoped memory for forward.1']
  %s0 = inlined_call_operand.smem [shape: u32[37], index: -1, kind: input, shape index: {}]
  %s1 = sld [smem:[%s0]]
  %s2 = scalar_lea.smem %s0, 1
  %s3 = sld [smem:[%s2]]
  %s4 = scalar_lea.smem %s0, 2
  %s5 = sld [smem:[%s4]]
  %s6 = scalar_lea.smem %s0, 3
  %s7 = sld [smem:[%s6]]
  %s8 = scalar_lea.smem %s0, 4
  %s9 = sld [smem:[%s8]]
  %s10 = scalar_lea.smem %s0, 5
  %s11 = sld [smem:[%s10]]
  %s12 = scalar_lea.smem %s0, 6
  %s13 = sld [smem:[%s12]]
  %s14 = scalar_lea.smem %s0, 7
  %s15 = sld [smem:[%s14]]
  %s16 = scalar_lea.smem %s0, 8
  %s17 = sld [smem:[%s16]]
  %s18 = scalar_lea.smem %s0, 9
  %s19 = sld [smem:[%s18]]
  %s20 = scalar_lea.smem %s0, 10
  %s21 = sld [smem:[%s20]]
  %s22 = scalar_lea.smem %s0, 11
  %s23 = sld [smem:[%s22]]
  %s24 = scalar_lea.smem %s0, 12
  %s25 = sld [smem:[%s24]]
  %s26 = scalar_lea.smem %s0, 13
  %s27 = sld [smem:[%s26]]
  %s28 = scalar_lea.smem %s0, 14
  %s29 = sld [smem:[%s28]]
  %s30 = scalar_lea.smem %s0, 15
  %s31 = sld [smem:[%s30]]
  %s32 = scalar_lea.smem %s0, 16
  %s33 = sld [smem:[%s32]]
  %s34 = scalar_lea.smem %s0, 17
  %s35 = sld [smem:[%s34]]
  %s36 = scalar_lea.smem %s0, 18
  %s37 = sld [smem:[%s36]]
  %s38 = scalar_lea.smem %s0, 19
  %s39 = sld [smem:[%s38]]
  %s40 = scalar_lea.smem %s0, 20
  %s41 = sld [smem:[%s40]]
  %s42 = scalar_lea.smem %s0, 21
  %s43 = sld [smem:[%s42]]
  %s44 = scalar_lea.smem %s0, 22
  %s45 = sld [smem:[%s44]]
  %s46 = scalar_lea.smem %s0, 23
  %s47 = sld [smem:[%s46]]
  %s48 = scalar_lea.smem %s0, 24
  %s49 = sld [smem:[%s48]]
  %s50 = scalar_lea.smem %s0, 25
  %s51 = sld [smem:[%s50]]
  %s52 = scalar_lea.smem %s0, 26
  %s53 = sld [smem:[%s52]]
  %s54 = scalar_lea.smem %s0, 27
  %s55 = sld [smem:[%s54]]
  %s56 = scalar_lea.smem %s0, 28
  %s57 = sld [smem:[%s56]]
  %s58 = scalar_lea.smem %s0, 29
  %s59 = sld [smem:[%s58]]
  %s60 = scalar_lea.smem %s0, 30
  %s61 = sld [smem:[%s60]]
  %s62 = scalar_lea.smem %s0, 31
  %s63 = sld [smem:[%s62]]
  %s64 = scalar_lea.smem %s0, 32
  %s65 = sld [smem:[%s64]]
  %s66 = scalar_lea.smem %s0, 33
  %s67 = sld [smem:[%s66]]
  %s68 = scalar_lea.smem %s0, 34
  %s69 = sld [smem:[%s68]]
  %s70 = scalar_lea.smem %s0, 35
  %s71 = sld [smem:[%s70]]
  %s72 = scalar_lea.smem %s0, 36
  %s73 = sld [smem:[%s72]]
  %s74 = sld [smem:[#allocation0]]
  $region177: #{forward.1} parent=0
    _
  %s76 = ssub.s32 1, %s74
  %s77 = scalar_select 0, %s76, %s74
  %v78 = vstv %s25
  %79 = vst [vmem:[#allocation2] sm:$0x1] %v78
  %v80 = vstv %s53
  %81 = vst [vmem:[#allocation3] sm:$0x1] %v80
  loop: start=0, step=1, limit=4
  $region2: #{forward.1} parent=0 // loop_pre_header
    _
  $region3: #{forward.1} parent=0 // loop_header
    %s83 = sphi 0, %s87
    %p84 = scmp.ge.s32.totalorder %s83, 4
    %s93 = sphi 0, %s95
    %s96 = sphi 0, %s93
    %s97 = sphi 0, %s96
    %s113 = sphi 0, %s97
    %s119 = sphi 0, %s121
    %s122 = sphi 0, %s119
    %s123 = sphi 0, %s122
    %s139 = sphi 0, %s123
    %s143 = sphi 0, %s143
    %s145 = sphi 0, %s143
    %s146 = sphi 0, %s145
    %s160 = sphi 0, %s146
    %s164 = sphi 0, %s164
    %s166 = sphi 0, %s164
    %s167 = sphi 0, %s166
    %s181 = sphi 0, %s167
    %s185 = sphi 0, %s185
    %s187 = sphi 0, %s185
    %s188 = sphi 0, %s187
    %s202 = sphi 0, %s188
    %s206 = sphi 0, %s206
    %s208 = sphi 0, %s206
    %s209 = sphi 0, %s208
    %s223 = sphi 0, %s209
    %s227 = sphi 0, %s227
    %s229 = sphi 0, %s227
    %s230 = sphi 0, %s229
    %s244 = sphi 0, %s230
    %s248 = sphi 0, %s248
    %s250 = sphi 0, %s248
    %s251 = sphi 0, %s250
    %s265 = sphi 0, %s251
    %s269 = sphi 0, %s269
    %s271 = sphi 0, %s269
    %s272 = sphi 0, %s271
    %s286 = sphi 0, %s272
    %s290 = sphi 0, %s290
    %s292 = sphi 0, %s290
    %s293 = sphi 0, %s292
    %s307 = sphi 0, %s293
    %s311 = sphi 0, %s311
    %s313 = sphi 0, %s311
    %s314 = sphi 0, %s313
    %s328 = sphi 0, %s314
    %s332 = sphi 0, %s332
    %s334 = sphi 0, %s332
    %s335 = sphi 0, %s334
    %s349 = sphi 0, %s335
    %s353 = sphi 0, %s353
    %s355 = sphi 0, %s353
    %s356 = sphi 0, %s355
    %s370 = sphi 0, %s356
    %s374 = sphi 0, %s374
    %s376 = sphi 0, %s374
    %s377 = sphi 0, %s376
    %s391 = sphi 0, %s377
    %s395 = sphi 0, %s395
    %s397 = sphi 0, %s395
    %s398 = sphi 0, %s397
    %s412 = sphi 0, %s398
    %s416 = sphi 0, %s416
    %s418 = sphi 0, %s416
    %s419 = sphi 0, %s418
    %s433 = sphi 0, %s419
    %s437 = sphi 0, %s437
    %s439 = sphi 0, %s437
    %s440 = sphi 0, %s439
    %s454 = sphi 0, %s440
    %s458 = sphi 0, %s458
    %s460 = sphi 0, %s458
    %s461 = sphi 0, %s460
    %s475 = sphi 0, %s461
    %s479 = sphi 0, %s479
    %s481 = sphi 0, %s479
    %s482 = sphi 0, %s481
    %s496 = sphi 0, %s482
    %s500 = sphi 0, %s500
    %s502 = sphi 0, %s500
    %s503 = sphi 0, %s502
    %s517 = sphi 0, %s503
    %s521 = sphi 0, %s521
    %s523 = sphi 0, %s521
    %s524 = sphi 0, %s523
    %s538 = sphi 0, %s524
    %s542 = sphi 0, %s542
    %s544 = sphi 0, %s542
    %s545 = sphi 0, %s544
    %s559 = sphi 0, %s545
    %s563 = sphi 0, %s563
    %s565 = sphi 0, %s563
    %s566 = sphi 0, %s565
    %s580 = sphi 0, %s566
    %s584 = sphi 0, %s584
    %s586 = sphi 0, %s584
    %s587 = sphi 0, %s586
    %s601 = sphi 0, %s587
    %s605 = sphi 0, %s605
    %s607 = sphi 0, %s605
    %s608 = sphi 0, %s607
    %s622 = sphi 0, %s608
    %s626 = sphi 0, %s626
    %s628 = sphi 0, %s626
    %s629 = sphi 0, %s628
    %s643 = sphi 0, %s629
    %s647 = sphi 0, %s647
    %s649 = sphi 0, %s647
    %s650 = sphi 0, %s649
    %s664 = sphi 0, %s650
    %s668 = sphi 0, %s668
    %s670 = sphi 0, %s668
    %s671 = sphi 0, %s670
    %s685 = sphi 0, %s671
    %s689 = sphi 0, %s689
    %s691 = sphi 0, %s689
    %s692 = sphi 0, %s691
    %s706 = sphi 0, %s692
    %s710 = sphi 0, %s710
    %s712 = sphi 0, %s710
    %s713 = sphi 0, %s712
    %s727 = sphi 0, %s713
    %s731 = sphi 0, %s731
    %s733 = sphi 0, %s731
    %s734 = sphi 0, %s733
    %s748 = sphi 0, %s734
    %s752 = sphi 0, %s752
    %s754 = sphi 0, %s752
    %s755 = sphi 0, %s754
    %s769 = sphi 0, %s755
    %s773 = sphi 0, %s773
    %s775 = sphi 0, %s773
    %s776 = sphi 0, %s775
    %s790 = sphi 0, %s776
    %s794 = sphi 0, %s794
    %s796 = sphi 0, %s794
    %s797 = sphi 0, %s796
    %s811 = sphi 0, %s797
    %s815 = sphi 0, %s815
    %s817 = sphi 0, %s815
    %s818 = sphi 0, %s817
    %s832 = sphi 0, %s818
    %s836 = sphi 0, %s836
    %s838 = sphi 0, %s836
    %s839 = sphi 0, %s838
    %s853 = sphi 0, %s839
    %s859 = sphi 0, %s861
    %s862 = sphi 0, %s859
    %s863 = sphi 0, %s862
    %s879 = sphi 0, %s863
  $region4: #{forward.1} parent=0 // loop_header_branch
    %86 = sbr.rel (%p84) target = $region8
  $region5: #{forward.1} parent=0 // loop_body
    %s88 = ssub.s32 %s83, 1
    %s89 = ssub.s32 %s83, 2
    %s90 = sadd.s32 %s83, 1
    %s91 = ssub.s32 %s83, %s90
    %p92 = scmp.eq.s32.totalorder %s91, 0
    %s94 = sadd.s32 %s93, 1
    %s95 = scalar_select %p92, %s93, %s94
    %p98 = pneg %p92
    %p99 = scmp.eq.s32.totalorder %s83, 1
    %p100 = por %p98, %p99
    %p101 = scmp.ne.s32.totalorder %s93, %s96
    %p102 = scmp.eq.s32.totalorder %s83, 0
    %p103 = por %p101, %p102
    %p104 = scmp.ne.s32.totalorder %s93, %s96
    %p105 = scmp.eq.s32.totalorder %s88, 1
    %p106 = por %p104, %p105
    %p107 = scmp.ne.s32.totalorder %s96, %s97
    %p108 = scmp.eq.s32.totalorder %s88, 0
    %p109 = por %p107, %p108
    %p110 = scmp.ne.s32.totalorder %s96, %s97
    %p111 = scmp.eq.s32.totalorder %s89, 1
    %p112 = por %p110, %p111
    %p114 = scmp.ne.s32.totalorder %s97, %s113
    %p115 = scmp.eq.s32.totalorder %s89, 0
    %p116 = por %p114, %p115
    %s117 = ssub.s32 %s83, %s90
    %p118 = scmp.eq.s32.totalorder %s117, 0
    %s120 = sadd.s32 %s119, 1
    %s121 = scalar_select %p118, %s119, %s120
    %p124 = pneg %p118
    %p125 = scmp.eq.s32.totalorder %s83, 1
    %p126 = por %p124, %p125
    %p127 = scmp.ne.s32.totalorder %s119, %s122
    %p128 = scmp.eq.s32.totalorder %s83, 0
    %p129 = por %p127, %p128
    %p130 = scmp.ne.s32.totalorder %s119, %s122
    %p131 = scmp.eq.s32.totalorder %s88, 1
    %p132 = por %p130, %p131
    %p133 = scmp.ne.s32.totalorder %s122, %s123
    %p134 = scmp.eq.s32.totalorder %s88, 0
    %p135 = por %p133, %p134
    %p136 = scmp.ne.s32.totalorder %s122, %s123
    %p137 = scmp.eq.s32.totalorder %s89, 1
    %p138 = por %p136, %p137
    %p140 = scmp.ne.s32.totalorder %s123, %s139
    %p141 = scmp.eq.s32.totalorder %s89, 0
    %p142 = por %p140, %p141
    %s144 = sadd.s32 %s143, 1
    %p147 = scmp.eq.s32.totalorder %s83, 1
    %p148 = scmp.ne.s32.totalorder %s143, %s145
    %p149 = scmp.eq.s32.totalorder %s83, 0
    %p150 = por %p148, %p149
    %p151 = scmp.ne.s32.totalorder %s143, %s145
    %p152 = scmp.eq.s32.totalorder %s88, 1
    %p153 = por %p151, %p152
    %p154 = scmp.ne.s32.totalorder %s145, %s146
    %p155 = scmp.eq.s32.totalorder %s88, 0
    %p156 = por %p154, %p155
    %p157 = scmp.ne.s32.totalorder %s145, %s146
    %p158 = scmp.eq.s32.totalorder %s89, 1
    %p159 = por %p157, %p158
    %p161 = scmp.ne.s32.totalorder %s146, %s160
    %p162 = scmp.eq.s32.totalorder %s89, 0
    %p163 = por %p161, %p162
    %s165 = sadd.s32 %s164, 1
    %p168 = scmp.eq.s32.totalorder %s83, 1
    %p169 = scmp.ne.s32.totalorder %s164, %s166
    %p170 = scmp.eq.s32.totalorder %s83, 0
    %p171 = por %p169, %p170
    %p172 = scmp.ne.s32.totalorder %s164, %s166
    %p173 = scmp.eq.s32.totalorder %s88, 1
    %p174 = por %p172, %p173
    %p175 = scmp.ne.s32.totalorder %s166, %s167
    %p176 = scmp.eq.s32.totalorder %s88, 0
    %p177 = por %p175, %p176
    %p178 = scmp.ne.s32.totalorder %s166, %s167
    %p179 = scmp.eq.s32.totalorder %s89, 1
    %p180 = por %p178, %p179
    %p182 = scmp.ne.s32.totalorder %s167, %s181
    %p183 = scmp.eq.s32.totalorder %s89, 0
    %p184 = por %p182, %p183
    %s186 = sadd.s32 %s185, 1
    %p189 = scmp.eq.s32.totalorder %s83, 1
    %p190 = scmp.ne.s32.totalorder %s185, %s187
    %p191 = scmp.eq.s32.totalorder %s83, 0
    %p192 = por %p190, %p191
    %p193 = scmp.ne.s32.totalorder %s185, %s187
    %p194 = scmp.eq.s32.totalorder %s88, 1
    %p195 = por %p193, %p194
    %p196 = scmp.ne.s32.totalorder %s187, %s188
    %p197 = scmp.eq.s32.totalorder %s88, 0
    %p198 = por %p196, %p197
    %p199 = scmp.ne.s32.totalorder %s187, %s188
    %p200 = scmp.eq.s32.totalorder %s89, 1
    %p201 = por %p199, %p200
    %p203 = scmp.ne.s32.totalorder %s188, %s202
    %p204 = scmp.eq.s32.totalorder %s89, 0
    %p205 = por %p203, %p204
    %s207 = sadd.s32 %s206, 1
    %p210 = scmp.eq.s32.totalorder %s83, 1
    %p211 = scmp.ne.s32.totalorder %s206, %s208
    %p212 = scmp.eq.s32.totalorder %s83, 0
    %p213 = por %p211, %p212
    %p214 = scmp.ne.s32.totalorder %s206, %s208
    %p215 = scmp.eq.s32.totalorder %s88, 1
    %p216 = por %p214, %p215
    %p217 = scmp.ne.s32.totalorder %s208, %s209
    %p218 = scmp.eq.s32.totalorder %s88, 0
    %p219 = por %p217, %p218
    %p220 = scmp.ne.s32.totalorder %s208, %s209
    %p221 = scmp.eq.s32.totalorder %s89, 1
    %p222 = por %p220, %p221
    %p224 = scmp.ne.s32.totalorder %s209, %s223
    %p225 = scmp.eq.s32.totalorder %s89, 0
    %p226 = por %p224, %p225
    %s228 = sadd.s32 %s227, 1
    %p231 = scmp.eq.s32.totalorder %s83, 1
    %p232 = scmp.ne.s32.totalorder %s227, %s229
    %p233 = scmp.eq.s32.totalorder %s83, 0
    %p234 = por %p232, %p233
    %p235 = scmp.ne.s32.totalorder %s227, %s229
    %p236 = scmp.eq.s32.totalorder %s88, 1
    %p237 = por %p235, %p236
    %p238 = scmp.ne.s32.totalorder %s229, %s230
    %p239 = scmp.eq.s32.totalorder %s88, 0
    %p240 = por %p238, %p239
    %p241 = scmp.ne.s32.totalorder %s229, %s230
    %p242 = scmp.eq.s32.totalorder %s89, 1
    %p243 = por %p241, %p242
    %p245 = scmp.ne.s32.totalorder %s230, %s244
    %p246 = scmp.eq.s32.totalorder %s89, 0
    %p247 = por %p245, %p246
    %s249 = sadd.s32 %s248, 1
    %p252 = scmp.eq.s32.totalorder %s83, 1
    %p253 = scmp.ne.s32.totalorder %s248, %s250
    %p254 = scmp.eq.s32.totalorder %s83, 0
    %p255 = por %p253, %p254
    %p256 = scmp.ne.s32.totalorder %s248, %s250
    %p257 = scmp.eq.s32.totalorder %s88, 1
    %p258 = por %p256, %p257
    %p259 = scmp.ne.s32.totalorder %s250, %s251
    %p260 = scmp.eq.s32.totalorder %s88, 0
    %p261 = por %p259, %p260
    %p262 = scmp.ne.s32.totalorder %s250, %s251
    %p263 = scmp.eq.s32.totalorder %s89, 1
    %p264 = por %p262, %p263
    %p266 = scmp.ne.s32.totalorder %s251, %s265
    %p267 = scmp.eq.s32.totalorder %s89, 0
    %p268 = por %p266, %p267
    %s270 = sadd.s32 %s269, 1
    %p273 = scmp.eq.s32.totalorder %s83, 1
    %p274 = scmp.ne.s32.totalorder %s269, %s271
    %p275 = scmp.eq.s32.totalorder %s83, 0
    %p276 = por %p274, %p275
    %p277 = scmp.ne.s32.totalorder %s269, %s271
    %p278 = scmp.eq.s32.totalorder %s88, 1
    %p279 = por %p277, %p278
    %p280 = scmp.ne.s32.totalorder %s271, %s272
    %p281 = scmp.eq.s32.totalorder %s88, 0
    %p282 = por %p280, %p281
    %p283 = scmp.ne.s32.totalorder %s271, %s272
    %p284 = scmp.eq.s32.totalorder %s89, 1
    %p285 = por %p283, %p284
    %p287 = scmp.ne.s32.totalorder %s272, %s286
    %p288 = scmp.eq.s32.totalorder %s89, 0
    %p289 = por %p287, %p288
    %s291 = sadd.s32 %s290, 1
    %p294 = scmp.eq.s32.totalorder %s83, 1
    %p295 = scmp.ne.s32.totalorder %s290, %s292
    %p296 = scmp.eq.s32.totalorder %s83, 0
    %p297 = por %p295, %p296
    %p298 = scmp.ne.s32.totalorder %s290, %s292
    %p299 = scmp.eq.s32.totalorder %s88, 1
    %p300 = por %p298, %p299
    %p301 = scmp.ne.s32.totalorder %s292, %s293
    %p302 = scmp.eq.s32.totalorder %s88, 0
    %p303 = por %p301, %p302
    %p304 = scmp.ne.s32.totalorder %s292, %s293
    %p305 = scmp.eq.s32.totalorder %s89, 1
    %p306 = por %p304, %p305
    %p308 = scmp.ne.s32.totalorder %s293, %s307
    %p309 = scmp.eq.s32.totalorder %s89, 0
    %p310 = por %p308, %p309
    %s312 = sadd.s32 %s311, 1
    %p315 = scmp.eq.s32.totalorder %s83, 1
    %p316 = scmp.ne.s32.totalorder %s311, %s313
    %p317 = scmp.eq.s32.totalorder %s83, 0
    %p318 = por %p316, %p317
    %p319 = scmp.ne.s32.totalorder %s311, %s313
    %p320 = scmp.eq.s32.totalorder %s88, 1
    %p321 = por %p319, %p320
    %p322 = scmp.ne.s32.totalorder %s313, %s314
    %p323 = scmp.eq.s32.totalorder %s88, 0
    %p324 = por %p322, %p323
    %p325 = scmp.ne.s32.totalorder %s313, %s314
    %p326 = scmp.eq.s32.totalorder %s89, 1
    %p327 = por %p325, %p326
    %p329 = scmp.ne.s32.totalorder %s314, %s328
    %p330 = scmp.eq.s32.totalorder %s89, 0
    %p331 = por %p329, %p330
    %s333 = sadd.s32 %s332, 1
    %p336 = scmp.eq.s32.totalorder %s83, 1
    %p337 = scmp.ne.s32.totalorder %s332, %s334
    %p338 = scmp.eq.s32.totalorder %s83, 0
    %p339 = por %p337, %p338
    %p340 = scmp.ne.s32.totalorder %s332, %s334
    %p341 = scmp.eq.s32.totalorder %s88, 1
    %p342 = por %p340, %p341
    %p343 = scmp.ne.s32.totalorder %s334, %s335
    %p344 = scmp.eq.s32.totalorder %s88, 0
    %p345 = por %p343, %p344
    %p346 = scmp.ne.s32.totalorder %s334, %s335
    %p347 = scmp.eq.s32.totalorder %s89, 1
    %p348 = por %p346, %p347
    %p350 = scmp.ne.s32.totalorder %s335, %s349
    %p351 = scmp.eq.s32.totalorder %s89, 0
    %p352 = por %p350, %p351
    %s354 = sadd.s32 %s353, 1
    %p357 = scmp.eq.s32.totalorder %s83, 1
    %p358 = scmp.ne.s32.totalorder %s353, %s355
    %p359 = scmp.eq.s32.totalorder %s83, 0
    %p360 = por %p358, %p359
    %p361 = scmp.ne.s32.totalorder %s353, %s355
    %p362 = scmp.eq.s32.totalorder %s88, 1
    %p363 = por %p361, %p362
    %p364 = scmp.ne.s32.totalorder %s355, %s356
    %p365 = scmp.eq.s32.totalorder %s88, 0
    %p366 = por %p364, %p365
    %p367 = scmp.ne.s32.totalorder %s355, %s356
    %p368 = scmp.eq.s32.totalorder %s89, 1
    %p369 = por %p367, %p368
    %p371 = scmp.ne.s32.totalorder %s356, %s370
    %p372 = scmp.eq.s32.totalorder %s89, 0
    %p373 = por %p371, %p372
    %s375 = sadd.s32 %s374, 1
    %p378 = scmp.eq.s32.totalorder %s83, 1
    %p379 = scmp.ne.s32.totalorder %s374, %s376
    %p380 = scmp.eq.s32.totalorder %s83, 0
    %p381 = por %p379, %p380
    %p382 = scmp.ne.s32.totalorder %s374, %s376
    %p383 = scmp.eq.s32.totalorder %s88, 1
    %p384 = por %p382, %p383
    %p385 = scmp.ne.s32.totalorder %s376, %s377
    %p386 = scmp.eq.s32.totalorder %s88, 0
    %p387 = por %p385, %p386
    %p388 = scmp.ne.s32.totalorder %s376, %s377
    %p389 = scmp.eq.s32.totalorder %s89, 1
    %p390 = por %p388, %p389
    %p392 = scmp.ne.s32.totalorder %s377, %s391
    %p393 = scmp.eq.s32.totalorder %s89, 0
    %p394 = por %p392, %p393
    %s396 = sadd.s32 %s395, 1
    %p399 = scmp.eq.s32.totalorder %s83, 1
    %p400 = scmp.ne.s32.totalorder %s395, %s397
    %p401 = scmp.eq.s32.totalorder %s83, 0
    %p402 = por %p400, %p401
    %p403 = scmp.ne.s32.totalorder %s395, %s397
    %p404 = scmp.eq.s32.totalorder %s88, 1
    %p405 = por %p403, %p404
    %p406 = scmp.ne.s32.totalorder %s397, %s398
    %p407 = scmp.eq.s32.totalorder %s88, 0
    %p408 = por %p406, %p407
    %p409 = scmp.ne.s32.totalorder %s397, %s398
    %p410 = scmp.eq.s32.totalorder %s89, 1
    %p411 = por %p409, %p410
    %p413 = scmp.ne.s32.totalorder %s398, %s412
    %p414 = scmp.eq.s32.totalorder %s89, 0
    %p415 = por %p413, %p414
    %s417 = sadd.s32 %s416, 1
    %p420 = scmp.eq.s32.totalorder %s83, 1
    %p421 = scmp.ne.s32.totalorder %s416, %s418
    %p422 = scmp.eq.s32.totalorder %s83, 0
    %p423 = por %p421, %p422
    %p424 = scmp.ne.s32.totalorder %s416, %s418
    %p425 = scmp.eq.s32.totalorder %s88, 1
    %p426 = por %p424, %p425
    %p427 = scmp.ne.s32.totalorder %s418, %s419
    %p428 = scmp.eq.s32.totalorder %s88, 0
    %p429 = por %p427, %p428
    %p430 = scmp.ne.s32.totalorder %s418, %s419
    %p431 = scmp.eq.s32.totalorder %s89, 1
    %p432 = por %p430, %p431
    %p434 = scmp.ne.s32.totalorder %s419, %s433
    %p435 = scmp.eq.s32.totalorder %s89, 0
    %p436 = por %p434, %p435
    %s438 = sadd.s32 %s437, 1
    %p441 = scmp.eq.s32.totalorder %s83, 1
    %p442 = scmp.ne.s32.totalorder %s437, %s439
    %p443 = scmp.eq.s32.totalorder %s83, 0
    %p444 = por %p442, %p443
    %p445 = scmp.ne.s32.totalorder %s437, %s439
    %p446 = scmp.eq.s32.totalorder %s88, 1
    %p447 = por %p445, %p446
    %p448 = scmp.ne.s32.totalorder %s439, %s440
    %p449 = scmp.eq.s32.totalorder %s88, 0
    %p450 = por %p448, %p449
    %p451 = scmp.ne.s32.totalorder %s439, %s440
    %p452 = scmp.eq.s32.totalorder %s89, 1
    %p453 = por %p451, %p452
    %p455 = scmp.ne.s32.totalorder %s440, %s454
    %p456 = scmp.eq.s32.totalorder %s89, 0
    %p457 = por %p455, %p456
    %s459 = sadd.s32 %s458, 1
    %p462 = scmp.eq.s32.totalorder %s83, 1
    %p463 = scmp.ne.s32.totalorder %s458, %s460
    %p464 = scmp.eq.s32.totalorder %s83, 0
    %p465 = por %p463, %p464
    %p466 = scmp.ne.s32.totalorder %s458, %s460
    %p467 = scmp.eq.s32.totalorder %s88, 1
    %p468 = por %p466, %p467
    %p469 = scmp.ne.s32.totalorder %s460, %s461
    %p470 = scmp.eq.s32.totalorder %s88, 0
    %p471 = por %p469, %p470
    %p472 = scmp.ne.s32.totalorder %s460, %s461
    %p473 = scmp.eq.s32.totalorder %s89, 1
    %p474 = por %p472, %p473
    %p476 = scmp.ne.s32.totalorder %s461, %s475
    %p477 = scmp.eq.s32.totalorder %s89, 0
    %p478 = por %p476, %p477
    %s480 = sadd.s32 %s479, 1
    %p483 = scmp.eq.s32.totalorder %s83, 1
    %p484 = scmp.ne.s32.totalorder %s479, %s481
    %p485 = scmp.eq.s32.totalorder %s83, 0
    %p486 = por %p484, %p485
    %p487 = scmp.ne.s32.totalorder %s479, %s481
    %p488 = scmp.eq.s32.totalorder %s88, 1
    %p489 = por %p487, %p488
    %p490 = scmp.ne.s32.totalorder %s481, %s482
    %p491 = scmp.eq.s32.totalorder %s88, 0
    %p492 = por %p490, %p491
    %p493 = scmp.ne.s32.totalorder %s481, %s482
    %p494 = scmp.eq.s32.totalorder %s89, 1
    %p495 = por %p493, %p494
    %p497 = scmp.ne.s32.totalorder %s482, %s496
    %p498 = scmp.eq.s32.totalorder %s89, 0
    %p499 = por %p497, %p498
    %s501 = sadd.s32 %s500, 1
    %p504 = scmp.eq.s32.totalorder %s83, 1
    %p505 = scmp.ne.s32.totalorder %s500, %s502
    %p506 = scmp.eq.s32.totalorder %s83, 0
    %p507 = por %p505, %p506
    %p508 = scmp.ne.s32.totalorder %s500, %s502
    %p509 = scmp.eq.s32.totalorder %s88, 1
    %p510 = por %p508, %p509
    %p511 = scmp.ne.s32.totalorder %s502, %s503
    %p512 = scmp.eq.s32.totalorder %s88, 0
    %p513 = por %p511, %p512
    %p514 = scmp.ne.s32.totalorder %s502, %s503
    %p515 = scmp.eq.s32.totalorder %s89, 1
    %p516 = por %p514, %p515
    %p518 = scmp.ne.s32.totalorder %s503, %s517
    %p519 = scmp.eq.s32.totalorder %s89, 0
    %p520 = por %p518, %p519
    %s522 = sadd.s32 %s521, 1
    %p525 = scmp.eq.s32.totalorder %s83, 1
    %p526 = scmp.ne.s32.totalorder %s521, %s523
    %p527 = scmp.eq.s32.totalorder %s83, 0
    %p528 = por %p526, %p527
    %p529 = scmp.ne.s32.totalorder %s521, %s523
    %p530 = scmp.eq.s32.totalorder %s88, 1
    %p531 = por %p529, %p530
    %p532 = scmp.ne.s32.totalorder %s523, %s524
    %p533 = scmp.eq.s32.totalorder %s88, 0
    %p534 = por %p532, %p533
    %p535 = scmp.ne.s32.totalorder %s523, %s524
    %p536 = scmp.eq.s32.totalorder %s89, 1
    %p537 = por %p535, %p536
    %p539 = scmp.ne.s32.totalorder %s524, %s538
    %p540 = scmp.eq.s32.totalorder %s89, 0
    %p541 = por %p539, %p540
    %s543 = sadd.s32 %s542, 1
    %p546 = scmp.eq.s32.totalorder %s83, 1
    %p547 = scmp.ne.s32.totalorder %s542, %s544
    %p548 = scmp.eq.s32.totalorder %s83, 0
    %p549 = por %p547, %p548
    %p550 = scmp.ne.s32.totalorder %s542, %s544
    %p551 = scmp.eq.s32.totalorder %s88, 1
    %p552 = por %p550, %p551
    %p553 = scmp.ne.s32.totalorder %s544, %s545
    %p554 = scmp.eq.s32.totalorder %s88, 0
    %p555 = por %p553, %p554
    %p556 = scmp.ne.s32.totalorder %s544, %s545
    %p557 = scmp.eq.s32.totalorder %s89, 1
    %p558 = por %p556, %p557
    %p560 = scmp.ne.s32.totalorder %s545, %s559
    %p561 = scmp.eq.s32.totalorder %s89, 0
    %p562 = por %p560, %p561
    %s564 = sadd.s32 %s563, 1
    %p567 = scmp.eq.s32.totalorder %s83, 1
    %p568 = scmp.ne.s32.totalorder %s563, %s565
    %p569 = scmp.eq.s32.totalorder %s83, 0
    %p570 = por %p568, %p569
    %p571 = scmp.ne.s32.totalorder %s563, %s565
    %p572 = scmp.eq.s32.totalorder %s88, 1
    %p573 = por %p571, %p572
    %p574 = scmp.ne.s32.totalorder %s565, %s566
    %p575 = scmp.eq.s32.totalorder %s88, 0
    %p576 = por %p574, %p575
    %p577 = scmp.ne.s32.totalorder %s565, %s566
    %p578 = scmp.eq.s32.totalorder %s89, 1
    %p579 = por %p577, %p578
    %p581 = scmp.ne.s32.totalorder %s566, %s580
    %p582 = scmp.eq.s32.totalorder %s89, 0
    %p583 = por %p581, %p582
    %s585 = sadd.s32 %s584, 1
    %p588 = scmp.eq.s32.totalorder %s83, 1
    %p589 = scmp.ne.s32.totalorder %s584, %s586
    %p590 = scmp.eq.s32.totalorder %s83, 0
    %p591 = por %p589, %p590
    %p592 = scmp.ne.s32.totalorder %s584, %s586
    %p593 = scmp.eq.s32.totalorder %s88, 1
    %p594 = por %p592, %p593
    %p595 = scmp.ne.s32.totalorder %s586, %s587
    %p596 = scmp.eq.s32.totalorder %s88, 0
    %p597 = por %p595, %p596
    %p598 = scmp.ne.s32.totalorder %s586, %s587
    %p599 = scmp.eq.s32.totalorder %s89, 1
    %p600 = por %p598, %p599
    %p602 = scmp.ne.s32.totalorder %s587, %s601
    %p603 = scmp.eq.s32.totalorder %s89, 0
    %p604 = por %p602, %p603
    %s606 = sadd.s32 %s605, 1
    %p609 = scmp.eq.s32.totalorder %s83, 1
    %p610 = scmp.ne.s32.totalorder %s605, %s607
    %p611 = scmp.eq.s32.totalorder %s83, 0
    %p612 = por %p610, %p611
    %p613 = scmp.ne.s32.totalorder %s605, %s607
    %p614 = scmp.eq.s32.totalorder %s88, 1
    %p615 = por %p613, %p614
    %p616 = scmp.ne.s32.totalorder %s607, %s608
    %p617 = scmp.eq.s32.totalorder %s88, 0
    %p618 = por %p616, %p617
    %p619 = scmp.ne.s32.totalorder %s607, %s608
    %p620 = scmp.eq.s32.totalorder %s89, 1
    %p621 = por %p619, %p620
    %p623 = scmp.ne.s32.totalorder %s608, %s622
    %p624 = scmp.eq.s32.totalorder %s89, 0
    %p625 = por %p623, %p624
    %s627 = sadd.s32 %s626, 1
    %p630 = scmp.eq.s32.totalorder %s83, 1
    %p631 = scmp.ne.s32.totalorder %s626, %s628
    %p632 = scmp.eq.s32.totalorder %s83, 0
    %p633 = por %p631, %p632
    %p634 = scmp.ne.s32.totalorder %s626, %s628
    %p635 = scmp.eq.s32.totalorder %s88, 1
    %p636 = por %p634, %p635
    %p637 = scmp.ne.s32.totalorder %s628, %s629
    %p638 = scmp.eq.s32.totalorder %s88, 0
    %p639 = por %p637, %p638
    %p640 = scmp.ne.s32.totalorder %s628, %s629
    %p641 = scmp.eq.s32.totalorder %s89, 1
    %p642 = por %p640, %p641
    %p644 = scmp.ne.s32.totalorder %s629, %s643
    %p645 = scmp.eq.s32.totalorder %s89, 0
    %p646 = por %p644, %p645
    %s648 = sadd.s32 %s647, 1
    %p651 = scmp.eq.s32.totalorder %s83, 1
    %p652 = scmp.ne.s32.totalorder %s647, %s649
    %p653 = scmp.eq.s32.totalorder %s83, 0
    %p654 = por %p652, %p653
    %p655 = scmp.ne.s32.totalorder %s647, %s649
    %p656 = scmp.eq.s32.totalorder %s88, 1
    %p657 = por %p655, %p656
    %p658 = scmp.ne.s32.totalorder %s649, %s650
    %p659 = scmp.eq.s32.totalorder %s88, 0
    %p660 = por %p658, %p659
    %p661 = scmp.ne.s32.totalorder %s649, %s650
    %p662 = scmp.eq.s32.totalorder %s89, 1
    %p663 = por %p661, %p662
    %p665 = scmp.ne.s32.totalorder %s650, %s664
    %p666 = scmp.eq.s32.totalorder %s89, 0
    %p667 = por %p665, %p666
    %s669 = sadd.s32 %s668, 1
    %p672 = scmp.eq.s32.totalorder %s83, 1
    %p673 = scmp.ne.s32.totalorder %s668, %s670
    %p674 = scmp.eq.s32.totalorder %s83, 0
    %p675 = por %p673, %p674
    %p676 = scmp.ne.s32.totalorder %s668, %s670
    %p677 = scmp.eq.s32.totalorder %s88, 1
    %p678 = por %p676, %p677
    %p679 = scmp.ne.s32.totalorder %s670, %s671
    %p680 = scmp.eq.s32.totalorder %s88, 0
    %p681 = por %p679, %p680
    %p682 = scmp.ne.s32.totalorder %s670, %s671
    %p683 = scmp.eq.s32.totalorder %s89, 1
    %p684 = por %p682, %p683
    %p686 = scmp.ne.s32.totalorder %s671, %s685
    %p687 = scmp.eq.s32.totalorder %s89, 0
    %p688 = por %p686, %p687
    %s690 = sadd.s32 %s689, 1
    %p693 = scmp.eq.s32.totalorder %s83, 1
    %p694 = scmp.ne.s32.totalorder %s689, %s691
    %p695 = scmp.eq.s32.totalorder %s83, 0
    %p696 = por %p694, %p695
    %p697 = scmp.ne.s32.totalorder %s689, %s691
    %p698 = scmp.eq.s32.totalorder %s88, 1
    %p699 = por %p697, %p698
    %p700 = scmp.ne.s32.totalorder %s691, %s692
    %p701 = scmp.eq.s32.totalorder %s88, 0
    %p702 = por %p700, %p701
    %p703 = scmp.ne.s32.totalorder %s691, %s692
    %p704 = scmp.eq.s32.totalorder %s89, 1
    %p705 = por %p703, %p704
    %p707 = scmp.ne.s32.totalorder %s692, %s706
    %p708 = scmp.eq.s32.totalorder %s89, 0
    %p709 = por %p707, %p708
    %s711 = sadd.s32 %s710, 1
    %p714 = scmp.eq.s32.totalorder %s83, 1
    %p715 = scmp.ne.s32.totalorder %s710, %s712
    %p716 = scmp.eq.s32.totalorder %s83, 0
    %p717 = por %p715, %p716
    %p718 = scmp.ne.s32.totalorder %s710, %s712
    %p719 = scmp.eq.s32.totalorder %s88, 1
    %p720 = por %p718, %p719
    %p721 = scmp.ne.s32.totalorder %s712, %s713
    %p722 = scmp.eq.s32.totalorder %s88, 0
    %p723 = por %p721, %p722
    %p724 = scmp.ne.s32.totalorder %s712, %s713
    %p725 = scmp.eq.s32.totalorder %s89, 1
    %p726 = por %p724, %p725
    %p728 = scmp.ne.s32.totalorder %s713, %s727
    %p729 = scmp.eq.s32.totalorder %s89, 0
    %p730 = por %p728, %p729
    %s732 = sadd.s32 %s731, 1
    %p735 = scmp.eq.s32.totalorder %s83, 1
    %p736 = scmp.ne.s32.totalorder %s731, %s733
    %p737 = scmp.eq.s32.totalorder %s83, 0
    %p738 = por %p736, %p737
    %p739 = scmp.ne.s32.totalorder %s731, %s733
    %p740 = scmp.eq.s32.totalorder %s88, 1
    %p741 = por %p739, %p740
    %p742 = scmp.ne.s32.totalorder %s733, %s734
    %p743 = scmp.eq.s32.totalorder %s88, 0
    %p744 = por %p742, %p743
    %p745 = scmp.ne.s32.totalorder %s733, %s734
    %p746 = scmp.eq.s32.totalorder %s89, 1
    %p747 = por %p745, %p746
    %p749 = scmp.ne.s32.totalorder %s734, %s748
    %p750 = scmp.eq.s32.totalorder %s89, 0
    %p751 = por %p749, %p750
    %s753 = sadd.s32 %s752, 1
    %p756 = scmp.eq.s32.totalorder %s83, 1
    %p757 = scmp.ne.s32.totalorder %s752, %s754
    %p758 = scmp.eq.s32.totalorder %s83, 0
    %p759 = por %p757, %p758
    %p760 = scmp.ne.s32.totalorder %s752, %s754
    %p761 = scmp.eq.s32.totalorder %s88, 1
    %p762 = por %p760, %p761
    %p763 = scmp.ne.s32.totalorder %s754, %s755
    %p764 = scmp.eq.s32.totalorder %s88, 0
    %p765 = por %p763, %p764
    %p766 = scmp.ne.s32.totalorder %s754, %s755
    %p767 = scmp.eq.s32.totalorder %s89, 1
    %p768 = por %p766, %p767
    %p770 = scmp.ne.s32.totalorder %s755, %s769
    %p771 = scmp.eq.s32.totalorder %s89, 0
    %p772 = por %p770, %p771
    %s774 = sadd.s32 %s773, 1
    %p777 = scmp.eq.s32.totalorder %s83, 1
    %p778 = scmp.ne.s32.totalorder %s773, %s775
    %p779 = scmp.eq.s32.totalorder %s83, 0
    %p780 = por %p778, %p779
    %p781 = scmp.ne.s32.totalorder %s773, %s775
    %p782 = scmp.eq.s32.totalorder %s88, 1
    %p783 = por %p781, %p782
    %p784 = scmp.ne.s32.totalorder %s775, %s776
    %p785 = scmp.eq.s32.totalorder %s88, 0
    %p786 = por %p784, %p785
    %p787 = scmp.ne.s32.totalorder %s775, %s776
    %p788 = scmp.eq.s32.totalorder %s89, 1
    %p789 = por %p787, %p788
    %p791 = scmp.ne.s32.totalorder %s776, %s790
    %p792 = scmp.eq.s32.totalorder %s89, 0
    %p793 = por %p791, %p792
    %s795 = sadd.s32 %s794, 1
    %p798 = scmp.eq.s32.totalorder %s83, 1
    %p799 = scmp.ne.s32.totalorder %s794, %s796
    %p800 = scmp.eq.s32.totalorder %s83, 0
    %p801 = por %p799, %p800
    %p802 = scmp.ne.s32.totalorder %s794, %s796
    %p803 = scmp.eq.s32.totalorder %s88, 1
    %p804 = por %p802, %p803
    %p805 = scmp.ne.s32.totalorder %s796, %s797
    %p806 = scmp.eq.s32.totalorder %s88, 0
    %p807 = por %p805, %p806
    %p808 = scmp.ne.s32.totalorder %s796, %s797
    %p809 = scmp.eq.s32.totalorder %s89, 1
    %p810 = por %p808, %p809
    %p812 = scmp.ne.s32.totalorder %s797, %s811
    %p813 = scmp.eq.s32.totalorder %s89, 0
    %p814 = por %p812, %p813
    %s816 = sadd.s32 %s815, 1
    %p819 = scmp.eq.s32.totalorder %s83, 1
    %p820 = scmp.ne.s32.totalorder %s815, %s817
    %p821 = scmp.eq.s32.totalorder %s83, 0
    %p822 = por %p820, %p821
    %p823 = scmp.ne.s32.totalorder %s815, %s817
    %p824 = scmp.eq.s32.totalorder %s88, 1
    %p825 = por %p823, %p824
    %p826 = scmp.ne.s32.totalorder %s817, %s818
    %p827 = scmp.eq.s32.totalorder %s88, 0
    %p828 = por %p826, %p827
    %p829 = scmp.ne.s32.totalorder %s817, %s818
    %p830 = scmp.eq.s32.totalorder %s89, 1
    %p831 = por %p829, %p830
    %p833 = scmp.ne.s32.totalorder %s818, %s832
    %p834 = scmp.eq.s32.totalorder %s89, 0
    %p835 = por %p833, %p834
    %s837 = sadd.s32 %s836, 1
    %p840 = scmp.eq.s32.totalorder %s83, 1
    %p841 = scmp.ne.s32.totalorder %s836, %s838
    %p842 = scmp.eq.s32.totalorder %s83, 0
    %p843 = por %p841, %p842
    %p844 = scmp.ne.s32.totalorder %s836, %s838
    %p845 = scmp.eq.s32.totalorder %s88, 1
    %p846 = por %p844, %p845
    %p847 = scmp.ne.s32.totalorder %s838, %s839
    %p848 = scmp.eq.s32.totalorder %s88, 0
    %p849 = por %p847, %p848
    %p850 = scmp.ne.s32.totalorder %s838, %s839
    %p851 = scmp.eq.s32.totalorder %s89, 1
    %p852 = por %p850, %p851
    %p854 = scmp.ne.s32.totalorder %s839, %s853
    %p855 = scmp.eq.s32.totalorder %s89, 0
    %p856 = por %p854, %p855
    %s857 = ssub.s32 %s83, %s90
    %p858 = scmp.eq.s32.totalorder %s857, 0
    %s860 = sadd.s32 %s859, 1
    %s861 = scalar_select %p858, %s859, %s860
    %p864 = pneg %p858
    %p865 = scmp.eq.s32.totalorder %s83, 1
    %p866 = por %p864, %p865
    %p867 = scmp.ne.s32.totalorder %s859, %s862
    %p868 = scmp.eq.s32.totalorder %s83, 0
    %p869 = por %p867, %p868
    %p870 = scmp.ne.s32.totalorder %s859, %s862
    %p871 = scmp.eq.s32.totalorder %s88, 1
    %p872 = por %p870, %p871
    %p873 = scmp.ne.s32.totalorder %s862, %s863
    %p874 = scmp.eq.s32.totalorder %s88, 0
    %p875 = por %p873, %p874
    %p876 = scmp.ne.s32.totalorder %s862, %s863
    %p877 = scmp.eq.s32.totalorder %s89, 1
    %p878 = por %p876, %p877
    %p880 = scmp.ne.s32.totalorder %s863, %s879
    %p881 = scmp.eq.s32.totalorder %s89, 0
    %p882 = por %p880, %p881
    %p883 = scmp.le.s32.totalorder 1, %s83
    %p884 = scmp.lt.s32.totalorder %s83, 3
    %p885 = pnand %p883, %p884
    %p886 = pneg %p885
    // Predicated region
    $region9: #{forward.1} parent=5 // pred_check
      _
    $region10: #{forward.1} parent=5 // pred_check_branch
      %888 = sbr.rel (%p885) target = $region12
    $region11: #{forward.1} parent=5 // pred_region
      %s889 = ssub.s32 %s83, 1
      // Predicated region
      $region13: #{forward.1} parent=11 // pred_check
        %p890 = pneg %p156
      $region14: #{forward.1} parent=11 // pred_check_branch
        %892 = sbr.rel (%p890) target = $region16
      $region15: #{forward.1} parent=11 // pred_region
        _
      $region16: #{forward.1} parent=11 // pred_fallthru
        _
      // Predicated region
      $region17: #{forward.1} parent=11 // pred_check
        %p893 = pneg %p177
      $region18: #{forward.1} parent=11 // pred_check_branch
        %895 = sbr.rel (%p893) target = $region20
      $region19: #{forward.1} parent=11 // pred_region
        _
      $region20: #{forward.1} parent=11 // pred_fallthru
        _
      // Predicated region
      $region21: #{forward.1} parent=11 // pred_check
        %p896 = pneg %p198
      $region22: #{forward.1} parent=11 // pred_check_branch
        %898 = sbr.rel (%p896) target = $region24
      $region23: #{forward.1} parent=11 // pred_region
        _
      $region24: #{forward.1} parent=11 // pred_fallthru
        _
      // Predicated region
      $region25: #{forward.1} parent=11 // pred_check
        %p899 = pneg %p219
      $region26: #{forward.1} parent=11 // pred_check_branch
        %901 = sbr.rel (%p899) target = $region28
      $region27: #{forward.1} parent=11 // pred_region
        _
      $region28: #{forward.1} parent=11 // pred_fallthru
        _
      // Predicated region
      $region29: #{forward.1} parent=11 // pred_check
        %p902 = pneg %p240
      $region30: #{forward.1} parent=11 // pred_check_branch
        %904 = sbr.rel (%p902) target = $region32
      $region31: #{forward.1} parent=11 // pred_region
        _
      $region32: #{forward.1} parent=11 // pred_fallthru
        _
      // Predicated region
      $region33: #{forward.1} parent=11 // pred_check
        %p905 = pneg %p261
      $region34: #{forward.1} parent=11 // pred_check_branch
        %907 = sbr.rel (%p905) target = $region36
      $region35: #{forward.1} parent=11 // pred_region
        _
      $region36: #{forward.1} parent=11 // pred_fallthru
        _
      // Predicated region
      $region37: #{forward.1} parent=11 // pred_check
        %p908 = pneg %p282
      $region38: #{forward.1} parent=11 // pred_check_branch
        %910 = sbr.rel (%p908) target = $region40
      $region39: #{forward.1} parent=11 // pred_region
        _
      $region40: #{forward.1} parent=11 // pred_fallthru
        _
      // Predicated region
      $region41: #{forward.1} parent=11 // pred_check
        %p911 = pneg %p303
      $region42: #{forward.1} parent=11 // pred_check_branch
        %913 = sbr.rel (%p911) target = $region44
      $region43: #{forward.1} parent=11 // pred_region
        _
      $region44: #{forward.1} parent=11 // pred_fallthru
        _
      // Predicated region
      $region45: #{forward.1} parent=11 // pred_check
        %p914 = pneg %p324
      $region46: #{forward.1} parent=11 // pred_check_branch
        %916 = sbr.rel (%p914) target = $region48
      $region47: #{forward.1} parent=11 // pred_region
        _
      $region48: #{forward.1} parent=11 // pred_fallthru
        _
      // Predicated region
      $region49: #{forward.1} parent=11 // pred_check
        %p917 = pneg %p345
      $region50: #{forward.1} parent=11 // pred_check_branch
        %919 = sbr.rel (%p917) target = $region52
      $region51: #{forward.1} parent=11 // pred_region
        _
      $region52: #{forward.1} parent=11 // pred_fallthru
        _
      // Predicated region
      $region53: #{forward.1} parent=11 // pred_check
        %p920 = pneg %p366
      $region54: #{forward.1} parent=11 // pred_check_branch
        %922 = sbr.rel (%p920) target = $region56
      $region55: #{forward.1} parent=11 // pred_region
        _
      $region56: #{forward.1} parent=11 // pred_fallthru
        _
      // Predicated region
      $region57: #{forward.1} parent=11 // pred_check
        %p923 = pneg %p387
      $region58: #{forward.1} parent=11 // pred_check_branch
        %925 = sbr.rel (%p923) target = $region60
      $region59: #{forward.1} parent=11 // pred_region
        _
      $region60: #{forward.1} parent=11 // pred_fallthru
        _
      // Predicated region
      $region61: #{forward.1} parent=11 // pred_check
        %p926 = pneg %p408
      $region62: #{forward.1} parent=11 // pred_check_branch
        %928 = sbr.rel (%p926) target = $region64
      $region63: #{forward.1} parent=11 // pred_region
        _
      $region64: #{forward.1} parent=11 // pred_fallthru
        _
      // Predicated region
      $region65: #{forward.1} parent=11 // pred_check
        %p929 = pneg %p429
      $region66: #{forward.1} parent=11 // pred_check_branch
        %931 = sbr.rel (%p929) target = $region68
      $region67: #{forward.1} parent=11 // pred_region
        _
      $region68: #{forward.1} parent=11 // pred_fallthru
        _
      // Predicated region
      $region69: #{forward.1} parent=11 // pred_check
        %p932 = pneg %p450
      $region70: #{forward.1} parent=11 // pred_check_branch
        %934 = sbr.rel (%p932) target = $region72
      $region71: #{forward.1} parent=11 // pred_region
        _
      $region72: #{forward.1} parent=11 // pred_fallthru
        _
      // Predicated region
      $region73: #{forward.1} parent=11 // pred_check
        %p935 = pneg %p471
      $region74: #{forward.1} parent=11 // pred_check_branch
        %937 = sbr.rel (%p935) target = $region76
      $region75: #{forward.1} parent=11 // pred_region
        _
      $region76: #{forward.1} parent=11 // pred_fallthru
        _
      // Predicated region
      $region77: #{forward.1} parent=11 // pred_check
        %p938 = pneg %p492
      $region78: #{forward.1} parent=11 // pred_check_branch
        %940 = sbr.rel (%p938) target = $region80
      $region79: #{forward.1} parent=11 // pred_region
        _
      $region80: #{forward.1} parent=11 // pred_fallthru
        _
      // Predicated region
      $region81: #{forward.1} parent=11 // pred_check
        %p941 = pneg %p513
      $region82: #{forward.1} parent=11 // pred_check_branch
        %943 = sbr.rel (%p941) target = $region84
      $region83: #{forward.1} parent=11 // pred_region
        _
      $region84: #{forward.1} parent=11 // pred_fallthru
        _
      // Predicated region
      $region85: #{forward.1} parent=11 // pred_check
        %p944 = pneg %p534
      $region86: #{forward.1} parent=11 // pred_check_branch
        %946 = sbr.rel (%p944) target = $region88
      $region87: #{forward.1} parent=11 // pred_region
        _
      $region88: #{forward.1} parent=11 // pred_fallthru
        _
      // Predicated region
      $region89: #{forward.1} parent=11 // pred_check
        %p947 = pneg %p555
      $region90: #{forward.1} parent=11 // pred_check_branch
        %949 = sbr.rel (%p947) target = $region92
      $region91: #{forward.1} parent=11 // pred_region
        _
      $region92: #{forward.1} parent=11 // pred_fallthru
        _
      // Predicated region
      $region93: #{forward.1} parent=11 // pred_check
        %p950 = pneg %p576
      $region94: #{forward.1} parent=11 // pred_check_branch
        %952 = sbr.rel (%p950) target = $region96
      $region95: #{forward.1} parent=11 // pred_region
        _
      $region96: #{forward.1} parent=11 // pred_fallthru
        _
      // Predicated region
      $region97: #{forward.1} parent=11 // pred_check
        %p953 = pneg %p597
      $region98: #{forward.1} parent=11 // pred_check_branch
        %955 = sbr.rel (%p953) target = $region100
      $region99: #{forward.1} parent=11 // pred_region
        _
      $region100: #{forward.1} parent=11 // pred_fallthru
        _
      // Predicated region
      $region101: #{forward.1} parent=11 // pred_check
        %p956 = pneg %p618
      $region102: #{forward.1} parent=11 // pred_check_branch
        %958 = sbr.rel (%p956) target = $region104
      $region103: #{forward.1} parent=11 // pred_region
        _
      $region104: #{forward.1} parent=11 // pred_fallthru
        _
      // Predicated region
      $region105: #{forward.1} parent=11 // pred_check
        %p959 = pneg %p639
      $region106: #{forward.1} parent=11 // pred_check_branch
        %961 = sbr.rel (%p959) target = $region108
      $region107: #{forward.1} parent=11 // pred_region
        _
      $region108: #{forward.1} parent=11 // pred_fallthru
        _
      // Predicated region
      $region109: #{forward.1} parent=11 // pred_check
        %p962 = pneg %p660
      $region110: #{forward.1} parent=11 // pred_check_branch
        %964 = sbr.rel (%p962) target = $region112
      $region111: #{forward.1} parent=11 // pred_region
        _
      $region112: #{forward.1} parent=11 // pred_fallthru
        _
      // Predicated region
      $region113: #{forward.1} parent=11 // pred_check
        %p965 = pneg %p681
      $region114: #{forward.1} parent=11 // pred_check_branch
        %967 = sbr.rel (%p965) target = $region116
      $region115: #{forward.1} parent=11 // pred_region
        _
      $region116: #{forward.1} parent=11 // pred_fallthru
        _
      // Predicated region
      $region117: #{forward.1} parent=11 // pred_check
        %p968 = pneg %p702
      $region118: #{forward.1} parent=11 // pred_check_branch
        %970 = sbr.rel (%p968) target = $region120
      $region119: #{forward.1} parent=11 // pred_region
        _
      $region120: #{forward.1} parent=11 // pred_fallthru
        _
      // Predicated region
      $region121: #{forward.1} parent=11 // pred_check
        %p971 = pneg %p723
      $region122: #{forward.1} parent=11 // pred_check_branch
        %973 = sbr.rel (%p971) target = $region124
      $region123: #{forward.1} parent=11 // pred_region
        _
      $region124: #{forward.1} parent=11 // pred_fallthru
        _
      // Predicated region
      $region125: #{forward.1} parent=11 // pred_check
        %p974 = pneg %p744
      $region126: #{forward.1} parent=11 // pred_check_branch
        %976 = sbr.rel (%p974) target = $region128
      $region127: #{forward.1} parent=11 // pred_region
        _
      $region128: #{forward.1} parent=11 // pred_fallthru
        _
      // Predicated region
      $region129: #{forward.1} parent=11 // pred_check
        %p977 = pneg %p765
      $region130: #{forward.1} parent=11 // pred_check_branch
        %979 = sbr.rel (%p977) target = $region132
      $region131: #{forward.1} parent=11 // pred_region
        _
      $region132: #{forward.1} parent=11 // pred_fallthru
        _
      // Predicated region
      $region133: #{forward.1} parent=11 // pred_check
        %p980 = pneg %p786
      $region134: #{forward.1} parent=11 // pred_check_branch
        %982 = sbr.rel (%p980) target = $region136
      $region135: #{forward.1} parent=11 // pred_region
        _
      $region136: #{forward.1} parent=11 // pred_fallthru
        _
      // Predicated region
      $region137: #{forward.1} parent=11 // pred_check
        %p983 = pneg %p807
      $region138: #{forward.1} parent=11 // pred_check_branch
        %985 = sbr.rel (%p983) target = $region140
      $region139: #{forward.1} parent=11 // pred_region
        _
      $region140: #{forward.1} parent=11 // pred_fallthru
        _
      // Predicated region
      $region141: #{forward.1} parent=11 // pred_check
        %p986 = pneg %p828
      $region142: #{forward.1} parent=11 // pred_check_branch
        %988 = sbr.rel (%p986) target = $region144
      $region143: #{forward.1} parent=11 // pred_region
        _
      $region144: #{forward.1} parent=11 // pred_fallthru
        _
      // Predicated region
      $region145: #{forward.1} parent=11 // pred_check
        %p989 = pneg %p849
      $region146: #{forward.1} parent=11 // pred_check_branch
        %991 = sbr.rel (%p989) target = $region148
      $region147: #{forward.1} parent=11 // pred_region
        _
      $region148: #{forward.1} parent=11 // pred_fallthru
        _
    $region12: #{forward.1} parent=5 // pred_fallthru
      _
    %p992 = scmp.lt.s32.totalorder %s83, 2
    // Predicated region
    $region149: #{forward.1} parent=5 // pred_check
      %p993 = pneg %p992
    $region150: #{forward.1} parent=5 // pred_check_branch
      %995 = sbr.rel (%p993) target = $region152
    $region151: #{forward.1} parent=5 // pred_region
      // Predicated region
      $region153: #{forward.1} parent=151 // pred_check
        %p996 = pneg %p103
      $region154: #{forward.1} parent=151 // pred_check_branch
        %998 = sbr.rel (%p996) target = $region156
      $region155: #{forward.1} parent=151 // pred_region
        %p999 = scmp.lt.s32.totalorder %s83, 1
        %s1000 = scalar_select %p999, %s83, 1
        %s1001 = smul.addr %s1000, 7
        %s1002 = smul.addr %s1001, 8
        %s1003 = scalar_lea.vmem %s1, %s1002
      $region156: #{forward.1} parent=151 // pred_fallthru
        _
      // Predicated region
      $region157: #{forward.1} parent=151 // pred_check
        %p1004 = pneg %p129
      $region158: #{forward.1} parent=151 // pred_check_branch
        %1006 = sbr.rel (%p1004) target = $region160
      $region159: #{forward.1} parent=151 // pred_region
        %p1007 = scmp.lt.s32.totalorder %s83, 1
        %s1008 = scalar_select %p1007, %s83, 1
        %s1009 = smul.addr %s1008, 8
        %s1010 = scalar_lea.vmem %s3, %s1009
      $region160: #{forward.1} parent=151 // pred_fallthru
        _
    $region152: #{forward.1} parent=5 // pred_fallthru
      _
    %p1011 = scmp.le.s32.totalorder 1, %s83
    %p1012 = scmp.lt.s32.totalorder %s83, 3
    %p1013 = pnand %p1011, %p1012
    %p1014 = pneg %p1013
    // Predicated region
    $region161: #{forward.1} parent=5 // pred_check
      _
    $region162: #{forward.1} parent=5 // pred_check_branch
      %1016 = sbr.rel (%p1013) target = $region164
    $region163: #{forward.1} parent=5 // pred_region
      %s1017 = ssub.s32 %s83, 1
      %p1018 = scmp.lt.s32.totalorder %s88, 1
      %s1019 = scalar_select %p1018, %s88, 1
      %s1020 = smul.addr %s1019, 7
      %s1021 = smul.addr %s1020, 8
      %s1022 = scalar_lea.vmem %s1, %s1021
      %p1023 = pneg %p109
      %p1024 = pneg %p106
      %p1025 = scmp.lt.s32.totalorder %s88, 1
      %s1026 = scalar_select %p1025, %s88, 1
      %s1027 = smul.addr %s1026, 8
      %s1028 = scalar_lea.vmem %s3, %s1027
      %p1029 = pneg %p135
      %p1030 = pneg %p132
      %p1031 = pneg %p156
      %p1032 = pneg %p153
      %p1033 = pneg %p177
      %p1034 = pneg %p174
      %p1035 = pneg %p198
      %p1036 = pneg %p195
      %p1037 = pneg %p219
      %p1038 = pneg %p216
      %p1039 = pneg %p240
      %p1040 = pneg %p237
      %p1041 = pneg %p261
      %p1042 = pneg %p258
      %p1043 = pneg %p282
      %p1044 = pneg %p279
      %p1045 = pneg %p303
      %p1046 = pneg %p300
      %p1047 = pneg %p324
      %p1048 = pneg %p321
      %p1049 = pneg %p345
      %p1050 = pneg %p342
      %p1051 = pneg %p366
      %p1052 = pneg %p363
      %p1053 = pneg %p387
      %p1054 = pneg %p384
      %p1055 = pneg %p408
      %p1056 = pneg %p405
      %p1057 = pneg %p429
      %p1058 = pneg %p426
      %p1059 = pneg %p450
      %p1060 = pneg %p447
      %p1061 = pneg %p471
      %p1062 = pneg %p468
      %p1063 = pneg %p492
      %p1064 = pneg %p489
      %p1065 = pneg %p513
      %p1066 = pneg %p510
      %p1067 = pneg %p534
      %p1068 = pneg %p531
      %p1069 = pneg %p555
      %p1070 = pneg %p552
      %p1071 = pneg %p576
      %p1072 = pneg %p573
      %p1073 = pneg %p597
      %p1074 = pneg %p594
      %p1075 = pneg %p618
      %p1076 = pneg %p615
      %p1077 = pneg %p639
      %p1078 = pneg %p636
      %p1079 = pneg %p660
      %p1080 = pneg %p657
      %p1081 = pneg %p681
      %p1082 = pneg %p678
      %p1083 = pneg %p702
      %p1084 = pneg %p699
      %p1085 = pneg %p723
      %p1086 = pneg %p720
      %p1087 = pneg %p744
      %p1088 = pneg %p741
      %p1089 = pneg %p765
      %p1090 = pneg %p762
      %p1091 = pneg %p786
      %p1092 = pneg %p783
      %p1093 = pneg %p807
      %p1094 = pneg %p804
      %p1095 = pneg %p828
      %p1096 = pneg %p825
      %p1097 = pneg %p849
      %p1098 = pneg %p846
      %p1099 = pneg %p875
      %p1100 = pneg %p872
      %p1101 = scmp.lt.s32.totalorder %s88, 1
      %s1102 = scalar_select %p1101, %s88, 1
      %s1103 = smul.addr %s1102, 8
      %s1104 = scalar_lea.vmem %s73, %s1103
      %p1105 = scmp.lt.s32.totalorder %s88, 1
      %s1106 = scalar_select %p1105, %s88, 1
      %s1107 = smul.addr %s1106, 7
      %s1108 = smul.addr %s1107, 8
      %s1109 = scalar_lea.vmem %s1, %s1108
      %p1110 = scmp.lt.s32.totalorder %s88, 1
      %s1111 = scalar_select %p1110, %s88, 1
      %s1112 = smul.addr %s1111, 8
      %s1113 = scalar_lea.vmem %s3, %s1112
      %p1114 = scmp.lt.s32.totalorder %s88, 1
      %s1115 = scalar_select %p1114, %s88, 1
      %s1116 = smul.addr %s1115, 8
      %s1117 = scalar_lea.vmem %s73, %s1116
      %v1118 = vld [vmem:[%s1109] sm:$0xff]
      %v1119 = vld [vmem:[%s1109 + $0x8] sm:$0xff]
      %v1120 = vld [vmem:[%s1109 + $0x10] sm:$0xff]
      %v1121 = vld [vmem:[%s1109 + $0x18] sm:$0xff]
      %v1122 = vld [vmem:[%s1109 + $0x20] sm:$0xff]
      %v1123 = vld [vmem:[%s1109 + $0x28] sm:$0xff]
      %v1124 = vld [vmem:[%s1109 + $0x30] sm:$0x1]
      %v1125 = vld [vmem:[%s5] sm:$0xff]
      %v1126 = vld [vmem:[%s5 + $0x8] sm:$0xff]
      %v1127 = vld [vmem:[%s5 + $0x10] sm:$0xff]
      %v1128 = vld [vmem:[%s5 + $0x18] sm:$0x7]
      %v1129 = vld [vmem:[%s7] sm:$0x1]
      %v1131 = vlaneseq
      %v1132 = vshrl.u32 %v1131, 7
      %v1133 = vsub.s32 0, %v1132
      %v1134 = vrot.slane %v1129, %v1133
      %vm1136 = vcmask 220160
      %v1138 = vsel %vm1136, %v1118, 0
      %v1141 = vsel %vm1136, %v1119, 0
      %v1144 = vsel %vm1136, %v1120, 0
      %v1147 = vsel %vm1136, %v1121, 0
      %v1150 = vsel %vm1136, %v1122, 0
      %v1153 = vsel %vm1136, %v1123, 0
      %v1156 = vsel %vm1136, %v1124, 0
      %vm1158 = vcmask 1042432
      %v1160 = vsel %vm1158, %v1128, 0
      %1162 = vmatprep.subr.mxu0 0.0
      %1163 = vmatpush1.msra.mxu0 %v1125
      %1164 = vmatprep.subr.mxu0 0.0
      %1165 = vmatpush1.msra.mxu0 %v1126
      %1166 = vmatprep.subr.mxu0 0.0
      %1167 = vmatpush1.msra.mxu0 %v1127
      %1168 = vmatprep.subr.mxu0 0.0
      %1169 = vmatpush1.msra.mxu0 %v1160
      %1170 = vmatprep.subr.mxu0 0.0
      %1171 = vmatpush1.msra.mxu0 0.0
      %1172 = vmatprep.subr.mxu0 0.0
      %1173 = vmatpush1.msra.mxu0 0.0
      %1174 = vmatprep.subr.mxu0 0.0
      %1175 = vmatpush1.msra.mxu0 0.0
      %1176 = vmatprep.subr.mxu0 0.0
      %1177 = vmatpush1.msra.mxu0 0.0
      %1178 = vmatprep.subr.mxu0 0.0
      %1179 = vmatpush1.msra.mxu0 0.0
      %1180 = vmatprep.subr.mxu0 0.0
      %1181 = vmatpush1.msra.mxu0 0.0
      %1182 = vmatprep.subr.mxu0 0.0
      %1183 = vmatpush1.msra.mxu0 0.0
      %1184 = vmatprep.subr.mxu0 0.0
      %1185 = vmatpush1.msra.mxu0 0.0
      %1186 = vmatprep.subr.mxu0 0.0
      %1187 = vmatpush1.msra.mxu0 0.0
      %1188 = vmatprep.subr.mxu0 0.0
      %1189 = vmatpush1.msra.mxu0 0.0
      %1190 = vmatprep.subr.mxu0 0.0
      %1191 = vmatpush1.msra.mxu0 0.0
      %1192 = vmatprep.subr.mxu0 0.0
      %1193 = vmatpush1.msra.mxu0 0.0
      %1194 = vmatprep.subr.mxu0 0.0
      %1195 = vmatpush1.msra.mxu0 0.0
      %1196 = vmatprep.subr.mxu0 0.0
      %1197 = vmatpush1.msra.mxu0 0.0
      %1198 = vmatprep.subr.mxu0 0.0
      %1199 = vmatpush1.msra.mxu0 0.0
      %1200 = vmatprep.subr.mxu0 0.0
      %1201 = vmatpush1.msra.mxu0 0.0
      %1202 = vmatprep.subr.mxu0 0.0
      %1203 = vmatpush1.msra.mxu0 0.0
      %1204 = vmatprep.subr.mxu0 0.0
      %1205 = vmatpush1.msra.mxu0 0.0
      %1206 = vmatprep.subr.mxu0 0.0
      %1207 = vmatpush1.msra.mxu0 0.0
      %1208 = vmatprep.subr.mxu0 0.0
      %1209 = vmatpush1.msra.mxu0 0.0
      %1210 = vmatprep.subr.mxu0 0.0
      %1211 = vmatpush1.msra.mxu0 0.0
      %1212 = vmatprep.subr.mxu0 0.0
      %1213 = vmatpush1.msra.mxu0 0.0
      %1214 = vmatprep.subr.mxu0 0.0
      %1215 = vmatpush1.msra.mxu0 0.0
      %1216 = vmatprep.subr.mxu0 0.0
      %1217 = vmatpush1.msra.mxu0 0.0
      %1218 = vmatprep.subr.mxu0 0.0
      %1219 = vmatpush1.msra.mxu0 0.0
      %1220 = vmatprep.subr.mxu0 0.0
      %1221 = vmatpush1.msra.mxu0 0.0
      %1222 = vmatprep.subr.mxu0 0.0
      %1223 = vmatpush1.msra.mxu0 0.0
      %1224 = vmatprep.subr.mxu0 0.0
      %1225 = vmatpush1.msra.mxu0 0.0
      %1226 = vmatprep.mubr.f32.mxu0 0.0
      %1227 = vmatmul.mubr.f32.gmra.mrb[0].mxu0 %v1138
      %v1228 = vpop.f32.mrb[0].mxu0
      %v1229 = vadd.f32 %v1134, %v1228
      %v1230 = vpop.f32.mrb[0].mxu0
      %1231 = vmatprep.mubr.f32.mxu0 0.0
      %1232 = vmatmul.mubr.f32.gmra.mrb[0].mxu0 %v1141
      %v1233 = vpop.f32.mrb[0].mxu0
      %v1234 = vadd.f32 %v1134, %v1233
      %v1235 = vpop.f32.mrb[0].mxu0
      %1236 = vmatprep.mubr.f32.mxu0 0.0
      %1237 = vmatmul.mubr.f32.gmra.mrb[0].mxu0 %v1144
      %v1238 = vpop.f32.mrb[0].mxu0
      %v1239 = vadd.f32 %v1134, %v1238
      %v1240 = vpop.f32.mrb[0].mxu0
      %1241 = vmatprep.mubr.f32.mxu0 0.0
      %1242 = vmatmul.mubr.f32.gmra.mrb[0].mxu0 %v1147
      %v1243 = vpop.f32.mrb[0].mxu0
      %v1244 = vadd.f32 %v1134, %v1243
      %v1245 = vpop.f32.mrb[0].mxu0
      %1246 = vmatprep.mubr.f32.mxu0 0.0
      %1247 = vmatmul.mubr.f32.gmra.mrb[0].mxu0 %v1150
      %v1248 = vpop.f32.mrb[0].mxu0
      %v1249 = vadd.f32 %v1134, %v1248
      %v1250 = vpop.f32.mrb[0].mxu0
      %1251 = vmatprep.mubr.f32.mxu0 0.0
      %1252 = vmatmul.mubr.f32.gmra.mrb[0].mxu0 %v1153
      %v1253 = vpop.f32.mrb[0].mxu0
      %v1254 = vadd.f32 %v1134, %v1253
      %v1255 = vpop.f32.mrb[0].mxu0
      %1256 = vmatprep.mubr.f32.mxu0 0.0
      %1257 = vmatmul.mubr.f32.gmra.mrb[0].mxu0 %v1156
      %v1258 = vpop.f32.mrb[0].mxu0
      %v1259 = vadd.f32 %v1134, %v1258
      %v1260 = vpop.f32.mrb[0].mxu0
      %1261 = vdwg.mxu0
      %v1262 = vmax.f32 %v1229, 0.0
      %v1263 = vmax.f32 %v1234, 0.0
      %v1264 = vmax.f32 %v1239, 0.0
      %v1265 = vmax.f32 %v1244, 0.0
      %v1266 = vmax.f32 %v1249, 0.0
      %v1267 = vmax.f32 %v1254, 0.0
      %v1268 = vmax.f32 %v1259, 0.0
      %v1269 = vld [vmem:[%s9] sm:$0xff]
      %v1270 = vld [vmem:[%s9 + $0x8] sm:$0xff]
      %v1271 = vld [vmem:[%s9 + $0x10] sm:$0xff]
      %v1272 = vld [vmem:[%s9 + $0x18] sm:$0xff]
      %v1273 = vld [vmem:[%s11] sm:$0x1]
      %v1275 = vlaneseq
      %v1276 = vshrl.u32 %v1275, 7
      %v1277 = vsub.s32 0, %v1276
      %v1278 = vrot.slane %v1273, %v1277
      %vm1280 = vcmask 261120
      %v1282 = vsel %vm1280, %v1262, 0
      %v1285 = vsel %vm1280, %v1263, 0
      %v1288 = vsel %vm1280, %v1264, 0
      %v1291 = vsel %vm1280, %v1265, 0
      %v1294 = vsel %vm1280, %v1266, 0
      %v1297 = vsel %vm1280, %v1267, 0
      %v1300 = vsel %vm1280, %v1268, 0
      %1302 = vmatprep.subr.mxu0 0.0
      %1303 = vmatpush1.msra.mxu0 %v1269
      %1304 = vmatprep.subr.mxu0 0.0
      %1305 = vmatpush1.msra.mxu0 %v1270
      %1306 = vmatprep.subr.mxu0 0.0
      %1307 = vmatpush1.msra.mxu0 %v1271
      %1308 = vmatprep.subr.mxu0 0.0
      %1309 = vmatpush1.msra.mxu0 %v1272
      %1310 = vmatprep.subr.mxu0 0.0
      %1311 = vmatpush1.msra.mxu0 0.0
      %1312 = vmatprep.subr.mxu0 0.0
      %1313 = vmatpush1.msra.mxu0 0.0
      %1314 = vmatprep.subr.mxu0 0.0
      %1315 = vmatpush1.msra.mxu0 0.0
      %1316 = vmatprep.subr.mxu0 0.0
      %1317 = vmatpush1.msra.mxu0 0.0
      %1318 = vmatprep.subr.mxu0 0.0
      %1319 = vmatpush1.msra.mxu0 0.0
      %1320 = vmatprep.subr.mxu0 0.0
      %1321 = vmatpush1.msra.mxu0 0.0
      %1322 = vmatprep.subr.mxu0 0.0
      %1323 = vmatpush1.msra.mxu0 0.0
      %1324 = vmatprep.subr.mxu0 0.0
      %1325 = vmatpush1.msra.mxu0 0.0
      %1326 = vmatprep.subr.mxu0 0.0
      %1327 = vmatpush1.msra.mxu0 0.0
      %1328 = vmatprep.subr.mxu0 0.0
      %1329 = vmatpush1.msra.mxu0 0.0
      %1330 = vmatprep.subr.mxu0 0.0
      %1331 = vmatpush1.msra.mxu0 0.0
      %1332 = vmatprep.subr.mxu0 0.0
      %1333 = vmatpush1.msra.mxu0 0.0
      %1334 = vmatprep.subr.mxu0 0.0
      %1335 = vmatpush1.msra.mxu0 0.0
      %1336 = vmatprep.subr.mxu0 0.0
      %1337 = vmatpush1.msra.mxu0 0.0
      %1338 = vmatprep.subr.mxu0 0.0
      %1339 = vmatpush1.msra.mxu0 0.0
      %1340 = vmatprep.subr.mxu0 0.0
      %1341 = vmatpush1.msra.mxu0 0.0
      %1342 = vmatprep.subr.mxu0 0.0
      %1343 = vmatpush1.msra.mxu0 0.0
      %1344 = vmatprep.subr.mxu0 0.0
      %1345 = vmatpush1.msra.mxu0 0.0
      %1346 = vmatprep.subr.mxu0 0.0
      %1347 = vmatpush1.msra.mxu0 0.0
      %1348 = vmatprep.subr.mxu0 0.0
      %1349 = vmatpush1.msra.mxu0 0.0
      %1350 = vmatprep.subr.mxu0 0.0
      %1351 = vmatpush1.msra.mxu0 0.0
      %1352 = vmatprep.subr.mxu0 0.0
      %1353 = vmatpush1.msra.mxu0 0.0
      %1354 = vmatprep.subr.mxu0 0.0
      %1355 = vmatpush1.msra.mxu0 0.0
      %1356 = vmatprep.subr.mxu0 0.0
      %1357 = vmatpush1.msra.mxu0 0.0
      %1358 = vmatprep.subr.mxu0 0.0
      %1359 = vmatpush1.msra.mxu0 0.0
      %1360 = vmatprep.subr.mxu0 0.0
      %1361 = vmatpush1.msra.mxu0 0.0
      %1362 = vmatprep.subr.mxu0 0.0
      %1363 = vmatpush1.msra.mxu0 0.0
      %1364 = vmatprep.subr.mxu0 0.0
      %1365 = vmatpush1.msra.mxu0 0.0
      %1366 = vmatprep.mubr.f32.mxu0 0.0
      %1367 = vmatmul.mubr.f32.gmra.mrb[0].mxu0 %v1282
      %v1368 = vpop.f32.mrb[0].mxu0
      %v1369 = vadd.f32 %v1278, %v1368
      %v1370 = vpop.f32.mrb[0].mxu0
      %1371 = vmatprep.mubr.f32.mxu0 0.0
      %1372 = vmatmul.mubr.f32.gmra.mrb[0].mxu0 %v1285
      %v1373 = vpop.f32.mrb[0].mxu0
      %v1374 = vadd.f32 %v1278, %v1373
      %v1375 = vpop.f32.mrb[0].mxu0
      %1376 = vmatprep.mubr.f32.mxu0 0.0
      %1377 = vmatmul.mubr.f32.gmra.mrb[0].mxu0 %v1288
      %v1378 = vpop.f32.mrb[0].mxu0
      %v1379 = vadd.f32 %v1278, %v1378
      %v1380 = vpop.f32.mrb[0].mxu0
      %1381 = vmatprep.mubr.f32.mxu0 0.0
      %1382 = vmatmul.mubr.f32.gmra.mrb[0].mxu0 %v1291
      %v1383 = vpop.f32.mrb[0].mxu0
      %v1384 = vadd.f32 %v1278, %v1383
      %v1385 = vpop.f32.mrb[0].mxu0
      %1386 = vmatprep.mubr.f32.mxu0 0.0
      %1387 = vmatmul.mubr.f32.gmra.mrb[0].mxu0 %v1294
      %v1388 = vpop.f32.mrb[0].mxu0
      %v1389 = vadd.f32 %v1278, %v1388
      %v1390 = vpop.f32.mrb[0].mxu0
      %1391 = vmatprep.mubr.f32.mxu0 0.0
      %1392 = vmatmul.mubr.f32.gmra.mrb[0].mxu0 %v1297
      %v1393 = vpop.f32.mrb[0].mxu0
      %v1394 = vadd.f32 %v1278, %v1393
      %v1395 = vpop.f32.mrb[0].mxu0
      %1396 = vmatprep.mubr.f32.mxu0 0.0
      %1397 = vmatmul.mubr.f32.gmra.mrb[0].mxu0 %v1300
      %v1398 = vpop.f32.mrb[0].mxu0
      %v1399 = vadd.f32 %v1278, %v1398
      %v1400 = vpop.f32.mrb[0].mxu0
      %1401 = vdwg.mxu0
      %v1402 = vmax.f32 %v1369, 0.0
      %v1403 = vmax.f32 %v1374, 0.0
      %v1404 = vmax.f32 %v1379, 0.0
      %v1405 = vmax.f32 %v1384, 0.0
      %v1406 = vmax.f32 %v1389, 0.0
      %v1407 = vmax.f32 %v1394, 0.0
      %v1408 = vmax.f32 %v1399, 0.0
      %v1409 = vld [vmem:[%s1113] sm:$0x3f]
      %v1410 = vld [vmem:[%s13] sm:$0xff]
      %v1411 = vld [vmem:[%s13 + $0x8] sm:$0xff]
      %v1412 = vld [vmem:[%s13 + $0x10] sm:$0xff]
      %v1413 = vld [vmem:[%s13 + $0x18] sm:$0xff]
      %v1414 = vld [vmem:[%s15] sm:$0x1]
      %v1416 = vlaneseq
      %v1417 = vshrl.u32 %v1416, 7
      %v1418 = vsub.s32 0, %v1417
      %v1419 = vrot.slane %v1414, %v1418
      %v1422 = vsel %vm1280, %v1409, 0
      %1424 = vmatprep.subr.mxu0 0.0
      %1425 = vmatpush1.msra.mxu0 %v1410
      %1426 = vmatprep.subr.mxu0 0.0
      %1427 = vmatpush1.msra.mxu0 %v1411
      %1428 = vmatprep.subr.mxu0 0.0
      %1429 = vmatpush1.msra.mxu0 %v1412
      %1430 = vmatprep.subr.mxu0 0.0
      %1431 = vmatpush1.msra.mxu0 %v1413
      %1432 = vmatprep.subr.mxu0 0.0
      %1433 = vmatpush1.msra.mxu0 0.0
      %1434 = vmatprep.subr.mxu0 0.0
      %1435 = vmatpush1.msra.mxu0 0.0
      %1436 = vmatprep.subr.mxu0 0.0
      %1437 = vmatpush1.msra.mxu0 0.0
      %1438 = vmatprep.subr.mxu0 0.0
      %1439 = vmatpush1.msra.mxu0 0.0
      %1440 = vmatprep.subr.mxu0 0.0
      %1441 = vmatpush1.msra.mxu0 0.0
      %1442 = vmatprep.subr.mxu0 0.0
      %1443 = vmatpush1.msra.mxu0 0.0
      %1444 = vmatprep.subr.mxu0 0.0
      %1445 = vmatpush1.msra.mxu0 0.0
      %1446 = vmatprep.subr.mxu0 0.0
      %1447 = vmatpush1.msra.mxu0 0.0
      %1448 = vmatprep.subr.mxu0 0.0
      %1449 = vmatpush1.msra.mxu0 0.0
      %1450 = vmatprep.subr.mxu0 0.0
      %1451 = vmatpush1.msra.mxu0 0.0
      %1452 = vmatprep.subr.mxu0 0.0
      %1453 = vmatpush1.msra.mxu0 0.0
      %1454 = vmatprep.subr.mxu0 0.0
      %1455 = vmatpush1.msra.mxu0 0.0
      %1456 = vmatprep.subr.mxu0 0.0
      %1457 = vmatpush1.msra.mxu0 0.0
      %1458 = vmatprep.subr.mxu0 0.0
      %1459 = vmatpush1.msra.mxu0 0.0
      %1460 = vmatprep.subr.mxu0 0.0
      %1461 = vmatpush1.msra.mxu0 0.0
      %1462 = vmatprep.subr.mxu0 0.0
      %1463 = vmatpush1.msra.mxu0 0.0
      %1464 = vmatprep.subr.mxu0 0.0
      %1465 = vmatpush1.msra.mxu0 0.0
      %1466 = vmatprep.subr.mxu0 0.0
      %1467 = vmatpush1.msra.mxu0 0.0
      %1468 = vmatprep.subr.mxu0 0.0
      %1469 = vmatpush1.msra.mxu0 0.0
      %1470 = vmatprep.subr.mxu0 0.0
      %1471 = vmatpush1.msra.mxu0 0.0
      %1472 = vmatprep.subr.mxu0 0.0
      %1473 = vmatpush1.msra.mxu0 0.0
      %1474 = vmatprep.subr.mxu0 0.0
      %1475 = vmatpush1.msra.mxu0 0.0
      %1476 = vmatprep.subr.mxu0 0.0
      %1477 = vmatpush1.msra.mxu0 0.0
      %1478 = vmatprep.subr.mxu0 0.0
      %1479 = vmatpush1.msra.mxu0 0.0
      %1480 = vmatprep.subr.mxu0 0.0
      %1481 = vmatpush1.msra.mxu0 0.0
      %1482 = vmatprep.subr.mxu0 0.0
      %1483 = vmatpush1.msra.mxu0 0.0
      %1484 = vmatprep.subr.mxu0 0.0
      %1485 = vmatpush1.msra.mxu0 0.0
      %1486 = vmatprep.subr.mxu0 0.0
      %1487 = vmatpush1.msra.mxu0 0.0
      %1488 = vmatprep.mubr.f32.mxu0 0.0
      %1489 = vmatmul.mubr.f32.gmra.mrb[0].mxu0 %v1422
      %v1490 = vpop.f32.mrb[0].mxu0
      %v1491 = vadd.f32 %v1419, %v1490
      %v1492 = vpop.f32.mrb[0].mxu0
      %1493 = vdwg.mxu0
      %v1494 = vmax.f32 %v1491, 0.0
      %v1495 = vld [vmem:[%s17] sm:$0xff]
      %v1496 = vld [vmem:[%s17 + $0x8] sm:$0xff]
      %v1497 = vld [vmem:[%s17 + $0x10] sm:$0xff]
      %v1498 = vld [vmem:[%s17 + $0x18] sm:$0xff]
      %v1500 = vsel %vm1280, %v1402, 0
      %v1503 = vsel %vm1280, %v1403, 0
      %v1506 = vsel %vm1280, %v1404, 0
      %v1509 = vsel %vm1280, %v1405, 0
      %v1512 = vsel %vm1280, %v1406, 0
      %v1515 = vsel %vm1280, %v1407, 0
      %v1518 = vsel %vm1280, %v1408, 0
      %1520 = vmatprep.subr.mxu0 0.0
      %1521 = vmatpush1.msra.mxu0 %v1495
      %1522 = vmatprep.subr.mxu0 0.0
      %1523 = vmatpush1.msra.mxu0 %v1496
      %1524 = vmatprep.subr.mxu0 0.0
      %1525 = vmatpush1.msra.mxu0 %v1497
      %1526 = vmatprep.subr.mxu0 0.0
      %1527 = vmatpush1.msra.mxu0 %v1498
      %1528 = vmatprep.subr.mxu0 0.0
      %1529 = vmatpush1.msra.mxu0 0.0
      %1530 = vmatprep.subr.mxu0 0.0
      %1531 = vmatpush1.msra.mxu0 0.0
      %1532 = vmatprep.subr.mxu0 0.0
      %1533 = vmatpush1.msra.mxu0 0.0
      %1534 = vmatprep.subr.mxu0 0.0
      %1535 = vmatpush1.msra.mxu0 0.0
      %1536 = vmatprep.subr.mxu0 0.0
      %1537 = vmatpush1.msra.mxu0 0.0
      %1538 = vmatprep.subr.mxu0 0.0
      %1539 = vmatpush1.msra.mxu0 0.0
      %1540 = vmatprep.subr.mxu0 0.0
      %1541 = vmatpush1.msra.mxu0 0.0
      %1542 = vmatprep.subr.mxu0 0.0
      %1543 = vmatpush1.msra.mxu0 0.0
      %1544 = vmatprep.subr.mxu0 0.0
      %1545 = vmatpush1.msra.mxu0 0.0
      %1546 = vmatprep.subr.mxu0 0.0
      %1547 = vmatpush1.msra.mxu0 0.0
      %1548 = vmatprep.subr.mxu0 0.0
      %1549 = vmatpush1.msra.mxu0 0.0
      %1550 = vmatprep.subr.mxu0 0.0
      %1551 = vmatpush1.msra.mxu0 0.0
      %1552 = vmatprep.subr.mxu0 0.0
      %1553 = vmatpush1.msra.mxu0 0.0
      %1554 = vmatprep.subr.mxu0 0.0
      %1555 = vmatpush1.msra.mxu0 0.0
      %1556 = vmatprep.subr.mxu0 0.0
      %1557 = vmatpush1.msra.mxu0 0.0
      %1558 = vmatprep.subr.mxu0 0.0
      %1559 = vmatpush1.msra.mxu0 0.0
      %1560 = vmatprep.subr.mxu0 0.0
      %1561 = vmatpush1.msra.mxu0 0.0
      %1562 = vmatprep.subr.mxu0 0.0
      %1563 = vmatpush1.msra.mxu0 0.0
      %1564 = vmatprep.subr.mxu0 0.0
      %1565 = vmatpush1.msra.mxu0 0.0
      %1566 = vmatprep.subr.mxu0 0.0
      %1567 = vmatpush1.msra.mxu0 0.0
      %1568 = vmatprep.subr.mxu0 0.0
      %1569 = vmatpush1.msra.mxu0 0.0
      %1570 = vmatprep.subr.mxu0 0.0
      %1571 = vmatpush1.msra.mxu0 0.0
      %1572 = vmatprep.subr.mxu0 0.0
      %1573 = vmatpush1.msra.mxu0 0.0
      %1574 = vmatprep.subr.mxu0 0.0
      %1575 = vmatpush1.msra.mxu0 0.0
      %1576 = vmatprep.subr.mxu0 0.0
      %1577 = vmatpush1.msra.mxu0 0.0
      %1578 = vmatprep.subr.mxu0 0.0
      %1579 = vmatpush1.msra.mxu0 0.0
      %1580 = vmatprep.subr.mxu0 0.0
      %1581 = vmatpush1.msra.mxu0 0.0
      %1582 = vmatprep.subr.mxu0 0.0
      %1583 = vmatpush1.msra.mxu0 0.0
      %1584 = vmatprep.mubr.f32.mxu0 0.0
      %1585 = vmatmul.mubr.f32.gmra.mrb[0].mxu0 %v1500
      %v1586 = vpop.f32.mrb[0].mxu0
      %v1587 = vadd.f32 0.0, %v1586
      %v1588 = vpop.f32.mrb[0].mxu0
      %1589 = vmatprep.mubr.f32.mxu0 0.0
      %1590 = vmatmul.mubr.f32.gmra.mrb[0].mxu0 %v1503
      %v1591 = vpop.f32.mrb[0].mxu0
      %v1592 = vadd.f32 0.0, %v1591
      %v1593 = vpop.f32.mrb[0].mxu0
      %1594 = vmatprep.mubr.f32.mxu0 0.0
      %1595 = vmatmul.mubr.f32.gmra.mrb[0].mxu0 %v1506
      %v1596 = vpop.f32.mrb[0].mxu0
      %v1597 = vadd.f32 0.0, %v1596
      %v1598 = vpop.f32.mrb[0].mxu0
      %1599 = vmatprep.mubr.f32.mxu0 0.0
      %1600 = vmatmul.mubr.f32.gmra.mrb[0].mxu0 %v1509
      %v1601 = vpop.f32.mrb[0].mxu0
      %v1602 = vadd.f32 0.0, %v1601
      %v1603 = vpop.f32.mrb[0].mxu0
      %1604 = vmatprep.mubr.f32.mxu0 0.0
      %1605 = vmatmul.mubr.f32.gmra.mrb[0].mxu0 %v1512
      %v1606 = vpop.f32.mrb[0].mxu0
      %v1607 = vadd.f32 0.0, %v1606
      %v1608 = vpop.f32.mrb[0].mxu0
      %1609 = vmatprep.mubr.f32.mxu0 0.0
      %1610 = vmatmul.mubr.f32.gmra.mrb[0].mxu0 %v1515
      %v1611 = vpop.f32.mrb[0].mxu0
      %v1612 = vadd.f32 0.0, %v1611
      %v1613 = vpop.f32.mrb[0].mxu0
      %1614 = vmatprep.mubr.f32.mxu0 0.0
      %1615 = vmatmul.mubr.f32.gmra.mrb[0].mxu0 %v1518
      %v1616 = vpop.f32.mrb[0].mxu0
      %v1617 = vadd.f32 0.0, %v1616
      %v1618 = vpop.f32.mrb[0].mxu0
      %1619 = vdwg.mxu0
      %v1620 = vld [vmem:[%s21] sm:$0x1]
      %v1621 = vld [vmem:[%s23] sm:$0x1]
      %v1622 = vld [vmem:[%s19] sm:$0xff]
      %v1623 = vld [vmem:[%s19 + $0x8] sm:$0xff]
      %v1624 = vld [vmem:[%s19 + $0x10] sm:$0xff]
      %v1625 = vld [vmem:[%s19 + $0x18] sm:$0xff]
      %v1627 = vsel %vm1280, %v1494, 0
      %1629 = vmatprep.subr.mxu0 0.0
      %1630 = vmatpush1.msra.mxu0 %v1622
      %1631 = vmatprep.subr.mxu0 0.0
      %1632 = vmatpush1.msra.mxu0 %v1623
      %1633 = vmatprep.subr.mxu0 0.0
      %1634 = vmatpush1.msra.mxu0 %v1624
      %1635 = vmatprep.subr.mxu0 0.0
      %1636 = vmatpush1.msra.mxu0 %v1625
      %1637 = vmatprep.subr.mxu0 0.0
      %1638 = vmatpush1.msra.mxu0 0.0
      %1639 = vmatprep.subr.mxu0 0.0
      %1640 = vmatpush1.msra.mxu0 0.0
      %1641 = vmatprep.subr.mxu0 0.0
      %1642 = vmatpush1.msra.mxu0 0.0
      %1643 = vmatprep.subr.mxu0 0.0
      %1644 = vmatpush1.msra.mxu0 0.0
      %1645 = vmatprep.subr.mxu0 0.0
      %1646 = vmatpush1.msra.mxu0 0.0
      %1647 = vmatprep.subr.mxu0 0.0
      %1648 = vmatpush1.msra.mxu0 0.0
      %1649 = vmatprep.subr.mxu0 0.0
      %1650 = vmatpush1.msra.mxu0 0.0
      %1651 = vmatprep.subr.mxu0 0.0
      %1652 = vmatpush1.msra.mxu0 0.0
      %1653 = vmatprep.subr.mxu0 0.0
      %1654 = vmatpush1.msra.mxu0 0.0
      %1655 = vmatprep.subr.mxu0 0.0
      %1656 = vmatpush1.msra.mxu0 0.0
      %1657 = vmatprep.subr.mxu0 0.0
      %1658 = vmatpush1.msra.mxu0 0.0
      %1659 = vmatprep.subr.mxu0 0.0
      %1660 = vmatpush1.msra.mxu0 0.0
      %1661 = vmatprep.subr.mxu0 0.0
      %1662 = vmatpush1.msra.mxu0 0.0
      %1663 = vmatprep.subr.mxu0 0.0
      %1664 = vmatpush1.msra.mxu0 0.0
      %1665 = vmatprep.subr.mxu0 0.0
      %1666 = vmatpush1.msra.mxu0 0.0
      %1667 = vmatprep.subr.mxu0 0.0
      %1668 = vmatpush1.msra.mxu0 0.0
      %1669 = vmatprep.subr.mxu0 0.0
      %1670 = vmatpush1.msra.mxu0 0.0
      %1671 = vmatprep.subr.mxu0 0.0
      %1672 = vmatpush1.msra.mxu0 0.0
      %1673 = vmatprep.subr.mxu0 0.0
      %1674 = vmatpush1.msra.mxu0 0.0
      %1675 = vmatprep.subr.mxu0 0.0
      %1676 = vmatpush1.msra.mxu0 0.0
      %1677 = vmatprep.subr.mxu0 0.0
      %1678 = vmatpush1.msra.mxu0 0.0
      %1679 = vmatprep.subr.mxu0 0.0
      %1680 = vmatpush1.msra.mxu0 0.0
      %1681 = vmatprep.subr.mxu0 0.0
      %1682 = vmatpush1.msra.mxu0 0.0
      %1683 = vmatprep.subr.mxu0 0.0
      %1684 = vmatpush1.msra.mxu0 0.0
      %1685 = vmatprep.subr.mxu0 0.0
      %1686 = vmatpush1.msra.mxu0 0.0
      %1687 = vmatprep.subr.mxu0 0.0
      %1688 = vmatpush1.msra.mxu0 0.0
      %1689 = vmatprep.subr.mxu0 0.0
      %1690 = vmatpush1.msra.mxu0 0.0
      %1691 = vmatprep.subr.mxu0 0.0
      %1692 = vmatpush1.msra.mxu0 0.0
      %1693 = vmatprep.mubr.f32.mxu0 0.0
      %1694 = vmatmul.mubr.f32.gmra.mrb[0].mxu0 %v1627
      %v1695 = vpop.f32.mrb[0].mxu0
      %v1696 = vadd.f32 0.0, %v1695
      %v1697 = vpop.f32.mrb[0].mxu0
      %1698 = vdwg.mxu0
      %v1699 = vlaneseq
      %v1700 = vshrl.u32 %v1699, 7
      %v1701 = vsub.s32 0, %v1700
      %v1702 = vrot.slane %v1696, %v1701
      %v1703 = vadd.f32 %v1587, %v1702
      %v1704 = vadd.f32 %v1592, %v1702
      %v1705 = vadd.f32 %v1597, %v1702
      %v1706 = vadd.f32 %v1602, %v1702
      %v1707 = vadd.f32 %v1607, %v1702
      %v1708 = vadd.f32 %v1612, %v1702
      %v1709 = vadd.f32 %v1617, %v1702
      %v1711 = vlaneseq
      %v1712 = vshrl.u32 %v1711, 7
      %v1713 = vsub.s32 0, %v1712
      %v1714 = vrot.slane %v1620, %v1713
      %v1716 = vadd.f32 %v1703, %v1714
      %v1717 = vadd.f32 %v1704, %v1714
      %v1718 = vadd.f32 %v1705, %v1714
      %v1719 = vadd.f32 %v1706, %v1714
      %v1720 = vadd.f32 %v1707, %v1714
      %v1721 = vadd.f32 %v1708, %v1714
      %v1722 = vadd.f32 %v1709, %v1714
      %v1723 = vmax.f32 %v1716, 0.0
      %v1724 = vmax.f32 %v1717, 0.0
      %v1725 = vmax.f32 %v1718, 0.0
      %v1726 = vmax.f32 %v1719, 0.0
      %v1727 = vmax.f32 %v1720, 0.0
      %v1728 = vmax.f32 %v1721, 0.0
      %v1729 = vmax.f32 %v1722, 0.0
      %v1731 = vsel %vm1280, %v1621, 0
      %v1734 = vsel %vm1280, %v1723, 0
      %v1737 = vsel %vm1280, %v1724, 0
      %v1740 = vsel %vm1280, %v1725, 0
      %v1743 = vsel %vm1280, %v1726, 0
      %v1746 = vsel %vm1280, %v1727, 0
      %v1749 = vsel %vm1280, %v1728, 0
      %v1752 = vsel %vm1280, %v1729, 0
      %1754 = vmatprep.subr.mxu0 0.0
      %1755 = vmatpush1.xpose.msra.mxu0 %v1734
      %1756 = vmatprep.subr.mxu0 0.0
      %1757 = vmatpush1.xpose.msra.mxu0 %v1737
      %1758 = vmatprep.subr.mxu0 0.0
      %1759 = vmatpush1.xpose.msra.mxu0 %v1740
      %1760 = vmatprep.subr.mxu0 0.0
      %1761 = vmatpush1.xpose.msra.mxu0 %v1743
      %1762 = vmatprep.subr.mxu0 0.0
      %1763 = vmatpush1.xpose.msra.mxu0 %v1746
      %1764 = vmatprep.subr.mxu0 0.0
      %1765 = vmatpush1.xpose.msra.mxu0 %v1749
      %1766 = vmatprep.subr.mxu0 0.0
      %1767 = vmatpush1.xpose.msra.mxu0 %v1752
      %1768 = vmatprep.subr.mxu0 0.0
      %1769 = vmatpush1.xpose.msra.mxu0 0.0
      %1770 = vmatprep.subr.mxu0 0.0
      %1771 = vmatpush1.xpose.msra.mxu0 0.0
      %1772 = vmatprep.subr.mxu0 0.0
      %1773 = vmatpush1.xpose.msra.mxu0 0.0
      %1774 = vmatprep.subr.mxu0 0.0
      %1775 = vmatpush1.xpose.msra.mxu0 0.0
      %1776 = vmatprep.subr.mxu0 0.0
      %1777 = vmatpush1.xpose.msra.mxu0 0.0
      %1778 = vmatprep.subr.mxu0 0.0
      %1779 = vmatpush1.xpose.msra.mxu0 0.0
      %1780 = vmatprep.subr.mxu0 0.0
      %1781 = vmatpush1.xpose.msra.mxu0 0.0
      %1782 = vmatprep.subr.mxu0 0.0
      %1783 = vmatpush1.xpose.msra.mxu0 0.0
      %1784 = vmatprep.subr.mxu0 0.0
      %1785 = vmatpush1.xpose.msra.mxu0 0.0
      %1786 = vmatprep.subr.mxu0 0.0
      %1787 = vmatpush1.xpose.msra.mxu0 0.0
      %1788 = vmatprep.subr.mxu0 0.0
      %1789 = vmatpush1.xpose.msra.mxu0 0.0
      %1790 = vmatprep.subr.mxu0 0.0
      %1791 = vmatpush1.xpose.msra.mxu0 0.0
      %1792 = vmatprep.subr.mxu0 0.0
      %1793 = vmatpush1.xpose.msra.mxu0 0.0
      %1794 = vmatprep.subr.mxu0 0.0
      %1795 = vmatpush1.xpose.msra.mxu0 0.0
      %1796 = vmatprep.subr.mxu0 0.0
      %1797 = vmatpush1.xpose.msra.mxu0 0.0
      %1798 = vmatprep.subr.mxu0 0.0
      %1799 = vmatpush1.xpose.msra.mxu0 0.0
      %1800 = vmatprep.subr.mxu0 0.0
      %1801 = vmatpush1.xpose.msra.mxu0 0.0
      %1802 = vmatprep.subr.mxu0 0.0
      %1803 = vmatpush1.xpose.msra.mxu0 0.0
      %1804 = vmatprep.subr.mxu0 0.0
      %1805 = vmatpush1.xpose.msra.mxu0 0.0
      %1806 = vmatprep.subr.mxu0 0.0
      %1807 = vmatpush1.xpose.msra.mxu0 0.0
      %1808 = vmatprep.subr.mxu0 0.0
      %1809 = vmatpush1.xpose.msra.mxu0 0.0
      %1810 = vmatprep.subr.mxu0 0.0
      %1811 = vmatpush1.xpose.msra.mxu0 0.0
      %1812 = vmatprep.subr.mxu0 0.0
      %1813 = vmatpush1.xpose.msra.mxu0 0.0
      %1814 = vmatprep.subr.mxu0 0.0
      %1815 = vmatpush1.xpose.msra.mxu0 0.0
      %1816 = vmatprep.subr.mxu0 0.0
      %1817 = vmatpush1.xpose.msra.mxu0 0.0
      %1818 = vmatprep.mubr.f32.mxu0 0.0
      %1819 = vmatmul.mubr.f32.gmra.mrb[0].mxu0 %v1731
      %v1820 = vpop.f32.mrb[0].mxu0
      %v1821 = vadd.f32 0.0, %v1820
      %v1822 = vpop.f32.mrb[0].mxu0
      %1823 = vdwg.mxu0
      %v1824 = vlaneseq
      %v1825 = vshrl.u32 %v1824, 7
      %v1826 = vsub.s32 1, %v1825
      %v1827 = vrot.slane %v1696, %v1826
      %v1828 = vadd.f32 %v1587, %v1827
      %v1829 = vadd.f32 %v1592, %v1827
      %v1830 = vadd.f32 %v1597, %v1827
      %v1831 = vadd.f32 %v1602, %v1827
      %v1832 = vadd.f32 %v1607, %v1827
      %v1833 = vadd.f32 %v1612, %v1827
      %v1834 = vadd.f32 %v1617, %v1827
      %v1835 = vadd.f32 %v1828, %v1714
      %v1836 = vadd.f32 %v1829, %v1714
      %v1837 = vadd.f32 %v1830, %v1714
      %v1838 = vadd.f32 %v1831, %v1714
      %v1839 = vadd.f32 %v1832, %v1714
      %v1840 = vadd.f32 %v1833, %v1714
      %v1841 = vadd.f32 %v1834, %v1714
      %v1842 = vmax.f32 %v1835, 0.0
      %v1843 = vmax.f32 %v1836, 0.0
      %v1844 = vmax.f32 %v1837, 0.0
      %v1845 = vmax.f32 %v1838, 0.0
      %v1846 = vmax.f32 %v1839, 0.0
      %v1847 = vmax.f32 %v1840, 0.0
      %v1848 = vmax.f32 %v1841, 0.0
      %v1850 = vsel %vm1280, %v1842, 0
      %v1853 = vsel %vm1280, %v1843, 0
      %v1856 = vsel %vm1280, %v1844, 0
      %v1859 = vsel %vm1280, %v1845, 0
      %v1862 = vsel %vm1280, %v1846, 0
      %v1865 = vsel %vm1280, %v1847, 0
      %v1868 = vsel %vm1280, %v1848, 0
      %1870 = vmatprep.subr.mxu0 0.0
      %1871 = vmatpush1.xpose.msra.mxu0 %v1850
      %1872 = vmatprep.subr.mxu0 0.0
      %1873 = vmatpush1.xpose.msra.mxu0 %v1853
      %1874 = vmatprep.subr.mxu0 0.0
      %1875 = vmatpush1.xpose.msra.mxu0 %v1856
      %1876 = vmatprep.subr.mxu0 0.0
      %1877 = vmatpush1.xpose.msra.mxu0 %v1859
      %1878 = vmatprep.subr.mxu0 0.0
      %1879 = vmatpush1.xpose.msra.mxu0 %v1862
      %1880 = vmatprep.subr.mxu0 0.0
      %1881 = vmatpush1.xpose.msra.mxu0 %v1865
      %1882 = vmatprep.subr.mxu0 0.0
      %1883 = vmatpush1.xpose.msra.mxu0 %v1868
      %1884 = vmatprep.subr.mxu0 0.0
      %1885 = vmatpush1.xpose.msra.mxu0 0.0
      %1886 = vmatprep.subr.mxu0 0.0
      %1887 = vmatpush1.xpose.msra.mxu0 0.0
      %1888 = vmatprep.subr.mxu0 0.0
      %1889 = vmatpush1.xpose.msra.mxu0 0.0
      %1890 = vmatprep.subr.mxu0 0.0
      %1891 = vmatpush1.xpose.msra.mxu0 0.0
      %1892 = vmatprep.subr.mxu0 0.0
      %1893 = vmatpush1.xpose.msra.mxu0 0.0
      %1894 = vmatprep.subr.mxu0 0.0
      %1895 = vmatpush1.xpose.msra.mxu0 0.0
      %1896 = vmatprep.subr.mxu0 0.0
      %1897 = vmatpush1.xpose.msra.mxu0 0.0
      %1898 = vmatprep.subr.mxu0 0.0
      %1899 = vmatpush1.xpose.msra.mxu0 0.0
      %1900 = vmatprep.subr.mxu0 0.0
      %1901 = vmatpush1.xpose.msra.mxu0 0.0
      %1902 = vmatprep.subr.mxu0 0.0
      %1903 = vmatpush1.xpose.msra.mxu0 0.0
      %1904 = vmatprep.subr.mxu0 0.0
      %1905 = vmatpush1.xpose.msra.mxu0 0.0
      %1906 = vmatprep.subr.mxu0 0.0
      %1907 = vmatpush1.xpose.msra.mxu0 0.0
      %1908 = vmatprep.subr.mxu0 0.0
      %1909 = vmatpush1.xpose.msra.mxu0 0.0
      %1910 = vmatprep.subr.mxu0 0.0
      %1911 = vmatpush1.xpose.msra.mxu0 0.0
      %1912 = vmatprep.subr.mxu0 0.0
      %1913 = vmatpush1.xpose.msra.mxu0 0.0
      %1914 = vmatprep.subr.mxu0 0.0
      %1915 = vmatpush1.xpose.msra.mxu0 0.0
      %1916 = vmatprep.subr.mxu0 0.0
      %1917 = vmatpush1.xpose.msra.mxu0 0.0
      %1918 = vmatprep.subr.mxu0 0.0
      %1919 = vmatpush1.xpose.msra.mxu0 0.0
      %1920 = vmatprep.subr.mxu0 0.0
      %1921 = vmatpush1.xpose.msra.mxu0 0.0
      %1922 = vmatprep.subr.mxu0 0.0
      %1923 = vmatpush1.xpose.msra.mxu0 0.0
      %1924 = vmatprep.subr.mxu0 0.0
      %1925 = vmatpush1.xpose.msra.mxu0 0.0
      %1926 = vmatprep.subr.mxu0 0.0
      %1927 = vmatpush1.xpose.msra.mxu0 0.0
      %1928 = vmatprep.subr.mxu0 0.0
      %1929 = vmatpush1.xpose.msra.mxu0 0.0
      %1930 = vmatprep.subr.mxu0 0.0
      %1931 = vmatpush1.xpose.msra.mxu0 0.0
      %1932 = vmatprep.subr.mxu0 0.0
      %1933 = vmatpush1.xpose.msra.mxu0 0.0
      %1934 = vmatprep.mubr.f32.mxu0 0.0
      %1935 = vmatmul.mubr.f32.gmra.mrb[0].mxu0 %v1731
      %v1936 = vpop.f32.mrb[0].mxu0
      %v1937 = vadd.f32 0.0, %v1936
      %v1938 = vpop.f32.mrb[0].mxu0
      %1939 = vdwg.mxu0
      %v1940 = vlaneseq
      %v1941 = vshrl.u32 %v1940, 7
      %v1942 = vsub.s32 2, %v1941
      %v1943 = vrot.slane %v1696, %v1942
      %v1944 = vadd.f32 %v1587, %v1943
      %v1945 = vadd.f32 %v1592, %v1943
      %v1946 = vadd.f32 %v1597, %v1943
      %v1947 = vadd.f32 %v1602, %v1943
      %v1948 = vadd.f32 %v1607, %v1943
      %v1949 = vadd.f32 %v1612, %v1943
      %v1950 = vadd.f32 %v1617, %v1943
      %v1951 = vadd.f32 %v1944, %v1714
      %v1952 = vadd.f32 %v1945, %v1714
      %v1953 = vadd.f32 %v1946, %v1714
      %v1954 = vadd.f32 %v1947, %v1714
      %v1955 = vadd.f32 %v1948, %v1714
      %v1956 = vadd.f32 %v1949, %v1714
      %v1957 = vadd.f32 %v1950, %v1714
      %v1958 = vmax.f32 %v1951, 0.0
      %v1959 = vmax.f32 %v1952, 0.0
      %v1960 = vmax.f32 %v1953, 0.0
      %v1961 = vmax.f32 %v1954, 0.0
      %v1962 = vmax.f32 %v1955, 0.0
      %v1963 = vmax.f32 %v1956, 0.0
      %v1964 = vmax.f32 %v1957, 0.0
      %v1966 = vsel %vm1280, %v1958, 0
      %v1969 = vsel %vm1280, %v1959, 0
      %v1972 = vsel %vm1280, %v1960, 0
      %v1975 = vsel %vm1280, %v1961, 0
      %v1978 = vsel %vm1280, %v1962, 0
      %v1981 = vsel %vm1280, %v1963, 0
      %v1984 = vsel %vm1280, %v1964, 0
      %1986 = vmatprep.subr.mxu0 0.0
      %1987 = vmatpush1.xpose.msra.mxu0 %v1966
      %1988 = vmatprep.subr.mxu0 0.0
      %1989 = vmatpush1.xpose.msra.mxu0 %v1969
      %1990 = vmatprep.subr.mxu0 0.0
      %1991 = vmatpush1.xpose.msra.mxu0 %v1972
      %1992 = vmatprep.subr.mxu0 0.0
      %1993 = vmatpush1.xpose.msra.mxu0 %v1975
      %1994 = vmatprep.subr.mxu0 0.0
      %1995 = vmatpush1.xpose.msra.mxu0 %v1978
      %1996 = vmatprep.subr.mxu0 0.0
      %1997 = vmatpush1.xpose.msra.mxu0 %v1981
      %1998 = vmatprep.subr.mxu0 0.0
      %1999 = vmatpush1.xpose.msra.mxu0 %v1984
      %2000 = vmatprep.subr.mxu0 0.0
      %2001 = vmatpush1.xpose.msra.mxu0 0.0
      %2002 = vmatprep.subr.mxu0 0.0
      %2003 = vmatpush1.xpose.msra.mxu0 0.0
      %2004 = vmatprep.subr.mxu0 0.0
      %2005 = vmatpush1.xpose.msra.mxu0 0.0
      %2006 = vmatprep.subr.mxu0 0.0
      %2007 = vmatpush1.xpose.msra.mxu0 0.0
      %2008 = vmatprep.subr.mxu0 0.0
      %2009 = vmatpush1.xpose.msra.mxu0 0.0
      %2010 = vmatprep.subr.mxu0 0.0
      %2011 = vmatpush1.xpose.msra.mxu0 0.0
      %2012 = vmatprep.subr.mxu0 0.0
      %2013 = vmatpush1.xpose.msra.mxu0 0.0
      %2014 = vmatprep.subr.mxu0 0.0
      %2015 = vmatpush1.xpose.msra.mxu0 0.0
      %2016 = vmatprep.subr.mxu0 0.0
      %2017 = vmatpush1.xpose.msra.mxu0 0.0
      %2018 = vmatprep.subr.mxu0 0.0
      %2019 = vmatpush1.xpose.msra.mxu0 0.0
      %2020 = vmatprep.subr.mxu0 0.0
      %2021 = vmatpush1.xpose.msra.mxu0 0.0
      %2022 = vmatprep.subr.mxu0 0.0
      %2023 = vmatpush1.xpose.msra.mxu0 0.0
      %2024 = vmatprep.subr.mxu0 0.0
      %2025 = vmatpush1.xpose.msra.mxu0 0.0
      %2026 = vmatprep.subr.mxu0 0.0
      %2027 = vmatpush1.xpose.msra.mxu0 0.0
      %2028 = vmatprep.subr.mxu0 0.0
      %2029 = vmatpush1.xpose.msra.mxu0 0.0
      %2030 = vmatprep.subr.mxu0 0.0
      %2031 = vmatpush1.xpose.msra.mxu0 0.0
      %2032 = vmatprep.subr.mxu0 0.0
      %2033 = vmatpush1.xpose.msra.mxu0 0.0
      %2034 = vmatprep.subr.mxu0 0.0
      %2035 = vmatpush1.xpose.msra.mxu0 0.0
      %2036 = vmatprep.subr.mxu0 0.0
      %2037 = vmatpush1.xpose.msra.mxu0 0.0
      %2038 = vmatprep.subr.mxu0 0.0
      %2039 = vmatpush1.xpose.msra.mxu0 0.0
      %2040 = vmatprep.subr.mxu0 0.0
      %2041 = vmatpush1.xpose.msra.mxu0 0.0
      %2042 = vmatprep.subr.mxu0 0.0
      %2043 = vmatpush1.xpose.msra.mxu0 0.0
      %2044 = vmatprep.subr.mxu0 0.0
      %2045 = vmatpush1.xpose.msra.mxu0 0.0
      %2046 = vmatprep.subr.mxu0 0.0
      %2047 = vmatpush1.xpose.msra.mxu0 0.0
      %2048 = vmatprep.subr.mxu0 0.0
      %2049 = vmatpush1.xpose.msra.mxu0 0.0
      %2050 = vmatprep.mubr.f32.mxu0 0.0
      %2051 = vmatmul.mubr.f32.gmra.mrb[0].mxu0 %v1731
      %v2052 = vpop.f32.mrb[0].mxu0
      %v2053 = vadd.f32 0.0, %v2052
      %v2054 = vpop.f32.mrb[0].mxu0
      %2055 = vdwg.mxu0
      %v2056 = vlaneseq
      %v2057 = vshrl.u32 %v2056, 7
      %v2058 = vsub.s32 3, %v2057
      %v2059 = vrot.slane %v1696, %v2058
      %v2060 = vadd.f32 %v1587, %v2059
      %v2061 = vadd.f32 %v1592, %v2059
      %v2062 = vadd.f32 %v1597, %v2059
      %v2063 = vadd.f32 %v1602, %v2059
      %v2064 = vadd.f32 %v1607, %v2059
      %v2065 = vadd.f32 %v1612, %v2059
      %v2066 = vadd.f32 %v1617, %v2059
      %v2067 = vadd.f32 %v2060, %v1714
      %v2068 = vadd.f32 %v2061, %v1714
      %v2069 = vadd.f32 %v2062, %v1714
      %v2070 = vadd.f32 %v2063, %v1714
      %v2071 = vadd.f32 %v2064, %v1714
      %v2072 = vadd.f32 %v2065, %v1714
      %v2073 = vadd.f32 %v2066, %v1714
      %v2074 = vmax.f32 %v2067, 0.0
      %v2075 = vmax.f32 %v2068, 0.0
      %v2076 = vmax.f32 %v2069, 0.0
      %v2077 = vmax.f32 %v2070, 0.0
      %v2078 = vmax.f32 %v2071, 0.0
      %v2079 = vmax.f32 %v2072, 0.0
      %v2080 = vmax.f32 %v2073, 0.0
      %v2082 = vsel %vm1280, %v2074, 0
      %v2085 = vsel %vm1280, %v2075, 0
      %v2088 = vsel %vm1280, %v2076, 0
      %v2091 = vsel %vm1280, %v2077, 0
      %v2094 = vsel %vm1280, %v2078, 0
      %v2097 = vsel %vm1280, %v2079, 0
      %v2100 = vsel %vm1280, %v2080, 0
      %2102 = vmatprep.subr.mxu0 0.0
      %2103 = vmatpush1.xpose.msra.mxu0 %v2082
      %2104 = vmatprep.subr.mxu0 0.0
      %2105 = vmatpush1.xpose.msra.mxu0 %v2085
      %2106 = vmatprep.subr.mxu0 0.0
      %2107 = vmatpush1.xpose.msra.mxu0 %v2088
      %2108 = vmatprep.subr.mxu0 0.0
      %2109 = vmatpush1.xpose.msra.mxu0 %v2091
      %2110 = vmatprep.subr.mxu0 0.0
      %2111 = vmatpush1.xpose.msra.mxu0 %v2094
      %2112 = vmatprep.subr.mxu0 0.0
      %2113 = vmatpush1.xpose.msra.mxu0 %v2097
      %2114 = vmatprep.subr.mxu0 0.0
      %2115 = vmatpush1.xpose.msra.mxu0 %v2100
      %2116 = vmatprep.subr.mxu0 0.0
      %2117 = vmatpush1.xpose.msra.mxu0 0.0
      %2118 = vmatprep.subr.mxu0 0.0
      %2119 = vmatpush1.xpose.msra.mxu0 0.0
      %2120 = vmatprep.subr.mxu0 0.0
      %2121 = vmatpush1.xpose.msra.mxu0 0.0
      %2122 = vmatprep.subr.mxu0 0.0
      %2123 = vmatpush1.xpose.msra.mxu0 0.0
      %2124 = vmatprep.subr.mxu0 0.0
      %2125 = vmatpush1.xpose.msra.mxu0 0.0
      %2126 = vmatprep.subr.mxu0 0.0
      %2127 = vmatpush1.xpose.msra.mxu0 0.0
      %2128 = vmatprep.subr.mxu0 0.0
      %2129 = vmatpush1.xpose.msra.mxu0 0.0
      %2130 = vmatprep.subr.mxu0 0.0
      %2131 = vmatpush1.xpose.msra.mxu0 0.0
      %2132 = vmatprep.subr.mxu0 0.0
      %2133 = vmatpush1.xpose.msra.mxu0 0.0
      %2134 = vmatprep.subr.mxu0 0.0
      %2135 = vmatpush1.xpose.msra.mxu0 0.0
      %2136 = vmatprep.subr.mxu0 0.0
      %2137 = vmatpush1.xpose.msra.mxu0 0.0
      %2138 = vmatprep.subr.mxu0 0.0
      %2139 = vmatpush1.xpose.msra.mxu0 0.0
      %2140 = vmatprep.subr.mxu0 0.0
      %2141 = vmatpush1.xpose.msra.mxu0 0.0
      %2142 = vmatprep.subr.mxu0 0.0
      %2143 = vmatpush1.xpose.msra.mxu0 0.0
      %2144 = vmatprep.subr.mxu0 0.0
      %2145 = vmatpush1.xpose.msra.mxu0 0.0
      %2146 = vmatprep.subr.mxu0 0.0
      %2147 = vmatpush1.xpose.msra.mxu0 0.0
      %2148 = vmatprep.subr.mxu0 0.0
      %2149 = vmatpush1.xpose.msra.mxu0 0.0
      %2150 = vmatprep.subr.mxu0 0.0
      %2151 = vmatpush1.xpose.msra.mxu0 0.0
      %2152 = vmatprep.subr.mxu0 0.0
      %2153 = vmatpush1.xpose.msra.mxu0 0.0
      %2154 = vmatprep.subr.mxu0 0.0
      %2155 = vmatpush1.xpose.msra.mxu0 0.0
      %2156 = vmatprep.subr.mxu0 0.0
      %2157 = vmatpush1.xpose.msra.mxu0 0.0
      %2158 = vmatprep.subr.mxu0 0.0
      %2159 = vmatpush1.xpose.msra.mxu0 0.0
      %2160 = vmatprep.subr.mxu0 0.0
      %2161 = vmatpush1.xpose.msra.mxu0 0.0
      %2162 = vmatprep.subr.mxu0 0.0
      %2163 = vmatpush1.xpose.msra.mxu0 0.0
      %2164 = vmatprep.subr.mxu0 0.0
      %2165 = vmatpush1.xpose.msra.mxu0 0.0
      %2166 = vmatprep.mubr.f32.mxu0 0.0
      %2167 = vmatmul.mubr.f32.gmra.mrb[0].mxu0 %v1731
      %v2168 = vpop.f32.mrb[0].mxu0
      %v2169 = vadd.f32 0.0, %v2168
      %v2170 = vpop.f32.mrb[0].mxu0
      %2171 = vdwg.mxu0
      %v2172 = vlaneseq
      %v2173 = vshrl.u32 %v2172, 7
      %v2174 = vsub.s32 4, %v2173
      %v2175 = vrot.slane %v1696, %v2174
      %v2176 = vadd.f32 %v1587, %v2175
      %v2177 = vadd.f32 %v1592, %v2175
      %v2178 = vadd.f32 %v1597, %v2175
      %v2179 = vadd.f32 %v1602, %v2175
      %v2180 = vadd.f32 %v1607, %v2175
      %v2181 = vadd.f32 %v1612, %v2175
      %v2182 = vadd.f32 %v1617, %v2175
      %v2183 = vadd.f32 %v2176, %v1714
      %v2184 = vadd.f32 %v2177, %v1714
      %v2185 = vadd.f32 %v2178, %v1714
      %v2186 = vadd.f32 %v2179, %v1714
      %v2187 = vadd.f32 %v2180, %v1714
      %v2188 = vadd.f32 %v2181, %v1714
      %v2189 = vadd.f32 %v2182, %v1714
      %v2190 = vmax.f32 %v2183, 0.0
      %v2191 = vmax.f32 %v2184, 0.0
      %v2192 = vmax.f32 %v2185, 0.0
      %v2193 = vmax.f32 %v2186, 0.0
      %v2194 = vmax.f32 %v2187, 0.0
      %v2195 = vmax.f32 %v2188, 0.0
      %v2196 = vmax.f32 %v2189, 0.0
      %v2198 = vsel %vm1280, %v2190, 0
      %v2201 = vsel %vm1280, %v2191, 0
      %v2204 = vsel %vm1280, %v2192, 0
      %v2207 = vsel %vm1280, %v2193, 0
      %v2210 = vsel %vm1280, %v2194, 0
      %v2213 = vsel %vm1280, %v2195, 0
      %v2216 = vsel %vm1280, %v2196, 0
      %2218 = vmatprep.subr.mxu0 0.0
      %2219 = vmatpush1.xpose.msra.mxu0 %v2198
      %2220 = vmatprep.subr.mxu0 0.0
      %2221 = vmatpush1.xpose.msra.mxu0 %v2201
      %2222 = vmatprep.subr.mxu0 0.0
      %2223 = vmatpush1.xpose.msra.mxu0 %v2204
      %2224 = vmatprep.subr.mxu0 0.0
      %2225 = vmatpush1.xpose.msra.mxu0 %v2207
      %2226 = vmatprep.subr.mxu0 0.0
      %2227 = vmatpush1.xpose.msra.mxu0 %v2210
      %2228 = vmatprep.subr.mxu0 0.0
      %2229 = vmatpush1.xpose.msra.mxu0 %v2213
      %2230 = vmatprep.subr.mxu0 0.0
      %2231 = vmatpush1.xpose.msra.mxu0 %v2216
      %2232 = vmatprep.subr.mxu0 0.0
      %2233 = vmatpush1.xpose.msra.mxu0 0.0
      %2234 = vmatprep.subr.mxu0 0.0
      %2235 = vmatpush1.xpose.msra.mxu0 0.0
      %2236 = vmatprep.subr.mxu0 0.0
      %2237 = vmatpush1.xpose.msra.mxu0 0.0
      %2238 = vmatprep.subr.mxu0 0.0
      %2239 = vmatpush1.xpose.msra.mxu0 0.0
      %2240 = vmatprep.subr.mxu0 0.0
      %2241 = vmatpush1.xpose.msra.mxu0 0.0
      %2242 = vmatprep.subr.mxu0 0.0
      %2243 = vmatpush1.xpose.msra.mxu0 0.0
      %2244 = vmatprep.subr.mxu0 0.0
      %2245 = vmatpush1.xpose.msra.mxu0 0.0
      %2246 = vmatprep.subr.mxu0 0.0
      %2247 = vmatpush1.xpose.msra.mxu0 0.0
      %2248 = vmatprep.subr.mxu0 0.0
      %2249 = vmatpush1.xpose.msra.mxu0 0.0
      %2250 = vmatprep.subr.mxu0 0.0
      %2251 = vmatpush1.xpose.msra.mxu0 0.0
      %2252 = vmatprep.subr.mxu0 0.0
      %2253 = vmatpush1.xpose.msra.mxu0 0.0
      %2254 = vmatprep.subr.mxu0 0.0
      %2255 = vmatpush1.xpose.msra.mxu0 0.0
      %2256 = vmatprep.subr.mxu0 0.0
      %2257 = vmatpush1.xpose.msra.mxu0 0.0
      %2258 = vmatprep.subr.mxu0 0.0
      %2259 = vmatpush1.xpose.msra.mxu0 0.0
      %2260 = vmatprep.subr.mxu0 0.0
      %2261 = vmatpush1.xpose.msra.mxu0 0.0
      %2262 = vmatprep.subr.mxu0 0.0
      %2263 = vmatpush1.xpose.msra.mxu0 0.0
      %2264 = vmatprep.subr.mxu0 0.0
      %2265 = vmatpush1.xpose.msra.mxu0 0.0
      %2266 = vmatprep.subr.mxu0 0.0
      %2267 = vmatpush1.xpose.msra.mxu0 0.0
      %2268 = vmatprep.subr.mxu0 0.0
      %2269 = vmatpush1.xpose.msra.mxu0 0.0
      %2270 = vmatprep.subr.mxu0 0.0
      %2271 = vmatpush1.xpose.msra.mxu0 0.0
      %2272 = vmatprep.subr.mxu0 0.0
      %2273 = vmatpush1.xpose.msra.mxu0 0.0
      %2274 = vmatprep.subr.mxu0 0.0
      %2275 = vmatpush1.xpose.msra.mxu0 0.0
      %2276 = vmatprep.subr.mxu0 0.0
      %2277 = vmatpush1.xpose.msra.mxu0 0.0
      %2278 = vmatprep.subr.mxu0 0.0
      %2279 = vmatpush1.xpose.msra.mxu0 0.0
      %2280 = vmatprep.subr.mxu0 0.0
      %2281 = vmatpush1.xpose.msra.mxu0 0.0
      %2282 = vmatprep.mubr.f32.mxu0 0.0
      %2283 = vmatmul.mubr.f32.gmra.mrb[0].mxu0 %v1731
      %v2284 = vpop.f32.mrb[0].mxu0
      %v2285 = vadd.f32 0.0, %v2284
      %v2286 = vpop.f32.mrb[0].mxu0
      %2287 = vdwg.mxu0
      %v2288 = vlaneseq
      %v2289 = vshrl.u32 %v2288, 7
      %v2290 = vsub.s32 5, %v2289
      %v2291 = vrot.slane %v1696, %v2290
      %v2292 = vadd.f32 %v1587, %v2291
      %v2293 = vadd.f32 %v1592, %v2291
      %v2294 = vadd.f32 %v1597, %v2291
      %v2295 = vadd.f32 %v1602, %v2291
      %v2296 = vadd.f32 %v1607, %v2291
      %v2297 = vadd.f32 %v1612, %v2291
      %v2298 = vadd.f32 %v1617, %v2291
      %v2299 = vadd.f32 %v2292, %v1714
      %v2300 = vadd.f32 %v2293, %v1714
      %v2301 = vadd.f32 %v2294, %v1714
      %v2302 = vadd.f32 %v2295, %v1714
      %v2303 = vadd.f32 %v2296, %v1714
      %v2304 = vadd.f32 %v2297, %v1714
      %v2305 = vadd.f32 %v2298, %v1714
      %v2306 = vmax.f32 %v2299, 0.0
      %v2307 = vmax.f32 %v2300, 0.0
      %v2308 = vmax.f32 %v2301, 0.0
      %v2309 = vmax.f32 %v2302, 0.0
      %v2310 = vmax.f32 %v2303, 0.0
      %v2311 = vmax.f32 %v2304, 0.0
      %v2312 = vmax.f32 %v2305, 0.0
      %v2314 = vsel %vm1280, %v2306, 0
      %v2317 = vsel %vm1280, %v2307, 0
      %v2320 = vsel %vm1280, %v2308, 0
      %v2323 = vsel %vm1280, %v2309, 0
      %v2326 = vsel %vm1280, %v2310, 0
      %v2329 = vsel %vm1280, %v2311, 0
      %v2332 = vsel %vm1280, %v2312, 0
      %2334 = vmatprep.subr.mxu0 0.0
      %2335 = vmatpush1.xpose.msra.mxu0 %v2314
      %2336 = vmatprep.subr.mxu0 0.0
      %2337 = vmatpush1.xpose.msra.mxu0 %v2317
      %2338 = vmatprep.subr.mxu0 0.0
      %2339 = vmatpush1.xpose.msra.mxu0 %v2320
      %2340 = vmatprep.subr.mxu0 0.0
      %2341 = vmatpush1.xpose.msra.mxu0 %v2323
      %2342 = vmatprep.subr.mxu0 0.0
      %2343 = vmatpush1.xpose.msra.mxu0 %v2326
      %2344 = vmatprep.subr.mxu0 0.0
      %2345 = vmatpush1.xpose.msra.mxu0 %v2329
      %2346 = vmatprep.subr.mxu0 0.0
      %2347 = vmatpush1.xpose.msra.mxu0 %v2332
      %2348 = vmatprep.subr.mxu0 0.0
      %2349 = vmatpush1.xpose.msra.mxu0 0.0
      %2350 = vmatprep.subr.mxu0 0.0
      %2351 = vmatpush1.xpose.msra.mxu0 0.0
      %2352 = vmatprep.subr.mxu0 0.0
      %2353 = vmatpush1.xpose.msra.mxu0 0.0
      %2354 = vmatprep.subr.mxu0 0.0
      %2355 = vmatpush1.xpose.msra.mxu0 0.0
      %2356 = vmatprep.subr.mxu0 0.0
      %2357 = vmatpush1.xpose.msra.mxu0 0.0
      %2358 = vmatprep.subr.mxu0 0.0
      %2359 = vmatpush1.xpose.msra.mxu0 0.0
      %2360 = vmatprep.subr.mxu0 0.0
      %2361 = vmatpush1.xpose.msra.mxu0 0.0
      %2362 = vmatprep.subr.mxu0 0.0
      %2363 = vmatpush1.xpose.msra.mxu0 0.0
      %2364 = vmatprep.subr.mxu0 0.0
      %2365 = vmatpush1.xpose.msra.mxu0 0.0
      %2366 = vmatprep.subr.mxu0 0.0
      %2367 = vmatpush1.xpose.msra.mxu0 0.0
      %2368 = vmatprep.subr.mxu0 0.0
      %2369 = vmatpush1.xpose.msra.mxu0 0.0
      %2370 = vmatprep.subr.mxu0 0.0
      %2371 = vmatpush1.xpose.msra.mxu0 0.0
      %2372 = vmatprep.subr.mxu0 0.0
      %2373 = vmatpush1.xpose.msra.mxu0 0.0
      %2374 = vmatprep.subr.mxu0 0.0
      %2375 = vmatpush1.xpose.msra.mxu0 0.0
      %2376 = vmatprep.subr.mxu0 0.0
      %2377 = vmatpush1.xpose.msra.mxu0 0.0
      %2378 = vmatprep.subr.mxu0 0.0
      %2379 = vmatpush1.xpose.msra.mxu0 0.0
      %2380 = vmatprep.subr.mxu0 0.0
      %2381 = vmatpush1.xpose.msra.mxu0 0.0
      %2382 = vmatprep.subr.mxu0 0.0
      %2383 = vmatpush1.xpose.msra.mxu0 0.0
      %2384 = vmatprep.subr.mxu0 0.0
      %2385 = vmatpush1.xpose.msra.mxu0 0.0
      %2386 = vmatprep.subr.mxu0 0.0
      %2387 = vmatpush1.xpose.msra.mxu0 0.0
      %2388 = vmatprep.subr.mxu0 0.0
      %2389 = vmatpush1.xpose.msra.mxu0 0.0
      %2390 = vmatprep.subr.mxu0 0.0
      %2391 = vmatpush1.xpose.msra.mxu0 0.0
      %2392 = vmatprep.subr.mxu0 0.0
      %2393 = vmatpush1.xpose.msra.mxu0 0.0
      %2394 = vmatprep.subr.mxu0 0.0
      %2395 = vmatpush1.xpose.msra.mxu0 0.0
      %2396 = vmatprep.subr.mxu0 0.0
      %2397 = vmatpush1.xpose.msra.mxu0 0.0
      %2398 = vmatprep.mubr.f32.mxu0 0.0
      %2399 = vmatmul.mubr.f32.gmra.mrb[0].mxu0 %v1731
      %v2400 = vpop.f32.mrb[0].mxu0
      %v2401 = vadd.f32 0.0, %v2400
      %v2402 = vpop.f32.mrb[0].mxu0
      %2403 = vdwg.mxu0
      %v2405 = vrot.slane %v1937, 7
      %v2408 = vrot.slane %v2053, 6
      %v2411 = vrot.slane %v2169, 5
      %v2414 = vrot.slane %v2285, 4
      %v2417 = vrot.slane %v2401, 3
      %vm2419 = vcmask 1040384
      %v2420 = vsel %vm2419, %v1821, %v2405
      %vm2421 = vcmask 1041408
      %v2422 = vsel %vm2421, %v2420, %v2408
      %v2423 = vsel %vm1158, %v2422, %v2411
      %vm2424 = vcmask 1043456
      %v2425 = vsel %vm2424, %v2423, %v2414
      %vm2426 = vcmask 1044480
      %v2427 = vsel %vm2426, %v2425, %v2417
      %v2428 = vld [vmem:[#allocation2] sm:$0x1]
      %v2430 = vlaneseq
      %v2431 = vshrl.u32 %v2430, 7
      %v2432 = vsub.s32 0, %v2431
      %v2433 = vrot.slane %v2428, %v2432
      %2434 = vset.pattern.permute.xlu0 0
      %2435 = vperm.xlu0 %2434, %v2433
      %v2436 = vpop.permute.xlu0 %2435
      %v2438 = vadd.f32 %v2427, %v2436
      %vm2439 = vcmask 398336
      %v2440 = vsel %vm2439, %v2438, -inf
      %2441 = vmax.xlane.f32.xlu0 %v2440
      %v2442 = vpop.xlane.xlu0 %2441
      %v2443 = vsub.f32 %v2438, %v2442
      %v2444 = vmul.f32 %v2443, 1.442695
      %v2445 = vpow.pop %v2444
      %v2446 = vsel %vm2439, %v2445, 0.0
      %2447 = vadd.xlane.f32.xlu0 %v2446
      %v2448 = vpop.xlane.xlu0 %2447
      %v2449 = vrcp.pop %v2448
      %v2450 = vmul.f32 %v2445, %v2449
      %vm2451 = vcmask 400384
      %v2453 = vsel %vm2451, %v2450, 0
      %v2455 = vsel %vm2419, %v1408, 0
      %2457 = vmatprep.subr.mxu0 0.0
      %2458 = vmatpush1.msra.mxu0 %v1402
      %2459 = vmatprep.subr.mxu0 0.0
      %2460 = vmatpush1.msra.mxu0 %v1403
      %2461 = vmatprep.subr.mxu0 0.0
      %2462 = vmatpush1.msra.mxu0 %v1404
      %2463 = vmatprep.subr.mxu0 0.0
      %2464 = vmatpush1.msra.mxu0 %v1405
      %2465 = vmatprep.subr.mxu0 0.0
      %2466 = vmatpush1.msra.mxu0 %v1406
      %2467 = vmatprep.subr.mxu0 0.0
      %2468 = vmatpush1.msra.mxu0 %v1407
      %2469 = vmatprep.subr.mxu0 0.0
      %2470 = vmatpush1.msra.mxu0 %v2455
      %2471 = vmatprep.subr.mxu0 0.0
      %2472 = vmatpush1.msra.mxu0 0.0
      %2473 = vmatprep.subr.mxu0 0.0
      %2474 = vmatpush1.msra.mxu0 0.0
      %2475 = vmatprep.subr.mxu0 0.0
      %2476 = vmatpush1.msra.mxu0 0.0
      %2477 = vmatprep.subr.mxu0 0.0
      %2478 = vmatpush1.msra.mxu0 0.0
      %2479 = vmatprep.subr.mxu0 0.0
      %2480 = vmatpush1.msra.mxu0 0.0
      %2481 = vmatprep.subr.mxu0 0.0
      %2482 = vmatpush1.msra.mxu0 0.0
      %2483 = vmatprep.subr.mxu0 0.0
      %2484 = vmatpush1.msra.mxu0 0.0
      %2485 = vmatprep.subr.mxu0 0.0
      %2486 = vmatpush1.msra.mxu0 0.0
      %2487 = vmatprep.subr.mxu0 0.0
      %2488 = vmatpush1.msra.mxu0 0.0
      %2489 = vmatprep.subr.mxu0 0.0
      %2490 = vmatpush1.msra.mxu0 0.0
      %2491 = vmatprep.subr.mxu0 0.0
      %2492 = vmatpush1.msra.mxu0 0.0
      %2493 = vmatprep.subr.mxu0 0.0
      %2494 = vmatpush1.msra.mxu0 0.0
      %2495 = vmatprep.subr.mxu0 0.0
      %2496 = vmatpush1.msra.mxu0 0.0
      %2497 = vmatprep.subr.mxu0 0.0
      %2498 = vmatpush1.msra.mxu0 0.0
      %2499 = vmatprep.subr.mxu0 0.0
      %2500 = vmatpush1.msra.mxu0 0.0
      %2501 = vmatprep.subr.mxu0 0.0
      %2502 = vmatpush1.msra.mxu0 0.0
      %2503 = vmatprep.subr.mxu0 0.0
      %2504 = vmatpush1.msra.mxu0 0.0
      %2505 = vmatprep.subr.mxu0 0.0
      %2506 = vmatpush1.msra.mxu0 0.0
      %2507 = vmatprep.subr.mxu0 0.0
      %2508 = vmatpush1.msra.mxu0 0.0
      %2509 = vmatprep.subr.mxu0 0.0
      %2510 = vmatpush1.msra.mxu0 0.0
      %2511 = vmatprep.subr.mxu0 0.0
      %2512 = vmatpush1.msra.mxu0 0.0
      %2513 = vmatprep.subr.mxu0 0.0
      %2514 = vmatpush1.msra.mxu0 0.0
      %2515 = vmatprep.subr.mxu0 0.0
      %2516 = vmatpush1.msra.mxu0 0.0
      %2517 = vmatprep.subr.mxu0 0.0
      %2518 = vmatpush1.msra.mxu0 0.0
      %2519 = vmatprep.subr.mxu0 0.0
      %2520 = vmatpush1.msra.mxu0 0.0
      %2521 = vmatprep.mubr.f32.mxu0 0.0
      %2522 = vmatmul.mubr.f32.gmra.mrb[0].mxu0 %v2453
      %v2523 = vpop.f32.mrb[0].mxu0
      %v2524 = vadd.f32 0.0, %v2523
      %v2525 = vpop.f32.mrb[0].mxu0
      %2526 = vdwg.mxu0
      %v2527 = vld [vmem:[%s31] sm:$0xff]
      %v2528 = vld [vmem:[%s31 + $0x8] sm:$0xff]
      %v2529 = vld [vmem:[%s31 + $0x10] sm:$0xff]
      %v2530 = vld [vmem:[%s31 + $0x18] sm:$0xff]
      %v2531 = vld [vmem:[%s33] sm:$0x1]
      %v2533 = vlaneseq
      %v2534 = vshrl.u32 %v2533, 7
      %v2535 = vsub.s32 0, %v2534
      %v2536 = vrot.slane %v2531, %v2535
      %v2539 = vsel %vm1280, %v2524, 0
      %2541 = vmatprep.subr.mxu0 0.0
      %2542 = vmatpush1.msra.mxu0 %v2527
      %2543 = vmatprep.subr.mxu0 0.0
      %2544 = vmatpush1.msra.mxu0 %v2528
      %2545 = vmatprep.subr.mxu0 0.0
      %2546 = vmatpush1.msra.mxu0 %v2529
      %2547 = vmatprep.subr.mxu0 0.0
      %2548 = vmatpush1.msra.mxu0 %v2530
      %2549 = vmatprep.subr.mxu0 0.0
      %2550 = vmatpush1.msra.mxu0 0.0
      %2551 = vmatprep.subr.mxu0 0.0
      %2552 = vmatpush1.msra.mxu0 0.0
      %2553 = vmatprep.subr.mxu0 0.0
      %2554 = vmatpush1.msra.mxu0 0.0
      %2555 = vmatprep.subr.mxu0 0.0
      %2556 = vmatpush1.msra.mxu0 0.0
      %2557 = vmatprep.subr.mxu0 0.0
      %2558 = vmatpush1.msra.mxu0 0.0
      %2559 = vmatprep.subr.mxu0 0.0
      %2560 = vmatpush1.msra.mxu0 0.0
      %2561 = vmatprep.subr.mxu0 0.0
      %2562 = vmatpush1.msra.mxu0 0.0
      %2563 = vmatprep.subr.mxu0 0.0
      %2564 = vmatpush1.msra.mxu0 0.0
      %2565 = vmatprep.subr.mxu0 0.0
      %2566 = vmatpush1.msra.mxu0 0.0
      %2567 = vmatprep.subr.mxu0 0.0
      %2568 = vmatpush1.msra.mxu0 0.0
      %2569 = vmatprep.subr.mxu0 0.0
      %2570 = vmatpush1.msra.mxu0 0.0
      %2571 = vmatprep.subr.mxu0 0.0
      %2572 = vmatpush1.msra.mxu0 0.0
      %2573 = vmatprep.subr.mxu0 0.0
      %2574 = vmatpush1.msra.mxu0 0.0
      %2575 = vmatprep.subr.mxu0 0.0
      %2576 = vmatpush1.msra.mxu0 0.0
      %2577 = vmatprep.subr.mxu0 0.0
      %2578 = vmatpush1.msra.mxu0 0.0
      %2579 = vmatprep.subr.mxu0 0.0
      %2580 = vmatpush1.msra.mxu0 0.0
      %2581 = vmatprep.subr.mxu0 0.0
      %2582 = vmatpush1.msra.mxu0 0.0
      %2583 = vmatprep.subr.mxu0 0.0
      %2584 = vmatpush1.msra.mxu0 0.0
      %2585 = vmatprep.subr.mxu0 0.0
      %2586 = vmatpush1.msra.mxu0 0.0
      %2587 = vmatprep.subr.mxu0 0.0
      %2588 = vmatpush1.msra.mxu0 0.0
      %2589 = vmatprep.subr.mxu0 0.0
      %2590 = vmatpush1.msra.mxu0 0.0
      %2591 = vmatprep.subr.mxu0 0.0
      %2592 = vmatpush1.msra.mxu0 0.0
      %2593 = vmatprep.subr.mxu0 0.0
      %2594 = vmatpush1.msra.mxu0 0.0
      %2595 = vmatprep.subr.mxu0 0.0
      %2596 = vmatpush1.msra.mxu0 0.0
      %2597 = vmatprep.subr.mxu0 0.0
      %2598 = vmatpush1.msra.mxu0 0.0
      %2599 = vmatprep.subr.mxu0 0.0
      %2600 = vmatpush1.msra.mxu0 0.0
      %2601 = vmatprep.subr.mxu0 0.0
      %2602 = vmatpush1.msra.mxu0 0.0
      %2603 = vmatprep.subr.mxu0 0.0
      %2604 = vmatpush1.msra.mxu0 0.0
      %2605 = vmatprep.mubr.f32.mxu0 0.0
      %2606 = vmatmul.mubr.f32.gmra.mrb[0].mxu0 %v2539
      %v2607 = vpop.f32.mrb[0].mxu0
      %v2608 = vadd.f32 %v2536, %v2607
      %v2609 = vpop.f32.mrb[0].mxu0
      %2610 = vdwg.mxu0
      %v2611 = vmax.f32 %v2608, 0.0
      %v2612 = vld [vmem:[%s27] sm:$0xff]
      %v2613 = vld [vmem:[%s27 + $0x8] sm:$0xff]
      %v2614 = vld [vmem:[%s27 + $0x10] sm:$0xff]
      %v2615 = vld [vmem:[%s27 + $0x18] sm:$0xff]
      %v2616 = vld [vmem:[%s29] sm:$0x1]
      %v2618 = vlaneseq
      %v2619 = vshrl.u32 %v2618, 7
      %v2620 = vsub.s32 0, %v2619
      %v2621 = vrot.slane %v2616, %v2620
      %2623 = vmatprep.subr.mxu0 0.0
      %2624 = vmatpush1.msra.mxu0 %v2612
      %2625 = vmatprep.subr.mxu0 0.0
      %2626 = vmatpush1.msra.mxu0 %v2613
      %2627 = vmatprep.subr.mxu0 0.0
      %2628 = vmatpush1.msra.mxu0 %v2614
      %2629 = vmatprep.subr.mxu0 0.0
      %2630 = vmatpush1.msra.mxu0 %v2615
      %2631 = vmatprep.subr.mxu0 0.0
      %2632 = vmatpush1.msra.mxu0 0.0
      %2633 = vmatprep.subr.mxu0 0.0
      %2634 = vmatpush1.msra.mxu0 0.0
      %2635 = vmatprep.subr.mxu0 0.0
      %2636 = vmatpush1.msra.mxu0 0.0
      %2637 = vmatprep.subr.mxu0 0.0
      %2638 = vmatpush1.msra.mxu0 0.0
      %2639 = vmatprep.subr.mxu0 0.0
      %2640 = vmatpush1.msra.mxu0 0.0
      %2641 = vmatprep.subr.mxu0 0.0
      %2642 = vmatpush1.msra.mxu0 0.0
      %2643 = vmatprep.subr.mxu0 0.0
      %2644 = vmatpush1.msra.mxu0 0.0
      %2645 = vmatprep.subr.mxu0 0.0
      %2646 = vmatpush1.msra.mxu0 0.0
      %2647 = vmatprep.subr.mxu0 0.0
      %2648 = vmatpush1.msra.mxu0 0.0
      %2649 = vmatprep.subr.mxu0 0.0
      %2650 = vmatpush1.msra.mxu0 0.0
      %2651 = vmatprep.subr.mxu0 0.0
      %2652 = vmatpush1.msra.mxu0 0.0
      %2653 = vmatprep.subr.mxu0 0.0
      %2654 = vmatpush1.msra.mxu0 0.0
      %2655 = vmatprep.subr.mxu0 0.0
      %2656 = vmatpush1.msra.mxu0 0.0
      %2657 = vmatprep.subr.mxu0 0.0
      %2658 = vmatpush1.msra.mxu0 0.0
      %2659 = vmatprep.subr.mxu0 0.0
      %2660 = vmatpush1.msra.mxu0 0.0
      %2661 = vmatprep.subr.mxu0 0.0
      %2662 = vmatpush1.msra.mxu0 0.0
      %2663 = vmatprep.subr.mxu0 0.0
      %2664 = vmatpush1.msra.mxu0 0.0
      %2665 = vmatprep.subr.mxu0 0.0
      %2666 = vmatpush1.msra.mxu0 0.0
      %2667 = vmatprep.subr.mxu0 0.0
      %2668 = vmatpush1.msra.mxu0 0.0
      %2669 = vmatprep.subr.mxu0 0.0
      %2670 = vmatpush1.msra.mxu0 0.0
      %2671 = vmatprep.subr.mxu0 0.0
      %2672 = vmatpush1.msra.mxu0 0.0
      %2673 = vmatprep.subr.mxu0 0.0
      %2674 = vmatpush1.msra.mxu0 0.0
      %2675 = vmatprep.subr.mxu0 0.0
      %2676 = vmatpush1.msra.mxu0 0.0
      %2677 = vmatprep.subr.mxu0 0.0
      %2678 = vmatpush1.msra.mxu0 0.0
      %2679 = vmatprep.subr.mxu0 0.0
      %2680 = vmatpush1.msra.mxu0 0.0
      %2681 = vmatprep.subr.mxu0 0.0
      %2682 = vmatpush1.msra.mxu0 0.0
      %2683 = vmatprep.subr.mxu0 0.0
      %2684 = vmatpush1.msra.mxu0 0.0
      %2685 = vmatprep.subr.mxu0 0.0
      %2686 = vmatpush1.msra.mxu0 0.0
      %2687 = vmatprep.mubr.f32.mxu0 0.0
      %2688 = vmatmul.mubr.f32.gmra.mrb[0].mxu0 %v1627
      %v2689 = vpop.f32.mrb[0].mxu0
      %v2690 = vadd.f32 %v2621, %v2689
      %v2691 = vpop.f32.mrb[0].mxu0
      %2692 = vdwg.mxu0
      %v2693 = vmax.f32 %v2690, 0.0
      %v2694 = vmul.f32 %v2693, %v2611
      %v2695 = vmax.f32 %v2694, 0.0
      %v2696 = vrsqrt.pop %v2695
      %v2697 = vmul.f32 %v2695, %v2696
      %vm2698 = vcmp.eq.f32.partialorder %v2695, inf
      %v2699 = vsel %vm2698, %v2695, %v2697
      %vm2700 = vcmp.eq.f32.partialorder %v2695, 0.0
      %v2701 = vand.u32 %v2695, 2147483648
      %v2702 = vsel %vm2700, %v2701, %v2699
      %v2703 = vsub.f32 0.0, %v2694
      %v2704 = vmax.f32 %v2703, 0.0
      %v2705 = vrsqrt.pop %v2704
      %v2706 = vmul.f32 %v2704, %v2705
      %vm2707 = vcmp.eq.f32.partialorder %v2704, inf
      %v2708 = vsel %vm2707, %v2704, %v2706
      %vm2709 = vcmp.eq.f32.partialorder %v2704, 0.0
      %v2710 = vand.u32 %v2704, 2147483648
      %v2711 = vsel %vm2709, %v2710, %v2708
      %v2712 = vsub.f32 %v2702, %v2711
      %v2713 = vmul.f32 %v2712, %v2712
      %vm2714 = vcmask 259072
      %v2715 = vsel %vm2714, %v2713, 0.0
      %2716 = vadd.xlane.f32.xlu0 %v2715
      %v2717 = vpop.xlane.xlu0 %2716
      %v2718 = vrsqrt.pop %v2717
      %v2719 = vmul.f32 %v2717, %v2718
      %vm2720 = vcmp.eq.f32.partialorder %v2717, inf
      %v2721 = vsel %vm2720, %v2717, %v2719
      %vm2722 = vcmp.eq.f32.partialorder %v2717, 0.0
      %v2723 = vand.u32 %v2717, 2147483648
      %v2724 = vsel %vm2722, %v2723, %v2721
      %v2725 = vmax.f32 %v2724, 1e-12
      %v2726 = vrcp.pop %v2725
      %v2727 = vmul.f32 %v2712, %v2726
      %v2728 = vld [vmem:[%s35] sm:$0xff]
      %v2729 = vld [vmem:[%s35 + $0x8] sm:$0xff]
      %v2730 = vld [vmem:[%s35 + $0x10] sm:$0xff]
      %v2731 = vld [vmem:[%s35 + $0x18] sm:$0xff]
      %v2732 = vld [vmem:[%s37] sm:$0x1]
      %v2734 = vlaneseq
      %v2735 = vshrl.u32 %v2734, 7
      %v2736 = vsub.s32 0, %v2735
      %v2737 = vrot.slane %v2732, %v2736
      %v2740 = vsel %vm1280, %v2727, 0
      %2742 = vmatprep.subr.mxu0 0.0
      %2743 = vmatpush1.msra.mxu0 %v2728
      %2744 = vmatprep.subr.mxu0 0.0
      %2745 = vmatpush1.msra.mxu0 %v2729
      %2746 = vmatprep.subr.mxu0 0.0
      %2747 = vmatpush1.msra.mxu0 %v2730
      %2748 = vmatprep.subr.mxu0 0.0
      %2749 = vmatpush1.msra.mxu0 %v2731
      %2750 = vmatprep.subr.mxu0 0.0
      %2751 = vmatpush1.msra.mxu0 0.0
      %2752 = vmatprep.subr.mxu0 0.0
      %2753 = vmatpush1.msra.mxu0 0.0
      %2754 = vmatprep.subr.mxu0 0.0
      %2755 = vmatpush1.msra.mxu0 0.0
      %2756 = vmatprep.subr.mxu0 0.0
      %2757 = vmatpush1.msra.mxu0 0.0
      %2758 = vmatprep.subr.mxu0 0.0
      %2759 = vmatpush1.msra.mxu0 0.0
      %2760 = vmatprep.subr.mxu0 0.0
      %2761 = vmatpush1.msra.mxu0 0.0
      %2762 = vmatprep.subr.mxu0 0.0
      %2763 = vmatpush1.msra.mxu0 0.0
      %2764 = vmatprep.subr.mxu0 0.0
      %2765 = vmatpush1.msra.mxu0 0.0
      %2766 = vmatprep.subr.mxu0 0.0
      %2767 = vmatpush1.msra.mxu0 0.0
      %2768 = vmatprep.subr.mxu0 0.0
      %2769 = vmatpush1.msra.mxu0 0.0
      %2770 = vmatprep.subr.mxu0 0.0
      %2771 = vmatpush1.msra.mxu0 0.0
      %2772 = vmatprep.subr.mxu0 0.0
      %2773 = vmatpush1.msra.mxu0 0.0
      %2774 = vmatprep.subr.mxu0 0.0
      %2775 = vmatpush1.msra.mxu0 0.0
      %2776 = vmatprep.subr.mxu0 0.0
      %2777 = vmatpush1.msra.mxu0 0.0
      %2778 = vmatprep.subr.mxu0 0.0
      %2779 = vmatpush1.msra.mxu0 0.0
      %2780 = vmatprep.subr.mxu0 0.0
      %2781 = vmatpush1.msra.mxu0 0.0
      %2782 = vmatprep.subr.mxu0 0.0
      %2783 = vmatpush1.msra.mxu0 0.0
      %2784 = vmatprep.subr.mxu0 0.0
      %2785 = vmatpush1.msra.mxu0 0.0
      %2786 = vmatprep.subr.mxu0 0.0
      %2787 = vmatpush1.msra.mxu0 0.0
      %2788 = vmatprep.subr.mxu0 0.0
      %2789 = vmatpush1.msra.mxu0 0.0
      %2790 = vmatprep.subr.mxu0 0.0
      %2791 = vmatpush1.msra.mxu0 0.0
      %2792 = vmatprep.subr.mxu0 0.0
      %2793 = vmatpush1.msra.mxu0 0.0
      %2794 = vmatprep.subr.mxu0 0.0
      %2795 = vmatpush1.msra.mxu0 0.0
      %2796 = vmatprep.subr.mxu0 0.0
      %2797 = vmatpush1.msra.mxu0 0.0
      %2798 = vmatprep.subr.mxu0 0.0
      %2799 = vmatpush1.msra.mxu0 0.0
      %2800 = vmatprep.subr.mxu0 0.0
      %2801 = vmatpush1.msra.mxu0 0.0
      %2802 = vmatprep.subr.mxu0 0.0
      %2803 = vmatpush1.msra.mxu0 0.0
      %2804 = vmatprep.subr.mxu0 0.0
      %2805 = vmatpush1.msra.mxu0 0.0
      %2806 = vmatprep.mubr.f32.mxu0 0.0
      %2807 = vmatmul.mubr.f32.gmra.mrb[0].mxu0 %v2740
      %v2808 = vpop.f32.mrb[0].mxu0
      %v2809 = vadd.f32 %v2737, %v2808
      %v2810 = vpop.f32.mrb[0].mxu0
      %2811 = vdwg.mxu0
      %2813 = vrot.lane.b32.xlu0 %v2809, 96
      %v2814 = vpop.permute.xlu0 %2813
      %v2815 = vsel %vm1280, %v2809, 0
      %v2817 = vsel %vm1280, %v2814, 0
      %2819 = vmatprep.subr.mxu0 0.0
      %2820 = vmatpush1.xpose.msra.mxu0 %v2817
      %2821 = vmatprep.subr.mxu0 0.0
      %2822 = vmatpush1.xpose.msra.mxu0 0.0
      %2823 = vmatprep.subr.mxu0 0.0
      %2824 = vmatpush1.xpose.msra.mxu0 0.0
      %2825 = vmatprep.subr.mxu0 0.0
      %2826 = vmatpush1.xpose.msra.mxu0 0.0
      %2827 = vmatprep.subr.mxu0 0.0
      %2828 = vmatpush1.xpose.msra.mxu0 0.0
      %2829 = vmatprep.subr.mxu0 0.0
      %2830 = vmatpush1.xpose.msra.mxu0 0.0
      %2831 = vmatprep.subr.mxu0 0.0
      %2832 = vmatpush1.xpose.msra.mxu0 0.0
      %2833 = vmatprep.subr.mxu0 0.0
      %2834 = vmatpush1.xpose.msra.mxu0 0.0
      %2835 = vmatprep.subr.mxu0 0.0
      %2836 = vmatpush1.xpose.msra.mxu0 0.0
      %2837 = vmatprep.subr.mxu0 0.0
      %2838 = vmatpush1.xpose.msra.mxu0 0.0
      %2839 = vmatprep.subr.mxu0 0.0
      %2840 = vmatpush1.xpose.msra.mxu0 0.0
      %2841 = vmatprep.subr.mxu0 0.0
      %2842 = vmatpush1.xpose.msra.mxu0 0.0
      %2843 = vmatprep.subr.mxu0 0.0
      %2844 = vmatpush1.xpose.msra.mxu0 0.0
      %2845 = vmatprep.subr.mxu0 0.0
      %2846 = vmatpush1.xpose.msra.mxu0 0.0
      %2847 = vmatprep.subr.mxu0 0.0
      %2848 = vmatpush1.xpose.msra.mxu0 0.0
      %2849 = vmatprep.subr.mxu0 0.0
      %2850 = vmatpush1.xpose.msra.mxu0 0.0
      %2851 = vmatprep.subr.mxu0 0.0
      %2852 = vmatpush1.xpose.msra.mxu0 0.0
      %2853 = vmatprep.subr.mxu0 0.0
      %2854 = vmatpush1.xpose.msra.mxu0 0.0
      %2855 = vmatprep.subr.mxu0 0.0
      %2856 = vmatpush1.xpose.msra.mxu0 0.0
      %2857 = vmatprep.subr.mxu0 0.0
      %2858 = vmatpush1.xpose.msra.mxu0 0.0
      %2859 = vmatprep.subr.mxu0 0.0
      %2860 = vmatpush1.xpose.msra.mxu0 0.0
      %2861 = vmatprep.subr.mxu0 0.0
      %2862 = vmatpush1.xpose.msra.mxu0 0.0
      %2863 = vmatprep.subr.mxu0 0.0
      %2864 = vmatpush1.xpose.msra.mxu0 0.0
      %2865 = vmatprep.subr.mxu0 0.0
      %2866 = vmatpush1.xpose.msra.mxu0 0.0
      %2867 = vmatprep.subr.mxu0 0.0
      %2868 = vmatpush1.xpose.msra.mxu0 0.0
      %2869 = vmatprep.subr.mxu0 0.0
      %2870 = vmatpush1.xpose.msra.mxu0 0.0
      %2871 = vmatprep.subr.mxu0 0.0
      %2872 = vmatpush1.xpose.msra.mxu0 0.0
      %2873 = vmatprep.subr.mxu0 0.0
      %2874 = vmatpush1.xpose.msra.mxu0 0.0
      %2875 = vmatprep.subr.mxu0 0.0
      %2876 = vmatpush1.xpose.msra.mxu0 0.0
      %2877 = vmatprep.subr.mxu0 0.0
      %2878 = vmatpush1.xpose.msra.mxu0 0.0
      %2879 = vmatprep.subr.mxu0 0.0
      %2880 = vmatpush1.xpose.msra.mxu0 0.0
      %2881 = vmatprep.subr.mxu0 0.0
      %2882 = vmatpush1.xpose.msra.mxu0 0.0
      %2883 = vmatprep.mubr.f32.mxu0 0.0
      %2884 = vmatmul.mubr.f32.gmra.mrb[0].mxu0 %v2815
      %v2885 = vpop.f32.mrb[0].mxu0
      %v2886 = vadd.f32 0.0, %v2885
      %v2887 = vpop.f32.mrb[0].mxu0
      %2888 = vdwg.mxu0
      %v2889 = vmul.f32 %v2886, 0.17677669
      %v2890 = vlaneseq
      %v2891 = vshrl.u32 %v2890, 7
      %v2892 = vlaneseq
      %v2893 = vand.u32 %v2892, 127
      %vm2894 = vcmp.eq.s32.totalorder %v2891, %v2893
      %v2895 = vsel %vm2894, -1e+09, %v2889
      %vm2896 = vcmask 46080
      %v2897 = vsel %vm2896, %v2895, -inf
      %2898 = vmax.xlane.f32.xlu0 %v2897
      %v2899 = vpop.xlane.xlu0 %2898
      %v2900 = vsub.f32 %v2895, %v2899
      %v2901 = vmul.f32 %v2900, 1.442695
      %v2902 = vpow.pop %v2901
      %v2903 = vsel %vm2896, %v2902, 0.0
      %2904 = vadd.xlane.f32.xlu0 %v2903
      %v2905 = vpop.xlane.xlu0 %2904
      %v2906 = vrcp.pop %v2905
      %v2907 = vmul.f32 %v2902, %v2906
      %2908 = vrot.lane.b32.xlu0 %v2809, 64
      %v2909 = vpop.permute.xlu0 %2908
      %vm2910 = vcmask 48128
      %v2912 = vsel %vm2910, %v2907, 0
      %vm2914 = vcmask 1045504
      %v2915 = vsel %vm2914, %v2909, 0
      %2917 = vmatprep.subr.mxu0 0.0
      %2918 = vmatpush1.msra.mxu0 %v2915
      %2919 = vmatprep.subr.mxu0 0.0
      %2920 = vmatpush1.msra.mxu0 0.0
      %2921 = vmatprep.subr.mxu0 0.0
      %2922 = vmatpush1.msra.mxu0 0.0
      %2923 = vmatprep.subr.mxu0 0.0
      %2924 = vmatpush1.msra.mxu0 0.0
      %2925 = vmatprep.subr.mxu0 0.0
      %2926 = vmatpush1.msra.mxu0 0.0
      %2927 = vmatprep.subr.mxu0 0.0
      %2928 = vmatpush1.msra.mxu0 0.0
      %2929 = vmatprep.subr.mxu0 0.0
      %2930 = vmatpush1.msra.mxu0 0.0
      %2931 = vmatprep.subr.mxu0 0.0
      %2932 = vmatpush1.msra.mxu0 0.0
      %2933 = vmatprep.subr.mxu0 0.0
      %2934 = vmatpush1.msra.mxu0 0.0
      %2935 = vmatprep.subr.mxu0 0.0
      %2936 = vmatpush1.msra.mxu0 0.0
      %2937 = vmatprep.subr.mxu0 0.0
      %2938 = vmatpush1.msra.mxu0 0.0
      %2939 = vmatprep.subr.mxu0 0.0
      %2940 = vmatpush1.msra.mxu0 0.0
      %2941 = vmatprep.subr.mxu0 0.0
      %2942 = vmatpush1.msra.mxu0 0.0
      %2943 = vmatprep.subr.mxu0 0.0
      %2944 = vmatpush1.msra.mxu0 0.0
      %2945 = vmatprep.subr.mxu0 0.0
      %2946 = vmatpush1.msra.mxu0 0.0
      %2947 = vmatprep.subr.mxu0 0.0
      %2948 = vmatpush1.msra.mxu0 0.0
      %2949 = vmatprep.subr.mxu0 0.0
      %2950 = vmatpush1.msra.mxu0 0.0
      %2951 = vmatprep.subr.mxu0 0.0
      %2952 = vmatpush1.msra.mxu0 0.0
      %2953 = vmatprep.subr.mxu0 0.0
      %2954 = vmatpush1.msra.mxu0 0.0
      %2955 = vmatprep.subr.mxu0 0.0
      %2956 = vmatpush1.msra.mxu0 0.0
      %2957 = vmatprep.subr.mxu0 0.0
      %2958 = vmatpush1.msra.mxu0 0.0
      %2959 = vmatprep.subr.mxu0 0.0
      %2960 = vmatpush1.msra.mxu0 0.0
      %2961 = vmatprep.subr.mxu0 0.0
      %2962 = vmatpush1.msra.mxu0 0.0
      %2963 = vmatprep.subr.mxu0 0.0
      %2964 = vmatpush1.msra.mxu0 0.0
      %2965 = vmatprep.subr.mxu0 0.0
      %2966 = vmatpush1.msra.mxu0 0.0
      %2967 = vmatprep.subr.mxu0 0.0
      %2968 = vmatpush1.msra.mxu0 0.0
      %2969 = vmatprep.subr.mxu0 0.0
      %2970 = vmatpush1.msra.mxu0 0.0
      %2971 = vmatprep.subr.mxu0 0.0
      %2972 = vmatpush1.msra.mxu0 0.0
      %2973 = vmatprep.subr.mxu0 0.0
      %2974 = vmatpush1.msra.mxu0 0.0
      %2975 = vmatprep.subr.mxu0 0.0
      %2976 = vmatpush1.msra.mxu0 0.0
      %2977 = vmatprep.subr.mxu0 0.0
      %2978 = vmatpush1.msra.mxu0 0.0
      %2979 = vmatprep.subr.mxu0 0.0
      %2980 = vmatpush1.msra.mxu0 0.0
      %2981 = vmatprep.mubr.f32.mxu0 0.0
      %2982 = vmatmul.mubr.f32.gmra.mrb[0].mxu0 %v2912
      %v2983 = vpop.f32.mrb[0].mxu0
      %v2984 = vadd.f32 0.0, %v2983
      %v2985 = vpop.f32.mrb[0].mxu0
      %2986 = vdwg.mxu0
      %v2987 = vld [vmem:[%s39] sm:$0xff]
      %v2988 = vld [vmem:[%s39 + $0x8] sm:$0xff]
      %v2989 = vld [vmem:[%s39 + $0x10] sm:$0xff]
      %v2990 = vld [vmem:[%s39 + $0x18] sm:$0xff]
      %v2991 = vld [vmem:[%s41] sm:$0x1]
      %v2993 = vlaneseq
      %v2994 = vshrl.u32 %v2993, 7
      %v2995 = vsub.s32 0, %v2994
      %v2996 = vrot.slane %v2991, %v2995
      %v2999 = vsel %vm1280, %v2984, 0
      %3001 = vmatprep.subr.mxu0 0.0
      %3002 = vmatpush1.msra.mxu0 %v2987
      %3003 = vmatprep.subr.mxu0 0.0
      %3004 = vmatpush1.msra.mxu0 %v2988
      %3005 = vmatprep.subr.mxu0 0.0
      %3006 = vmatpush1.msra.mxu0 %v2989
      %3007 = vmatprep.subr.mxu0 0.0
      %3008 = vmatpush1.msra.mxu0 %v2990
      %3009 = vmatprep.subr.mxu0 0.0
      %3010 = vmatpush1.msra.mxu0 0.0
      %3011 = vmatprep.subr.mxu0 0.0
      %3012 = vmatpush1.msra.mxu0 0.0
      %3013 = vmatprep.subr.mxu0 0.0
      %3014 = vmatpush1.msra.mxu0 0.0
      %3015 = vmatprep.subr.mxu0 0.0
      %3016 = vmatpush1.msra.mxu0 0.0
      %3017 = vmatprep.subr.mxu0 0.0
      %3018 = vmatpush1.msra.mxu0 0.0
      %3019 = vmatprep.subr.mxu0 0.0
      %3020 = vmatpush1.msra.mxu0 0.0
      %3021 = vmatprep.subr.mxu0 0.0
      %3022 = vmatpush1.msra.mxu0 0.0
      %3023 = vmatprep.subr.mxu0 0.0
      %3024 = vmatpush1.msra.mxu0 0.0
      %3025 = vmatprep.subr.mxu0 0.0
      %3026 = vmatpush1.msra.mxu0 0.0
      %3027 = vmatprep.subr.mxu0 0.0
      %3028 = vmatpush1.msra.mxu0 0.0
      %3029 = vmatprep.subr.mxu0 0.0
      %3030 = vmatpush1.msra.mxu0 0.0
      %3031 = vmatprep.subr.mxu0 0.0
      %3032 = vmatpush1.msra.mxu0 0.0
      %3033 = vmatprep.subr.mxu0 0.0
      %3034 = vmatpush1.msra.mxu0 0.0
      %3035 = vmatprep.subr.mxu0 0.0
      %3036 = vmatpush1.msra.mxu0 0.0
      %3037 = vmatprep.subr.mxu0 0.0
      %3038 = vmatpush1.msra.mxu0 0.0
      %3039 = vmatprep.subr.mxu0 0.0
      %3040 = vmatpush1.msra.mxu0 0.0
      %3041 = vmatprep.subr.mxu0 0.0
      %3042 = vmatpush1.msra.mxu0 0.0
      %3043 = vmatprep.subr.mxu0 0.0
      %3044 = vmatpush1.msra.mxu0 0.0
      %3045 = vmatprep.subr.mxu0 0.0
      %3046 = vmatpush1.msra.mxu0 0.0
      %3047 = vmatprep.subr.mxu0 0.0
      %3048 = vmatpush1.msra.mxu0 0.0
      %3049 = vmatprep.subr.mxu0 0.0
      %3050 = vmatpush1.msra.mxu0 0.0
      %3051 = vmatprep.subr.mxu0 0.0
      %3052 = vmatpush1.msra.mxu0 0.0
      %3053 = vmatprep.subr.mxu0 0.0
      %3054 = vmatpush1.msra.mxu0 0.0
      %3055 = vmatprep.subr.mxu0 0.0
      %3056 = vmatpush1.msra.mxu0 0.0
      %3057 = vmatprep.subr.mxu0 0.0
      %3058 = vmatpush1.msra.mxu0 0.0
      %3059 = vmatprep.subr.mxu0 0.0
      %3060 = vmatpush1.msra.mxu0 0.0
      %3061 = vmatprep.subr.mxu0 0.0
      %3062 = vmatpush1.msra.mxu0 0.0
      %3063 = vmatprep.subr.mxu0 0.0
      %3064 = vmatpush1.msra.mxu0 0.0
      %3065 = vmatprep.mubr.f32.mxu0 0.0
      %3066 = vmatmul.mubr.f32.gmra.mrb[0].mxu0 %v2999
      %v3067 = vpop.f32.mrb[0].mxu0
      %v3068 = vadd.f32 %v2996, %v3067
      %v3069 = vpop.f32.mrb[0].mxu0
      %3070 = vdwg.mxu0
      %v3071 = vld [vmem:[%s43] sm:$0xff]
      %v3072 = vld [vmem:[%s43 + $0x8] sm:$0xff]
      %v3073 = vld [vmem:[%s43 + $0x10] sm:$0xff]
      %v3074 = vld [vmem:[%s43 + $0x18] sm:$0xff]
      %v3075 = vld [vmem:[%s45] sm:$0xff]
      %v3076 = vld [vmem:[%s45 + $0x8] sm:$0xff]
      %v3077 = vld [vmem:[%s45 + $0x10] sm:$0xff]
      %v3078 = vld [vmem:[%s45 + $0x18] sm:$0xff]
      %3079 = vmatprep.subr.mxu0 0.0
      %3080 = vmatpush1.msra.mxu0 %v3075
      %3081 = vmatprep.subr.mxu0 0.0
      %3082 = vmatpush1.msra.mxu0 %v3076
      %3083 = vmatprep.subr.mxu0 0.0
      %3084 = vmatpush1.msra.mxu0 %v3077
      %3085 = vmatprep.subr.mxu0 0.0
      %3086 = vmatpush1.msra.mxu0 %v3078
      %3087 = vmatprep.subr.mxu0 0.0
      %3088 = vmatpush1.msra.mxu0 0.0
      %3089 = vmatprep.subr.mxu0 0.0
      %3090 = vmatpush1.msra.mxu0 0.0
      %3091 = vmatprep.subr.mxu0 0.0
      %3092 = vmatpush1.msra.mxu0 0.0
      %3093 = vmatprep.subr.mxu0 0.0
      %3094 = vmatpush1.msra.mxu0 0.0
      %3095 = vmatprep.subr.mxu0 0.0
      %3096 = vmatpush1.msra.mxu0 0.0
      %3097 = vmatprep.subr.mxu0 0.0
      %3098 = vmatpush1.msra.mxu0 0.0
      %3099 = vmatprep.subr.mxu0 0.0
      %3100 = vmatpush1.msra.mxu0 0.0
      %3101 = vmatprep.subr.mxu0 0.0
      %3102 = vmatpush1.msra.mxu0 0.0
      %3103 = vmatprep.subr.mxu0 0.0
      %3104 = vmatpush1.msra.mxu0 0.0
      %3105 = vmatprep.subr.mxu0 0.0
      %3106 = vmatpush1.msra.mxu0 0.0
      %3107 = vmatprep.subr.mxu0 0.0
      %3108 = vmatpush1.msra.mxu0 0.0
      %3109 = vmatprep.subr.mxu0 0.0
      %3110 = vmatpush1.msra.mxu0 0.0
      %3111 = vmatprep.subr.mxu0 0.0
      %3112 = vmatpush1.msra.mxu0 0.0
      %3113 = vmatprep.subr.mxu0 0.0
      %3114 = vmatpush1.msra.mxu0 0.0
      %3115 = vmatprep.subr.mxu0 0.0
      %3116 = vmatpush1.msra.mxu0 0.0
      %3117 = vmatprep.subr.mxu0 0.0
      %3118 = vmatpush1.msra.mxu0 0.0
      %3119 = vmatprep.subr.mxu0 0.0
      %3120 = vmatpush1.msra.mxu0 0.0
      %3121 = vmatprep.subr.mxu0 0.0
      %3122 = vmatpush1.msra.mxu0 0.0
      %3123 = vmatprep.subr.mxu0 0.0
      %3124 = vmatpush1.msra.mxu0 0.0
      %3125 = vmatprep.subr.mxu0 0.0
      %3126 = vmatpush1.msra.mxu0 0.0
      %3127 = vmatprep.subr.mxu0 0.0
      %3128 = vmatpush1.msra.mxu0 0.0
      %3129 = vmatprep.subr.mxu0 0.0
      %3130 = vmatpush1.msra.mxu0 0.0
      %3131 = vmatprep.subr.mxu0 0.0
      %3132 = vmatpush1.msra.mxu0 0.0
      %3133 = vmatprep.subr.mxu0 0.0
      %3134 = vmatpush1.msra.mxu0 0.0
      %3135 = vmatprep.subr.mxu0 0.0
      %3136 = vmatpush1.msra.mxu0 0.0
      %3137 = vmatprep.subr.mxu0 0.0
      %3138 = vmatpush1.msra.mxu0 0.0
      %3139 = vmatprep.subr.mxu0 0.0
      %3140 = vmatpush1.msra.mxu0 0.0
      %3141 = vmatprep.subr.mxu0 0.0
      %3142 = vmatpush1.msra.mxu0 0.0
      %3143 = vmatprep.mubr.f32.mxu0 0.0
      %3144 = vmatmul.mubr.f32.gmra.mrb[0].mxu0 %v1422
      %v3145 = vpop.f32.mrb[0].mxu0
      %v3146 = vadd.f32 0.0, %v3145
      %v3147 = vpop.f32.mrb[0].mxu0
      %3148 = vdwg.mxu0
      %v3150 = vsel %vm1280, %v3068, 0
      %3152 = vmatprep.subr.mxu0 0.0
      %3153 = vmatpush1.msra.mxu0 %v3071
      %3154 = vmatprep.subr.mxu0 0.0
      %3155 = vmatpush1.msra.mxu0 %v3072
      %3156 = vmatprep.subr.mxu0 0.0
      %3157 = vmatpush1.msra.mxu0 %v3073
      %3158 = vmatprep.subr.mxu0 0.0
      %3159 = vmatpush1.msra.mxu0 %v3074
      %3160 = vmatprep.subr.mxu0 0.0
      %3161 = vmatpush1.msra.mxu0 0.0
      %3162 = vmatprep.subr.mxu0 0.0
      %3163 = vmatpush1.msra.mxu0 0.0
      %3164 = vmatprep.subr.mxu0 0.0
      %3165 = vmatpush1.msra.mxu0 0.0
      %3166 = vmatprep.subr.mxu0 0.0
      %3167 = vmatpush1.msra.mxu0 0.0
      %3168 = vmatprep.subr.mxu0 0.0
      %3169 = vmatpush1.msra.mxu0 0.0
      %3170 = vmatprep.subr.mxu0 0.0
      %3171 = vmatpush1.msra.mxu0 0.0
      %3172 = vmatprep.subr.mxu0 0.0
      %3173 = vmatpush1.msra.mxu0 0.0
      %3174 = vmatprep.subr.mxu0 0.0
      %3175 = vmatpush1.msra.mxu0 0.0
      %3176 = vmatprep.subr.mxu0 0.0
      %3177 = vmatpush1.msra.mxu0 0.0
      %3178 = vmatprep.subr.mxu0 0.0
      %3179 = vmatpush1.msra.mxu0 0.0
      %3180 = vmatprep.subr.mxu0 0.0
      %3181 = vmatpush1.msra.mxu0 0.0
      %3182 = vmatprep.subr.mxu0 0.0
      %3183 = vmatpush1.msra.mxu0 0.0
      %3184 = vmatprep.subr.mxu0 0.0
      %3185 = vmatpush1.msra.mxu0 0.0
      %3186 = vmatprep.subr.mxu0 0.0
      %3187 = vmatpush1.msra.mxu0 0.0
      %3188 = vmatprep.subr.mxu0 0.0
      %3189 = vmatpush1.msra.mxu0 0.0
      %3190 = vmatprep.subr.mxu0 0.0
      %3191 = vmatpush1.msra.mxu0 0.0
      %3192 = vmatprep.subr.mxu0 0.0
      %3193 = vmatpush1.msra.mxu0 0.0
      %3194 = vmatprep.subr.mxu0 0.0
      %3195 = vmatpush1.msra.mxu0 0.0
      %3196 = vmatprep.subr.mxu0 0.0
      %3197 = vmatpush1.msra.mxu0 0.0
      %3198 = vmatprep.subr.mxu0 0.0
      %3199 = vmatpush1.msra.mxu0 0.0
      %3200 = vmatprep.subr.mxu0 0.0
      %3201 = vmatpush1.msra.mxu0 0.0
      %3202 = vmatprep.subr.mxu0 0.0
      %3203 = vmatpush1.msra.mxu0 0.0
      %3204 = vmatprep.subr.mxu0 0.0
      %3205 = vmatpush1.msra.mxu0 0.0
      %3206 = vmatprep.subr.mxu0 0.0
      %3207 = vmatpush1.msra.mxu0 0.0
      %3208 = vmatprep.subr.mxu0 0.0
      %3209 = vmatpush1.msra.mxu0 0.0
      %3210 = vmatprep.subr.mxu0 0.0
      %3211 = vmatpush1.msra.mxu0 0.0
      %3212 = vmatprep.subr.mxu0 0.0
      %3213 = vmatpush1.msra.mxu0 0.0
      %3214 = vmatprep.subr.mxu0 0.0
      %3215 = vmatpush1.msra.mxu0 0.0
      %3216 = vmatprep.mubr.f32.mxu0 0.0
      %3217 = vmatmul.mubr.f32.gmra.mrb[0].mxu0 %v3150
      %v3218 = vpop.f32.mrb[0].mxu0
      %v3219 = vadd.f32 %v3146, %v3218
      %v3220 = vpop.f32.mrb[0].mxu0
      %3221 = vdwg.mxu0
      %v3222 = vld [vmem:[%s47] sm:$0x1]
      %v3224 = vlaneseq
      %v3225 = vshrl.u32 %v3224, 7
      %v3226 = vsub.s32 0, %v3225
      %v3227 = vrot.slane %v3222, %v3226
      %v3229 = vadd.f32 %v3219, %v3227
      %v3230 = vmax.f32 %v3229, 0.0
      %v3232 = vsel %vm1280, %v3230, 0
      %3234 = vmatprep.subr.mxu0 0.0
      %3235 = vmatpush1.msra.mxu0 %v1622
      %3236 = vmatprep.subr.mxu0 0.0
      %3237 = vmatpush1.msra.mxu0 %v1623
      %3238 = vmatprep.subr.mxu0 0.0
      %3239 = vmatpush1.msra.mxu0 %v1624
      %3240 = vmatprep.subr.mxu0 0.0
      %3241 = vmatpush1.msra.mxu0 %v1625
      %3242 = vmatprep.subr.mxu0 0.0
      %3243 = vmatpush1.msra.mxu0 0.0
      %3244 = vmatprep.subr.mxu0 0.0
      %3245 = vmatpush1.msra.mxu0 0.0
      %3246 = vmatprep.subr.mxu0 0.0
      %3247 = vmatpush1.msra.mxu0 0.0
      %3248 = vmatprep.subr.mxu0 0.0
      %3249 = vmatpush1.msra.mxu0 0.0
      %3250 = vmatprep.subr.mxu0 0.0
      %3251 = vmatpush1.msra.mxu0 0.0
      %3252 = vmatprep.subr.mxu0 0.0
      %3253 = vmatpush1.msra.mxu0 0.0
      %3254 = vmatprep.subr.mxu0 0.0
      %3255 = vmatpush1.msra.mxu0 0.0
      %3256 = vmatprep.subr.mxu0 0.0
      %3257 = vmatpush1.msra.mxu0 0.0
      %3258 = vmatprep.subr.mxu0 0.0
      %3259 = vmatpush1.msra.mxu0 0.0
      %3260 = vmatprep.subr.mxu0 0.0
      %3261 = vmatpush1.msra.mxu0 0.0
      %3262 = vmatprep.subr.mxu0 0.0
      %3263 = vmatpush1.msra.mxu0 0.0
      %3264 = vmatprep.subr.mxu0 0.0
      %3265 = vmatpush1.msra.mxu0 0.0
      %3266 = vmatprep.subr.mxu0 0.0
      %3267 = vmatpush1.msra.mxu0 0.0
      %3268 = vmatprep.subr.mxu0 0.0
      %3269 = vmatpush1.msra.mxu0 0.0
      %3270 = vmatprep.subr.mxu0 0.0
      %3271 = vmatpush1.msra.mxu0 0.0
      %3272 = vmatprep.subr.mxu0 0.0
      %3273 = vmatpush1.msra.mxu0 0.0
      %3274 = vmatprep.subr.mxu0 0.0
      %3275 = vmatpush1.msra.mxu0 0.0
      %3276 = vmatprep.subr.mxu0 0.0
      %3277 = vmatpush1.msra.mxu0 0.0
      %3278 = vmatprep.subr.mxu0 0.0
      %3279 = vmatpush1.msra.mxu0 0.0
      %3280 = vmatprep.subr.mxu0 0.0
      %3281 = vmatpush1.msra.mxu0 0.0
      %3282 = vmatprep.subr.mxu0 0.0
      %3283 = vmatpush1.msra.mxu0 0.0
      %3284 = vmatprep.subr.mxu0 0.0
      %3285 = vmatpush1.msra.mxu0 0.0
      %3286 = vmatprep.subr.mxu0 0.0
      %3287 = vmatpush1.msra.mxu0 0.0
      %3288 = vmatprep.subr.mxu0 0.0
      %3289 = vmatpush1.msra.mxu0 0.0
      %3290 = vmatprep.subr.mxu0 0.0
      %3291 = vmatpush1.msra.mxu0 0.0
      %3292 = vmatprep.subr.mxu0 0.0
      %3293 = vmatpush1.msra.mxu0 0.0
      %3294 = vmatprep.subr.mxu0 0.0
      %3295 = vmatpush1.msra.mxu0 0.0
      %3296 = vmatprep.subr.mxu0 0.0
      %3297 = vmatpush1.msra.mxu0 0.0
      %3298 = vmatprep.mubr.f32.mxu0 0.0
      %3299 = vmatmul.mubr.f32.gmra.mrb[0].mxu0 %v3232
      %v3300 = vpop.f32.mrb[0].mxu0
      %v3301 = vadd.f32 0.0, %v3300
      %v3302 = vpop.f32.mrb[0].mxu0
      %3303 = vdwg.mxu0
      %v3304 = vlaneseq
      %v3305 = vshrl.u32 %v3304, 7
      %v3306 = vsub.s32 0, %v3305
      %v3307 = vrot.slane %v3301, %v3306
      %v3308 = vadd.f32 %v1587, %v3307
      %v3309 = vadd.f32 %v1592, %v3307
      %v3310 = vadd.f32 %v1597, %v3307
      %v3311 = vadd.f32 %v1602, %v3307
      %v3312 = vadd.f32 %v1607, %v3307
      %v3313 = vadd.f32 %v1612, %v3307
      %v3314 = vadd.f32 %v1617, %v3307
      %v3315 = vadd.f32 %v3308, %v1714
      %v3316 = vadd.f32 %v3309, %v1714
      %v3317 = vadd.f32 %v3310, %v1714
      %v3318 = vadd.f32 %v3311, %v1714
      %v3319 = vadd.f32 %v3312, %v1714
      %v3320 = vadd.f32 %v3313, %v1714
      %v3321 = vadd.f32 %v3314, %v1714
      %v3322 = vmax.f32 %v3315, 0.0
      %v3323 = vmax.f32 %v3316, 0.0
      %v3324 = vmax.f32 %v3317, 0.0
      %v3325 = vmax.f32 %v3318, 0.0
      %v3326 = vmax.f32 %v3319, 0.0
      %v3327 = vmax.f32 %v3320, 0.0
      %v3328 = vmax.f32 %v3321, 0.0
      %v3330 = vsel %vm1280, %v3322, 0
      %v3333 = vsel %vm1280, %v3323, 0
      %v3336 = vsel %vm1280, %v3324, 0
      %v3339 = vsel %vm1280, %v3325, 0
      %v3342 = vsel %vm1280, %v3326, 0
      %v3345 = vsel %vm1280, %v3327, 0
      %v3348 = vsel %vm1280, %v3328, 0
      %3350 = vmatprep.subr.mxu0 0.0
      %3351 = vmatpush1.xpose.msra.mxu0 %v3330
      %3352 = vmatprep.subr.mxu0 0.0
      %3353 = vmatpush1.xpose.msra.mxu0 %v3333
      %3354 = vmatprep.subr.mxu0 0.0
      %3355 = vmatpush1.xpose.msra.mxu0 %v3336
      %3356 = vmatprep.subr.mxu0 0.0
      %3357 = vmatpush1.xpose.msra.mxu0 %v3339
      %3358 = vmatprep.subr.mxu0 0.0
      %3359 = vmatpush1.xpose.msra.mxu0 %v3342
      %3360 = vmatprep.subr.mxu0 0.0
      %3361 = vmatpush1.xpose.msra.mxu0 %v3345
      %3362 = vmatprep.subr.mxu0 0.0
      %3363 = vmatpush1.xpose.msra.mxu0 %v3348
      %3364 = vmatprep.subr.mxu0 0.0
      %3365 = vmatpush1.xpose.msra.mxu0 0.0
      %3366 = vmatprep.subr.mxu0 0.0
      %3367 = vmatpush1.xpose.msra.mxu0 0.0
      %3368 = vmatprep.subr.mxu0 0.0
      %3369 = vmatpush1.xpose.msra.mxu0 0.0
      %3370 = vmatprep.subr.mxu0 0.0
      %3371 = vmatpush1.xpose.msra.mxu0 0.0
      %3372 = vmatprep.subr.mxu0 0.0
      %3373 = vmatpush1.xpose.msra.mxu0 0.0
      %3374 = vmatprep.subr.mxu0 0.0
      %3375 = vmatpush1.xpose.msra.mxu0 0.0
      %3376 = vmatprep.subr.mxu0 0.0
      %3377 = vmatpush1.xpose.msra.mxu0 0.0
      %3378 = vmatprep.subr.mxu0 0.0
      %3379 = vmatpush1.xpose.msra.mxu0 0.0
      %3380 = vmatprep.subr.mxu0 0.0
      %3381 = vmatpush1.xpose.msra.mxu0 0.0
      %3382 = vmatprep.subr.mxu0 0.0
      %3383 = vmatpush1.xpose.msra.mxu0 0.0
      %3384 = vmatprep.subr.mxu0 0.0
      %3385 = vmatpush1.xpose.msra.mxu0 0.0
      %3386 = vmatprep.subr.mxu0 0.0
      %3387 = vmatpush1.xpose.msra.mxu0 0.0
      %3388 = vmatprep.subr.mxu0 0.0
      %3389 = vmatpush1.xpose.msra.mxu0 0.0
      %3390 = vmatprep.subr.mxu0 0.0
      %3391 = vmatpush1.xpose.msra.mxu0 0.0
      %3392 = vmatprep.subr.mxu0 0.0
      %3393 = vmatpush1.xpose.msra.mxu0 0.0
      %3394 = vmatprep.subr.mxu0 0.0
      %3395 = vmatpush1.xpose.msra.mxu0 0.0
      %3396 = vmatprep.subr.mxu0 0.0
      %3397 = vmatpush1.xpose.msra.mxu0 0.0
      %3398 = vmatprep.subr.mxu0 0.0
      %3399 = vmatpush1.xpose.msra.mxu0 0.0
      %3400 = vmatprep.subr.mxu0 0.0
      %3401 = vmatpush1.xpose.msra.mxu0 0.0
      %3402 = vmatprep.subr.mxu0 0.0
      %3403 = vmatpush1.xpose.msra.mxu0 0.0
      %3404 = vmatprep.subr.mxu0 0.0
      %3405 = vmatpush1.xpose.msra.mxu0 0.0
      %3406 = vmatprep.subr.mxu0 0.0
      %3407 = vmatpush1.xpose.msra.mxu0 0.0
      %3408 = vmatprep.subr.mxu0 0.0
      %3409 = vmatpush1.xpose.msra.mxu0 0.0
      %3410 = vmatprep.subr.mxu0 0.0
      %3411 = vmatpush1.xpose.msra.mxu0 0.0
      %3412 = vmatprep.subr.mxu0 0.0
      %3413 = vmatpush1.xpose.msra.mxu0 0.0
      %3414 = vmatprep.mubr.f32.mxu0 0.0
      %3415 = vmatmul.mubr.f32.gmra.mrb[0].mxu0 %v1731
      %v3416 = vpop.f32.mrb[0].mxu0
      %v3417 = vadd.f32 0.0, %v3416
      %v3418 = vpop.f32.mrb[0].mxu0
      %3419 = vdwg.mxu0
      %v3420 = vlaneseq
      %v3421 = vshrl.u32 %v3420, 7
      %v3422 = vsub.s32 1, %v3421
      %v3423 = vrot.slane %v3301, %v3422
      %v3424 = vadd.f32 %v1587, %v3423
      %v3425 = vadd.f32 %v1592, %v3423
      %v3426 = vadd.f32 %v1597, %v3423
      %v3427 = vadd.f32 %v1602, %v3423
      %v3428 = vadd.f32 %v1607, %v3423
      %v3429 = vadd.f32 %v1612, %v3423
      %v3430 = vadd.f32 %v1617, %v3423
      %v3431 = vadd.f32 %v3424, %v1714
      %v3432 = vadd.f32 %v3425, %v1714
      %v3433 = vadd.f32 %v3426, %v1714
      %v3434 = vadd.f32 %v3427, %v1714
      %v3435 = vadd.f32 %v3428, %v1714
      %v3436 = vadd.f32 %v3429, %v1714
      %v3437 = vadd.f32 %v3430, %v1714
      %v3438 = vmax.f32 %v3431, 0.0
      %v3439 = vmax.f32 %v3432, 0.0
      %v3440 = vmax.f32 %v3433, 0.0
      %v3441 = vmax.f32 %v3434, 0.0
      %v3442 = vmax.f32 %v3435, 0.0
      %v3443 = vmax.f32 %v3436, 0.0
      %v3444 = vmax.f32 %v3437, 0.0
      %v3446 = vsel %vm1280, %v3438, 0
      %v3449 = vsel %vm1280, %v3439, 0
      %v3452 = vsel %vm1280, %v3440, 0
      %v3455 = vsel %vm1280, %v3441, 0
      %v3458 = vsel %vm1280, %v3442, 0
      %v3461 = vsel %vm1280, %v3443, 0
      %v3464 = vsel %vm1280, %v3444, 0
      %3466 = vmatprep.subr.mxu0 0.0
      %3467 = vmatpush1.xpose.msra.mxu0 %v3446
      %3468 = vmatprep.subr.mxu0 0.0
      %3469 = vmatpush1.xpose.msra.mxu0 %v3449
      %3470 = vmatprep.subr.mxu0 0.0
      %3471 = vmatpush1.xpose.msra.mxu0 %v3452
      %3472 = vmatprep.subr.mxu0 0.0
      %3473 = vmatpush1.xpose.msra.mxu0 %v3455
      %3474 = vmatprep.subr.mxu0 0.0
      %3475 = vmatpush1.xpose.msra.mxu0 %v3458
      %3476 = vmatprep.subr.mxu0 0.0
      %3477 = vmatpush1.xpose.msra.mxu0 %v3461
      %3478 = vmatprep.subr.mxu0 0.0
      %3479 = vmatpush1.xpose.msra.mxu0 %v3464
      %3480 = vmatprep.subr.mxu0 0.0
      %3481 = vmatpush1.xpose.msra.mxu0 0.0
      %3482 = vmatprep.subr.mxu0 0.0
      %3483 = vmatpush1.xpose.msra.mxu0 0.0
      %3484 = vmatprep.subr.mxu0 0.0
      %3485 = vmatpush1.xpose.msra.mxu0 0.0
      %3486 = vmatprep.subr.mxu0 0.0
      %3487 = vmatpush1.xpose.msra.mxu0 0.0
      %3488 = vmatprep.subr.mxu0 0.0
      %3489 = vmatpush1.xpose.msra.mxu0 0.0
      %3490 = vmatprep.subr.mxu0 0.0
      %3491 = vmatpush1.xpose.msra.mxu0 0.0
      %3492 = vmatprep.subr.mxu0 0.0
      %3493 = vmatpush1.xpose.msra.mxu0 0.0
      %3494 = vmatprep.subr.mxu0 0.0
      %3495 = vmatpush1.xpose.msra.mxu0 0.0
      %3496 = vmatprep.subr.mxu0 0.0
      %3497 = vmatpush1.xpose.msra.mxu0 0.0
      %3498 = vmatprep.subr.mxu0 0.0
      %3499 = vmatpush1.xpose.msra.mxu0 0.0
      %3500 = vmatprep.subr.mxu0 0.0
      %3501 = vmatpush1.xpose.msra.mxu0 0.0
      %3502 = vmatprep.subr.mxu0 0.0
      %3503 = vmatpush1.xpose.msra.mxu0 0.0
      %3504 = vmatprep.subr.mxu0 0.0
      %3505 = vmatpush1.xpose.msra.mxu0 0.0
      %3506 = vmatprep.subr.mxu0 0.0
      %3507 = vmatpush1.xpose.msra.mxu0 0.0
      %3508 = vmatprep.subr.mxu0 0.0
      %3509 = vmatpush1.xpose.msra.mxu0 0.0
      %3510 = vmatprep.subr.mxu0 0.0
      %3511 = vmatpush1.xpose.msra.mxu0 0.0
      %3512 = vmatprep.subr.mxu0 0.0
      %3513 = vmatpush1.xpose.msra.mxu0 0.0
      %3514 = vmatprep.subr.mxu0 0.0
      %3515 = vmatpush1.xpose.msra.mxu0 0.0
      %3516 = vmatprep.subr.mxu0 0.0
      %3517 = vmatpush1.xpose.msra.mxu0 0.0
      %3518 = vmatprep.subr.mxu0 0.0
      %3519 = vmatpush1.xpose.msra.mxu0 0.0
      %3520 = vmatprep.subr.mxu0 0.0
      %3521 = vmatpush1.xpose.msra.mxu0 0.0
      %3522 = vmatprep.subr.mxu0 0.0
      %3523 = vmatpush1.xpose.msra.mxu0 0.0
      %3524 = vmatprep.subr.mxu0 0.0
      %3525 = vmatpush1.xpose.msra.mxu0 0.0
      %3526 = vmatprep.subr.mxu0 0.0
      %3527 = vmatpush1.xpose.msra.mxu0 0.0
      %3528 = vmatprep.subr.mxu0 0.0
      %3529 = vmatpush1.xpose.msra.mxu0 0.0
      %3530 = vmatprep.mubr.f32.mxu0 0.0
      %3531 = vmatmul.mubr.f32.gmra.mrb[0].mxu0 %v1731
      %v3532 = vpop.f32.mrb[0].mxu0
      %v3533 = vadd.f32 0.0, %v3532
      %v3534 = vpop.f32.mrb[0].mxu0
      %3535 = vdwg.mxu0
      %v3536 = vlaneseq
      %v3537 = vshrl.u32 %v3536, 7
      %v3538 = vsub.s32 2, %v3537
      %v3539 = vrot.slane %v3301, %v3538
      %v3540 = vadd.f32 %v1587, %v3539
      %v3541 = vadd.f32 %v1592, %v3539
      %v3542 = vadd.f32 %v1597, %v3539
      %v3543 = vadd.f32 %v1602, %v3539
      %v3544 = vadd.f32 %v1607, %v3539
      %v3545 = vadd.f32 %v1612, %v3539
      %v3546 = vadd.f32 %v1617, %v3539
      %v3547 = vadd.f32 %v3540, %v1714
      %v3548 = vadd.f32 %v3541, %v1714
      %v3549 = vadd.f32 %v3542, %v1714
      %v3550 = vadd.f32 %v3543, %v1714
      %v3551 = vadd.f32 %v3544, %v1714
      %v3552 = vadd.f32 %v3545, %v1714
      %v3553 = vadd.f32 %v3546, %v1714
      %v3554 = vmax.f32 %v3547, 0.0
      %v3555 = vmax.f32 %v3548, 0.0
      %v3556 = vmax.f32 %v3549, 0.0
      %v3557 = vmax.f32 %v3550, 0.0
      %v3558 = vmax.f32 %v3551, 0.0
      %v3559 = vmax.f32 %v3552, 0.0
      %v3560 = vmax.f32 %v3553, 0.0
      %v3562 = vsel %vm1280, %v3554, 0
      %v3565 = vsel %vm1280, %v3555, 0
      %v3568 = vsel %vm1280, %v3556, 0
      %v3571 = vsel %vm1280, %v3557, 0
      %v3574 = vsel %vm1280, %v3558, 0
      %v3577 = vsel %vm1280, %v3559, 0
      %v3580 = vsel %vm1280, %v3560, 0
      %3582 = vmatprep.subr.mxu0 0.0
      %3583 = vmatpush1.xpose.msra.mxu0 %v3562
      %3584 = vmatprep.subr.mxu0 0.0
      %3585 = vmatpush1.xpose.msra.mxu0 %v3565
      %3586 = vmatprep.subr.mxu0 0.0
      %3587 = vmatpush1.xpose.msra.mxu0 %v3568
      %3588 = vmatprep.subr.mxu0 0.0
      %3589 = vmatpush1.xpose.msra.mxu0 %v3571
      %3590 = vmatprep.subr.mxu0 0.0
      %3591 = vmatpush1.xpose.msra.mxu0 %v3574
      %3592 = vmatprep.subr.mxu0 0.0
      %3593 = vmatpush1.xpose.msra.mxu0 %v3577
      %3594 = vmatprep.subr.mxu0 0.0
      %3595 = vmatpush1.xpose.msra.mxu0 %v3580
      %3596 = vmatprep.subr.mxu0 0.0
      %3597 = vmatpush1.xpose.msra.mxu0 0.0
      %3598 = vmatprep.subr.mxu0 0.0
      %3599 = vmatpush1.xpose.msra.mxu0 0.0
      %3600 = vmatprep.subr.mxu0 0.0
      %3601 = vmatpush1.xpose.msra.mxu0 0.0
      %3602 = vmatprep.subr.mxu0 0.0
      %3603 = vmatpush1.xpose.msra.mxu0 0.0
      %3604 = vmatprep.subr.mxu0 0.0
      %3605 = vmatpush1.xpose.msra.mxu0 0.0
      %3606 = vmatprep.subr.mxu0 0.0
      %3607 = vmatpush1.xpose.msra.mxu0 0.0
      %3608 = vmatprep.subr.mxu0 0.0
      %3609 = vmatpush1.xpose.msra.mxu0 0.0
      %3610 = vmatprep.subr.mxu0 0.0
      %3611 = vmatpush1.xpose.msra.mxu0 0.0
      %3612 = vmatprep.subr.mxu0 0.0
      %3613 = vmatpush1.xpose.msra.mxu0 0.0
      %3614 = vmatprep.subr.mxu0 0.0
      %3615 = vmatpush1.xpose.msra.mxu0 0.0
      %3616 = vmatprep.subr.mxu0 0.0
      %3617 = vmatpush1.xpose.msra.mxu0 0.0
      %3618 = vmatprep.subr.mxu0 0.0
      %3619 = vmatpush1.xpose.msra.mxu0 0.0
      %3620 = vmatprep.subr.mxu0 0.0
      %3621 = vmatpush1.xpose.msra.mxu0 0.0
      %3622 = vmatprep.subr.mxu0 0.0
      %3623 = vmatpush1.xpose.msra.mxu0 0.0
      %3624 = vmatprep.subr.mxu0 0.0
      %3625 = vmatpush1.xpose.msra.mxu0 0.0
      %3626 = vmatprep.subr.mxu0 0.0
      %3627 = vmatpush1.xpose.msra.mxu0 0.0
      %3628 = vmatprep.subr.mxu0 0.0
      %3629 = vmatpush1.xpose.msra.mxu0 0.0
      %3630 = vmatprep.subr.mxu0 0.0
      %3631 = vmatpush1.xpose.msra.mxu0 0.0
      %3632 = vmatprep.subr.mxu0 0.0
      %3633 = vmatpush1.xpose.msra.mxu0 0.0
      %3634 = vmatprep.subr.mxu0 0.0
      %3635 = vmatpush1.xpose.msra.mxu0 0.0
      %3636 = vmatprep.subr.mxu0 0.0
      %3637 = vmatpush1.xpose.msra.mxu0 0.0
      %3638 = vmatprep.subr.mxu0 0.0
      %3639 = vmatpush1.xpose.msra.mxu0 0.0
      %3640 = vmatprep.subr.mxu0 0.0
      %3641 = vmatpush1.xpose.msra.mxu0 0.0
      %3642 = vmatprep.subr.mxu0 0.0
      %3643 = vmatpush1.xpose.msra.mxu0 0.0
      %3644 = vmatprep.subr.mxu0 0.0
      %3645 = vmatpush1.xpose.msra.mxu0 0.0
      %3646 = vmatprep.mubr.f32.mxu0 0.0
      %3647 = vmatmul.mubr.f32.gmra.mrb[0].mxu0 %v1731
      %v3648 = vpop.f32.mrb[0].mxu0
      %v3649 = vadd.f32 0.0, %v3648
      %v3650 = vpop.f32.mrb[0].mxu0
      %3651 = vdwg.mxu0
      %v3652 = vlaneseq
      %v3653 = vshrl.u32 %v3652, 7
      %v3654 = vsub.s32 3, %v3653
      %v3655 = vrot.slane %v3301, %v3654
      %v3656 = vadd.f32 %v1587, %v3655
      %v3657 = vadd.f32 %v1592, %v3655
      %v3658 = vadd.f32 %v1597, %v3655
      %v3659 = vadd.f32 %v1602, %v3655
      %v3660 = vadd.f32 %v1607, %v3655
      %v3661 = vadd.f32 %v1612, %v3655
      %v3662 = vadd.f32 %v1617, %v3655
      %v3663 = vadd.f32 %v3656, %v1714
      %v3664 = vadd.f32 %v3657, %v1714
      %v3665 = vadd.f32 %v3658, %v1714
      %v3666 = vadd.f32 %v3659, %v1714
      %v3667 = vadd.f32 %v3660, %v1714
      %v3668 = vadd.f32 %v3661, %v1714
      %v3669 = vadd.f32 %v3662, %v1714
      %v3670 = vmax.f32 %v3663, 0.0
      %v3671 = vmax.f32 %v3664, 0.0
      %v3672 = vmax.f32 %v3665, 0.0
      %v3673 = vmax.f32 %v3666, 0.0
      %v3674 = vmax.f32 %v3667, 0.0
      %v3675 = vmax.f32 %v3668, 0.0
      %v3676 = vmax.f32 %v3669, 0.0
      %v3678 = vsel %vm1280, %v3670, 0
      %v3681 = vsel %vm1280, %v3671, 0
      %v3684 = vsel %vm1280, %v3672, 0
      %v3687 = vsel %vm1280, %v3673, 0
      %v3690 = vsel %vm1280, %v3674, 0
      %v3693 = vsel %vm1280, %v3675, 0
      %v3696 = vsel %vm1280, %v3676, 0
      %3698 = vmatprep.subr.mxu0 0.0
      %3699 = vmatpush1.xpose.msra.mxu0 %v3678
      %3700 = vmatprep.subr.mxu0 0.0
      %3701 = vmatpush1.xpose.msra.mxu0 %v3681
      %3702 = vmatprep.subr.mxu0 0.0
      %3703 = vmatpush1.xpose.msra.mxu0 %v3684
      %3704 = vmatprep.subr.mxu0 0.0
      %3705 = vmatpush1.xpose.msra.mxu0 %v3687
      %3706 = vmatprep.subr.mxu0 0.0
      %3707 = vmatpush1.xpose.msra.mxu0 %v3690
      %3708 = vmatprep.subr.mxu0 0.0
      %3709 = vmatpush1.xpose.msra.mxu0 %v3693
      %3710 = vmatprep.subr.mxu0 0.0
      %3711 = vmatpush1.xpose.msra.mxu0 %v3696
      %3712 = vmatprep.subr.mxu0 0.0
      %3713 = vmatpush1.xpose.msra.mxu0 0.0
      %3714 = vmatprep.subr.mxu0 0.0
      %3715 = vmatpush1.xpose.msra.mxu0 0.0
      %3716 = vmatprep.subr.mxu0 0.0
      %3717 = vmatpush1.xpose.msra.mxu0 0.0
      %3718 = vmatprep.subr.mxu0 0.0
      %3719 = vmatpush1.xpose.msra.mxu0 0.0
      %3720 = vmatprep.subr.mxu0 0.0
      %3721 = vmatpush1.xpose.msra.mxu0 0.0
      %3722 = vmatprep.subr.mxu0 0.0
      %3723 = vmatpush1.xpose.msra.mxu0 0.0
      %3724 = vmatprep.subr.mxu0 0.0
      %3725 = vmatpush1.xpose.msra.mxu0 0.0
      %3726 = vmatprep.subr.mxu0 0.0
      %3727 = vmatpush1.xpose.msra.mxu0 0.0
      %3728 = vmatprep.subr.mxu0 0.0
      %3729 = vmatpush1.xpose.msra.mxu0 0.0
      %3730 = vmatprep.subr.mxu0 0.0
      %3731 = vmatpush1.xpose.msra.mxu0 0.0
      %3732 = vmatprep.subr.mxu0 0.0
      %3733 = vmatpush1.xpose.msra.mxu0 0.0
      %3734 = vmatprep.subr.mxu0 0.0
      %3735 = vmatpush1.xpose.msra.mxu0 0.0
      %3736 = vmatprep.subr.mxu0 0.0
      %3737 = vmatpush1.xpose.msra.mxu0 0.0
      %3738 = vmatprep.subr.mxu0 0.0
      %3739 = vmatpush1.xpose.msra.mxu0 0.0
      %3740 = vmatprep.subr.mxu0 0.0
      %3741 = vmatpush1.xpose.msra.mxu0 0.0
      %3742 = vmatprep.subr.mxu0 0.0
      %3743 = vmatpush1.xpose.msra.mxu0 0.0
      %3744 = vmatprep.subr.mxu0 0.0
      %3745 = vmatpush1.xpose.msra.mxu0 0.0
      %3746 = vmatprep.subr.mxu0 0.0
      %3747 = vmatpush1.xpose.msra.mxu0 0.0
      %3748 = vmatprep.subr.mxu0 0.0
      %3749 = vmatpush1.xpose.msra.mxu0 0.0
      %3750 = vmatprep.subr.mxu0 0.0
      %3751 = vmatpush1.xpose.msra.mxu0 0.0
      %3752 = vmatprep.subr.mxu0 0.0
      %3753 = vmatpush1.xpose.msra.mxu0 0.0
      %3754 = vmatprep.subr.mxu0 0.0
      %3755 = vmatpush1.xpose.msra.mxu0 0.0
      %3756 = vmatprep.subr.mxu0 0.0
      %3757 = vmatpush1.xpose.msra.mxu0 0.0
      %3758 = vmatprep.subr.mxu0 0.0
      %3759 = vmatpush1.xpose.msra.mxu0 0.0
      %3760 = vmatprep.subr.mxu0 0.0
      %3761 = vmatpush1.xpose.msra.mxu0 0.0
      %3762 = vmatprep.mubr.f32.mxu0 0.0
      %3763 = vmatmul.mubr.f32.gmra.mrb[0].mxu0 %v1731
      %v3764 = vpop.f32.mrb[0].mxu0
      %v3765 = vadd.f32 0.0, %v3764
      %v3766 = vpop.f32.mrb[0].mxu0
      %3767 = vdwg.mxu0
      %v3768 = vlaneseq
      %v3769 = vshrl.u32 %v3768, 7
      %v3770 = vsub.s32 4, %v3769
      %v3771 = vrot.slane %v3301, %v3770
      %v3772 = vadd.f32 %v1587, %v3771
      %v3773 = vadd.f32 %v1592, %v3771
      %v3774 = vadd.f32 %v1597, %v3771
      %v3775 = vadd.f32 %v1602, %v3771
      %v3776 = vadd.f32 %v1607, %v3771
      %v3777 = vadd.f32 %v1612, %v3771
      %v3778 = vadd.f32 %v1617, %v3771
      %v3779 = vadd.f32 %v3772, %v1714
      %v3780 = vadd.f32 %v3773, %v1714
      %v3781 = vadd.f32 %v3774, %v1714
      %v3782 = vadd.f32 %v3775, %v1714
      %v3783 = vadd.f32 %v3776, %v1714
      %v3784 = vadd.f32 %v3777, %v1714
      %v3785 = vadd.f32 %v3778, %v1714
      %v3786 = vmax.f32 %v3779, 0.0
      %v3787 = vmax.f32 %v3780, 0.0
      %v3788 = vmax.f32 %v3781, 0.0
      %v3789 = vmax.f32 %v3782, 0.0
      %v3790 = vmax.f32 %v3783, 0.0
      %v3791 = vmax.f32 %v3784, 0.0
      %v3792 = vmax.f32 %v3785, 0.0
      %v3794 = vsel %vm1280, %v3786, 0
      %v3797 = vsel %vm1280, %v3787, 0
      %v3800 = vsel %vm1280, %v3788, 0
      %v3803 = vsel %vm1280, %v3789, 0
      %v3806 = vsel %vm1280, %v3790, 0
      %v3809 = vsel %vm1280, %v3791, 0
      %v3812 = vsel %vm1280, %v3792, 0
      %3814 = vmatprep.subr.mxu0 0.0
      %3815 = vmatpush1.xpose.msra.mxu0 %v3794
      %3816 = vmatprep.subr.mxu0 0.0
      %3817 = vmatpush1.xpose.msra.mxu0 %v3797
      %3818 = vmatprep.subr.mxu0 0.0
      %3819 = vmatpush1.xpose.msra.mxu0 %v3800
      %3820 = vmatprep.subr.mxu0 0.0
      %3821 = vmatpush1.xpose.msra.mxu0 %v3803
      %3822 = vmatprep.subr.mxu0 0.0
      %3823 = vmatpush1.xpose.msra.mxu0 %v3806
      %3824 = vmatprep.subr.mxu0 0.0
      %3825 = vmatpush1.xpose.msra.mxu0 %v3809
      %3826 = vmatprep.subr.mxu0 0.0
      %3827 = vmatpush1.xpose.msra.mxu0 %v3812
      %3828 = vmatprep.subr.mxu0 0.0
      %3829 = vmatpush1.xpose.msra.mxu0 0.0
      %3830 = vmatprep.subr.mxu0 0.0
      %3831 = vmatpush1.xpose.msra.mxu0 0.0
      %3832 = vmatprep.subr.mxu0 0.0
      %3833 = vmatpush1.xpose.msra.mxu0 0.0
      %3834 = vmatprep.subr.mxu0 0.0
      %3835 = vmatpush1.xpose.msra.mxu0 0.0
      %3836 = vmatprep.subr.mxu0 0.0
      %3837 = vmatpush1.xpose.msra.mxu0 0.0
      %3838 = vmatprep.subr.mxu0 0.0
      %3839 = vmatpush1.xpose.msra.mxu0 0.0
      %3840 = vmatprep.subr.mxu0 0.0
      %3841 = vmatpush1.xpose.msra.mxu0 0.0
      %3842 = vmatprep.subr.mxu0 0.0
      %3843 = vmatpush1.xpose.msra.mxu0 0.0
      %3844 = vmatprep.subr.mxu0 0.0
      %3845 = vmatpush1.xpose.msra.mxu0 0.0
      %3846 = vmatprep.subr.mxu0 0.0
      %3847 = vmatpush1.xpose.msra.mxu0 0.0
      %3848 = vmatprep.subr.mxu0 0.0
      %3849 = vmatpush1.xpose.msra.mxu0 0.0
      %3850 = vmatprep.subr.mxu0 0.0
      %3851 = vmatpush1.xpose.msra.mxu0 0.0
      %3852 = vmatprep.subr.mxu0 0.0
      %3853 = vmatpush1.xpose.msra.mxu0 0.0
      %3854 = vmatprep.subr.mxu0 0.0
      %3855 = vmatpush1.xpose.msra.mxu0 0.0
      %3856 = vmatprep.subr.mxu0 0.0
      %3857 = vmatpush1.xpose.msra.mxu0 0.0
      %3858 = vmatprep.subr.mxu0 0.0
      %3859 = vmatpush1.xpose.msra.mxu0 0.0
      %3860 = vmatprep.subr.mxu0 0.0
      %3861 = vmatpush1.xpose.msra.mxu0 0.0
      %3862 = vmatprep.subr.mxu0 0.0
      %3863 = vmatpush1.xpose.msra.mxu0 0.0
      %3864 = vmatprep.subr.mxu0 0.0
      %3865 = vmatpush1.xpose.msra.mxu0 0.0
      %3866 = vmatprep.subr.mxu0 0.0
      %3867 = vmatpush1.xpose.msra.mxu0 0.0
      %3868 = vmatprep.subr.mxu0 0.0
      %3869 = vmatpush1.xpose.msra.mxu0 0.0
      %3870 = vmatprep.subr.mxu0 0.0
      %3871 = vmatpush1.xpose.msra.mxu0 0.0
      %3872 = vmatprep.subr.mxu0 0.0
      %3873 = vmatpush1.xpose.msra.mxu0 0.0
      %3874 = vmatprep.subr.mxu0 0.0
      %3875 = vmatpush1.xpose.msra.mxu0 0.0
      %3876 = vmatprep.subr.mxu0 0.0
      %3877 = vmatpush1.xpose.msra.mxu0 0.0
      %3878 = vmatprep.mubr.f32.mxu0 0.0
      %3879 = vmatmul.mubr.f32.gmra.mrb[0].mxu0 %v1731
      %v3880 = vpop.f32.mrb[0].mxu0
      %v3881 = vadd.f32 0.0, %v3880
      %v3882 = vpop.f32.mrb[0].mxu0
      %3883 = vdwg.mxu0
      %v3884 = vlaneseq
      %v3885 = vshrl.u32 %v3884, 7
      %v3886 = vsub.s32 5, %v3885
      %v3887 = vrot.slane %v3301, %v3886
      %v3888 = vadd.f32 %v1587, %v3887
      %v3889 = vadd.f32 %v1592, %v3887
      %v3890 = vadd.f32 %v1597, %v3887
      %v3891 = vadd.f32 %v1602, %v3887
      %v3892 = vadd.f32 %v1607, %v3887
      %v3893 = vadd.f32 %v1612, %v3887
      %v3894 = vadd.f32 %v1617, %v3887
      %v3895 = vadd.f32 %v3888, %v1714
      %v3896 = vadd.f32 %v3889, %v1714
      %v3897 = vadd.f32 %v3890, %v1714
      %v3898 = vadd.f32 %v3891, %v1714
      %v3899 = vadd.f32 %v3892, %v1714
      %v3900 = vadd.f32 %v3893, %v1714
      %v3901 = vadd.f32 %v3894, %v1714
      %v3902 = vmax.f32 %v3895, 0.0
      %v3903 = vmax.f32 %v3896, 0.0
      %v3904 = vmax.f32 %v3897, 0.0
      %v3905 = vmax.f32 %v3898, 0.0
      %v3906 = vmax.f32 %v3899, 0.0
      %v3907 = vmax.f32 %v3900, 0.0
      %v3908 = vmax.f32 %v3901, 0.0
      %v3910 = vsel %vm1280, %v3902, 0
      %v3913 = vsel %vm1280, %v3903, 0
      %v3916 = vsel %vm1280, %v3904, 0
      %v3919 = vsel %vm1280, %v3905, 0
      %v3922 = vsel %vm1280, %v3906, 0
      %v3925 = vsel %vm1280, %v3907, 0
      %v3928 = vsel %vm1280, %v3908, 0
      %3930 = vmatprep.subr.mxu0 0.0
      %3931 = vmatpush1.xpose.msra.mxu0 %v3910
      %3932 = vmatprep.subr.mxu0 0.0
      %3933 = vmatpush1.xpose.msra.mxu0 %v3913
      %3934 = vmatprep.subr.mxu0 0.0
      %3935 = vmatpush1.xpose.msra.mxu0 %v3916
      %3936 = vmatprep.subr.mxu0 0.0
      %3937 = vmatpush1.xpose.msra.mxu0 %v3919
      %3938 = vmatprep.subr.mxu0 0.0
      %3939 = vmatpush1.xpose.msra.mxu0 %v3922
      %3940 = vmatprep.subr.mxu0 0.0
      %3941 = vmatpush1.xpose.msra.mxu0 %v3925
      %3942 = vmatprep.subr.mxu0 0.0
      %3943 = vmatpush1.xpose.msra.mxu0 %v3928
      %3944 = vmatprep.subr.mxu0 0.0
      %3945 = vmatpush1.xpose.msra.mxu0 0.0
      %3946 = vmatprep.subr.mxu0 0.0
      %3947 = vmatpush1.xpose.msra.mxu0 0.0
      %3948 = vmatprep.subr.mxu0 0.0
      %3949 = vmatpush1.xpose.msra.mxu0 0.0
      %3950 = vmatprep.subr.mxu0 0.0
      %3951 = vmatpush1.xpose.msra.mxu0 0.0
      %3952 = vmatprep.subr.mxu0 0.0
      %3953 = vmatpush1.xpose.msra.mxu0 0.0
      %3954 = vmatprep.subr.mxu0 0.0
      %3955 = vmatpush1.xpose.msra.mxu0 0.0
      %3956 = vmatprep.subr.mxu0 0.0
      %3957 = vmatpush1.xpose.msra.mxu0 0.0
      %3958 = vmatprep.subr.mxu0 0.0
      %3959 = vmatpush1.xpose.msra.mxu0 0.0
      %3960 = vmatprep.subr.mxu0 0.0
      %3961 = vmatpush1.xpose.msra.mxu0 0.0
      %3962 = vmatprep.subr.mxu0 0.0
      %3963 = vmatpush1.xpose.msra.mxu0 0.0
      %3964 = vmatprep.subr.mxu0 0.0
      %3965 = vmatpush1.xpose.msra.mxu0 0.0
      %3966 = vmatprep.subr.mxu0 0.0
      %3967 = vmatpush1.xpose.msra.mxu0 0.0
      %3968 = vmatprep.subr.mxu0 0.0
      %3969 = vmatpush1.xpose.msra.mxu0 0.0
      %3970 = vmatprep.subr.mxu0 0.0
      %3971 = vmatpush1.xpose.msra.mxu0 0.0
      %3972 = vmatprep.subr.mxu0 0.0
      %3973 = vmatpush1.xpose.msra.mxu0 0.0
      %3974 = vmatprep.subr.mxu0 0.0
      %3975 = vmatpush1.xpose.msra.mxu0 0.0
      %3976 = vmatprep.subr.mxu0 0.0
      %3977 = vmatpush1.xpose.msra.mxu0 0.0
      %3978 = vmatprep.subr.mxu0 0.0
      %3979 = vmatpush1.xpose.msra.mxu0 0.0
      %3980 = vmatprep.subr.mxu0 0.0
      %3981 = vmatpush1.xpose.msra.mxu0 0.0
      %3982 = vmatprep.subr.mxu0 0.0
      %3983 = vmatpush1.xpose.msra.mxu0 0.0
      %3984 = vmatprep.subr.mxu0 0.0
      %3985 = vmatpush1.xpose.msra.mxu0 0.0
      %3986 = vmatprep.subr.mxu0 0.0
      %3987 = vmatpush1.xpose.msra.mxu0 0.0
      %3988 = vmatprep.subr.mxu0 0.0
      %3989 = vmatpush1.xpose.msra.mxu0 0.0
      %3990 = vmatprep.subr.mxu0 0.0
      %3991 = vmatpush1.xpose.msra.mxu0 0.0
      %3992 = vmatprep.subr.mxu0 0.0
      %3993 = vmatpush1.xpose.msra.mxu0 0.0
      %3994 = vmatprep.mubr.f32.mxu0 0.0
      %3995 = vmatmul.mubr.f32.gmra.mrb[0].mxu0 %v1731
      %v3996 = vpop.f32.mrb[0].mxu0
      %v3997 = vadd.f32 0.0, %v3996
      %v3998 = vpop.f32.mrb[0].mxu0
      %3999 = vdwg.mxu0
      %v4001 = vrot.slane %v3533, 7
      %v4004 = vrot.slane %v3649, 6
      %v4007 = vrot.slane %v3765, 5
      %v4010 = vrot.slane %v3881, 4
      %v4013 = vrot.slane %v3997, 3
      %v4015 = vsel %vm2419, %v3417, %v4001
      %v4016 = vsel %vm2421, %v4015, %v4004
      %v4017 = vsel %vm1158, %v4016, %v4007
      %v4018 = vsel %vm2424, %v4017, %v4010
      %v4019 = vsel %vm2426, %v4018, %v4013
      %v4020 = vadd.f32 %v4019, %v2436
      %v4021 = vsel %vm2439, %v4020, -inf
      %4022 = vmax.xlane.f32.xlu0 %v4021
      %v4023 = vpop.xlane.xlu0 %4022
      %v4024 = vsub.f32 %v4020, %v4023
      %v4025 = vmul.f32 %v4024, 1.442695
      %v4026 = vpow.pop %v4025
      %v4027 = vsel %vm2439, %v4026, 0.0
      %4028 = vadd.xlane.f32.xlu0 %v4027
      %v4029 = vpop.xlane.xlu0 %4028
      %v4030 = vrcp.pop %v4029
      %v4031 = vmul.f32 %v4026, %v4030
      %v4033 = vsel %vm2451, %v4031, 0
      %4035 = vmatprep.subr.mxu0 0.0
      %4036 = vmatpush1.msra.mxu0 %v1402
      %4037 = vmatprep.subr.mxu0 0.0
      %4038 = vmatpush1.msra.mxu0 %v1403
      %4039 = vmatprep.subr.mxu0 0.0
      %4040 = vmatpush1.msra.mxu0 %v1404
      %4041 = vmatprep.subr.mxu0 0.0
      %4042 = vmatpush1.msra.mxu0 %v1405
      %4043 = vmatprep.subr.mxu0 0.0
      %4044 = vmatpush1.msra.mxu0 %v1406
      %4045 = vmatprep.subr.mxu0 0.0
      %4046 = vmatpush1.msra.mxu0 %v1407
      %4047 = vmatprep.subr.mxu0 0.0
      %4048 = vmatpush1.msra.mxu0 %v2455
      %4049 = vmatprep.subr.mxu0 0.0
      %4050 = vmatpush1.msra.mxu0 0.0
      %4051 = vmatprep.subr.mxu0 0.0
      %4052 = vmatpush1.msra.mxu0 0.0
      %4053 = vmatprep.subr.mxu0 0.0
      %4054 = vmatpush1.msra.mxu0 0.0
      %4055 = vmatprep.subr.mxu0 0.0
      %4056 = vmatpush1.msra.mxu0 0.0
      %4057 = vmatprep.subr.mxu0 0.0
      %4058 = vmatpush1.msra.mxu0 0.0
      %4059 = vmatprep.subr.mxu0 0.0
      %4060 = vmatpush1.msra.mxu0 0.0
      %4061 = vmatprep.subr.mxu0 0.0
      %4062 = vmatpush1.msra.mxu0 0.0
      %4063 = vmatprep.subr.mxu0 0.0
      %4064 = vmatpush1.msra.mxu0 0.0
      %4065 = vmatprep.subr.mxu0 0.0
      %4066 = vmatpush1.msra.mxu0 0.0
      %4067 = vmatprep.subr.mxu0 0.0
      %4068 = vmatpush1.msra.mxu0 0.0
      %4069 = vmatprep.subr.mxu0 0.0
      %4070 = vmatpush1.msra.mxu0 0.0
      %4071 = vmatprep.subr.mxu0 0.0
      %4072 = vmatpush1.msra.mxu0 0.0
      %4073 = vmatprep.subr.mxu0 0.0
      %4074 = vmatpush1.msra.mxu0 0.0
      %4075 = vmatprep.subr.mxu0 0.0
      %4076 = vmatpush1.msra.mxu0 0.0
      %4077 = vmatprep.subr.mxu0 0.0
      %4078 = vmatpush1.msra.mxu0 0.0
      %4079 = vmatprep.subr.mxu0 0.0
      %4080 = vmatpush1.msra.mxu0 0.0
      %4081 = vmatprep.subr.mxu0 0.0
      %4082 = vmatpush1.msra.mxu0 0.0
      %4083 = vmatprep.subr.mxu0 0.0
      %4084 = vmatpush1.msra.mxu0 0.0
      %4085 = vmatprep.subr.mxu0 0.0
      %4086 = vmatpush1.msra.mxu0 0.0
      %4087 = vmatprep.subr.mxu0 0.0
      %4088 = vmatpush1.msra.mxu0 0.0
      %4089 = vmatprep.subr.mxu0 0.0
      %4090 = vmatpush1.msra.mxu0 0.0
      %4091 = vmatprep.subr.mxu0 0.0
      %4092 = vmatpush1.msra.mxu0 0.0
      %4093 = vmatprep.subr.mxu0 0.0
      %4094 = vmatpush1.msra.mxu0 0.0
      %4095 = vmatprep.subr.mxu0 0.0
      %4096 = vmatpush1.msra.mxu0 0.0
      %4097 = vmatprep.subr.mxu0 0.0
      %4098 = vmatpush1.msra.mxu0 0.0
      %4099 = vmatprep.mubr.f32.mxu0 0.0
      %4100 = vmatmul.mubr.f32.gmra.mrb[0].mxu0 %v4033
      %v4101 = vpop.f32.mrb[0].mxu0
      %v4102 = vadd.f32 0.0, %v4101
      %v4103 = vpop.f32.mrb[0].mxu0
      %4104 = vdwg.mxu0
      %v4106 = vsel %vm1280, %v4102, 0
      %4108 = vmatprep.subr.mxu0 0.0
      %4109 = vmatpush1.msra.mxu0 %v2527
      %4110 = vmatprep.subr.mxu0 0.0
      %4111 = vmatpush1.msra.mxu0 %v2528
      %4112 = vmatprep.subr.mxu0 0.0
      %4113 = vmatpush1.msra.mxu0 %v2529
      %4114 = vmatprep.subr.mxu0 0.0
      %4115 = vmatpush1.msra.mxu0 %v2530
      %4116 = vmatprep.subr.mxu0 0.0
      %4117 = vmatpush1.msra.mxu0 0.0
      %4118 = vmatprep.subr.mxu0 0.0
      %4119 = vmatpush1.msra.mxu0 0.0
      %4120 = vmatprep.subr.mxu0 0.0
      %4121 = vmatpush1.msra.mxu0 0.0
      %4122 = vmatprep.subr.mxu0 0.0
      %4123 = vmatpush1.msra.mxu0 0.0
      %4124 = vmatprep.subr.mxu0 0.0
      %4125 = vmatpush1.msra.mxu0 0.0
      %4126 = vmatprep.subr.mxu0 0.0
      %4127 = vmatpush1.msra.mxu0 0.0
      %4128 = vmatprep.subr.mxu0 0.0
      %4129 = vmatpush1.msra.mxu0 0.0
      %4130 = vmatprep.subr.mxu0 0.0
      %4131 = vmatpush1.msra.mxu0 0.0
      %4132 = vmatprep.subr.mxu0 0.0
      %4133 = vmatpush1.msra.mxu0 0.0
      %4134 = vmatprep.subr.mxu0 0.0
      %4135 = vmatpush1.msra.mxu0 0.0
      %4136 = vmatprep.subr.mxu0 0.0
      %4137 = vmatpush1.msra.mxu0 0.0
      %4138 = vmatprep.subr.mxu0 0.0
      %4139 = vmatpush1.msra.mxu0 0.0
      %4140 = vmatprep.subr.mxu0 0.0
      %4141 = vmatpush1.msra.mxu0 0.0
      %4142 = vmatprep.subr.mxu0 0.0
      %4143 = vmatpush1.msra.mxu0 0.0
      %4144 = vmatprep.subr.mxu0 0.0
      %4145 = vmatpush1.msra.mxu0 0.0
      %4146 = vmatprep.subr.mxu0 0.0
      %4147 = vmatpush1.msra.mxu0 0.0
      %4148 = vmatprep.subr.mxu0 0.0
      %4149 = vmatpush1.msra.mxu0 0.0
      %4150 = vmatprep.subr.mxu0 0.0
      %4151 = vmatpush1.msra.mxu0 0.0
      %4152 = vmatprep.subr.mxu0 0.0
      %4153 = vmatpush1.msra.mxu0 0.0
      %4154 = vmatprep.subr.mxu0 0.0
      %4155 = vmatpush1.msra.mxu0 0.0
      %4156 = vmatprep.subr.mxu0 0.0
      %4157 = vmatpush1.msra.mxu0 0.0
      %4158 = vmatprep.subr.mxu0 0.0
      %4159 = vmatpush1.msra.mxu0 0.0
      %4160 = vmatprep.subr.mxu0 0.0
      %4161 = vmatpush1.msra.mxu0 0.0
      %4162 = vmatprep.subr.mxu0 0.0
      %4163 = vmatpush1.msra.mxu0 0.0
      %4164 = vmatprep.subr.mxu0 0.0
      %4165 = vmatpush1.msra.mxu0 0.0
      %4166 = vmatprep.subr.mxu0 0.0
      %4167 = vmatpush1.msra.mxu0 0.0
      %4168 = vmatprep.subr.mxu0 0.0
      %4169 = vmatpush1.msra.mxu0 0.0
      %4170 = vmatprep.subr.mxu0 0.0
      %4171 = vmatpush1.msra.mxu0 0.0
      %4172 = vmatprep.mubr.f32.mxu0 0.0
      %4173 = vmatmul.mubr.f32.gmra.mrb[0].mxu0 %v4106
      %v4174 = vpop.f32.mrb[0].mxu0
      %v4175 = vadd.f32 %v2536, %v4174
      %v4176 = vpop.f32.mrb[0].mxu0
      %4177 = vdwg.mxu0
      %v4178 = vmax.f32 %v4175, 0.0
      %4179 = vmatprep.subr.mxu0 0.0
      %4180 = vmatpush1.msra.mxu0 %v2612
      %4181 = vmatprep.subr.mxu0 0.0
      %4182 = vmatpush1.msra.mxu0 %v2613
      %4183 = vmatprep.subr.mxu0 0.0
      %4184 = vmatpush1.msra.mxu0 %v2614
      %4185 = vmatprep.subr.mxu0 0.0
      %4186 = vmatpush1.msra.mxu0 %v2615
      %4187 = vmatprep.subr.mxu0 0.0
      %4188 = vmatpush1.msra.mxu0 0.0
      %4189 = vmatprep.subr.mxu0 0.0
      %4190 = vmatpush1.msra.mxu0 0.0
      %4191 = vmatprep.subr.mxu0 0.0
      %4192 = vmatpush1.msra.mxu0 0.0
      %4193 = vmatprep.subr.mxu0 0.0
      %4194 = vmatpush1.msra.mxu0 0.0
      %4195 = vmatprep.subr.mxu0 0.0
      %4196 = vmatpush1.msra.mxu0 0.0
      %4197 = vmatprep.subr.mxu0 0.0
      %4198 = vmatpush1.msra.mxu0 0.0
      %4199 = vmatprep.subr.mxu0 0.0
      %4200 = vmatpush1.msra.mxu0 0.0
      %4201 = vmatprep.subr.mxu0 0.0
      %4202 = vmatpush1.msra.mxu0 0.0
      %4203 = vmatprep.subr.mxu0 0.0
      %4204 = vmatpush1.msra.mxu0 0.0
      %4205 = vmatprep.subr.mxu0 0.0
      %4206 = vmatpush1.msra.mxu0 0.0
      %4207 = vmatprep.subr.mxu0 0.0
      %4208 = vmatpush1.msra.mxu0 0.0
      %4209 = vmatprep.subr.mxu0 0.0
      %4210 = vmatpush1.msra.mxu0 0.0
      %4211 = vmatprep.subr.mxu0 0.0
      %4212 = vmatpush1.msra.mxu0 0.0
      %4213 = vmatprep.subr.mxu0 0.0
      %4214 = vmatpush1.msra.mxu0 0.0
      %4215 = vmatprep.subr.mxu0 0.0
      %4216 = vmatpush1.msra.mxu0 0.0
      %4217 = vmatprep.subr.mxu0 0.0
      %4218 = vmatpush1.msra.mxu0 0.0
      %4219 = vmatprep.subr.mxu0 0.0
      %4220 = vmatpush1.msra.mxu0 0.0
      %4221 = vmatprep.subr.mxu0 0.0
      %4222 = vmatpush1.msra.mxu0 0.0
      %4223 = vmatprep.subr.mxu0 0.0
      %4224 = vmatpush1.msra.mxu0 0.0
      %4225 = vmatprep.subr.mxu0 0.0
      %4226 = vmatpush1.msra.mxu0 0.0
      %4227 = vmatprep.subr.mxu0 0.0
      %4228 = vmatpush1.msra.mxu0 0.0
      %4229 = vmatprep.subr.mxu0 0.0
      %4230 = vmatpush1.msra.mxu0 0.0
      %4231 = vmatprep.subr.mxu0 0.0
      %4232 = vmatpush1.msra.mxu0 0.0
      %4233 = vmatprep.subr.mxu0 0.0
      %4234 = vmatpush1.msra.mxu0 0.0
      %4235 = vmatprep.subr.mxu0 0.0
      %4236 = vmatpush1.msra.mxu0 0.0
      %4237 = vmatprep.subr.mxu0 0.0
      %4238 = vmatpush1.msra.mxu0 0.0
      %4239 = vmatprep.subr.mxu0 0.0
      %4240 = vmatpush1.msra.mxu0 0.0
      %4241 = vmatprep.subr.mxu0 0.0
      %4242 = vmatpush1.msra.mxu0 0.0
      %4243 = vmatprep.mubr.f32.mxu0 0.0
      %4244 = vmatmul.mubr.f32.gmra.mrb[0].mxu0 %v3232
      %v4245 = vpop.f32.mrb[0].mxu0
      %v4246 = vadd.f32 %v2621, %v4245
      %v4247 = vpop.f32.mrb[0].mxu0
      %4248 = vdwg.mxu0
      %v4249 = vmax.f32 %v4246, 0.0
      %v4250 = vmul.f32 %v4249, %v4178
      %v4251 = vmax.f32 %v4250, 0.0
      %v4252 = vrsqrt.pop %v4251
      %v4253 = vmul.f32 %v4251, %v4252
      %vm4254 = vcmp.eq.f32.partialorder %v4251, inf
      %v4255 = vsel %vm4254, %v4251, %v4253
      %vm4256 = vcmp.eq.f32.partialorder %v4251, 0.0
      %v4257 = vand.u32 %v4251, 2147483648
      %v4258 = vsel %vm4256, %v4257, %v4255
      %v4259 = vsub.f32 0.0, %v4250
      %v4260 = vmax.f32 %v4259, 0.0
      %v4261 = vrsqrt.pop %v4260
      %v4262 = vmul.f32 %v4260, %v4261
      %vm4263 = vcmp.eq.f32.partialorder %v4260, inf
      %v4264 = vsel %vm4263, %v4260, %v4262
      %vm4265 = vcmp.eq.f32.partialorder %v4260, 0.0
      %v4266 = vand.u32 %v4260, 2147483648
      %v4267 = vsel %vm4265, %v4266, %v4264
      %v4268 = vsub.f32 %v4258, %v4267
      %v4269 = vmul.f32 %v4268, %v4268
      %v4270 = vsel %vm2714, %v4269, 0.0
      %4271 = vadd.xlane.f32.xlu0 %v4270
      %v4272 = vpop.xlane.xlu0 %4271
      %v4273 = vrsqrt.pop %v4272
      %v4274 = vmul.f32 %v4272, %v4273
      %vm4275 = vcmp.eq.f32.partialorder %v4272, inf
      %v4276 = vsel %vm4275, %v4272, %v4274
      %vm4277 = vcmp.eq.f32.partialorder %v4272, 0.0
      %v4278 = vand.u32 %v4272, 2147483648
      %v4279 = vsel %vm4277, %v4278, %v4276
      %v4280 = vmax.f32 %v4279, 1e-12
      %v4281 = vrcp.pop %v4280
      %v4282 = vmul.f32 %v4268, %v4281
      %v4283 = vld [vmem:[%s49] sm:$0xff]
      %v4284 = vld [vmem:[%s49 + $0x8] sm:$0xff]
      %v4285 = vld [vmem:[%s49 + $0x10] sm:$0xff]
      %v4286 = vld [vmem:[%s49 + $0x18] sm:$0xff]
      %4287 = vmatprep.subr.mxu0 0.0
      %4288 = vmatpush1.msra.mxu0 %v4283
      %4289 = vmatprep.subr.mxu0 0.0
      %4290 = vmatpush1.msra.mxu0 %v4284
      %4291 = vmatprep.subr.mxu0 0.0
      %4292 = vmatpush1.msra.mxu0 %v4285
      %4293 = vmatprep.subr.mxu0 0.0
      %4294 = vmatpush1.msra.mxu0 %v4286
      %4295 = vmatprep.subr.mxu0 0.0
      %4296 = vmatpush1.msra.mxu0 0.0
      %4297 = vmatprep.subr.mxu0 0.0
      %4298 = vmatpush1.msra.mxu0 0.0
      %4299 = vmatprep.subr.mxu0 0.0
      %4300 = vmatpush1.msra.mxu0 0.0
      %4301 = vmatprep.subr.mxu0 0.0
      %4302 = vmatpush1.msra.mxu0 0.0
      %4303 = vmatprep.subr.mxu0 0.0
      %4304 = vmatpush1.msra.mxu0 0.0
      %4305 = vmatprep.subr.mxu0 0.0
      %4306 = vmatpush1.msra.mxu0 0.0
      %4307 = vmatprep.subr.mxu0 0.0
      %4308 = vmatpush1.msra.mxu0 0.0
      %4309 = vmatprep.subr.mxu0 0.0
      %4310 = vmatpush1.msra.mxu0 0.0
      %4311 = vmatprep.subr.mxu0 0.0
      %4312 = vmatpush1.msra.mxu0 0.0
      %4313 = vmatprep.subr.mxu0 0.0
      %4314 = vmatpush1.msra.mxu0 0.0
      %4315 = vmatprep.subr.mxu0 0.0
      %4316 = vmatpush1.msra.mxu0 0.0
      %4317 = vmatprep.subr.mxu0 0.0
      %4318 = vmatpush1.msra.mxu0 0.0
      %4319 = vmatprep.subr.mxu0 0.0
      %4320 = vmatpush1.msra.mxu0 0.0
      %4321 = vmatprep.subr.mxu0 0.0
      %4322 = vmatpush1.msra.mxu0 0.0
      %4323 = vmatprep.subr.mxu0 0.0
      %4324 = vmatpush1.msra.mxu0 0.0
      %4325 = vmatprep.subr.mxu0 0.0
      %4326 = vmatpush1.msra.mxu0 0.0
      %4327 = vmatprep.subr.mxu0 0.0
      %4328 = vmatpush1.msra.mxu0 0.0
      %4329 = vmatprep.subr.mxu0 0.0
      %4330 = vmatpush1.msra.mxu0 0.0
      %4331 = vmatprep.subr.mxu0 0.0
      %4332 = vmatpush1.msra.mxu0 0.0
      %4333 = vmatprep.subr.mxu0 0.0
      %4334 = vmatpush1.msra.mxu0 0.0
      %4335 = vmatprep.subr.mxu0 0.0
      %4336 = vmatpush1.msra.mxu0 0.0
      %4337 = vmatprep.subr.mxu0 0.0
      %4338 = vmatpush1.msra.mxu0 0.0
      %4339 = vmatprep.subr.mxu0 0.0
      %4340 = vmatpush1.msra.mxu0 0.0
      %4341 = vmatprep.subr.mxu0 0.0
      %4342 = vmatpush1.msra.mxu0 0.0
      %4343 = vmatprep.subr.mxu0 0.0
      %4344 = vmatpush1.msra.mxu0 0.0
      %4345 = vmatprep.subr.mxu0 0.0
      %4346 = vmatpush1.msra.mxu0 0.0
      %4347 = vmatprep.subr.mxu0 0.0
      %4348 = vmatpush1.msra.mxu0 0.0
      %4349 = vmatprep.subr.mxu0 0.0
      %4350 = vmatpush1.msra.mxu0 0.0
      %4351 = vmatprep.mubr.f32.mxu0 0.0
      %4352 = vmatmul.mubr.f32.gmra.mrb[0].mxu0 %v2740
      %v4353 = vpop.f32.mrb[0].mxu0
      %v4354 = vadd.f32 0.0, %v4353
      %v4355 = vpop.f32.mrb[0].mxu0
      %4356 = vdwg.mxu0
      %v4357 = vld [vmem:[%s51] sm:$0x1]
      %v4359 = vsel %vm1280, %v4357, 0
      %4361 = vmatprep.subr.mxu0 0.0
      %4362 = vmatpush1.xpose.msra.mxu0 %v1500
      %4363 = vmatprep.subr.mxu0 0.0
      %4364 = vmatpush1.xpose.msra.mxu0 %v1503
      %4365 = vmatprep.subr.mxu0 0.0
      %4366 = vmatpush1.xpose.msra.mxu0 %v1506
      %4367 = vmatprep.subr.mxu0 0.0
      %4368 = vmatpush1.xpose.msra.mxu0 %v1509
      %4369 = vmatprep.subr.mxu0 0.0
      %4370 = vmatpush1.xpose.msra.mxu0 %v1512
      %4371 = vmatprep.subr.mxu0 0.0
      %4372 = vmatpush1.xpose.msra.mxu0 %v1515
      %4373 = vmatprep.subr.mxu0 0.0
      %4374 = vmatpush1.xpose.msra.mxu0 %v1518
      %4375 = vmatprep.subr.mxu0 0.0
      %4376 = vmatpush1.xpose.msra.mxu0 0.0
      %4377 = vmatprep.subr.mxu0 0.0
      %4378 = vmatpush1.xpose.msra.mxu0 0.0
      %4379 = vmatprep.subr.mxu0 0.0
      %4380 = vmatpush1.xpose.msra.mxu0 0.0
      %4381 = vmatprep.subr.mxu0 0.0
      %4382 = vmatpush1.xpose.msra.mxu0 0.0
      %4383 = vmatprep.subr.mxu0 0.0
      %4384 = vmatpush1.xpose.msra.mxu0 0.0
      %4385 = vmatprep.subr.mxu0 0.0
      %4386 = vmatpush1.xpose.msra.mxu0 0.0
      %4387 = vmatprep.subr.mxu0 0.0
      %4388 = vmatpush1.xpose.msra.mxu0 0.0
      %4389 = vmatprep.subr.mxu0 0.0
      %4390 = vmatpush1.xpose.msra.mxu0 0.0
      %4391 = vmatprep.subr.mxu0 0.0
      %4392 = vmatpush1.xpose.msra.mxu0 0.0
      %4393 = vmatprep.subr.mxu0 0.0
      %4394 = vmatpush1.xpose.msra.mxu0 0.0
      %4395 = vmatprep.subr.mxu0 0.0
      %4396 = vmatpush1.xpose.msra.mxu0 0.0
      %4397 = vmatprep.subr.mxu0 0.0
      %4398 = vmatpush1.xpose.msra.mxu0 0.0
      %4399 = vmatprep.subr.mxu0 0.0
      %4400 = vmatpush1.xpose.msra.mxu0 0.0
      %4401 = vmatprep.subr.mxu0 0.0
      %4402 = vmatpush1.xpose.msra.mxu0 0.0
      %4403 = vmatprep.subr.mxu0 0.0
      %4404 = vmatpush1.xpose.msra.mxu0 0.0
      %4405 = vmatprep.subr.mxu0 0.0
      %4406 = vmatpush1.xpose.msra.mxu0 0.0
      %4407 = vmatprep.subr.mxu0 0.0
      %4408 = vmatpush1.xpose.msra.mxu0 0.0
      %4409 = vmatprep.subr.mxu0 0.0
      %4410 = vmatpush1.xpose.msra.mxu0 0.0
      %4411 = vmatprep.subr.mxu0 0.0
      %4412 = vmatpush1.xpose.msra.mxu0 0.0
      %4413 = vmatprep.subr.mxu0 0.0
      %4414 = vmatpush1.xpose.msra.mxu0 0.0
      %4415 = vmatprep.subr.mxu0 0.0
      %4416 = vmatpush1.xpose.msra.mxu0 0.0
      %4417 = vmatprep.subr.mxu0 0.0
      %4418 = vmatpush1.xpose.msra.mxu0 0.0
      %4419 = vmatprep.subr.mxu0 0.0
      %4420 = vmatpush1.xpose.msra.mxu0 0.0
      %4421 = vmatprep.subr.mxu0 0.0
      %4422 = vmatpush1.xpose.msra.mxu0 0.0
      %4423 = vmatprep.subr.mxu0 0.0
      %4424 = vmatpush1.xpose.msra.mxu0 0.0
      %4425 = vmatprep.mubr.f32.mxu0 0.0
      %4426 = vmatmul.mubr.f32.gmra.mrb[0].mxu0 %v4359
      %v4427 = vpop.f32.mrb[0].mxu0
      %v4428 = vadd.f32 0.0, %v4427
      %v4429 = vpop.f32.mrb[0].mxu0
      %4430 = vdwg.mxu0
      %4432 = vset.pattern.permute.xlu0 0
      %4433 = vperm.xlu0 %4432, %v4354
      %v4434 = vpop.permute.xlu0 %4433
      %v4436 = vlaneseq
      %v4437 = vshrl.u32 %v4436, 7
      %v4438 = vsub.s32 0, %v4437
      %v4439 = vrot.slane %v4428, %v4438
      %v4440 = vadd.f32 %v4434, %v4439
      %v4441 = vld [vmem:[#allocation3] sm:$0x1]
      %v4443 = vlaneseq
      %v4444 = vshrl.u32 %v4443, 7
      %v4445 = vsub.s32 0, %v4444
      %v4446 = vrot.slane %v4441, %v4445
      %4447 = vset.pattern.permute.xlu0 0
      %4448 = vperm.xlu0 %4447, %v4446
      %v4449 = vpop.permute.xlu0 %4448
      %v4451 = vadd.f32 %v4440, %v4449
      %v4452 = vld [vmem:[%s55] sm:$0xff]
      %v4453 = vld [vmem:[%s55 + $0x8] sm:$0xff]
      %v4454 = vld [vmem:[%s55 + $0x10] sm:$0xff]
      %v4455 = vld [vmem:[%s55 + $0x18] sm:$0xff]
      %v4456 = vld [vmem:[%s55 + $0x20] sm:$0xff]
      %v4457 = vld [vmem:[%s55 + $0x28] sm:$0xff]
      %v4458 = vld [vmem:[%s55 + $0x30] sm:$0x1]
      %v4460 = vsel %vm2451, %v4451, 0
      %v4463 = vsel %vm2419, %v4458, 0
      %4465 = vmatprep.subr.mxu0 0.0
      %4466 = vmatpush1.msra.mxu0 %v4452
      %4467 = vmatprep.subr.mxu0 0.0
      %4468 = vmatpush1.msra.mxu0 %v4453
      %4469 = vmatprep.subr.mxu0 0.0
      %4470 = vmatpush1.msra.mxu0 %v4454
      %4471 = vmatprep.subr.mxu0 0.0
      %4472 = vmatpush1.msra.mxu0 %v4455
      %4473 = vmatprep.subr.mxu0 0.0
      %4474 = vmatpush1.msra.mxu0 %v4456
      %4475 = vmatprep.subr.mxu0 0.0
      %4476 = vmatpush1.msra.mxu0 %v4457
      %4477 = vmatprep.subr.mxu0 0.0
      %4478 = vmatpush1.msra.mxu0 %v4463
      %4479 = vmatprep.subr.mxu0 0.0
      %4480 = vmatpush1.msra.mxu0 0.0
      %4481 = vmatprep.subr.mxu0 0.0
      %4482 = vmatpush1.msra.mxu0 0.0
      %4483 = vmatprep.subr.mxu0 0.0
      %4484 = vmatpush1.msra.mxu0 0.0
      %4485 = vmatprep.subr.mxu0 0.0
      %4486 = vmatpush1.msra.mxu0 0.0
      %4487 = vmatprep.subr.mxu0 0.0
      %4488 = vmatpush1.msra.mxu0 0.0
      %4489 = vmatprep.subr.mxu0 0.0
      %4490 = vmatpush1.msra.mxu0 0.0
      %4491 = vmatprep.subr.mxu0 0.0
      %4492 = vmatpush1.msra.mxu0 0.0
      %4493 = vmatprep.subr.mxu0 0.0
      %4494 = vmatpush1.msra.mxu0 0.0
      %4495 = vmatprep.subr.mxu0 0.0
      %4496 = vmatpush1.msra.mxu0 0.0
      %4497 = vmatprep.subr.mxu0 0.0
      %4498 = vmatpush1.msra.mxu0 0.0
      %4499 = vmatprep.subr.mxu0 0.0
      %4500 = vmatpush1.msra.mxu0 0.0
      %4501 = vmatprep.subr.mxu0 0.0
      %4502 = vmatpush1.msra.mxu0 0.0
      %4503 = vmatprep.subr.mxu0 0.0
      %4504 = vmatpush1.msra.mxu0 0.0
      %4505 = vmatprep.subr.mxu0 0.0
      %4506 = vmatpush1.msra.mxu0 0.0
      %4507 = vmatprep.subr.mxu0 0.0
      %4508 = vmatpush1.msra.mxu0 0.0
      %4509 = vmatprep.subr.mxu0 0.0
      %4510 = vmatpush1.msra.mxu0 0.0
      %4511 = vmatprep.subr.mxu0 0.0
      %4512 = vmatpush1.msra.mxu0 0.0
      %4513 = vmatprep.subr.mxu0 0.0
      %4514 = vmatpush1.msra.mxu0 0.0
      %4515 = vmatprep.subr.mxu0 0.0
      %4516 = vmatpush1.msra.mxu0 0.0
      %4517 = vmatprep.subr.mxu0 0.0
      %4518 = vmatpush1.msra.mxu0 0.0
      %4519 = vmatprep.subr.mxu0 0.0
      %4520 = vmatpush1.msra.mxu0 0.0
      %4521 = vmatprep.subr.mxu0 0.0
      %4522 = vmatpush1.msra.mxu0 0.0
      %4523 = vmatprep.subr.mxu0 0.0
      %4524 = vmatpush1.msra.mxu0 0.0
      %4525 = vmatprep.subr.mxu0 0.0
      %4526 = vmatpush1.msra.mxu0 0.0
      %4527 = vmatprep.subr.mxu0 0.0
      %4528 = vmatpush1.msra.mxu0 0.0
      %4529 = vmatprep.mubr.f32.mxu0 0.0
      %4530 = vmatmul.mubr.f32.gmra.mrb[0].mxu0 %v4460
      %v4531 = vpop.f32.mrb[0].mxu0
      %v4532 = vadd.f32 0.0, %v4531
      %v4533 = vpop.f32.mrb[0].mxu0
      %4534 = vdwg.mxu0
      %vm4535 = vcmask 291840
      %v4536 = vsel %vm4535, %v4532, -inf
      %4537 = vmax.xlane.f32.xlu0 %v4536
      %v4538 = vpop.xlane.xlu0 %4537
      %vm4539 = vcmp.ge.f32.partialorder %v4532, %v4538
      %v4540 = vsel %vm4539, %v2893, 1000000
      %v4541 = vsel %vm4535, %v4540, 2147483647
      %v4542 = vand.u32 %v4541, 65535
      %v4543 = vshra.s32 %v4541, 16
      %v4544 = vcvt.s32.f32 %v4542
      %v4545 = vcvt.s32.f32 %v4543
      %4546 = vmin.xlane.f32.xlu0 %v4545
      %v4547 = vpop.xlane.xlu0 %4546
      %vm4548 = vcmp.eq.f32.partialorder %v4545, %v4547
      %v4549 = vsel %vm4548, %v4544, inf
      %4550 = vmin.xlane.f32.xlu0 %v4549
      %v4551 = vpop.xlane.xlu0 %4550
      %v4552 = vcvt.f32.s32 %v4551
      %v4553 = vcvt.f32.s32 %v4547
      %v4554 = vshll.u32 %v4553, 16
      %v4555 = vadd.s32 %v4554, %v4552
      %v4556 = vcvt.s32.f32 %v4555
      %v4557 = vmul.f32 %v4556, 0.16666667
      %v4558 = vfloor.f32 %v4557
      %v4559 = vmul.f32 %v4558, 6.0
      %v4560 = vsub.f32 %v4556, %v4559
      %v4561 = vld [vmem:[%s57] sm:$0x1]
      %v4562 = vld [vmem:[%s59] sm:$0x1]
      %v4564 = vlaneseq
      %v4565 = vshrl.u32 %v4564, 7
      %v4566 = vsub.s32 0, %v4565
      %v4567 = vrot.slane %v4561, %v4566
      %vm4569 = vcmp.ge.f32.partialorder %v4567, %v4558
      %v4570 = vadd.f32 %v4558, 1.0
      %vm4571 = vcmp.le.f32.partialorder %v4567, %v4570
      %vm4572 = vmand %vm4569, %vm4571
      %v4574 = vlaneseq
      %v4575 = vshrl.u32 %v4574, 7
      %v4576 = vsub.s32 0, %v4575
      %v4577 = vrot.slane %v4562, %v4576
      %vm4579 = vcmp.ge.f32.partialorder %v4577, %v4560
      %vm4580 = vmand %vm4572, %vm4579
      %v4581 = vadd.f32 %v4560, 1.0
      %vm4582 = vcmp.le.f32.partialorder %v4577, %v4581
      %vm4583 = vmand %vm4580, %vm4582
      %v4584 = vsel %vm4583, 1.0, 0.0
      %v4585 = vsel %vm2439, %v4584, 0.0
      %v4586 = vrot.slane %v4585, 4
      %v4587 = vadd.f32 %v4585, %v4586
      %v4588 = vrot.slane %v4587, 2
      %v4589 = vadd.f32 %v4587, %v4588
      %v4590 = vrot.slane %v4589, 1
      %v4591 = vadd.f32 %v4589, %v4590
      %v4592 = vsub.f32 %v4591, %v4584
      %vm4593 = vcmp.eq.f32.partialorder %v4592, 0.0
      %v4594 = vsel %vm4593, 1.0, 0.0
      %v4595 = vld [vmem:[%s61] sm:$0xff]
      %v4596 = vld [vmem:[%s61 + $0x8] sm:$0xff]
      %v4597 = vld [vmem:[%s61 + $0x10] sm:$0xff]
      %v4598 = vld [vmem:[%s61 + $0x18] sm:$0xff]
      %v4599 = vld [vmem:[%s61 + $0x20] sm:$0xff]
      %v4600 = vld [vmem:[%s61 + $0x28] sm:$0xff]
      %v4601 = vld [vmem:[%s61 + $0x30] sm:$0x1]
      %v4602 = vld [vmem:[%s61 + $0x38] sm:$0xff]
      %v4603 = vld [vmem:[%s61 + $0x40] sm:$0xff]
      %v4604 = vld [vmem:[%s61 + $0x48] sm:$0xff]
      %v4605 = vld [vmem:[%s61 + $0x50] sm:$0xff]
      %v4606 = vld [vmem:[%s61 + $0x58] sm:$0xff]
      %v4607 = vld [vmem:[%s61 + $0x60] sm:$0xff]
      %v4608 = vld [vmem:[%s61 + $0x68] sm:$0x1]
      %v4609 = vld [vmem:[%s61 + $0x70] sm:$0xff]
      %v4610 = vld [vmem:[%s61 + $0x78] sm:$0xff]
      %v4611 = vld [vmem:[%s61 + $0x80] sm:$0xff]
      %v4612 = vld [vmem:[%s61 + $0x88] sm:$0xff]
      %v4613 = vld [vmem:[%s61 + $0x90] sm:$0xff]
      %v4614 = vld [vmem:[%s61 + $0x98] sm:$0xff]
      %v4615 = vld [vmem:[%s61 + $0xa0] sm:$0x1]
      %v4616 = vld [vmem:[%s61 + $0xa8] sm:$0xff]
      %v4617 = vld [vmem:[%s61 + $0xb0] sm:$0xff]
      %v4618 = vld [vmem:[%s61 + $0xb8] sm:$0xff]
      %v4619 = vld [vmem:[%s61 + $0xc0] sm:$0xff]
      %v4620 = vld [vmem:[%s61 + $0xc8] sm:$0xff]
      %v4621 = vld [vmem:[%s61 + $0xd0] sm:$0xff]
      %v4622 = vld [vmem:[%s61 + $0xd8] sm:$0x1]
      %v4623 = vld [vmem:[%s61 + $0xe0] sm:$0xff]
      %v4624 = vld [vmem:[%s61 + $0xe8] sm:$0xff]
      %v4625 = vld [vmem:[%s61 + $0xf0] sm:$0xff]
      %v4626 = vld [vmem:[%s61 + $0xf8] sm:$0xff]
      %v4627 = vld [vmem:[%s61 + $0x100] sm:$0xff]
      %v4628 = vld [vmem:[%s61 + $0x108] sm:$0xff]
      %v4629 = vld [vmem:[%s61 + $0x110] sm:$0x1]
      %v4630 = vld [vmem:[%s61 + $0x118] sm:$0xff]
      %v4631 = vld [vmem:[%s61 + $0x120] sm:$0xff]
      %v4632 = vld [vmem:[%s61 + $0x128] sm:$0xff]
      %v4633 = vld [vmem:[%s61 + $0x130] sm:$0xff]
      %v4634 = vld [vmem:[%s61 + $0x138] sm:$0xff]
      %v4635 = vld [vmem:[%s61 + $0x140] sm:$0xff]
      %v4636 = vld [vmem:[%s61 + $0x148] sm:$0x1]
      %v4637 = vld [vmem:[%s61 + $0x150] sm:$0xff]
      %v4638 = vld [vmem:[%s61 + $0x158] sm:$0xff]
      %v4639 = vld [vmem:[%s61 + $0x160] sm:$0xff]
      %v4640 = vld [vmem:[%s61 + $0x168] sm:$0xff]
      %v4641 = vld [vmem:[%s61 + $0x170] sm:$0xff]
      %v4642 = vld [vmem:[%s61 + $0x178] sm:$0xff]
      %v4643 = vld [vmem:[%s61 + $0x180] sm:$0x1]
      %v4644 = vld [vmem:[%s61 + $0x188] sm:$0xff]
      %v4645 = vld [vmem:[%s61 + $0x190] sm:$0xff]
      %v4646 = vld [vmem:[%s61 + $0x198] sm:$0xff]
      %v4647 = vld [vmem:[%s61 + $0x1a0] sm:$0xff]
      %v4648 = vld [vmem:[%s61 + $0x1a8] sm:$0xff]
      %v4649 = vld [vmem:[%s61 + $0x1b0] sm:$0xff]
      %v4650 = vld [vmem:[%s61 + $0x1b8] sm:$0x1]
      %v4651 = vld [vmem:[%s61 + $0x1c0] sm:$0xff]
      %v4652 = vld [vmem:[%s61 + $0x1c8] sm:$0xff]
      %v4653 = vld [vmem:[%s61 + $0x1d0] sm:$0xff]
      %v4654 = vld [vmem:[%s61 + $0x1d8] sm:$0xff]
      %v4655 = vld [vmem:[%s61 + $0x1e0] sm:$0xff]
      %v4656 = vld [vmem:[%s61 + $0x1e8] sm:$0xff]
      %v4657 = vld [vmem:[%s61 + $0x1f0] sm:$0x1]
      %v4658 = vld [vmem:[%s61 + $0x1f8] sm:$0xff]
      %v4659 = vld [vmem:[%s61 + $0x200] sm:$0xff]
      %v4660 = vld [vmem:[%s61 + $0x208] sm:$0xff]
      %v4661 = vld [vmem:[%s61 + $0x210] sm:$0xff]
      %v4662 = vld [vmem:[%s61 + $0x218] sm:$0xff]
      %v4663 = vld [vmem:[%s61 + $0x220] sm:$0xff]
      %v4664 = vld [vmem:[%s61 + $0x228] sm:$0x1]
      %v4665 = vld [vmem:[%s61 + $0x230] sm:$0xff]
      %v4666 = vld [vmem:[%s61 + $0x238] sm:$0xff]
      %v4667 = vld [vmem:[%s61 + $0x240] sm:$0xff]
      %v4668 = vld [vmem:[%s61 + $0x248] sm:$0xff]
      %v4669 = vld [vmem:[%s61 + $0x250] sm:$0xff]
      %v4670 = vld [vmem:[%s61 + $0x258] sm:$0xff]
      %v4671 = vld [vmem:[%s61 + $0x260] sm:$0x1]
      %v4672 = vld [vmem:[%s61 + $0x268] sm:$0xff]
      %v4673 = vld [vmem:[%s61 + $0x270] sm:$0xff]
      %v4674 = vld [vmem:[%s61 + $0x278] sm:$0xff]
      %v4675 = vld [vmem:[%s61 + $0x280] sm:$0xff]
      %v4676 = vld [vmem:[%s61 + $0x288] sm:$0xff]
      %v4677 = vld [vmem:[%s61 + $0x290] sm:$0xff]
      %v4678 = vld [vmem:[%s61 + $0x298] sm:$0x1]
      %v4679 = vld [vmem:[%s61 + $0x2a0] sm:$0xff]
      %v4680 = vld [vmem:[%s61 + $0x2a8] sm:$0xff]
      %v4681 = vld [vmem:[%s61 + $0x2b0] sm:$0xff]
      %v4682 = vld [vmem:[%s61 + $0x2b8] sm:$0xff]
      %v4683 = vld [vmem:[%s61 + $0x2c0] sm:$0xff]
      %v4684 = vld [vmem:[%s61 + $0x2c8] sm:$0xff]
      %v4685 = vld [vmem:[%s61 + $0x2d0] sm:$0x1]
      %v4686 = vld [vmem:[%s61 + $0x2d8] sm:$0xff]
      %v4687 = vld [vmem:[%s61 + $0x2e0] sm:$0xff]
      %v4688 = vld [vmem:[%s61 + $0x2e8] sm:$0xff]
      %v4689 = vld [vmem:[%s61 + $0x2f0] sm:$0xff]
      %v4690 = vld [vmem:[%s61 + $0x2f8] sm:$0xff]
      %v4691 = vld [vmem:[%s61 + $0x300] sm:$0xff]
      %v4692 = vld [vmem:[%s61 + $0x308] sm:$0x1]
      %v4693 = vld [vmem:[%s61 + $0x310] sm:$0xff]
      %v4694 = vld [vmem:[%s61 + $0x318] sm:$0xff]
      %v4695 = vld [vmem:[%s61 + $0x320] sm:$0xff]
      %v4696 = vld [vmem:[%s61 + $0x328] sm:$0xff]
      %v4697 = vld [vmem:[%s61 + $0x330] sm:$0xff]
      %v4698 = vld [vmem:[%s61 + $0x338] sm:$0xff]
      %v4699 = vld [vmem:[%s61 + $0x340] sm:$0x1]
      %v4700 = vld [vmem:[%s61 + $0x348] sm:$0xff]
      %v4701 = vld [vmem:[%s61 + $0x350] sm:$0xff]
      %v4702 = vld [vmem:[%s61 + $0x358] sm:$0xff]
      %v4703 = vld [vmem:[%s61 + $0x360] sm:$0xff]
      %v4704 = vld [vmem:[%s61 + $0x368] sm:$0xff]
      %v4705 = vld [vmem:[%s61 + $0x370] sm:$0xff]
      %v4706 = vld [vmem:[%s61 + $0x378] sm:$0x1]
      %v4707 = vld [vmem:[%s61 + $0x380] sm:$0xff]
      %v4708 = vld [vmem:[%s61 + $0x388] sm:$0xff]
      %v4709 = vld [vmem:[%s61 + $0x390] sm:$0xff]
      %v4710 = vld [vmem:[%s61 + $0x398] sm:$0xff]
      %v4711 = vld [vmem:[%s61 + $0x3a0] sm:$0xff]
      %v4712 = vld [vmem:[%s61 + $0x3a8] sm:$0xff]
      %v4713 = vld [vmem:[%s61 + $0x3b0] sm:$0x1]
      %v4714 = vld [vmem:[%s61 + $0x3b8] sm:$0xff]
      %v4715 = vld [vmem:[%s61 + $0x3c0] sm:$0xff]
      %v4716 = vld [vmem:[%s61 + $0x3c8] sm:$0xff]
      %v4717 = vld [vmem:[%s61 + $0x3d0] sm:$0xff]
      %v4718 = vld [vmem:[%s61 + $0x3d8] sm:$0xff]
      %v4719 = vld [vmem:[%s61 + $0x3e0] sm:$0xff]
      %v4720 = vld [vmem:[%s61 + $0x3e8] sm:$0x1]
      %v4721 = vld [vmem:[%s61 + $0x3f0] sm:$0xff]
      %v4722 = vld [vmem:[%s61 + $0x3f8] sm:$0xff]
      %v4723 = vld [vmem:[%s61 + $0x400] sm:$0xff]
      %v4724 = vld [vmem:[%s61 + $0x408] sm:$0xff]
      %v4725 = vld [vmem:[%s61 + $0x410] sm:$0xff]
      %v4726 = vld [vmem:[%s61 + $0x418] sm:$0xff]
      %v4727 = vld [vmem:[%s61 + $0x420] sm:$0x1]
      %v4728 = vld [vmem:[%s61 + $0x428] sm:$0xff]
      %v4729 = vld [vmem:[%s61 + $0x430] sm:$0xff]
      %v4730 = vld [vmem:[%s61 + $0x438] sm:$0xff]
      %v4731 = vld [vmem:[%s61 + $0x440] sm:$0xff]
      %v4732 = vld [vmem:[%s61 + $0x448] sm:$0xff]
      %v4733 = vld [vmem:[%s61 + $0x450] sm:$0xff]
      %v4734 = vld [vmem:[%s61 + $0x458] sm:$0x1]
      %v4735 = vld [vmem:[%s61 + $0x460] sm:$0xff]
      %v4736 = vld [vmem:[%s61 + $0x468] sm:$0xff]
      %v4737 = vld [vmem:[%s61 + $0x470] sm:$0xff]
      %v4738 = vld [vmem:[%s61 + $0x478] sm:$0xff]
      %v4739 = vld [vmem:[%s61 + $0x480] sm:$0xff]
      %v4740 = vld [vmem:[%s61 + $0x488] sm:$0xff]
      %v4741 = vld [vmem:[%s61 + $0x490] sm:$0x1]
      %v4742 = vld [vmem:[%s61 + $0x498] sm:$0xff]
      %v4743 = vld [vmem:[%s61 + $0x4a0] sm:$0xff]
      %v4744 = vld [vmem:[%s61 + $0x4a8] sm:$0xff]
      %v4745 = vld [vmem:[%s61 + $0x4b0] sm:$0xff]
      %v4746 = vld [vmem:[%s61 + $0x4b8] sm:$0xff]
      %v4747 = vld [vmem:[%s61 + $0x4c0] sm:$0xff]
      %v4748 = vld [vmem:[%s61 + $0x4c8] sm:$0x1]
      %v4749 = vld [vmem:[%s61 + $0x4d0] sm:$0xff]
      %v4750 = vld [vmem:[%s61 + $0x4d8] sm:$0xff]
      %v4751 = vld [vmem:[%s61 + $0x4e0] sm:$0xff]
      %v4752 = vld [vmem:[%s61 + $0x4e8] sm:$0xff]
      %v4753 = vld [vmem:[%s61 + $0x4f0] sm:$0xff]
      %v4754 = vld [vmem:[%s61 + $0x4f8] sm:$0xff]
      %v4755 = vld [vmem:[%s61 + $0x500] sm:$0x1]
      %v4756 = vld [vmem:[%s61 + $0x508] sm:$0xff]
      %v4757 = vld [vmem:[%s61 + $0x510] sm:$0xff]
      %v4758 = vld [vmem:[%s61 + $0x518] sm:$0xff]
      %v4759 = vld [vmem:[%s61 + $0x520] sm:$0xff]
      %v4760 = vld [vmem:[%s61 + $0x528] sm:$0xff]
      %v4761 = vld [vmem:[%s61 + $0x530] sm:$0xff]
      %v4762 = vld [vmem:[%s61 + $0x538] sm:$0x1]
      %v4763 = vld [vmem:[%s61 + $0x540] sm:$0xff]
      %v4764 = vld [vmem:[%s61 + $0x548] sm:$0xff]
      %v4765 = vld [vmem:[%s61 + $0x550] sm:$0xff]
      %v4766 = vld [vmem:[%s61 + $0x558] sm:$0xff]
      %v4767 = vld [vmem:[%s61 + $0x560] sm:$0xff]
      %v4768 = vld [vmem:[%s61 + $0x568] sm:$0xff]
      %v4769 = vld [vmem:[%s61 + $0x570] sm:$0x1]
      %v4770 = vld [vmem:[%s61 + $0x578] sm:$0xff]
      %v4771 = vld [vmem:[%s61 + $0x580] sm:$0xff]
      %v4772 = vld [vmem:[%s61 + $0x588] sm:$0xff]
      %v4773 = vld [vmem:[%s61 + $0x590] sm:$0xff]
      %v4774 = vld [vmem:[%s61 + $0x598] sm:$0xff]
      %v4775 = vld [vmem:[%s61 + $0x5a0] sm:$0xff]
      %v4776 = vld [vmem:[%s61 + $0x5a8] sm:$0x1]
      %v4777 = vld [vmem:[%s61 + $0x5b0] sm:$0xff]
      %v4778 = vld [vmem:[%s61 + $0x5b8] sm:$0xff]
      %v4779 = vld [vmem:[%s61 + $0x5c0] sm:$0xff]
      %v4780 = vld [vmem:[%s61 + $0x5c8] sm:$0xff]
      %v4781 = vld [vmem:[%s61 + $0x5d0] sm:$0xff]
      %v4782 = vld [vmem:[%s61 + $0x5d8] sm:$0xff]
      %v4783 = vld [vmem:[%s61 + $0x5e0] sm:$0x1]
      %v4784 = vld [vmem:[%s61 + $0x5e8] sm:$0xff]
      %v4785 = vld [vmem:[%s61 + $0x5f0] sm:$0xff]
      %v4786 = vld [vmem:[%s61 + $0x5f8] sm:$0xff]
      %v4787 = vld [vmem:[%s61 + $0x600] sm:$0xff]
      %v4788 = vld [vmem:[%s61 + $0x608] sm:$0xff]
      %v4789 = vld [vmem:[%s61 + $0x610] sm:$0xff]
      %v4790 = vld [vmem:[%s61 + $0x618] sm:$0x1]
      %v4791 = vld [vmem:[%s61 + $0x620] sm:$0xff]
      %v4792 = vld [vmem:[%s61 + $0x628] sm:$0xff]
      %v4793 = vld [vmem:[%s61 + $0x630] sm:$0xff]
      %v4794 = vld [vmem:[%s61 + $0x638] sm:$0xff]
      %v4795 = vld [vmem:[%s61 + $0x640] sm:$0xff]
      %v4796 = vld [vmem:[%s61 + $0x648] sm:$0xff]
      %v4797 = vld [vmem:[%s61 + $0x650] sm:$0x1]
      %v4798 = vld [vmem:[%s61 + $0x658] sm:$0xff]
      %v4799 = vld [vmem:[%s61 + $0x660] sm:$0xff]
      %v4800 = vld [vmem:[%s61 + $0x668] sm:$0xff]
      %v4801 = vld [vmem:[%s61 + $0x670] sm:$0xff]
      %v4802 = vld [vmem:[%s61 + $0x678] sm:$0xff]
      %v4803 = vld [vmem:[%s61 + $0x680] sm:$0xff]
      %v4804 = vld [vmem:[%s61 + $0x688] sm:$0x1]
      %v4805 = vld [vmem:[%s61 + $0x690] sm:$0xff]
      %v4806 = vld [vmem:[%s61 + $0x698] sm:$0xff]
      %v4807 = vld [vmem:[%s61 + $0x6a0] sm:$0xff]
      %v4808 = vld [vmem:[%s61 + $0x6a8] sm:$0xff]
      %v4809 = vld [vmem:[%s61 + $0x6b0] sm:$0xff]
      %v4810 = vld [vmem:[%s61 + $0x6b8] sm:$0xff]
      %v4811 = vld [vmem:[%s61 + $0x6c0] sm:$0x1]
      %v4812 = vld [vmem:[%s61 + $0x6c8] sm:$0xff]
      %v4813 = vld [vmem:[%s61 + $0x6d0] sm:$0xff]
      %v4814 = vld [vmem:[%s61 + $0x6d8] sm:$0xff]
      %v4815 = vld [vmem:[%s61 + $0x6e0] sm:$0xff]
      %v4816 = vld [vmem:[%s61 + $0x6e8] sm:$0xff]
      %v4817 = vld [vmem:[%s61 + $0x6f0] sm:$0xff]
      %v4818 = vld [vmem:[%s61 + $0x6f8] sm:$0x1]
      %v4819 = vmul.f32 %v1402, %v4595
      %v4820 = vmul.f32 %v1403, %v4596
      %v4821 = vmul.f32 %v1404, %v4597
      %v4822 = vmul.f32 %v1405, %v4598
      %v4823 = vmul.f32 %v1406, %v4599
      %v4824 = vmul.f32 %v1407, %v4600
      %v4825 = vmul.f32 %v1408, %v4601
      %v4826 = vmul.f32 %v1402, %v4602
      %v4827 = vmul.f32 %v1403, %v4603
      %v4828 = vmul.f32 %v1404, %v4604
      %v4829 = vmul.f32 %v1405, %v4605
      %v4830 = vmul.f32 %v1406, %v4606
      %v4831 = vmul.f32 %v1407, %v4607
      %v4832 = vmul.f32 %v1408, %v4608
      %v4833 = vmul.f32 %v1402, %v4609
      %v4834 = vmul.f32 %v1403, %v4610
      %v4835 = vmul.f32 %v1404, %v4611
      %v4836 = vmul.f32 %v1405, %v4612
      %v4837 = vmul.f32 %v1406, %v4613
      %v4838 = vmul.f32 %v1407, %v4614
      %v4839 = vmul.f32 %v1408, %v4615
      %v4840 = vmul.f32 %v1402, %v4616
      %v4841 = vmul.f32 %v1403, %v4617
      %v4842 = vmul.f32 %v1404, %v4618
      %v4843 = vmul.f32 %v1405, %v4619
      %v4844 = vmul.f32 %v1406, %v4620
      %v4845 = vmul.f32 %v1407, %v4621
      %v4846 = vmul.f32 %v1408, %v4622
      %v4847 = vmul.f32 %v1402, %v4623
      %v4848 = vmul.f32 %v1403, %v4624
      %v4849 = vmul.f32 %v1404, %v4625
      %v4850 = vmul.f32 %v1405, %v4626
      %v4851 = vmul.f32 %v1406, %v4627
      %v4852 = vmul.f32 %v1407, %v4628
      %v4853 = vmul.f32 %v1408, %v4629
      %v4854 = vmul.f32 %v1402, %v4630
      %v4855 = vmul.f32 %v1403, %v4631
      %v4856 = vmul.f32 %v1404, %v4632
      %v4857 = vmul.f32 %v1405, %v4633
      %v4858 = vmul.f32 %v1406, %v4634
      %v4859 = vmul.f32 %v1407, %v4635
      %v4860 = vmul.f32 %v1408, %v4636
      %v4861 = vmul.f32 %v1402, %v4637
      %v4862 = vmul.f32 %v1403, %v4638
      %v4863 = vmul.f32 %v1404, %v4639
      %v4864 = vmul.f32 %v1405, %v4640
      %v4865 = vmul.f32 %v1406, %v4641
      %v4866 = vmul.f32 %v1407, %v4642
      %v4867 = vmul.f32 %v1408, %v4643
      %v4868 = vmul.f32 %v1402, %v4644
      %v4869 = vmul.f32 %v1403, %v4645
      %v4870 = vmul.f32 %v1404, %v4646
      %v4871 = vmul.f32 %v1405, %v4647
      %v4872 = vmul.f32 %v1406, %v4648
      %v4873 = vmul.f32 %v1407, %v4649
      %v4874 = vmul.f32 %v1408, %v4650
      %v4875 = vmul.f32 %v1402, %v4651
      %v4876 = vmul.f32 %v1403, %v4652
      %v4877 = vmul.f32 %v1404, %v4653
      %v4878 = vmul.f32 %v1405, %v4654
      %v4879 = vmul.f32 %v1406, %v4655
      %v4880 = vmul.f32 %v1407, %v4656
      %v4881 = vmul.f32 %v1408, %v4657
      %v4882 = vmul.f32 %v1402, %v4658
      %v4883 = vmul.f32 %v1403, %v4659
      %v4884 = vmul.f32 %v1404, %v4660
      %v4885 = vmul.f32 %v1405, %v4661
      %v4886 = vmul.f32 %v1406, %v4662
      %v4887 = vmul.f32 %v1407, %v4663
      %v4888 = vmul.f32 %v1408, %v4664
      %v4889 = vmul.f32 %v1402, %v4665
      %v4890 = vmul.f32 %v1403, %v4666
      %v4891 = vmul.f32 %v1404, %v4667
      %v4892 = vmul.f32 %v1405, %v4668
      %v4893 = vmul.f32 %v1406, %v4669
      %v4894 = vmul.f32 %v1407, %v4670
      %v4895 = vmul.f32 %v1408, %v4671
      %v4896 = vmul.f32 %v1402, %v4672
      %v4897 = vmul.f32 %v1403, %v4673
      %v4898 = vmul.f32 %v1404, %v4674
      %v4899 = vmul.f32 %v1405, %v4675
      %v4900 = vmul.f32 %v1406, %v4676
      %v4901 = vmul.f32 %v1407, %v4677
      %v4902 = vmul.f32 %v1408, %v4678
      %v4903 = vmul.f32 %v1402, %v4679
      %v4904 = vmul.f32 %v1403, %v4680
      %v4905 = vmul.f32 %v1404, %v4681
      %v4906 = vmul.f32 %v1405, %v4682
      %v4907 = vmul.f32 %v1406, %v4683
      %v4908 = vmul.f32 %v1407, %v4684
      %v4909 = vmul.f32 %v1408, %v4685
      %v4910 = vmul.f32 %v1402, %v4686
      %v4911 = vmul.f32 %v1403, %v4687
      %v4912 = vmul.f32 %v1404, %v4688
      %v4913 = vmul.f32 %v1405, %v4689
      %v4914 = vmul.f32 %v1406, %v4690
      %v4915 = vmul.f32 %v1407, %v4691
      %v4916 = vmul.f32 %v1408, %v4692
      %v4917 = vmul.f32 %v1402, %v4693
      %v4918 = vmul.f32 %v1403, %v4694
      %v4919 = vmul.f32 %v1404, %v4695
      %v4920 = vmul.f32 %v1405, %v4696
      %v4921 = vmul.f32 %v1406, %v4697
      %v4922 = vmul.f32 %v1407, %v4698
      %v4923 = vmul.f32 %v1408, %v4699
      %v4924 = vmul.f32 %v1402, %v4700
      %v4925 = vmul.f32 %v1403, %v4701
      %v4926 = vmul.f32 %v1404, %v4702
      %v4927 = vmul.f32 %v1405, %v4703
      %v4928 = vmul.f32 %v1406, %v4704
      %v4929 = vmul.f32 %v1407, %v4705
      %v4930 = vmul.f32 %v1408, %v4706
      %v4931 = vmul.f32 %v1402, %v4707
      %v4932 = vmul.f32 %v1403, %v4708
      %v4933 = vmul.f32 %v1404, %v4709
      %v4934 = vmul.f32 %v1405, %v4710
      %v4935 = vmul.f32 %v1406, %v4711
      %v4936 = vmul.f32 %v1407, %v4712
      %v4937 = vmul.f32 %v1408, %v4713
      %v4938 = vmul.f32 %v1402, %v4714
      %v4939 = vmul.f32 %v1403, %v4715
      %v4940 = vmul.f32 %v1404, %v4716
      %v4941 = vmul.f32 %v1405, %v4717
      %v4942 = vmul.f32 %v1406, %v4718
      %v4943 = vmul.f32 %v1407, %v4719
      %v4944 = vmul.f32 %v1408, %v4720
      %v4945 = vmul.f32 %v1402, %v4721
      %v4946 = vmul.f32 %v1403, %v4722
      %v4947 = vmul.f32 %v1404, %v4723
      %v4948 = vmul.f32 %v1405, %v4724
      %v4949 = vmul.f32 %v1406, %v4725
      %v4950 = vmul.f32 %v1407, %v4726
      %v4951 = vmul.f32 %v1408, %v4727
      %v4952 = vmul.f32 %v1402, %v4728
      %v4953 = vmul.f32 %v1403, %v4729
      %v4954 = vmul.f32 %v1404, %v4730
      %v4955 = vmul.f32 %v1405, %v4731
      %v4956 = vmul.f32 %v1406, %v4732
      %v4957 = vmul.f32 %v1407, %v4733
      %v4958 = vmul.f32 %v1408, %v4734
      %v4959 = vmul.f32 %v1402, %v4735
      %v4960 = vmul.f32 %v1403, %v4736
      %v4961 = vmul.f32 %v1404, %v4737
      %v4962 = vmul.f32 %v1405, %v4738
      %v4963 = vmul.f32 %v1406, %v4739
      %v4964 = vmul.f32 %v1407, %v4740
      %v4965 = vmul.f32 %v1408, %v4741
      %v4966 = vmul.f32 %v1402, %v4742
      %v4967 = vmul.f32 %v1403, %v4743
      %v4968 = vmul.f32 %v1404, %v4744
      %v4969 = vmul.f32 %v1405, %v4745
      %v4970 = vmul.f32 %v1406, %v4746
      %v4971 = vmul.f32 %v1407, %v4747
      %v4972 = vmul.f32 %v1408, %v4748
      %v4973 = vmul.f32 %v1402, %v4749
      %v4974 = vmul.f32 %v1403, %v4750
      %v4975 = vmul.f32 %v1404, %v4751
      %v4976 = vmul.f32 %v1405, %v4752
      %v4977 = vmul.f32 %v1406, %v4753
      %v4978 = vmul.f32 %v1407, %v4754
      %v4979 = vmul.f32 %v1408, %v4755
      %v4980 = vmul.f32 %v1402, %v4756
      %v4981 = vmul.f32 %v1403, %v4757
      %v4982 = vmul.f32 %v1404, %v4758
      %v4983 = vmul.f32 %v1405, %v4759
      %v4984 = vmul.f32 %v1406, %v4760
      %v4985 = vmul.f32 %v1407, %v4761
      %v4986 = vmul.f32 %v1408, %v4762
      %v4987 = vmul.f32 %v1402, %v4763
      %v4988 = vmul.f32 %v1403, %v4764
      %v4989 = vmul.f32 %v1404, %v4765
      %v4990 = vmul.f32 %v1405, %v4766
      %v4991 = vmul.f32 %v1406, %v4767
      %v4992 = vmul.f32 %v1407, %v4768
      %v4993 = vmul.f32 %v1408, %v4769
      %v4994 = vmul.f32 %v1402, %v4770
      %v4995 = vmul.f32 %v1403, %v4771
      %v4996 = vmul.f32 %v1404, %v4772
      %v4997 = vmul.f32 %v1405, %v4773
      %v4998 = vmul.f32 %v1406, %v4774
      %v4999 = vmul.f32 %v1407, %v4775
      %v5000 = vmul.f32 %v1408, %v4776
      %v5001 = vmul.f32 %v1402, %v4777
      %v5002 = vmul.f32 %v1403, %v4778
      %v5003 = vmul.f32 %v1404, %v4779
      %v5004 = vmul.f32 %v1405, %v4780
      %v5005 = vmul.f32 %v1406, %v4781
      %v5006 = vmul.f32 %v1407, %v4782
      %v5007 = vmul.f32 %v1408, %v4783
      %v5008 = vmul.f32 %v1402, %v4784
      %v5009 = vmul.f32 %v1403, %v4785
      %v5010 = vmul.f32 %v1404, %v4786
      %v5011 = vmul.f32 %v1405, %v4787
      %v5012 = vmul.f32 %v1406, %v4788
      %v5013 = vmul.f32 %v1407, %v4789
      %v5014 = vmul.f32 %v1408, %v4790
      %v5015 = vmul.f32 %v1402, %v4791
      %v5016 = vmul.f32 %v1403, %v4792
      %v5017 = vmul.f32 %v1404, %v4793
      %v5018 = vmul.f32 %v1405, %v4794
      %v5019 = vmul.f32 %v1406, %v4795
      %v5020 = vmul.f32 %v1407, %v4796
      %v5021 = vmul.f32 %v1408, %v4797
      %v5022 = vmul.f32 %v1402, %v4798
      %v5023 = vmul.f32 %v1403, %v4799
      %v5024 = vmul.f32 %v1404, %v4800
      %v5025 = vmul.f32 %v1405, %v4801
      %v5026 = vmul.f32 %v1406, %v4802
      %v5027 = vmul.f32 %v1407, %v4803
      %v5028 = vmul.f32 %v1408, %v4804
      %v5029 = vmul.f32 %v1402, %v4805
      %v5030 = vmul.f32 %v1403, %v4806
      %v5031 = vmul.f32 %v1404, %v4807
      %v5032 = vmul.f32 %v1405, %v4808
      %v5033 = vmul.f32 %v1406, %v4809
      %v5034 = vmul.f32 %v1407, %v4810
      %v5035 = vmul.f32 %v1408, %v4811
      %v5036 = vmul.f32 %v1402, %v4812
      %v5037 = vmul.f32 %v1403, %v4813
      %v5038 = vmul.f32 %v1404, %v4814
      %v5039 = vmul.f32 %v1405, %v4815
      %v5040 = vmul.f32 %v1406, %v4816
      %v5041 = vmul.f32 %v1407, %v4817
      %v5042 = vmul.f32 %v1408, %v4818
      %v5043 = vsel %vm1280, %v4819, 0.0
      %5044 = vadd.xlane.f32.xlu0 %v5043
      %v5045 = vpop.xlane.xlu0 %5044
      %v5046 = vsel %vm1280, %v4820, 0.0
      %5047 = vadd.xlane.f32.xlu0 %v5046
      %v5048 = vpop.xlane.xlu0 %5047
      %v5049 = vsel %vm1280, %v4821, 0.0
      %5050 = vadd.xlane.f32.xlu0 %v5049
      %v5051 = vpop.xlane.xlu0 %5050
      %v5052 = vsel %vm1280, %v4822, 0.0
      %5053 = vadd.xlane.f32.xlu0 %v5052
      %v5054 = vpop.xlane.xlu0 %5053
      %v5055 = vsel %vm1280, %v4823, 0.0
      %5056 = vadd.xlane.f32.xlu0 %v5055
      %v5057 = vpop.xlane.xlu0 %5056
      %v5058 = vsel %vm1280, %v4824, 0.0
      %5059 = vadd.xlane.f32.xlu0 %v5058
      %v5060 = vpop.xlane.xlu0 %5059
      %vm5061 = vcmask 253952
      %v5062 = vsel %vm5061, %v4825, 0.0
      %5063 = vadd.xlane.f32.xlu0 %v5062
      %v5064 = vpop.xlane.xlu0 %5063
      %v5065 = vsel %vm1280, %v4826, 0.0
      %5066 = vadd.xlane.f32.xlu0 %v5065
      %v5067 = vpop.xlane.xlu0 %5066
      %v5068 = vsel %vm1280, %v4827, 0.0
      %5069 = vadd.xlane.f32.xlu0 %v5068
      %v5070 = vpop.xlane.xlu0 %5069
      %v5071 = vsel %vm1280, %v4828, 0.0
      %5072 = vadd.xlane.f32.xlu0 %v5071
      %v5073 = vpop.xlane.xlu0 %5072
      %v5074 = vsel %vm1280, %v4829, 0.0
      %5075 = vadd.xlane.f32.xlu0 %v5074
      %v5076 = vpop.xlane.xlu0 %5075
      %v5077 = vsel %vm1280, %v4830, 0.0
      %5078 = vadd.xlane.f32.xlu0 %v5077
      %v5079 = vpop.xlane.xlu0 %5078
      %v5080 = vsel %vm1280, %v4831, 0.0
      %5081 = vadd.xlane.f32.xlu0 %v5080
      %v5082 = vpop.xlane.xlu0 %5081
      %v5083 = vsel %vm5061, %v4832, 0.0
      %5084 = vadd.xlane.f32.xlu0 %v5083
      %v5085 = vpop.xlane.xlu0 %5084
      %v5086 = vsel %vm1280, %v4833, 0.0
      %5087 = vadd.xlane.f32.xlu0 %v5086
      %v5088 = vpop.xlane.xlu0 %5087
      %v5089 = vsel %vm1280, %v4834, 0.0
      %5090 = vadd.xlane.f32.xlu0 %v5089
      %v5091 = vpop.xlane.xlu0 %5090
      %v5092 = vsel %vm1280, %v4835, 0.0
      %5093 = vadd.xlane.f32.xlu0 %v5092
      %v5094 = vpop.xlane.xlu0 %5093
      %v5095 = vsel %vm1280, %v4836, 0.0
      %5096 = vadd.xlane.f32.xlu0 %v5095
      %v5097 = vpop.xlane.xlu0 %5096
      %v5098 = vsel %vm1280, %v4837, 0.0
      %5099 = vadd.xlane.f32.xlu0 %v5098
      %v5100 = vpop.xlane.xlu0 %5099
      %v5101 = vsel %vm1280, %v4838, 0.0
      %5102 = vadd.xlane.f32.xlu0 %v5101
      %v5103 = vpop.xlane.xlu0 %5102
      %v5104 = vsel %vm5061, %v4839, 0.0
      %5105 = vadd.xlane.f32.xlu0 %v5104
      %v5106 = vpop.xlane.xlu0 %5105
      %v5107 = vsel %vm1280, %v4840, 0.0
      %5108 = vadd.xlane.f32.xlu0 %v5107
      %v5109 = vpop.xlane.xlu0 %5108
      %v5110 = vsel %vm1280, %v4841, 0.0
      %5111 = vadd.xlane.f32.xlu0 %v5110
      %v5112 = vpop.xlane.xlu0 %5111
      %v5113 = vsel %vm1280, %v4842, 0.0
      %5114 = vadd.xlane.f32.xlu0 %v5113
      %v5115 = vpop.xlane.xlu0 %5114
      %v5116 = vsel %vm1280, %v4843, 0.0
      %5117 = vadd.xlane.f32.xlu0 %v5116
      %v5118 = vpop.xlane.xlu0 %5117
      %v5119 = vsel %vm1280, %v4844, 0.0
      %5120 = vadd.xlane.f32.xlu0 %v5119
      %v5121 = vpop.xlane.xlu0 %5120
      %v5122 = vsel %vm1280, %v4845, 0.0
      %5123 = vadd.xlane.f32.xlu0 %v5122
      %v5124 = vpop.xlane.xlu0 %5123
      %v5125 = vsel %vm5061, %v4846, 0.0
      %5126 = vadd.xlane.f32.xlu0 %v5125
      %v5127 = vpop.xlane.xlu0 %5126
      %v5128 = vsel %vm1280, %v4847, 0.0
      %5129 = vadd.xlane.f32.xlu0 %v5128
      %v5130 = vpop.xlane.xlu0 %5129
      %v5131 = vsel %vm1280, %v4848, 0.0
      %5132 = vadd.xlane.f32.xlu0 %v5131
      %v5133 = vpop.xlane.xlu0 %5132
      %v5134 = vsel %vm1280, %v4849, 0.0
      %5135 = vadd.xlane.f32.xlu0 %v5134
      %v5136 = vpop.xlane.xlu0 %5135
      %v5137 = vsel %vm1280, %v4850, 0.0
      %5138 = vadd.xlane.f32.xlu0 %v5137
      %v5139 = vpop.xlane.xlu0 %5138
      %v5140 = vsel %vm1280, %v4851, 0.0
      %5141 = vadd.xlane.f32.xlu0 %v5140
      %v5142 = vpop.xlane.xlu0 %5141
      %v5143 = vsel %vm1280, %v4852, 0.0
      %5144 = vadd.xlane.f32.xlu0 %v5143
      %v5145 = vpop.xlane.xlu0 %5144
      %v5146 = vsel %vm5061, %v4853, 0.0
      %5147 = vadd.xlane.f32.xlu0 %v5146
      %v5148 = vpop.xlane.xlu0 %5147
      %v5149 = vsel %vm1280, %v4854, 0.0
      %5150 = vadd.xlane.f32.xlu0 %v5149
      %v5151 = vpop.xlane.xlu0 %5150
      %v5152 = vsel %vm1280, %v4855, 0.0
      %5153 = vadd.xlane.f32.xlu0 %v5152
      %v5154 = vpop.xlane.xlu0 %5153
      %v5155 = vsel %vm1280, %v4856, 0.0
      %5156 = vadd.xlane.f32.xlu0 %v5155
      %v5157 = vpop.xlane.xlu0 %5156
      %v5158 = vsel %vm1280, %v4857, 0.0
      %5159 = vadd.xlane.f32.xlu0 %v5158
      %v5160 = vpop.xlane.xlu0 %5159
      %v5161 = vsel %vm1280, %v4858, 0.0
      %5162 = vadd.xlane.f32.xlu0 %v5161
      %v5163 = vpop.xlane.xlu0 %5162
      %v5164 = vsel %vm1280, %v4859, 0.0
      %5165 = vadd.xlane.f32.xlu0 %v5164
      %v5166 = vpop.xlane.xlu0 %5165
      %v5167 = vsel %vm5061, %v4860, 0.0
      %5168 = vadd.xlane.f32.xlu0 %v5167
      %v5169 = vpop.xlane.xlu0 %5168
      %v5170 = vsel %vm1280, %v4861, 0.0
      %5171 = vadd.xlane.f32.xlu0 %v5170
      %v5172 = vpop.xlane.xlu0 %5171
      %v5173 = vsel %vm1280, %v4862, 0.0
      %5174 = vadd.xlane.f32.xlu0 %v5173
      %v5175 = vpop.xlane.xlu0 %5174
      %v5176 = vsel %vm1280, %v4863, 0.0
      %5177 = vadd.xlane.f32.xlu0 %v5176
      %v5178 = vpop.xlane.xlu0 %5177
      %v5179 = vsel %vm1280, %v4864, 0.0
      %5180 = vadd.xlane.f32.xlu0 %v5179
      %v5181 = vpop.xlane.xlu0 %5180
      %v5182 = vsel %vm1280, %v4865, 0.0
      %5183 = vadd.xlane.f32.xlu0 %v5182
      %v5184 = vpop.xlane.xlu0 %5183
      %v5185 = vsel %vm1280, %v4866, 0.0
      %5186 = vadd.xlane.f32.xlu0 %v5185
      %v5187 = vpop.xlane.xlu0 %5186
      %v5188 = vsel %vm5061, %v4867, 0.0
      %5189 = vadd.xlane.f32.xlu0 %v5188
      %v5190 = vpop.xlane.xlu0 %5189
      %v5191 = vsel %vm1280, %v4868, 0.0
      %5192 = vadd.xlane.f32.xlu0 %v5191
      %v5193 = vpop.xlane.xlu0 %5192
      %v5194 = vsel %vm1280, %v4869, 0.0
      %5195 = vadd.xlane.f32.xlu0 %v5194
      %v5196 = vpop.xlane.xlu0 %5195
      %v5197 = vsel %vm1280, %v4870, 0.0
      %5198 = vadd.xlane.f32.xlu0 %v5197
      %v5199 = vpop.xlane.xlu0 %5198
      %v5200 = vsel %vm1280, %v4871, 0.0
      %5201 = vadd.xlane.f32.xlu0 %v5200
      %v5202 = vpop.xlane.xlu0 %5201
      %v5203 = vsel %vm1280, %v4872, 0.0
      %5204 = vadd.xlane.f32.xlu0 %v5203
      %v5205 = vpop.xlane.xlu0 %5204
      %v5206 = vsel %vm1280, %v4873, 0.0
      %5207 = vadd.xlane.f32.xlu0 %v5206
      %v5208 = vpop.xlane.xlu0 %5207
      %v5209 = vsel %vm5061, %v4874, 0.0
      %5210 = vadd.xlane.f32.xlu0 %v5209
      %v5211 = vpop.xlane.xlu0 %5210
      %v5212 = vsel %vm1280, %v4875, 0.0
      %5213 = vadd.xlane.f32.xlu0 %v5212
      %v5214 = vpop.xlane.xlu0 %5213
      %v5215 = vsel %vm1280, %v4876, 0.0
      %5216 = vadd.xlane.f32.xlu0 %v5215
      %v5217 = vpop.xlane.xlu0 %5216
      %v5218 = vsel %vm1280, %v4877, 0.0
      %5219 = vadd.xlane.f32.xlu0 %v5218
      %v5220 = vpop.xlane.xlu0 %5219
      %v5221 = vsel %vm1280, %v4878, 0.0
      %5222 = vadd.xlane.f32.xlu0 %v5221
      %v5223 = vpop.xlane.xlu0 %5222
      %v5224 = vsel %vm1280, %v4879, 0.0
      %5225 = vadd.xlane.f32.xlu0 %v5224
      %v5226 = vpop.xlane.xlu0 %5225
      %v5227 = vsel %vm1280, %v4880, 0.0
      %5228 = vadd.xlane.f32.xlu0 %v5227
      %v5229 = vpop.xlane.xlu0 %5228
      %v5230 = vsel %vm5061, %v4881, 0.0
      %5231 = vadd.xlane.f32.xlu0 %v5230
      %v5232 = vpop.xlane.xlu0 %5231
      %v5233 = vsel %vm1280, %v4882, 0.0
      %5234 = vadd.xlane.f32.xlu0 %v5233
      %v5235 = vpop.xlane.xlu0 %5234
      %v5236 = vsel %vm1280, %v4883, 0.0
      %5237 = vadd.xlane.f32.xlu0 %v5236
      %v5238 = vpop.xlane.xlu0 %5237
      %v5239 = vsel %vm1280, %v4884, 0.0
      %5240 = vadd.xlane.f32.xlu0 %v5239
      %v5241 = vpop.xlane.xlu0 %5240
      %v5242 = vsel %vm1280, %v4885, 0.0
      %5243 = vadd.xlane.f32.xlu0 %v5242
      %v5244 = vpop.xlane.xlu0 %5243
      %v5245 = vsel %vm1280, %v4886, 0.0
      %5246 = vadd.xlane.f32.xlu0 %v5245
      %v5247 = vpop.xlane.xlu0 %5246
      %v5248 = vsel %vm1280, %v4887, 0.0
      %5249 = vadd.xlane.f32.xlu0 %v5248
      %v5250 = vpop.xlane.xlu0 %5249
      %v5251 = vsel %vm5061, %v4888, 0.0
      %5252 = vadd.xlane.f32.xlu0 %v5251
      %v5253 = vpop.xlane.xlu0 %5252
      %v5254 = vsel %vm1280, %v4889, 0.0
      %5255 = vadd.xlane.f32.xlu0 %v5254
      %v5256 = vpop.xlane.xlu0 %5255
      %v5257 = vsel %vm1280, %v4890, 0.0
      %5258 = vadd.xlane.f32.xlu0 %v5257
      %v5259 = vpop.xlane.xlu0 %5258
      %v5260 = vsel %vm1280, %v4891, 0.0
      %5261 = vadd.xlane.f32.xlu0 %v5260
      %v5262 = vpop.xlane.xlu0 %5261
      %v5263 = vsel %vm1280, %v4892, 0.0
      %5264 = vadd.xlane.f32.xlu0 %v5263
      %v5265 = vpop.xlane.xlu0 %5264
      %v5266 = vsel %vm1280, %v4893, 0.0
      %5267 = vadd.xlane.f32.xlu0 %v5266
      %v5268 = vpop.xlane.xlu0 %5267
      %v5269 = vsel %vm1280, %v4894, 0.0
      %5270 = vadd.xlane.f32.xlu0 %v5269
      %v5271 = vpop.xlane.xlu0 %5270
      %v5272 = vsel %vm5061, %v4895, 0.0
      %5273 = vadd.xlane.f32.xlu0 %v5272
      %v5274 = vpop.xlane.xlu0 %5273
      %v5275 = vsel %vm1280, %v4896, 0.0
      %5276 = vadd.xlane.f32.xlu0 %v5275
      %v5277 = vpop.xlane.xlu0 %5276
      %v5278 = vsel %vm1280, %v4897, 0.0
      %5279 = vadd.xlane.f32.xlu0 %v5278
      %v5280 = vpop.xlane.xlu0 %5279
      %v5281 = vsel %vm1280, %v4898, 0.0
      %5282 = vadd.xlane.f32.xlu0 %v5281
      %v5283 = vpop.xlane.xlu0 %5282
      %v5284 = vsel %vm1280, %v4899, 0.0
      %5285 = vadd.xlane.f32.xlu0 %v5284
      %v5286 = vpop.xlane.xlu0 %5285
      %v5287 = vsel %vm1280, %v4900, 0.0
      %5288 = vadd.xlane.f32.xlu0 %v5287
      %v5289 = vpop.xlane.xlu0 %5288
      %v5290 = vsel %vm1280, %v4901, 0.0
      %5291 = vadd.xlane.f32.xlu0 %v5290
      %v5292 = vpop.xlane.xlu0 %5291
      %v5293 = vsel %vm5061, %v4902, 0.0
      %5294 = vadd.xlane.f32.xlu0 %v5293
      %v5295 = vpop.xlane.xlu0 %5294
      %v5296 = vsel %vm1280, %v4903, 0.0
      %5297 = vadd.xlane.f32.xlu0 %v5296
      %v5298 = vpop.xlane.xlu0 %5297
      %v5299 = vsel %vm1280, %v4904, 0.0
      %5300 = vadd.xlane.f32.xlu0 %v5299
      %v5301 = vpop.xlane.xlu0 %5300
      %v5302 = vsel %vm1280, %v4905, 0.0
      %5303 = vadd.xlane.f32.xlu0 %v5302
      %v5304 = vpop.xlane.xlu0 %5303
      %v5305 = vsel %vm1280, %v4906, 0.0
      %5306 = vadd.xlane.f32.xlu0 %v5305
      %v5307 = vpop.xlane.xlu0 %5306
      %v5308 = vsel %vm1280, %v4907, 0.0
      %5309 = vadd.xlane.f32.xlu0 %v5308
      %v5310 = vpop.xlane.xlu0 %5309
      %v5311 = vsel %vm1280, %v4908, 0.0
      %5312 = vadd.xlane.f32.xlu0 %v5311
      %v5313 = vpop.xlane.xlu0 %5312
      %v5314 = vsel %vm5061, %v4909, 0.0
      %5315 = vadd.xlane.f32.xlu0 %v5314
      %v5316 = vpop.xlane.xlu0 %5315
      %v5317 = vsel %vm1280, %v4910, 0.0
      %5318 = vadd.xlane.f32.xlu0 %v5317
      %v5319 = vpop.xlane.xlu0 %5318
      %v5320 = vsel %vm1280, %v4911, 0.0
      %5321 = vadd.xlane.f32.xlu0 %v5320
      %v5322 = vpop.xlane.xlu0 %5321
      %v5323 = vsel %vm1280, %v4912, 0.0
      %5324 = vadd.xlane.f32.xlu0 %v5323
      %v5325 = vpop.xlane.xlu0 %5324
      %v5326 = vsel %vm1280, %v4913, 0.0
      %5327 = vadd.xlane.f32.xlu0 %v5326
      %v5328 = vpop.xlane.xlu0 %5327
      %v5329 = vsel %vm1280, %v4914, 0.0
      %5330 = vadd.xlane.f32.xlu0 %v5329
      %v5331 = vpop.xlane.xlu0 %5330
      %v5332 = vsel %vm1280, %v4915, 0.0
      %5333 = vadd.xlane.f32.xlu0 %v5332
      %v5334 = vpop.xlane.xlu0 %5333
      %v5335 = vsel %vm5061, %v4916, 0.0
      %5336 = vadd.xlane.f32.xlu0 %v5335
      %v5337 = vpop.xlane.xlu0 %5336
      %v5338 = vsel %vm1280, %v4917, 0.0
      %5339 = vadd.xlane.f32.xlu0 %v5338
      %v5340 = vpop.xlane.xlu0 %5339
      %v5341 = vsel %vm1280, %v4918, 0.0
      %5342 = vadd.xlane.f32.xlu0 %v5341
      %v5343 = vpop.xlane.xlu0 %5342
      %v5344 = vsel %vm1280, %v4919, 0.0
      %5345 = vadd.xlane.f32.xlu0 %v5344
      %v5346 = vpop.xlane.xlu0 %5345
      %v5347 = vsel %vm1280, %v4920, 0.0
      %5348 = vadd.xlane.f32.xlu0 %v5347
      %v5349 = vpop.xlane.xlu0 %5348
      %v5350 = vsel %vm1280, %v4921, 0.0
      %5351 = vadd.xlane.f32.xlu0 %v5350
      %v5352 = vpop.xlane.xlu0 %5351
      %v5353 = vsel %vm1280, %v4922, 0.0
      %5354 = vadd.xlane.f32.xlu0 %v5353
      %v5355 = vpop.xlane.xlu0 %5354
      %v5356 = vsel %vm5061, %v4923, 0.0
      %5357 = vadd.xlane.f32.xlu0 %v5356
      %v5358 = vpop.xlane.xlu0 %5357
      %v5359 = vsel %vm1280, %v4924, 0.0
      %5360 = vadd.xlane.f32.xlu0 %v5359
      %v5361 = vpop.xlane.xlu0 %5360
      %v5362 = vsel %vm1280, %v4925, 0.0
      %5363 = vadd.xlane.f32.xlu0 %v5362
      %v5364 = vpop.xlane.xlu0 %5363
      %v5365 = vsel %vm1280, %v4926, 0.0
      %5366 = vadd.xlane.f32.xlu0 %v5365
      %v5367 = vpop.xlane.xlu0 %5366
      %v5368 = vsel %vm1280, %v4927, 0.0
      %5369 = vadd.xlane.f32.xlu0 %v5368
      %v5370 = vpop.xlane.xlu0 %5369
      %v5371 = vsel %vm1280, %v4928, 0.0
      %5372 = vadd.xlane.f32.xlu0 %v5371
      %v5373 = vpop.xlane.xlu0 %5372
      %v5374 = vsel %vm1280, %v4929, 0.0
      %5375 = vadd.xlane.f32.xlu0 %v5374
      %v5376 = vpop.xlane.xlu0 %5375
      %v5377 = vsel %vm5061, %v4930, 0.0
      %5378 = vadd.xlane.f32.xlu0 %v5377
      %v5379 = vpop.xlane.xlu0 %5378
      %v5380 = vsel %vm1280, %v4931, 0.0
      %5381 = vadd.xlane.f32.xlu0 %v5380
      %v5382 = vpop.xlane.xlu0 %5381
      %v5383 = vsel %vm1280, %v4932, 0.0
      %5384 = vadd.xlane.f32.xlu0 %v5383
      %v5385 = vpop.xlane.xlu0 %5384
      %v5386 = vsel %vm1280, %v4933, 0.0
      %5387 = vadd.xlane.f32.xlu0 %v5386
      %v5388 = vpop.xlane.xlu0 %5387
      %v5389 = vsel %vm1280, %v4934, 0.0
      %5390 = vadd.xlane.f32.xlu0 %v5389
      %v5391 = vpop.xlane.xlu0 %5390
      %v5392 = vsel %vm1280, %v4935, 0.0
      %5393 = vadd.xlane.f32.xlu0 %v5392
      %v5394 = vpop.xlane.xlu0 %5393
      %v5395 = vsel %vm1280, %v4936, 0.0
      %5396 = vadd.xlane.f32.xlu0 %v5395
      %v5397 = vpop.xlane.xlu0 %5396
      %v5398 = vsel %vm5061, %v4937, 0.0
      %5399 = vadd.xlane.f32.xlu0 %v5398
      %v5400 = vpop.xlane.xlu0 %5399
      %v5401 = vsel %vm1280, %v4938, 0.0
      %5402 = vadd.xlane.f32.xlu0 %v5401
      %v5403 = vpop.xlane.xlu0 %5402
      %v5404 = vsel %vm1280, %v4939, 0.0
      %5405 = vadd.xlane.f32.xlu0 %v5404
      %v5406 = vpop.xlane.xlu0 %5405
      %v5407 = vsel %vm1280, %v4940, 0.0
      %5408 = vadd.xlane.f32.xlu0 %v5407
      %v5409 = vpop.xlane.xlu0 %5408
      %v5410 = vsel %vm1280, %v4941, 0.0
      %5411 = vadd.xlane.f32.xlu0 %v5410
      %v5412 = vpop.xlane.xlu0 %5411
      %v5413 = vsel %vm1280, %v4942, 0.0
      %5414 = vadd.xlane.f32.xlu0 %v5413
      %v5415 = vpop.xlane.xlu0 %5414
      %v5416 = vsel %vm1280, %v4943, 0.0
      %5417 = vadd.xlane.f32.xlu0 %v5416
      %v5418 = vpop.xlane.xlu0 %5417
      %v5419 = vsel %vm5061, %v4944, 0.0
      %5420 = vadd.xlane.f32.xlu0 %v5419
      %v5421 = vpop.xlane.xlu0 %5420
      %v5422 = vsel %vm1280, %v4945, 0.0
      %5423 = vadd.xlane.f32.xlu0 %v5422
      %v5424 = vpop.xlane.xlu0 %5423
      %v5425 = vsel %vm1280, %v4946, 0.0
      %5426 = vadd.xlane.f32.xlu0 %v5425
      %v5427 = vpop.xlane.xlu0 %5426
      %v5428 = vsel %vm1280, %v4947, 0.0
      %5429 = vadd.xlane.f32.xlu0 %v5428
      %v5430 = vpop.xlane.xlu0 %5429
      %v5431 = vsel %vm1280, %v4948, 0.0
      %5432 = vadd.xlane.f32.xlu0 %v5431
      %v5433 = vpop.xlane.xlu0 %5432
      %v5434 = vsel %vm1280, %v4949, 0.0
      %5435 = vadd.xlane.f32.xlu0 %v5434
      %v5436 = vpop.xlane.xlu0 %5435
      %v5437 = vsel %vm1280, %v4950, 0.0
      %5438 = vadd.xlane.f32.xlu0 %v5437
      %v5439 = vpop.xlane.xlu0 %5438
      %v5440 = vsel %vm5061, %v4951, 0.0
      %5441 = vadd.xlane.f32.xlu0 %v5440
      %v5442 = vpop.xlane.xlu0 %5441
      %v5443 = vsel %vm1280, %v4952, 0.0
      %5444 = vadd.xlane.f32.xlu0 %v5443
      %v5445 = vpop.xlane.xlu0 %5444
      %v5446 = vsel %vm1280, %v4953, 0.0
      %5447 = vadd.xlane.f32.xlu0 %v5446
      %v5448 = vpop.xlane.xlu0 %5447
      %v5449 = vsel %vm1280, %v4954, 0.0
      %5450 = vadd.xlane.f32.xlu0 %v5449
      %v5451 = vpop.xlane.xlu0 %5450
      %v5452 = vsel %vm1280, %v4955, 0.0
      %5453 = vadd.xlane.f32.xlu0 %v5452
      %v5454 = vpop.xlane.xlu0 %5453
      %v5455 = vsel %vm1280, %v4956, 0.0
      %5456 = vadd.xlane.f32.xlu0 %v5455
      %v5457 = vpop.xlane.xlu0 %5456
      %v5458 = vsel %vm1280, %v4957, 0.0
      %5459 = vadd.xlane.f32.xlu0 %v5458
      %v5460 = vpop.xlane.xlu0 %5459
      %v5461 = vsel %vm5061, %v4958, 0.0
      %5462 = vadd.xlane.f32.xlu0 %v5461
      %v5463 = vpop.xlane.xlu0 %5462
      %v5464 = vsel %vm1280, %v4959, 0.0
      %5465 = vadd.xlane.f32.xlu0 %v5464
      %v5466 = vpop.xlane.xlu0 %5465
      %v5467 = vsel %vm1280, %v4960, 0.0
      %5468 = vadd.xlane.f32.xlu0 %v5467
      %v5469 = vpop.xlane.xlu0 %5468
      %v5470 = vsel %vm1280, %v4961, 0.0
      %5471 = vadd.xlane.f32.xlu0 %v5470
      %v5472 = vpop.xlane.xlu0 %5471
      %v5473 = vsel %vm1280, %v4962, 0.0
      %5474 = vadd.xlane.f32.xlu0 %v5473
      %v5475 = vpop.xlane.xlu0 %5474
      %v5476 = vsel %vm1280, %v4963, 0.0
      %5477 = vadd.xlane.f32.xlu0 %v5476
      %v5478 = vpop.xlane.xlu0 %5477
      %v5479 = vsel %vm1280, %v4964, 0.0
      %5480 = vadd.xlane.f32.xlu0 %v5479
      %v5481 = vpop.xlane.xlu0 %5480
      %v5482 = vsel %vm5061, %v4965, 0.0
      %5483 = vadd.xlane.f32.xlu0 %v5482
      %v5484 = vpop.xlane.xlu0 %5483
      %v5485 = vsel %vm1280, %v4966, 0.0
      %5486 = vadd.xlane.f32.xlu0 %v5485
      %v5487 = vpop.xlane.xlu0 %5486
      %v5488 = vsel %vm1280, %v4967, 0.0
      %5489 = vadd.xlane.f32.xlu0 %v5488
      %v5490 = vpop.xlane.xlu0 %5489
      %v5491 = vsel %vm1280, %v4968, 0.0
      %5492 = vadd.xlane.f32.xlu0 %v5491
      %v5493 = vpop.xlane.xlu0 %5492
      %v5494 = vsel %vm1280, %v4969, 0.0
      %5495 = vadd.xlane.f32.xlu0 %v5494
      %v5496 = vpop.xlane.xlu0 %5495
      %v5497 = vsel %vm1280, %v4970, 0.0
      %5498 = vadd.xlane.f32.xlu0 %v5497
      %v5499 = vpop.xlane.xlu0 %5498
      %v5500 = vsel %vm1280, %v4971, 0.0
      %5501 = vadd.xlane.f32.xlu0 %v5500
      %v5502 = vpop.xlane.xlu0 %5501
      %v5503 = vsel %vm5061, %v4972, 0.0
      %5504 = vadd.xlane.f32.xlu0 %v5503
      %v5505 = vpop.xlane.xlu0 %5504
      %v5506 = vsel %vm1280, %v4973, 0.0
      %5507 = vadd.xlane.f32.xlu0 %v5506
      %v5508 = vpop.xlane.xlu0 %5507
      %v5509 = vsel %vm1280, %v4974, 0.0
      %5510 = vadd.xlane.f32.xlu0 %v5509
      %v5511 = vpop.xlane.xlu0 %5510
      %v5512 = vsel %vm1280, %v4975, 0.0
      %5513 = vadd.xlane.f32.xlu0 %v5512
      %v5514 = vpop.xlane.xlu0 %5513
      %v5515 = vsel %vm1280, %v4976, 0.0
      %5516 = vadd.xlane.f32.xlu0 %v5515
      %v5517 = vpop.xlane.xlu0 %5516
      %v5518 = vsel %vm1280, %v4977, 0.0
      %5519 = vadd.xlane.f32.xlu0 %v5518
      %v5520 = vpop.xlane.xlu0 %5519
      %v5521 = vsel %vm1280, %v4978, 0.0
      %5522 = vadd.xlane.f32.xlu0 %v5521
      %v5523 = vpop.xlane.xlu0 %5522
      %v5524 = vsel %vm5061, %v4979, 0.0
      %5525 = vadd.xlane.f32.xlu0 %v5524
      %v5526 = vpop.xlane.xlu0 %5525
      %v5527 = vsel %vm1280, %v4980, 0.0
      %5528 = vadd.xlane.f32.xlu0 %v5527
      %v5529 = vpop.xlane.xlu0 %5528
      %v5530 = vsel %vm1280, %v4981, 0.0
      %5531 = vadd.xlane.f32.xlu0 %v5530
      %v5532 = vpop.xlane.xlu0 %5531
      %v5533 = vsel %vm1280, %v4982, 0.0
      %5534 = vadd.xlane.f32.xlu0 %v5533
      %v5535 = vpop.xlane.xlu0 %5534
      %v5536 = vsel %vm1280, %v4983, 0.0
      %5537 = vadd.xlane.f32.xlu0 %v5536
      %v5538 = vpop.xlane.xlu0 %5537
      %v5539 = vsel %vm1280, %v4984, 0.0
      %5540 = vadd.xlane.f32.xlu0 %v5539
      %v5541 = vpop.xlane.xlu0 %5540
      %v5542 = vsel %vm1280, %v4985, 0.0
      %5543 = vadd.xlane.f32.xlu0 %v5542
      %v5544 = vpop.xlane.xlu0 %5543
      %v5545 = vsel %vm5061, %v4986, 0.0
      %5546 = vadd.xlane.f32.xlu0 %v5545
      %v5547 = vpop.xlane.xlu0 %5546
      %v5548 = vsel %vm1280, %v4987, 0.0
      %5549 = vadd.xlane.f32.xlu0 %v5548
      %v5550 = vpop.xlane.xlu0 %5549
      %v5551 = vsel %vm1280, %v4988, 0.0
      %5552 = vadd.xlane.f32.xlu0 %v5551
      %v5553 = vpop.xlane.xlu0 %5552
      %v5554 = vsel %vm1280, %v4989, 0.0
      %5555 = vadd.xlane.f32.xlu0 %v5554
      %v5556 = vpop.xlane.xlu0 %5555
      %v5557 = vsel %vm1280, %v4990, 0.0
      %5558 = vadd.xlane.f32.xlu0 %v5557
      %v5559 = vpop.xlane.xlu0 %5558
      %v5560 = vsel %vm1280, %v4991, 0.0
      %5561 = vadd.xlane.f32.xlu0 %v5560
      %v5562 = vpop.xlane.xlu0 %5561
      %v5563 = vsel %vm1280, %v4992, 0.0
      %5564 = vadd.xlane.f32.xlu0 %v5563
      %v5565 = vpop.xlane.xlu0 %5564
      %v5566 = vsel %vm5061, %v4993, 0.0
      %5567 = vadd.xlane.f32.xlu0 %v5566
      %v5568 = vpop.xlane.xlu0 %5567
      %v5569 = vsel %vm1280, %v4994, 0.0
      %5570 = vadd.xlane.f32.xlu0 %v5569
      %v5571 = vpop.xlane.xlu0 %5570
      %v5572 = vsel %vm1280, %v4995, 0.0
      %5573 = vadd.xlane.f32.xlu0 %v5572
      %v5574 = vpop.xlane.xlu0 %5573
      %v5575 = vsel %vm1280, %v4996, 0.0
      %5576 = vadd.xlane.f32.xlu0 %v5575
      %v5577 = vpop.xlane.xlu0 %5576
      %v5578 = vsel %vm1280, %v4997, 0.0
      %5579 = vadd.xlane.f32.xlu0 %v5578
      %v5580 = vpop.xlane.xlu0 %5579
      %v5581 = vsel %vm1280, %v4998, 0.0
      %5582 = vadd.xlane.f32.xlu0 %v5581
      %v5583 = vpop.xlane.xlu0 %5582
      %v5584 = vsel %vm1280, %v4999, 0.0
      %5585 = vadd.xlane.f32.xlu0 %v5584
      %v5586 = vpop.xlane.xlu0 %5585
      %v5587 = vsel %vm5061, %v5000, 0.0
      %5588 = vadd.xlane.f32.xlu0 %v5587
      %v5589 = vpop.xlane.xlu0 %5588
      %v5590 = vsel %vm1280, %v5001, 0.0
      %5591 = vadd.xlane.f32.xlu0 %v5590
      %v5592 = vpop.xlane.xlu0 %5591
      %v5593 = vsel %vm1280, %v5002, 0.0
      %5594 = vadd.xlane.f32.xlu0 %v5593
      %v5595 = vpop.xlane.xlu0 %5594
      %v5596 = vsel %vm1280, %v5003, 0.0
      %5597 = vadd.xlane.f32.xlu0 %v5596
      %v5598 = vpop.xlane.xlu0 %5597
      %v5599 = vsel %vm1280, %v5004, 0.0
      %5600 = vadd.xlane.f32.xlu0 %v5599
      %v5601 = vpop.xlane.xlu0 %5600
      %v5602 = vsel %vm1280, %v5005, 0.0
      %5603 = vadd.xlane.f32.xlu0 %v5602
      %v5604 = vpop.xlane.xlu0 %5603
      %v5605 = vsel %vm1280, %v5006, 0.0
      %5606 = vadd.xlane.f32.xlu0 %v5605
      %v5607 = vpop.xlane.xlu0 %5606
      %v5608 = vsel %vm5061, %v5007, 0.0
      %5609 = vadd.xlane.f32.xlu0 %v5608
      %v5610 = vpop.xlane.xlu0 %5609
      %v5611 = vsel %vm1280, %v5008, 0.0
      %5612 = vadd.xlane.f32.xlu0 %v5611
      %v5613 = vpop.xlane.xlu0 %5612
      %v5614 = vsel %vm1280, %v5009, 0.0
      %5615 = vadd.xlane.f32.xlu0 %v5614
      %v5616 = vpop.xlane.xlu0 %5615
      %v5617 = vsel %vm1280, %v5010, 0.0
      %5618 = vadd.xlane.f32.xlu0 %v5617
      %v5619 = vpop.xlane.xlu0 %5618
      %v5620 = vsel %vm1280, %v5011, 0.0
      %5621 = vadd.xlane.f32.xlu0 %v5620
      %v5622 = vpop.xlane.xlu0 %5621
      %v5623 = vsel %vm1280, %v5012, 0.0
      %5624 = vadd.xlane.f32.xlu0 %v5623
      %v5625 = vpop.xlane.xlu0 %5624
      %v5626 = vsel %vm1280, %v5013, 0.0
      %5627 = vadd.xlane.f32.xlu0 %v5626
      %v5628 = vpop.xlane.xlu0 %5627
      %v5629 = vsel %vm5061, %v5014, 0.0
      %5630 = vadd.xlane.f32.xlu0 %v5629
      %v5631 = vpop.xlane.xlu0 %5630
      %v5632 = vsel %vm1280, %v5015, 0.0
      %5633 = vadd.xlane.f32.xlu0 %v5632
      %v5634 = vpop.xlane.xlu0 %5633
      %v5635 = vsel %vm1280, %v5016, 0.0
      %5636 = vadd.xlane.f32.xlu0 %v5635
      %v5637 = vpop.xlane.xlu0 %5636
      %v5638 = vsel %vm1280, %v5017, 0.0
      %5639 = vadd.xlane.f32.xlu0 %v5638
      %v5640 = vpop.xlane.xlu0 %5639
      %v5641 = vsel %vm1280, %v5018, 0.0
      %5642 = vadd.xlane.f32.xlu0 %v5641
      %v5643 = vpop.xlane.xlu0 %5642
      %v5644 = vsel %vm1280, %v5019, 0.0
      %5645 = vadd.xlane.f32.xlu0 %v5644
      %v5646 = vpop.xlane.xlu0 %5645
      %v5647 = vsel %vm1280, %v5020, 0.0
      %5648 = vadd.xlane.f32.xlu0 %v5647
      %v5649 = vpop.xlane.xlu0 %5648
      %v5650 = vsel %vm5061, %v5021, 0.0
      %5651 = vadd.xlane.f32.xlu0 %v5650
      %v5652 = vpop.xlane.xlu0 %5651
      %v5653 = vsel %vm1280, %v5022, 0.0
      %5654 = vadd.xlane.f32.xlu0 %v5653
      %v5655 = vpop.xlane.xlu0 %5654
      %v5656 = vsel %vm1280, %v5023, 0.0
      %5657 = vadd.xlane.f32.xlu0 %v5656
      %v5658 = vpop.xlane.xlu0 %5657
      %v5659 = vsel %vm1280, %v5024, 0.0
      %5660 = vadd.xlane.f32.xlu0 %v5659
      %v5661 = vpop.xlane.xlu0 %5660
      %v5662 = vsel %vm1280, %v5025, 0.0
      %5663 = vadd.xlane.f32.xlu0 %v5662
      %v5664 = vpop.xlane.xlu0 %5663
      %v5665 = vsel %vm1280, %v5026, 0.0
      %5666 = vadd.xlane.f32.xlu0 %v5665
      %v5667 = vpop.xlane.xlu0 %5666
      %v5668 = vsel %vm1280, %v5027, 0.0
      %5669 = vadd.xlane.f32.xlu0 %v5668
      %v5670 = vpop.xlane.xlu0 %5669
      %v5671 = vsel %vm5061, %v5028, 0.0
      %5672 = vadd.xlane.f32.xlu0 %v5671
      %v5673 = vpop.xlane.xlu0 %5672
      %v5674 = vsel %vm1280, %v5029, 0.0
      %5675 = vadd.xlane.f32.xlu0 %v5674
      %v5676 = vpop.xlane.xlu0 %5675
      %v5677 = vsel %vm1280, %v5030, 0.0
      %5678 = vadd.xlane.f32.xlu0 %v5677
      %v5679 = vpop.xlane.xlu0 %5678
      %v5680 = vsel %vm1280, %v5031, 0.0
      %5681 = vadd.xlane.f32.xlu0 %v5680
      %v5682 = vpop.xlane.xlu0 %5681
      %v5683 = vsel %vm1280, %v5032, 0.0
      %5684 = vadd.xlane.f32.xlu0 %v5683
      %v5685 = vpop.xlane.xlu0 %5684
      %v5686 = vsel %vm1280, %v5033, 0.0
      %5687 = vadd.xlane.f32.xlu0 %v5686
      %v5688 = vpop.xlane.xlu0 %5687
      %v5689 = vsel %vm1280, %v5034, 0.0
      %5690 = vadd.xlane.f32.xlu0 %v5689
      %v5691 = vpop.xlane.xlu0 %5690
      %v5692 = vsel %vm5061, %v5035, 0.0
      %5693 = vadd.xlane.f32.xlu0 %v5692
      %v5694 = vpop.xlane.xlu0 %5693
      %v5695 = vsel %vm1280, %v5036, 0.0
      %5696 = vadd.xlane.f32.xlu0 %v5695
      %v5697 = vpop.xlane.xlu0 %5696
      %v5698 = vsel %vm1280, %v5037, 0.0
      %5699 = vadd.xlane.f32.xlu0 %v5698
      %v5700 = vpop.xlane.xlu0 %5699
      %v5701 = vsel %vm1280, %v5038, 0.0
      %5702 = vadd.xlane.f32.xlu0 %v5701
      %v5703 = vpop.xlane.xlu0 %5702
      %v5704 = vsel %vm1280, %v5039, 0.0
      %5705 = vadd.xlane.f32.xlu0 %v5704
      %v5706 = vpop.xlane.xlu0 %5705
      %v5707 = vsel %vm1280, %v5040, 0.0
      %5708 = vadd.xlane.f32.xlu0 %v5707
      %v5709 = vpop.xlane.xlu0 %5708
      %v5710 = vsel %vm1280, %v5041, 0.0
      %5711 = vadd.xlane.f32.xlu0 %v5710
      %v5712 = vpop.xlane.xlu0 %5711
      %v5713 = vsel %vm5061, %v5042, 0.0
      %5714 = vadd.xlane.f32.xlu0 %v5713
      %v5715 = vpop.xlane.xlu0 %5714
      %v5716 = vld [vmem:[%s63] sm:$0x1]
      %v5718 = vlaneseq
      %v5719 = vshrl.u32 %v5718, 7
      %v5720 = vsub.s32 0, %v5719
      %v5721 = vrot.slane %v5716, %v5720
      %v5947 = vlaneseq
      %v5948 = vshrl.u32 %v5947, 7
      %v5949 = vsub.s32 %v2893, %v5948
      %v5950 = vrot.slane %v5045, %v5949
      %v5951 = vadd.s32 %v2893, 4294967288
      %v5952 = vlaneseq
      %v5953 = vshrl.u32 %v5952, 7
      %v5954 = vsub.s32 %v5951, %v5953
      %v5955 = vrot.slane %v5048, %v5954
      %vm5956 = vcmask 130112
      %v5957 = vsel %vm5956, %v5955, %v5950
      %v5958 = vadd.s32 %v2893, 4294967280
      %v5959 = vlaneseq
      %v5960 = vshrl.u32 %v5959, 7
      %v5961 = vsub.s32 %v5958, %v5960
      %v5962 = vrot.slane %v5051, %v5961
      %vm5963 = vcmask 195712
      %v5964 = vsel %vm5963, %v5962, %v5957
      %v5965 = vadd.s32 %v2893, 4294967272
      %v5966 = vlaneseq
      %v5967 = vshrl.u32 %v5966, 7
      %v5968 = vsub.s32 %v5965, %v5967
      %v5969 = vrot.slane %v5054, %v5968
      %vm5970 = vcmask 261312
      %v5971 = vsel %vm5970, %v5969, %v5964
      %v5972 = vadd.s32 %v2893, 4294967264
      %v5973 = vlaneseq
      %v5974 = vshrl.u32 %v5973, 7
      %v5975 = vsub.s32 %v5972, %v5974
      %v5976 = vrot.slane %v5057, %v5975
      %vm5977 = vcmask 326912
      %v5978 = vsel %vm5977, %v5976, %v5971
      %v5979 = vadd.s32 %v2893, 4294967256
      %v5980 = vlaneseq
      %v5981 = vshrl.u32 %v5980, 7
      %v5982 = vsub.s32 %v5979, %v5981
      %v5983 = vrot.slane %v5060, %v5982
      %vm5984 = vcmask 392512
      %v5985 = vsel %vm5984, %v5983, %v5978
      %v5986 = vadd.s32 %v2893, 4294967248
      %v5987 = vlaneseq
      %v5988 = vshrl.u32 %v5987, 7
      %v5989 = vsub.s32 %v5986, %v5988
      %v5990 = vrot.slane %v5064, %v5989
      %vm5991 = vcmask 458112
      %v5992 = vsel %vm5991, %v5990, %v5985
      %v5993 = vlaneseq
      %v5994 = vshrl.u32 %v5993, 7
      %v5995 = vsub.s32 %v2893, %v5994
      %v5996 = vrot.slane %v5067, %v5995
      %v5997 = vlaneseq
      %v5998 = vshrl.u32 %v5997, 7
      %v5999 = vsub.s32 %v5951, %v5998
      %v6000 = vrot.slane %v5070, %v5999
      %v6001 = vsel %vm5956, %v6000, %v5996
      %v6002 = vlaneseq
      %v6003 = vshrl.u32 %v6002, 7
      %v6004 = vsub.s32 %v5958, %v6003
      %v6005 = vrot.slane %v5073, %v6004
      %v6006 = vsel %vm5963, %v6005, %v6001
      %v6007 = vlaneseq
      %v6008 = vshrl.u32 %v6007, 7
      %v6009 = vsub.s32 %v5965, %v6008
      %v6010 = vrot.slane %v5076, %v6009
      %v6011 = vsel %vm5970, %v6010, %v6006
      %v6012 = vlaneseq
      %v6013 = vshrl.u32 %v6012, 7
      %v6014 = vsub.s32 %v5972, %v6013
      %v6015 = vrot.slane %v5079, %v6014
      %v6016 = vsel %vm5977, %v6015, %v6011
      %v6017 = vlaneseq
      %v6018 = vshrl.u32 %v6017, 7
      %v6019 = vsub.s32 %v5979, %v6018
      %v6020 = vrot.slane %v5082, %v6019
      %v6021 = vsel %vm5984, %v6020, %v6016
      %v6022 = vlaneseq
      %v6023 = vshrl.u32 %v6022, 7
      %v6024 = vsub.s32 %v5986, %v6023
      %v6025 = vrot.slane %v5085, %v6024
      %v6026 = vsel %vm5991, %v6025, %v6021
      %v6027 = vlaneseq
      %v6028 = vshrl.u32 %v6027, 7
      %v6029 = vsub.s32 %v2893, %v6028
      %v6030 = vrot.slane %v5088, %v6029
      %v6031 = vlaneseq
      %v6032 = vshrl.u32 %v6031, 7
      %v6033 = vsub.s32 %v5951, %v6032
      %v6034 = vrot.slane %v5091, %v6033
      %v6035 = vsel %vm5956, %v6034, %v6030
      %v6036 = vlaneseq
      %v6037 = vshrl.u32 %v6036, 7
      %v6038 = vsub.s32 %v5958, %v6037
      %v6039 = vrot.slane %v5094, %v6038
      %v6040 = vsel %vm5963, %v6039, %v6035
      %v6041 = vlaneseq
      %v6042 = vshrl.u32 %v6041, 7
      %v6043 = vsub.s32 %v5965, %v6042
      %v6044 = vrot.slane %v5097, %v6043
      %v6045 = vsel %vm5970, %v6044, %v6040
      %v6046 = vlaneseq
      %v6047 = vshrl.u32 %v6046, 7
      %v6048 = vsub.s32 %v5972, %v6047
      %v6049 = vrot.slane %v5100, %v6048
      %v6050 = vsel %vm5977, %v6049, %v6045
      %v6051 = vlaneseq
      %v6052 = vshrl.u32 %v6051, 7
      %v6053 = vsub.s32 %v5979, %v6052
      %v6054 = vrot.slane %v5103, %v6053
      %v6055 = vsel %vm5984, %v6054, %v6050
      %v6056 = vlaneseq
      %v6057 = vshrl.u32 %v6056, 7
      %v6058 = vsub.s32 %v5986, %v6057
      %v6059 = vrot.slane %v5106, %v6058
      %v6060 = vsel %vm5991, %v6059, %v6055
      %v6061 = vlaneseq
      %v6062 = vshrl.u32 %v6061, 7
      %v6063 = vsub.s32 %v2893, %v6062
      %v6064 = vrot.slane %v5109, %v6063
      %v6065 = vlaneseq
      %v6066 = vshrl.u32 %v6065, 7
      %v6067 = vsub.s32 %v5951, %v6066
      %v6068 = vrot.slane %v5112, %v6067
      %v6069 = vsel %vm5956, %v6068, %v6064
      %v6070 = vlaneseq
      %v6071 = vshrl.u32 %v6070, 7
      %v6072 = vsub.s32 %v5958, %v6071
      %v6073 = vrot.slane %v5115, %v6072
      %v6074 = vsel %vm5963, %v6073, %v6069
      %v6075 = vlaneseq
      %v6076 = vshrl.u32 %v6075, 7
      %v6077 = vsub.s32 %v5965, %v6076
      %v6078 = vrot.slane %v5118, %v6077
      %v6079 = vsel %vm5970, %v6078, %v6074
      %v6080 = vlaneseq
      %v6081 = vshrl.u32 %v6080, 7
      %v6082 = vsub.s32 %v5972, %v6081
      %v6083 = vrot.slane %v5121, %v6082
      %v6084 = vsel %vm5977, %v6083, %v6079
      %v6085 = vlaneseq
      %v6086 = vshrl.u32 %v6085, 7
      %v6087 = vsub.s32 %v5979, %v6086
      %v6088 = vrot.slane %v5124, %v6087
      %v6089 = vsel %vm5984, %v6088, %v6084
      %v6090 = vlaneseq
      %v6091 = vshrl.u32 %v6090, 7
      %v6092 = vsub.s32 %v5986, %v6091
      %v6093 = vrot.slane %v5127, %v6092
      %v6094 = vsel %vm5991, %v6093, %v6089
      %v6095 = vlaneseq
      %v6096 = vshrl.u32 %v6095, 7
      %v6097 = vsub.s32 %v2893, %v6096
      %v6098 = vrot.slane %v5130, %v6097
      %v6099 = vlaneseq
      %v6100 = vshrl.u32 %v6099, 7
      %v6101 = vsub.s32 %v5951, %v6100
      %v6102 = vrot.slane %v5133, %v6101
      %v6103 = vsel %vm5956, %v6102, %v6098
      %v6104 = vlaneseq
      %v6105 = vshrl.u32 %v6104, 7
      %v6106 = vsub.s32 %v5958, %v6105
      %v6107 = vrot.slane %v5136, %v6106
      %v6108 = vsel %vm5963, %v6107, %v6103
      %v6109 = vlaneseq
      %v6110 = vshrl.u32 %v6109, 7
      %v6111 = vsub.s32 %v5965, %v6110
      %v6112 = vrot.slane %v5139, %v6111
      %v6113 = vsel %vm5970, %v6112, %v6108
      %v6114 = vlaneseq
      %v6115 = vshrl.u32 %v6114, 7
      %v6116 = vsub.s32 %v5972, %v6115
      %v6117 = vrot.slane %v5142, %v6116
      %v6118 = vsel %vm5977, %v6117, %v6113
      %v6119 = vlaneseq
      %v6120 = vshrl.u32 %v6119, 7
      %v6121 = vsub.s32 %v5979, %v6120
      %v6122 = vrot.slane %v5145, %v6121
      %v6123 = vsel %vm5984, %v6122, %v6118
      %v6124 = vlaneseq
      %v6125 = vshrl.u32 %v6124, 7
      %v6126 = vsub.s32 %v5986, %v6125
      %v6127 = vrot.slane %v5148, %v6126
      %v6128 = vsel %vm5991, %v6127, %v6123
      %v6129 = vlaneseq
      %v6130 = vshrl.u32 %v6129, 7
      %v6131 = vsub.s32 %v2893, %v6130
      %v6132 = vrot.slane %v5151, %v6131
      %v6133 = vlaneseq
      %v6134 = vshrl.u32 %v6133, 7
      %v6135 = vsub.s32 %v5951, %v6134
      %v6136 = vrot.slane %v5154, %v6135
      %v6137 = vsel %vm5956, %v6136, %v6132
      %v6138 = vlaneseq
      %v6139 = vshrl.u32 %v6138, 7
      %v6140 = vsub.s32 %v5958, %v6139
      %v6141 = vrot.slane %v5157, %v6140
      %v6142 = vsel %vm5963, %v6141, %v6137
      %v6143 = vlaneseq
      %v6144 = vshrl.u32 %v6143, 7
      %v6145 = vsub.s32 %v5965, %v6144
      %v6146 = vrot.slane %v5160, %v6145
      %v6147 = vsel %vm5970, %v6146, %v6142
      %v6148 = vlaneseq
      %v6149 = vshrl.u32 %v6148, 7
      %v6150 = vsub.s32 %v5972, %v6149
      %v6151 = vrot.slane %v5163, %v6150
      %v6152 = vsel %vm5977, %v6151, %v6147
      %v6153 = vlaneseq
      %v6154 = vshrl.u32 %v6153, 7
      %v6155 = vsub.s32 %v5979, %v6154
      %v6156 = vrot.slane %v5166, %v6155
      %v6157 = vsel %vm5984, %v6156, %v6152
      %v6158 = vlaneseq
      %v6159 = vshrl.u32 %v6158, 7
      %v6160 = vsub.s32 %v5986, %v6159
      %v6161 = vrot.slane %v5169, %v6160
      %v6162 = vsel %vm5991, %v6161, %v6157
      %v6163 = vlaneseq
      %v6164 = vshrl.u32 %v6163, 7
      %v6165 = vsub.s32 %v2893, %v6164
      %v6166 = vrot.slane %v5172, %v6165
      %v6167 = vlaneseq
      %v6168 = vshrl.u32 %v6167, 7
      %v6169 = vsub.s32 %v5951, %v6168
      %v6170 = vrot.slane %v5175, %v6169
      %v6171 = vsel %vm5956, %v6170, %v6166
      %v6172 = vlaneseq
      %v6173 = vshrl.u32 %v6172, 7
      %v6174 = vsub.s32 %v5958, %v6173
      %v6175 = vrot.slane %v5178, %v6174
      %v6176 = vsel %vm5963, %v6175, %v6171
      %v6177 = vlaneseq
      %v6178 = vshrl.u32 %v6177, 7
      %v6179 = vsub.s32 %v5965, %v6178
      %v6180 = vrot.slane %v5181, %v6179
      %v6181 = vsel %vm5970, %v6180, %v6176
      %v6182 = vlaneseq
      %v6183 = vshrl.u32 %v6182, 7
      %v6184 = vsub.s32 %v5972, %v6183
      %v6185 = vrot.slane %v5184, %v6184
      %v6186 = vsel %vm5977, %v6185, %v6181
      %v6187 = vlaneseq
      %v6188 = vshrl.u32 %v6187, 7
      %v6189 = vsub.s32 %v5979, %v6188
      %v6190 = vrot.slane %v5187, %v6189
      %v6191 = vsel %vm5984, %v6190, %v6186
      %v6192 = vlaneseq
      %v6193 = vshrl.u32 %v6192, 7
      %v6194 = vsub.s32 %v5986, %v6193
      %v6195 = vrot.slane %v5190, %v6194
      %v6196 = vsel %vm5991, %v6195, %v6191
      %v6197 = vlaneseq
      %v6198 = vshrl.u32 %v6197, 7
      %v6199 = vsub.s32 %v2893, %v6198
      %v6200 = vrot.slane %v5193, %v6199
      %v6201 = vlaneseq
      %v6202 = vshrl.u32 %v6201, 7
      %v6203 = vsub.s32 %v5951, %v6202
      %v6204 = vrot.slane %v5196, %v6203
      %v6205 = vsel %vm5956, %v6204, %v6200
      %v6206 = vlaneseq
      %v6207 = vshrl.u32 %v6206, 7
      %v6208 = vsub.s32 %v5958, %v6207
      %v6209 = vrot.slane %v5199, %v6208
      %v6210 = vsel %vm5963, %v6209, %v6205
      %v6211 = vlaneseq
      %v6212 = vshrl.u32 %v6211, 7
      %v6213 = vsub.s32 %v5965, %v6212
      %v6214 = vrot.slane %v5202, %v6213
      %v6215 = vsel %vm5970, %v6214, %v6210
      %v6216 = vlaneseq
      %v6217 = vshrl.u32 %v6216, 7
      %v6218 = vsub.s32 %v5972, %v6217
      %v6219 = vrot.slane %v5205, %v6218
      %v6220 = vsel %vm5977, %v6219, %v6215
      %v6221 = vlaneseq
      %v6222 = vshrl.u32 %v6221, 7
      %v6223 = vsub.s32 %v5979, %v6222
      %v6224 = vrot.slane %v5208, %v6223
      %v6225 = vsel %vm5984, %v6224, %v6220
      %v6226 = vlaneseq
      %v6227 = vshrl.u32 %v6226, 7
      %v6228 = vsub.s32 %v5986, %v6227
      %v6229 = vrot.slane %v5211, %v6228
      %v6230 = vsel %vm5991, %v6229, %v6225
      %v6231 = vlaneseq
      %v6232 = vshrl.u32 %v6231, 7
      %v6233 = vsub.s32 %v2893, %v6232
      %v6234 = vrot.slane %v5214, %v6233
      %v6235 = vlaneseq
      %v6236 = vshrl.u32 %v6235, 7
      %v6237 = vsub.s32 %v5951, %v6236
      %v6238 = vrot.slane %v5217, %v6237
      %v6239 = vsel %vm5956, %v6238, %v6234
      %v6240 = vlaneseq
      %v6241 = vshrl.u32 %v6240, 7
      %v6242 = vsub.s32 %v5958, %v6241
      %v6243 = vrot.slane %v5220, %v6242
      %v6244 = vsel %vm5963, %v6243, %v6239
      %v6245 = vlaneseq
      %v6246 = vshrl.u32 %v6245, 7
      %v6247 = vsub.s32 %v5965, %v6246
      %v6248 = vrot.slane %v5223, %v6247
      %v6249 = vsel %vm5970, %v6248, %v6244
      %v6250 = vlaneseq
      %v6251 = vshrl.u32 %v6250, 7
      %v6252 = vsub.s32 %v5972, %v6251
      %v6253 = vrot.slane %v5226, %v6252
      %v6254 = vsel %vm5977, %v6253, %v6249
      %v6255 = vlaneseq
      %v6256 = vshrl.u32 %v6255, 7
      %v6257 = vsub.s32 %v5979, %v6256
      %v6258 = vrot.slane %v5229, %v6257
      %v6259 = vsel %vm5984, %v6258, %v6254
      %v6260 = vlaneseq
      %v6261 = vshrl.u32 %v6260, 7
      %v6262 = vsub.s32 %v5986, %v6261
      %v6263 = vrot.slane %v5232, %v6262
      %v6264 = vsel %vm5991, %v6263, %v6259
      %v6265 = vlaneseq
      %v6266 = vshrl.u32 %v6265, 7
      %v6267 = vsub.s32 %v2893, %v6266
      %v6268 = vrot.slane %v5235, %v6267
      %v6269 = vlaneseq
      %v6270 = vshrl.u32 %v6269, 7
      %v6271 = vsub.s32 %v5951, %v6270
      %v6272 = vrot.slane %v5238, %v6271
      %v6273 = vsel %vm5956, %v6272, %v6268
      %v6274 = vlaneseq
      %v6275 = vshrl.u32 %v6274, 7
      %v6276 = vsub.s32 %v5958, %v6275
      %v6277 = vrot.slane %v5241, %v6276
      %v6278 = vsel %vm5963, %v6277, %v6273
      %v6279 = vlaneseq
      %v6280 = vshrl.u32 %v6279, 7
      %v6281 = vsub.s32 %v5965, %v6280
      %v6282 = vrot.slane %v5244, %v6281
      %v6283 = vsel %vm5970, %v6282, %v6278
      %v6284 = vlaneseq
      %v6285 = vshrl.u32 %v6284, 7
      %v6286 = vsub.s32 %v5972, %v6285
      %v6287 = vrot.slane %v5247, %v6286
      %v6288 = vsel %vm5977, %v6287, %v6283
      %v6289 = vlaneseq
      %v6290 = vshrl.u32 %v6289, 7
      %v6291 = vsub.s32 %v5979, %v6290
      %v6292 = vrot.slane %v5250, %v6291
      %v6293 = vsel %vm5984, %v6292, %v6288
      %v6294 = vlaneseq
      %v6295 = vshrl.u32 %v6294, 7
      %v6296 = vsub.s32 %v5986, %v6295
      %v6297 = vrot.slane %v5253, %v6296
      %v6298 = vsel %vm5991, %v6297, %v6293
      %v6299 = vlaneseq
      %v6300 = vshrl.u32 %v6299, 7
      %v6301 = vsub.s32 %v2893, %v6300
      %v6302 = vrot.slane %v5256, %v6301
      %v6303 = vlaneseq
      %v6304 = vshrl.u32 %v6303, 7
      %v6305 = vsub.s32 %v5951, %v6304
      %v6306 = vrot.slane %v5259, %v6305
      %v6307 = vsel %vm5956, %v6306, %v6302
      %v6308 = vlaneseq
      %v6309 = vshrl.u32 %v6308, 7
      %v6310 = vsub.s32 %v5958, %v6309
      %v6311 = vrot.slane %v5262, %v6310
      %v6312 = vsel %vm5963, %v6311, %v6307
      %v6313 = vlaneseq
      %v6314 = vshrl.u32 %v6313, 7
      %v6315 = vsub.s32 %v5965, %v6314
      %v6316 = vrot.slane %v5265, %v6315
      %v6317 = vsel %vm5970, %v6316, %v6312
      %v6318 = vlaneseq
      %v6319 = vshrl.u32 %v6318, 7
      %v6320 = vsub.s32 %v5972, %v6319
      %v6321 = vrot.slane %v5268, %v6320
      %v6322 = vsel %vm5977, %v6321, %v6317
      %v6323 = vlaneseq
      %v6324 = vshrl.u32 %v6323, 7
      %v6325 = vsub.s32 %v5979, %v6324
      %v6326 = vrot.slane %v5271, %v6325
      %v6327 = vsel %vm5984, %v6326, %v6322
      %v6328 = vlaneseq
      %v6329 = vshrl.u32 %v6328, 7
      %v6330 = vsub.s32 %v5986, %v6329
      %v6331 = vrot.slane %v5274, %v6330
      %v6332 = vsel %vm5991, %v6331, %v6327
      %v6333 = vlaneseq
      %v6334 = vshrl.u32 %v6333, 7
      %v6335 = vsub.s32 %v2893, %v6334
      %v6336 = vrot.slane %v5277, %v6335
      %v6337 = vlaneseq
      %v6338 = vshrl.u32 %v6337, 7
      %v6339 = vsub.s32 %v5951, %v6338
      %v6340 = vrot.slane %v5280, %v6339
      %v6341 = vsel %vm5956, %v6340, %v6336
      %v6342 = vlaneseq
      %v6343 = vshrl.u32 %v6342, 7
      %v6344 = vsub.s32 %v5958, %v6343
      %v6345 = vrot.slane %v5283, %v6344
      %v6346 = vsel %vm5963, %v6345, %v6341
      %v6347 = vlaneseq
      %v6348 = vshrl.u32 %v6347, 7
      %v6349 = vsub.s32 %v5965, %v6348
      %v6350 = vrot.slane %v5286, %v6349
      %v6351 = vsel %vm5970, %v6350, %v6346
      %v6352 = vlaneseq
      %v6353 = vshrl.u32 %v6352, 7
      %v6354 = vsub.s32 %v5972, %v6353
      %v6355 = vrot.slane %v5289, %v6354
      %v6356 = vsel %vm5977, %v6355, %v6351
      %v6357 = vlaneseq
      %v6358 = vshrl.u32 %v6357, 7
      %v6359 = vsub.s32 %v5979, %v6358
      %v6360 = vrot.slane %v5292, %v6359
      %v6361 = vsel %vm5984, %v6360, %v6356
      %v6362 = vlaneseq
      %v6363 = vshrl.u32 %v6362, 7
      %v6364 = vsub.s32 %v5986, %v6363
      %v6365 = vrot.slane %v5295, %v6364
      %v6366 = vsel %vm5991, %v6365, %v6361
      %v6367 = vlaneseq
      %v6368 = vshrl.u32 %v6367, 7
      %v6369 = vsub.s32 %v2893, %v6368
      %v6370 = vrot.slane %v5298, %v6369
      %v6371 = vlaneseq
      %v6372 = vshrl.u32 %v6371, 7
      %v6373 = vsub.s32 %v5951, %v6372
      %v6374 = vrot.slane %v5301, %v6373
      %v6375 = vsel %vm5956, %v6374, %v6370
      %v6376 = vlaneseq
      %v6377 = vshrl.u32 %v6376, 7
      %v6378 = vsub.s32 %v5958, %v6377
      %v6379 = vrot.slane %v5304, %v6378
      %v6380 = vsel %vm5963, %v6379, %v6375
      %v6381 = vlaneseq
      %v6382 = vshrl.u32 %v6381, 7
      %v6383 = vsub.s32 %v5965, %v6382
      %v6384 = vrot.slane %v5307, %v6383
      %v6385 = vsel %vm5970, %v6384, %v6380
      %v6386 = vlaneseq
      %v6387 = vshrl.u32 %v6386, 7
      %v6388 = vsub.s32 %v5972, %v6387
      %v6389 = vrot.slane %v5310, %v6388
      %v6390 = vsel %vm5977, %v6389, %v6385
      %v6391 = vlaneseq
      %v6392 = vshrl.u32 %v6391, 7
      %v6393 = vsub.s32 %v5979, %v6392
      %v6394 = vrot.slane %v5313, %v6393
      %v6395 = vsel %vm5984, %v6394, %v6390
      %v6396 = vlaneseq
      %v6397 = vshrl.u32 %v6396, 7
      %v6398 = vsub.s32 %v5986, %v6397
      %v6399 = vrot.slane %v5316, %v6398
      %v6400 = vsel %vm5991, %v6399, %v6395
      %v6401 = vlaneseq
      %v6402 = vshrl.u32 %v6401, 7
      %v6403 = vsub.s32 %v2893, %v6402
      %v6404 = vrot.slane %v5319, %v6403
      %v6405 = vlaneseq
      %v6406 = vshrl.u32 %v6405, 7
      %v6407 = vsub.s32 %v5951, %v6406
      %v6408 = vrot.slane %v5322, %v6407
      %v6409 = vsel %vm5956, %v6408, %v6404
      %v6410 = vlaneseq
      %v6411 = vshrl.u32 %v6410, 7
      %v6412 = vsub.s32 %v5958, %v6411
      %v6413 = vrot.slane %v5325, %v6412
      %v6414 = vsel %vm5963, %v6413, %v6409
      %v6415 = vlaneseq
      %v6416 = vshrl.u32 %v6415, 7
      %v6417 = vsub.s32 %v5965, %v6416
      %v6418 = vrot.slane %v5328, %v6417
      %v6419 = vsel %vm5970, %v6418, %v6414
      %v6420 = vlaneseq
      %v6421 = vshrl.u32 %v6420, 7
      %v6422 = vsub.s32 %v5972, %v6421
      %v6423 = vrot.slane %v5331, %v6422
      %v6424 = vsel %vm5977, %v6423, %v6419
      %v6425 = vlaneseq
      %v6426 = vshrl.u32 %v6425, 7
      %v6427 = vsub.s32 %v5979, %v6426
      %v6428 = vrot.slane %v5334, %v6427
      %v6429 = vsel %vm5984, %v6428, %v6424
      %v6430 = vlaneseq
      %v6431 = vshrl.u32 %v6430, 7
      %v6432 = vsub.s32 %v5986, %v6431
      %v6433 = vrot.slane %v5337, %v6432
      %v6434 = vsel %vm5991, %v6433, %v6429
      %v6435 = vlaneseq
      %v6436 = vshrl.u32 %v6435, 7
      %v6437 = vsub.s32 %v2893, %v6436
      %v6438 = vrot.slane %v5340, %v6437
      %v6439 = vlaneseq
      %v6440 = vshrl.u32 %v6439, 7
      %v6441 = vsub.s32 %v5951, %v6440
      %v6442 = vrot.slane %v5343, %v6441
      %v6443 = vsel %vm5956, %v6442, %v6438
      %v6444 = vlaneseq
      %v6445 = vshrl.u32 %v6444, 7
      %v6446 = vsub.s32 %v5958, %v6445
      %v6447 = vrot.slane %v5346, %v6446
      %v6448 = vsel %vm5963, %v6447, %v6443
      %v6449 = vlaneseq
      %v6450 = vshrl.u32 %v6449, 7
      %v6451 = vsub.s32 %v5965, %v6450
      %v6452 = vrot.slane %v5349, %v6451
      %v6453 = vsel %vm5970, %v6452, %v6448
      %v6454 = vlaneseq
      %v6455 = vshrl.u32 %v6454, 7
      %v6456 = vsub.s32 %v5972, %v6455
      %v6457 = vrot.slane %v5352, %v6456
      %v6458 = vsel %vm5977, %v6457, %v6453
      %v6459 = vlaneseq
      %v6460 = vshrl.u32 %v6459, 7
      %v6461 = vsub.s32 %v5979, %v6460
      %v6462 = vrot.slane %v5355, %v6461
      %v6463 = vsel %vm5984, %v6462, %v6458
      %v6464 = vlaneseq
      %v6465 = vshrl.u32 %v6464, 7
      %v6466 = vsub.s32 %v5986, %v6465
      %v6467 = vrot.slane %v5358, %v6466
      %v6468 = vsel %vm5991, %v6467, %v6463
      %v6469 = vlaneseq
      %v6470 = vshrl.u32 %v6469, 7
      %v6471 = vsub.s32 %v2893, %v6470
      %v6472 = vrot.slane %v5361, %v6471
      %v6473 = vlaneseq
      %v6474 = vshrl.u32 %v6473, 7
      %v6475 = vsub.s32 %v5951, %v6474
      %v6476 = vrot.slane %v5364, %v6475
      %v6477 = vsel %vm5956, %v6476, %v6472
      %v6478 = vlaneseq
      %v6479 = vshrl.u32 %v6478, 7
      %v6480 = vsub.s32 %v5958, %v6479
      %v6481 = vrot.slane %v5367, %v6480
      %v6482 = vsel %vm5963, %v6481, %v6477
      %v6483 = vlaneseq
      %v6484 = vshrl.u32 %v6483, 7
      %v6485 = vsub.s32 %v5965, %v6484
      %v6486 = vrot.slane %v5370, %v6485
      %v6487 = vsel %vm5970, %v6486, %v6482
      %v6488 = vlaneseq
      %v6489 = vshrl.u32 %v6488, 7
      %v6490 = vsub.s32 %v5972, %v6489
      %v6491 = vrot.slane %v5373, %v6490
      %v6492 = vsel %vm5977, %v6491, %v6487
      %v6493 = vlaneseq
      %v6494 = vshrl.u32 %v6493, 7
      %v6495 = vsub.s32 %v5979, %v6494
      %v6496 = vrot.slane %v5376, %v6495
      %v6497 = vsel %vm5984, %v6496, %v6492
      %v6498 = vlaneseq
      %v6499 = vshrl.u32 %v6498, 7
      %v6500 = vsub.s32 %v5986, %v6499
      %v6501 = vrot.slane %v5379, %v6500
      %v6502 = vsel %vm5991, %v6501, %v6497
      %v6503 = vlaneseq
      %v6504 = vshrl.u32 %v6503, 7
      %v6505 = vsub.s32 %v2893, %v6504
      %v6506 = vrot.slane %v5382, %v6505
      %v6507 = vlaneseq
      %v6508 = vshrl.u32 %v6507, 7
      %v6509 = vsub.s32 %v5951, %v6508
      %v6510 = vrot.slane %v5385, %v6509
      %v6511 = vsel %vm5956, %v6510, %v6506
      %v6512 = vlaneseq
      %v6513 = vshrl.u32 %v6512, 7
      %v6514 = vsub.s32 %v5958, %v6513
      %v6515 = vrot.slane %v5388, %v6514
      %v6516 = vsel %vm5963, %v6515, %v6511
      %v6517 = vlaneseq
      %v6518 = vshrl.u32 %v6517, 7
      %v6519 = vsub.s32 %v5965, %v6518
      %v6520 = vrot.slane %v5391, %v6519
      %v6521 = vsel %vm5970, %v6520, %v6516
      %v6522 = vlaneseq
      %v6523 = vshrl.u32 %v6522, 7
      %v6524 = vsub.s32 %v5972, %v6523
      %v6525 = vrot.slane %v5394, %v6524
      %v6526 = vsel %vm5977, %v6525, %v6521
      %v6527 = vlaneseq
      %v6528 = vshrl.u32 %v6527, 7
      %v6529 = vsub.s32 %v5979, %v6528
      %v6530 = vrot.slane %v5397, %v6529
      %v6531 = vsel %vm5984, %v6530, %v6526
      %v6532 = vlaneseq
      %v6533 = vshrl.u32 %v6532, 7
      %v6534 = vsub.s32 %v5986, %v6533
      %v6535 = vrot.slane %v5400, %v6534
      %v6536 = vsel %vm5991, %v6535, %v6531
      %v6537 = vlaneseq
      %v6538 = vshrl.u32 %v6537, 7
      %v6539 = vsub.s32 %v2893, %v6538
      %v6540 = vrot.slane %v5403, %v6539
      %v6541 = vlaneseq
      %v6542 = vshrl.u32 %v6541, 7
      %v6543 = vsub.s32 %v5951, %v6542
      %v6544 = vrot.slane %v5406, %v6543
      %v6545 = vsel %vm5956, %v6544, %v6540
      %v6546 = vlaneseq
      %v6547 = vshrl.u32 %v6546, 7
      %v6548 = vsub.s32 %v5958, %v6547
      %v6549 = vrot.slane %v5409, %v6548
      %v6550 = vsel %vm5963, %v6549, %v6545
      %v6551 = vlaneseq
      %v6552 = vshrl.u32 %v6551, 7
      %v6553 = vsub.s32 %v5965, %v6552
      %v6554 = vrot.slane %v5412, %v6553
      %v6555 = vsel %vm5970, %v6554, %v6550
      %v6556 = vlaneseq
      %v6557 = vshrl.u32 %v6556, 7
      %v6558 = vsub.s32 %v5972, %v6557
      %v6559 = vrot.slane %v5415, %v6558
      %v6560 = vsel %vm5977, %v6559, %v6555
      %v6561 = vlaneseq
      %v6562 = vshrl.u32 %v6561, 7
      %v6563 = vsub.s32 %v5979, %v6562
      %v6564 = vrot.slane %v5418, %v6563
      %v6565 = vsel %vm5984, %v6564, %v6560
      %v6566 = vlaneseq
      %v6567 = vshrl.u32 %v6566, 7
      %v6568 = vsub.s32 %v5986, %v6567
      %v6569 = vrot.slane %v5421, %v6568
      %v6570 = vsel %vm5991, %v6569, %v6565
      %v6571 = vlaneseq
      %v6572 = vshrl.u32 %v6571, 7
      %v6573 = vsub.s32 %v2893, %v6572
      %v6574 = vrot.slane %v5424, %v6573
      %v6575 = vlaneseq
      %v6576 = vshrl.u32 %v6575, 7
      %v6577 = vsub.s32 %v5951, %v6576
      %v6578 = vrot.slane %v5427, %v6577
      %v6579 = vsel %vm5956, %v6578, %v6574
      %v6580 = vlaneseq
      %v6581 = vshrl.u32 %v6580, 7
      %v6582 = vsub.s32 %v5958, %v6581
      %v6583 = vrot.slane %v5430, %v6582
      %v6584 = vsel %vm5963, %v6583, %v6579
      %v6585 = vlaneseq
      %v6586 = vshrl.u32 %v6585, 7
      %v6587 = vsub.s32 %v5965, %v6586
      %v6588 = vrot.slane %v5433, %v6587
      %v6589 = vsel %vm5970, %v6588, %v6584
      %v6590 = vlaneseq
      %v6591 = vshrl.u32 %v6590, 7
      %v6592 = vsub.s32 %v5972, %v6591
      %v6593 = vrot.slane %v5436, %v6592
      %v6594 = vsel %vm5977, %v6593, %v6589
      %v6595 = vlaneseq
      %v6596 = vshrl.u32 %v6595, 7
      %v6597 = vsub.s32 %v5979, %v6596
      %v6598 = vrot.slane %v5439, %v6597
      %v6599 = vsel %vm5984, %v6598, %v6594
      %v6600 = vlaneseq
      %v6601 = vshrl.u32 %v6600, 7
      %v6602 = vsub.s32 %v5986, %v6601
      %v6603 = vrot.slane %v5442, %v6602
      %v6604 = vsel %vm5991, %v6603, %v6599
      %v6605 = vlaneseq
      %v6606 = vshrl.u32 %v6605, 7
      %v6607 = vsub.s32 %v2893, %v6606
      %v6608 = vrot.slane %v5445, %v6607
      %v6609 = vlaneseq
      %v6610 = vshrl.u32 %v6609, 7
      %v6611 = vsub.s32 %v5951, %v6610
      %v6612 = vrot.slane %v5448, %v6611
      %v6613 = vsel %vm5956, %v6612, %v6608
      %v6614 = vlaneseq
      %v6615 = vshrl.u32 %v6614, 7
      %v6616 = vsub.s32 %v5958, %v6615
      %v6617 = vrot.slane %v5451, %v6616
      %v6618 = vsel %vm5963, %v6617, %v6613
      %v6619 = vlaneseq
      %v6620 = vshrl.u32 %v6619, 7
      %v6621 = vsub.s32 %v5965, %v6620
      %v6622 = vrot.slane %v5454, %v6621
      %v6623 = vsel %vm5970, %v6622, %v6618
      %v6624 = vlaneseq
      %v6625 = vshrl.u32 %v6624, 7
      %v6626 = vsub.s32 %v5972, %v6625
      %v6627 = vrot.slane %v5457, %v6626
      %v6628 = vsel %vm5977, %v6627, %v6623
      %v6629 = vlaneseq
      %v6630 = vshrl.u32 %v6629, 7
      %v6631 = vsub.s32 %v5979, %v6630
      %v6632 = vrot.slane %v5460, %v6631
      %v6633 = vsel %vm5984, %v6632, %v6628
      %v6634 = vlaneseq
      %v6635 = vshrl.u32 %v6634, 7
      %v6636 = vsub.s32 %v5986, %v6635
      %v6637 = vrot.slane %v5463, %v6636
      %v6638 = vsel %vm5991, %v6637, %v6633
      %v6639 = vlaneseq
      %v6640 = vshrl.u32 %v6639, 7
      %v6641 = vsub.s32 %v2893, %v6640
      %v6642 = vrot.slane %v5466, %v6641
      %v6643 = vlaneseq
      %v6644 = vshrl.u32 %v6643, 7
      %v6645 = vsub.s32 %v5951, %v6644
      %v6646 = vrot.slane %v5469, %v6645
      %v6647 = vsel %vm5956, %v6646, %v6642
      %v6648 = vlaneseq
      %v6649 = vshrl.u32 %v6648, 7
      %v6650 = vsub.s32 %v5958, %v6649
      %v6651 = vrot.slane %v5472, %v6650
      %v6652 = vsel %vm5963, %v6651, %v6647
      %v6653 = vlaneseq
      %v6654 = vshrl.u32 %v6653, 7
      %v6655 = vsub.s32 %v5965, %v6654
      %v6656 = vrot.slane %v5475, %v6655
      %v6657 = vsel %vm5970, %v6656, %v6652
      %v6658 = vlaneseq
      %v6659 = vshrl.u32 %v6658, 7
      %v6660 = vsub.s32 %v5972, %v6659
      %v6661 = vrot.slane %v5478, %v6660
      %v6662 = vsel %vm5977, %v6661, %v6657
      %v6663 = vlaneseq
      %v6664 = vshrl.u32 %v6663, 7
      %v6665 = vsub.s32 %v5979, %v6664
      %v6666 = vrot.slane %v5481, %v6665
      %v6667 = vsel %vm5984, %v6666, %v6662
      %v6668 = vlaneseq
      %v6669 = vshrl.u32 %v6668, 7
      %v6670 = vsub.s32 %v5986, %v6669
      %v6671 = vrot.slane %v5484, %v6670
      %v6672 = vsel %vm5991, %v6671, %v6667
      %v6673 = vlaneseq
      %v6674 = vshrl.u32 %v6673, 7
      %v6675 = vsub.s32 %v2893, %v6674
      %v6676 = vrot.slane %v5487, %v6675
      %v6677 = vlaneseq
      %v6678 = vshrl.u32 %v6677, 7
      %v6679 = vsub.s32 %v5951, %v6678
      %v6680 = vrot.slane %v5490, %v6679
      %v6681 = vsel %vm5956, %v6680, %v6676
      %v6682 = vlaneseq
      %v6683 = vshrl.u32 %v6682, 7
      %v6684 = vsub.s32 %v5958, %v6683
      %v6685 = vrot.slane %v5493, %v6684
      %v6686 = vsel %vm5963, %v6685, %v6681
      %v6687 = vlaneseq
      %v6688 = vshrl.u32 %v6687, 7
      %v6689 = vsub.s32 %v5965, %v6688
      %v6690 = vrot.slane %v5496, %v6689
      %v6691 = vsel %vm5970, %v6690, %v6686
      %v6692 = vlaneseq
      %v6693 = vshrl.u32 %v6692, 7
      %v6694 = vsub.s32 %v5972, %v6693
      %v6695 = vrot.slane %v5499, %v6694
      %v6696 = vsel %vm5977, %v6695, %v6691
      %v6697 = vlaneseq
      %v6698 = vshrl.u32 %v6697, 7
      %v6699 = vsub.s32 %v5979, %v6698
      %v6700 = vrot.slane %v5502, %v6699
      %v6701 = vsel %vm5984, %v6700, %v6696
      %v6702 = vlaneseq
      %v6703 = vshrl.u32 %v6702, 7
      %v6704 = vsub.s32 %v5986, %v6703
      %v6705 = vrot.slane %v5505, %v6704
      %v6706 = vsel %vm5991, %v6705, %v6701
      %v6707 = vlaneseq
      %v6708 = vshrl.u32 %v6707, 7
      %v6709 = vsub.s32 %v2893, %v6708
      %v6710 = vrot.slane %v5508, %v6709
      %v6711 = vlaneseq
      %v6712 = vshrl.u32 %v6711, 7
      %v6713 = vsub.s32 %v5951, %v6712
      %v6714 = vrot.slane %v5511, %v6713
      %v6715 = vsel %vm5956, %v6714, %v6710
      %v6716 = vlaneseq
      %v6717 = vshrl.u32 %v6716, 7
      %v6718 = vsub.s32 %v5958, %v6717
      %v6719 = vrot.slane %v5514, %v6718
      %v6720 = vsel %vm5963, %v6719, %v6715
      %v6721 = vlaneseq
      %v6722 = vshrl.u32 %v6721, 7
      %v6723 = vsub.s32 %v5965, %v6722
      %v6724 = vrot.slane %v5517, %v6723
      %v6725 = vsel %vm5970, %v6724, %v6720
      %v6726 = vlaneseq
      %v6727 = vshrl.u32 %v6726, 7
      %v6728 = vsub.s32 %v5972, %v6727
      %v6729 = vrot.slane %v5520, %v6728
      %v6730 = vsel %vm5977, %v6729, %v6725
      %v6731 = vlaneseq
      %v6732 = vshrl.u32 %v6731, 7
      %v6733 = vsub.s32 %v5979, %v6732
      %v6734 = vrot.slane %v5523, %v6733
      %v6735 = vsel %vm5984, %v6734, %v6730
      %v6736 = vlaneseq
      %v6737 = vshrl.u32 %v6736, 7
      %v6738 = vsub.s32 %v5986, %v6737
      %v6739 = vrot.slane %v5526, %v6738
      %v6740 = vsel %vm5991, %v6739, %v6735
      %v6741 = vlaneseq
      %v6742 = vshrl.u32 %v6741, 7
      %v6743 = vsub.s32 %v2893, %v6742
      %v6744 = vrot.slane %v5529, %v6743
      %v6745 = vlaneseq
      %v6746 = vshrl.u32 %v6745, 7
      %v6747 = vsub.s32 %v5951, %v6746
      %v6748 = vrot.slane %v5532, %v6747
      %v6749 = vsel %vm5956, %v6748, %v6744
      %v6750 = vlaneseq
      %v6751 = vshrl.u32 %v6750, 7
      %v6752 = vsub.s32 %v5958, %v6751
      %v6753 = vrot.slane %v5535, %v6752
      %v6754 = vsel %vm5963, %v6753, %v6749
      %v6755 = vlaneseq
      %v6756 = vshrl.u32 %v6755, 7
      %v6757 = vsub.s32 %v5965, %v6756
      %v6758 = vrot.slane %v5538, %v6757
      %v6759 = vsel %vm5970, %v6758, %v6754
      %v6760 = vlaneseq
      %v6761 = vshrl.u32 %v6760, 7
      %v6762 = vsub.s32 %v5972, %v6761
      %v6763 = vrot.slane %v5541, %v6762
      %v6764 = vsel %vm5977, %v6763, %v6759
      %v6765 = vlaneseq
      %v6766 = vshrl.u32 %v6765, 7
      %v6767 = vsub.s32 %v5979, %v6766
      %v6768 = vrot.slane %v5544, %v6767
      %v6769 = vsel %vm5984, %v6768, %v6764
      %v6770 = vlaneseq
      %v6771 = vshrl.u32 %v6770, 7
      %v6772 = vsub.s32 %v5986, %v6771
      %v6773 = vrot.slane %v5547, %v6772
      %v6774 = vsel %vm5991, %v6773, %v6769
      %v6775 = vlaneseq
      %v6776 = vshrl.u32 %v6775, 7
      %v6777 = vsub.s32 %v2893, %v6776
      %v6778 = vrot.slane %v5550, %v6777
      %v6779 = vlaneseq
      %v6780 = vshrl.u32 %v6779, 7
      %v6781 = vsub.s32 %v5951, %v6780
      %v6782 = vrot.slane %v5553, %v6781
      %v6783 = vsel %vm5956, %v6782, %v6778
      %v6784 = vlaneseq
      %v6785 = vshrl.u32 %v6784, 7
      %v6786 = vsub.s32 %v5958, %v6785
      %v6787 = vrot.slane %v5556, %v6786
      %v6788 = vsel %vm5963, %v6787, %v6783
      %v6789 = vlaneseq
      %v6790 = vshrl.u32 %v6789, 7
      %v6791 = vsub.s32 %v5965, %v6790
      %v6792 = vrot.slane %v5559, %v6791
      %v6793 = vsel %vm5970, %v6792, %v6788
      %v6794 = vlaneseq
      %v6795 = vshrl.u32 %v6794, 7
      %v6796 = vsub.s32 %v5972, %v6795
      %v6797 = vrot.slane %v5562, %v6796
      %v6798 = vsel %vm5977, %v6797, %v6793
      %v6799 = vlaneseq
      %v6800 = vshrl.u32 %v6799, 7
      %v6801 = vsub.s32 %v5979, %v6800
      %v6802 = vrot.slane %v5565, %v6801
      %v6803 = vsel %vm5984, %v6802, %v6798
      %v6804 = vlaneseq
      %v6805 = vshrl.u32 %v6804, 7
      %v6806 = vsub.s32 %v5986, %v6805
      %v6807 = vrot.slane %v5568, %v6806
      %v6808 = vsel %vm5991, %v6807, %v6803
      %v6809 = vlaneseq
      %v6810 = vshrl.u32 %v6809, 7
      %v6811 = vsub.s32 %v2893, %v6810
      %v6812 = vrot.slane %v5571, %v6811
      %v6813 = vlaneseq
      %v6814 = vshrl.u32 %v6813, 7
      %v6815 = vsub.s32 %v5951, %v6814
      %v6816 = vrot.slane %v5574, %v6815
      %v6817 = vsel %vm5956, %v6816, %v6812
      %v6818 = vlaneseq
      %v6819 = vshrl.u32 %v6818, 7
      %v6820 = vsub.s32 %v5958, %v6819
      %v6821 = vrot.slane %v5577, %v6820
      %v6822 = vsel %vm5963, %v6821, %v6817
      %v6823 = vlaneseq
      %v6824 = vshrl.u32 %v6823, 7
      %v6825 = vsub.s32 %v5965, %v6824
      %v6826 = vrot.slane %v5580, %v6825
      %v6827 = vsel %vm5970, %v6826, %v6822
      %v6828 = vlaneseq
      %v6829 = vshrl.u32 %v6828, 7
      %v6830 = vsub.s32 %v5972, %v6829
      %v6831 = vrot.slane %v5583, %v6830
      %v6832 = vsel %vm5977, %v6831, %v6827
      %v6833 = vlaneseq
      %v6834 = vshrl.u32 %v6833, 7
      %v6835 = vsub.s32 %v5979, %v6834
      %v6836 = vrot.slane %v5586, %v6835
      %v6837 = vsel %vm5984, %v6836, %v6832
      %v6838 = vlaneseq
      %v6839 = vshrl.u32 %v6838, 7
      %v6840 = vsub.s32 %v5986, %v6839
      %v6841 = vrot.slane %v5589, %v6840
      %v6842 = vsel %vm5991, %v6841, %v6837
      %v6843 = vlaneseq
      %v6844 = vshrl.u32 %v6843, 7
      %v6845 = vsub.s32 %v2893, %v6844
      %v6846 = vrot.slane %v5592, %v6845
      %v6847 = vlaneseq
      %v6848 = vshrl.u32 %v6847, 7
      %v6849 = vsub.s32 %v5951, %v6848
      %v6850 = vrot.slane %v5595, %v6849
      %v6851 = vsel %vm5956, %v6850, %v6846
      %v6852 = vlaneseq
      %v6853 = vshrl.u32 %v6852, 7
      %v6854 = vsub.s32 %v5958, %v6853
      %v6855 = vrot.slane %v5598, %v6854
      %v6856 = vsel %vm5963, %v6855, %v6851
      %v6857 = vlaneseq
      %v6858 = vshrl.u32 %v6857, 7
      %v6859 = vsub.s32 %v5965, %v6858
      %v6860 = vrot.slane %v5601, %v6859
      %v6861 = vsel %vm5970, %v6860, %v6856
      %v6862 = vlaneseq
      %v6863 = vshrl.u32 %v6862, 7
      %v6864 = vsub.s32 %v5972, %v6863
      %v6865 = vrot.slane %v5604, %v6864
      %v6866 = vsel %vm5977, %v6865, %v6861
      %v6867 = vlaneseq
      %v6868 = vshrl.u32 %v6867, 7
      %v6869 = vsub.s32 %v5979, %v6868
      %v6870 = vrot.slane %v5607, %v6869
      %v6871 = vsel %vm5984, %v6870, %v6866
      %v6872 = vlaneseq
      %v6873 = vshrl.u32 %v6872, 7
      %v6874 = vsub.s32 %v5986, %v6873
      %v6875 = vrot.slane %v5610, %v6874
      %v6876 = vsel %vm5991, %v6875, %v6871
      %v6877 = vlaneseq
      %v6878 = vshrl.u32 %v6877, 7
      %v6879 = vsub.s32 %v2893, %v6878
      %v6880 = vrot.slane %v5613, %v6879
      %v6881 = vlaneseq
      %v6882 = vshrl.u32 %v6881, 7
      %v6883 = vsub.s32 %v5951, %v6882
      %v6884 = vrot.slane %v5616, %v6883
      %v6885 = vsel %vm5956, %v6884, %v6880
      %v6886 = vlaneseq
      %v6887 = vshrl.u32 %v6886, 7
      %v6888 = vsub.s32 %v5958, %v6887
      %v6889 = vrot.slane %v5619, %v6888
      %v6890 = vsel %vm5963, %v6889, %v6885
      %v6891 = vlaneseq
      %v6892 = vshrl.u32 %v6891, 7
      %v6893 = vsub.s32 %v5965, %v6892
      %v6894 = vrot.slane %v5622, %v6893
      %v6895 = vsel %vm5970, %v6894, %v6890
      %v6896 = vlaneseq
      %v6897 = vshrl.u32 %v6896, 7
      %v6898 = vsub.s32 %v5972, %v6897
      %v6899 = vrot.slane %v5625, %v6898
      %v6900 = vsel %vm5977, %v6899, %v6895
      %v6901 = vlaneseq
      %v6902 = vshrl.u32 %v6901, 7
      %v6903 = vsub.s32 %v5979, %v6902
      %v6904 = vrot.slane %v5628, %v6903
      %v6905 = vsel %vm5984, %v6904, %v6900
      %v6906 = vlaneseq
      %v6907 = vshrl.u32 %v6906, 7
      %v6908 = vsub.s32 %v5986, %v6907
      %v6909 = vrot.slane %v5631, %v6908
      %v6910 = vsel %vm5991, %v6909, %v6905
      %v6911 = vlaneseq
      %v6912 = vshrl.u32 %v6911, 7
      %v6913 = vsub.s32 %v2893, %v6912
      %v6914 = vrot.slane %v5634, %v6913
      %v6915 = vlaneseq
      %v6916 = vshrl.u32 %v6915, 7
      %v6917 = vsub.s32 %v5951, %v6916
      %v6918 = vrot.slane %v5637, %v6917
      %v6919 = vsel %vm5956, %v6918, %v6914
      %v6920 = vlaneseq
      %v6921 = vshrl.u32 %v6920, 7
      %v6922 = vsub.s32 %v5958, %v6921
      %v6923 = vrot.slane %v5640, %v6922
      %v6924 = vsel %vm5963, %v6923, %v6919
      %v6925 = vlaneseq
      %v6926 = vshrl.u32 %v6925, 7
      %v6927 = vsub.s32 %v5965, %v6926
      %v6928 = vrot.slane %v5643, %v6927
      %v6929 = vsel %vm5970, %v6928, %v6924
      %v6930 = vlaneseq
      %v6931 = vshrl.u32 %v6930, 7
      %v6932 = vsub.s32 %v5972, %v6931
      %v6933 = vrot.slane %v5646, %v6932
      %v6934 = vsel %vm5977, %v6933, %v6929
      %v6935 = vlaneseq
      %v6936 = vshrl.u32 %v6935, 7
      %v6937 = vsub.s32 %v5979, %v6936
      %v6938 = vrot.slane %v5649, %v6937
      %v6939 = vsel %vm5984, %v6938, %v6934
      %v6940 = vlaneseq
      %v6941 = vshrl.u32 %v6940, 7
      %v6942 = vsub.s32 %v5986, %v6941
      %v6943 = vrot.slane %v5652, %v6942
      %v6944 = vsel %vm5991, %v6943, %v6939
      %v6945 = vlaneseq
      %v6946 = vshrl.u32 %v6945, 7
      %v6947 = vsub.s32 %v2893, %v6946
      %v6948 = vrot.slane %v5655, %v6947
      %v6949 = vlaneseq
      %v6950 = vshrl.u32 %v6949, 7
      %v6951 = vsub.s32 %v5951, %v6950
      %v6952 = vrot.slane %v5658, %v6951
      %v6953 = vsel %vm5956, %v6952, %v6948
      %v6954 = vlaneseq
      %v6955 = vshrl.u32 %v6954, 7
      %v6956 = vsub.s32 %v5958, %v6955
      %v6957 = vrot.slane %v5661, %v6956
      %v6958 = vsel %vm5963, %v6957, %v6953
      %v6959 = vlaneseq
      %v6960 = vshrl.u32 %v6959, 7
      %v6961 = vsub.s32 %v5965, %v6960
      %v6962 = vrot.slane %v5664, %v6961
      %v6963 = vsel %vm5970, %v6962, %v6958
      %v6964 = vlaneseq
      %v6965 = vshrl.u32 %v6964, 7
      %v6966 = vsub.s32 %v5972, %v6965
      %v6967 = vrot.slane %v5667, %v6966
      %v6968 = vsel %vm5977, %v6967, %v6963
      %v6969 = vlaneseq
      %v6970 = vshrl.u32 %v6969, 7
      %v6971 = vsub.s32 %v5979, %v6970
      %v6972 = vrot.slane %v5670, %v6971
      %v6973 = vsel %vm5984, %v6972, %v6968
      %v6974 = vlaneseq
      %v6975 = vshrl.u32 %v6974, 7
      %v6976 = vsub.s32 %v5986, %v6975
      %v6977 = vrot.slane %v5673, %v6976
      %v6978 = vsel %vm5991, %v6977, %v6973
      %v6979 = vlaneseq
      %v6980 = vshrl.u32 %v6979, 7
      %v6981 = vsub.s32 %v2893, %v6980
      %v6982 = vrot.slane %v5676, %v6981
      %v6983 = vlaneseq
      %v6984 = vshrl.u32 %v6983, 7
      %v6985 = vsub.s32 %v5951, %v6984
      %v6986 = vrot.slane %v5679, %v6985
      %v6987 = vsel %vm5956, %v6986, %v6982
      %v6988 = vlaneseq
      %v6989 = vshrl.u32 %v6988, 7
      %v6990 = vsub.s32 %v5958, %v6989
      %v6991 = vrot.slane %v5682, %v6990
      %v6992 = vsel %vm5963, %v6991, %v6987
      %v6993 = vlaneseq
      %v6994 = vshrl.u32 %v6993, 7
      %v6995 = vsub.s32 %v5965, %v6994
      %v6996 = vrot.slane %v5685, %v6995
      %v6997 = vsel %vm5970, %v6996, %v6992
      %v6998 = vlaneseq
      %v6999 = vshrl.u32 %v6998, 7
      %v7000 = vsub.s32 %v5972, %v6999
      %v7001 = vrot.slane %v5688, %v7000
      %v7002 = vsel %vm5977, %v7001, %v6997
      %v7003 = vlaneseq
      %v7004 = vshrl.u32 %v7003, 7
      %v7005 = vsub.s32 %v5979, %v7004
      %v7006 = vrot.slane %v5691, %v7005
      %v7007 = vsel %vm5984, %v7006, %v7002
      %v7008 = vlaneseq
      %v7009 = vshrl.u32 %v7008, 7
      %v7010 = vsub.s32 %v5986, %v7009
      %v7011 = vrot.slane %v5694, %v7010
      %v7012 = vsel %vm5991, %v7011, %v7007
      %v7013 = vlaneseq
      %v7014 = vshrl.u32 %v7013, 7
      %v7015 = vsub.s32 %v2893, %v7014
      %v7016 = vrot.slane %v5697, %v7015
      %v7017 = vlaneseq
      %v7018 = vshrl.u32 %v7017, 7
      %v7019 = vsub.s32 %v5951, %v7018
      %v7020 = vrot.slane %v5700, %v7019
      %v7021 = vsel %vm5956, %v7020, %v7016
      %v7022 = vlaneseq
      %v7023 = vshrl.u32 %v7022, 7
      %v7024 = vsub.s32 %v5958, %v7023
      %v7025 = vrot.slane %v5703, %v7024
      %v7026 = vsel %vm5963, %v7025, %v7021
      %v7027 = vlaneseq
      %v7028 = vshrl.u32 %v7027, 7
      %v7029 = vsub.s32 %v5965, %v7028
      %v7030 = vrot.slane %v5706, %v7029
      %v7031 = vsel %vm5970, %v7030, %v7026
      %v7032 = vlaneseq
      %v7033 = vshrl.u32 %v7032, 7
      %v7034 = vsub.s32 %v5972, %v7033
      %v7035 = vrot.slane %v5709, %v7034
      %v7036 = vsel %vm5977, %v7035, %v7031
      %v7037 = vlaneseq
      %v7038 = vshrl.u32 %v7037, 7
      %v7039 = vsub.s32 %v5979, %v7038
      %v7040 = vrot.slane %v5712, %v7039
      %v7041 = vsel %vm5984, %v7040, %v7036
      %v7042 = vlaneseq
      %v7043 = vshrl.u32 %v7042, 7
      %v7044 = vsub.s32 %v5986, %v7043
      %v7045 = vrot.slane %v5715, %v7044
      %v7046 = vsel %vm5991, %v7045, %v7041
      %vm7047 = vcmask 1041409
      %v7048 = vsel %vm7047, %v6026, %v5992
      %vm7049 = vcmask 1042434
      %v7050 = vsel %vm7049, %v6060, %v7048
      %vm7051 = vcmask 1043459
      %v7052 = vsel %vm7051, %v6094, %v7050
      %vm7053 = vcmask 1044484
      %v7054 = vsel %vm7053, %v6128, %v7052
      %vm7055 = vcmask 1045509
      %v7056 = vsel %vm7055, %v6162, %v7054
      %vm7057 = vcmask 1046534
      %v7058 = vsel %vm7057, %v6196, %v7056
      %vm7059 = vcmask 1047559
      %v7060 = vsel %vm7059, %v6230, %v7058
      %v7061 = vsel %vm7047, %v6298, %v6264
      %v7062 = vsel %vm7049, %v6332, %v7061
      %v7063 = vsel %vm7051, %v6366, %v7062
      %v7064 = vsel %vm7053, %v6400, %v7063
      %v7065 = vsel %vm7055, %v6434, %v7064
      %v7066 = vsel %vm7057, %v6468, %v7065
      %v7067 = vsel %vm7059, %v6502, %v7066
      %v7068 = vsel %vm7047, %v6570, %v6536
      %v7069 = vsel %vm7049, %v6604, %v7068
      %v7070 = vsel %vm7051, %v6638, %v7069
      %v7071 = vsel %vm7053, %v6672, %v7070
      %v7072 = vsel %vm7055, %v6706, %v7071
      %v7073 = vsel %vm7057, %v6740, %v7072
      %v7074 = vsel %vm7059, %v6774, %v7073
      %v7075 = vsel %vm7047, %v6842, %v6808
      %v7076 = vsel %vm7049, %v6876, %v7075
      %v7077 = vsel %vm7051, %v6910, %v7076
      %v7078 = vsel %vm7053, %v6944, %v7077
      %v7079 = vsel %vm7055, %v6978, %v7078
      %v7080 = vsel %vm7057, %v7012, %v7079
      %v7081 = vsel %vm7059, %v7046, %v7080
      %v7083 = vsel %vm2451, %v4594, 0
      %v7085 = vsel %vm2451, %v7060, 0
      %v7087 = vsel %vm2451, %v7067, 0
      %v7089 = vsel %vm2451, %v7074, 0
      %v7091 = vsel %vm2451, %v7081, 0
      %7093 = vmatprep.subr.mxu0 0.0
      %7094 = vmatpush1.xpose.msra.mxu0 %v7085
      %7095 = vmatprep.subr.mxu0 0.0
      %7096 = vmatpush1.xpose.msra.mxu0 %v7087
      %7097 = vmatprep.subr.mxu0 0.0
      %7098 = vmatpush1.xpose.msra.mxu0 %v7089
      %7099 = vmatprep.subr.mxu0 0.0
      %7100 = vmatpush1.xpose.msra.mxu0 %v7091
      %7101 = vmatprep.subr.mxu0 0.0
      %7102 = vmatpush1.xpose.msra.mxu0 0.0
      %7103 = vmatprep.subr.mxu0 0.0
      %7104 = vmatpush1.xpose.msra.mxu0 0.0
      %7105 = vmatprep.subr.mxu0 0.0
      %7106 = vmatpush1.xpose.msra.mxu0 0.0
      %7107 = vmatprep.subr.mxu0 0.0
      %7108 = vmatpush1.xpose.msra.mxu0 0.0
      %7109 = vmatprep.subr.mxu0 0.0
      %7110 = vmatpush1.xpose.msra.mxu0 0.0
      %7111 = vmatprep.subr.mxu0 0.0
      %7112 = vmatpush1.xpose.msra.mxu0 0.0
      %7113 = vmatprep.subr.mxu0 0.0
      %7114 = vmatpush1.xpose.msra.mxu0 0.0
      %7115 = vmatprep.subr.mxu0 0.0
      %7116 = vmatpush1.xpose.msra.mxu0 0.0
      %7117 = vmatprep.subr.mxu0 0.0
      %7118 = vmatpush1.xpose.msra.mxu0 0.0
      %7119 = vmatprep.subr.mxu0 0.0
      %7120 = vmatpush1.xpose.msra.mxu0 0.0
      %7121 = vmatprep.subr.mxu0 0.0
      %7122 = vmatpush1.xpose.msra.mxu0 0.0
      %7123 = vmatprep.subr.mxu0 0.0
      %7124 = vmatpush1.xpose.msra.mxu0 0.0
      %7125 = vmatprep.subr.mxu0 0.0
      %7126 = vmatpush1.xpose.msra.mxu0 0.0
      %7127 = vmatprep.subr.mxu0 0.0
      %7128 = vmatpush1.xpose.msra.mxu0 0.0
      %7129 = vmatprep.subr.mxu0 0.0
      %7130 = vmatpush1.xpose.msra.mxu0 0.0
      %7131 = vmatprep.subr.mxu0 0.0
      %7132 = vmatpush1.xpose.msra.mxu0 0.0
      %7133 = vmatprep.subr.mxu0 0.0
      %7134 = vmatpush1.xpose.msra.mxu0 0.0
      %7135 = vmatprep.subr.mxu0 0.0
      %7136 = vmatpush1.xpose.msra.mxu0 0.0
      %7137 = vmatprep.subr.mxu0 0.0
      %7138 = vmatpush1.xpose.msra.mxu0 0.0
      %7139 = vmatprep.subr.mxu0 0.0
      %7140 = vmatpush1.xpose.msra.mxu0 0.0
      %7141 = vmatprep.subr.mxu0 0.0
      %7142 = vmatpush1.xpose.msra.mxu0 0.0
      %7143 = vmatprep.subr.mxu0 0.0
      %7144 = vmatpush1.xpose.msra.mxu0 0.0
      %7145 = vmatprep.subr.mxu0 0.0
      %7146 = vmatpush1.xpose.msra.mxu0 0.0
      %7147 = vmatprep.subr.mxu0 0.0
      %7148 = vmatpush1.xpose.msra.mxu0 0.0
      %7149 = vmatprep.subr.mxu0 0.0
      %7150 = vmatpush1.xpose.msra.mxu0 0.0
      %7151 = vmatprep.subr.mxu0 0.0
      %7152 = vmatpush1.xpose.msra.mxu0 0.0
      %7153 = vmatprep.subr.mxu0 0.0
      %7154 = vmatpush1.xpose.msra.mxu0 0.0
      %7155 = vmatprep.subr.mxu0 0.0
      %7156 = vmatpush1.xpose.msra.mxu0 0.0
      %7157 = vmatprep.mubr.f32.mxu0 0.0
      %7158 = vmatmul.mubr.f32.gmra.mrb[0].mxu0 %v7083
      %v7159 = vpop.f32.mrb[0].mxu0
      %v7160 = vadd.f32 %v5721, %v7159
      %v7161 = vpop.f32.mrb[0].mxu0
      %7162 = vdwg.mxu0
      %v7163 = vadd.f32 %v4282, %v7160
      %v7164 = vmul.f32 %v2693, %v4249
      %v7165 = vxor.u32 %v7164, 2147483648
      %v7166 = vmul.f32 %v7165, 1.442695
      %v7167 = vpow.pop %v7166
      %v7168 = vadd.f32 %v7167, 1.0
      %v7169 = vrcp.pop %v7168
      %v7170 = vmul.f32 1.0, %v7169
      %v7171 = vmul.f32 %v7170, %v2727
      %v7172 = vsub.f32 1.0, %v7170
      %v7173 = vmul.f32 %v7172, %v7163
      %v7174 = vadd.f32 %v7171, %v7173
      %v7175 = vld [vmem:[%s65] sm:$0xff]
      %v7176 = vld [vmem:[%s65 + $0x8] sm:$0xff]
      %v7177 = vld [vmem:[%s65 + $0x10] sm:$0xff]
      %v7178 = vld [vmem:[%s65 + $0x18] sm:$0xff]
      %v7179 = vld [vmem:[%s67] sm:$0x1]
      %v7181 = vlaneseq
      %v7182 = vshrl.u32 %v7181, 7
      %v7183 = vsub.s32 0, %v7182
      %v7184 = vrot.slane %v7179, %v7183
      %v7187 = vsel %vm1280, %v7174, 0
      %7189 = vmatprep.subr.mxu0 0.0
      %7190 = vmatpush1.msra.mxu0 %v7175
      %7191 = vmatprep.subr.mxu0 0.0
      %7192 = vmatpush1.msra.mxu0 %v7176
      %7193 = vmatprep.subr.mxu0 0.0
      %7194 = vmatpush1.msra.mxu0 %v7177
      %7195 = vmatprep.subr.mxu0 0.0
      %7196 = vmatpush1.msra.mxu0 %v7178
      %7197 = vmatprep.subr.mxu0 0.0
      %7198 = vmatpush1.msra.mxu0 0.0
      %7199 = vmatprep.subr.mxu0 0.0
      %7200 = vmatpush1.msra.mxu0 0.0
      %7201 = vmatprep.subr.mxu0 0.0
      %7202 = vmatpush1.msra.mxu0 0.0
      %7203 = vmatprep.subr.mxu0 0.0
      %7204 = vmatpush1.msra.mxu0 0.0
      %7205 = vmatprep.subr.mxu0 0.0
      %7206 = vmatpush1.msra.mxu0 0.0
      %7207 = vmatprep.subr.mxu0 0.0
      %7208 = vmatpush1.msra.mxu0 0.0
      %7209 = vmatprep.subr.mxu0 0.0
      %7210 = vmatpush1.msra.mxu0 0.0
      %7211 = vmatprep.subr.mxu0 0.0
      %7212 = vmatpush1.msra.mxu0 0.0
      %7213 = vmatprep.subr.mxu0 0.0
      %7214 = vmatpush1.msra.mxu0 0.0
      %7215 = vmatprep.subr.mxu0 0.0
      %7216 = vmatpush1.msra.mxu0 0.0
      %7217 = vmatprep.subr.mxu0 0.0
      %7218 = vmatpush1.msra.mxu0 0.0
      %7219 = vmatprep.subr.mxu0 0.0
      %7220 = vmatpush1.msra.mxu0 0.0
      %7221 = vmatprep.subr.mxu0 0.0
      %7222 = vmatpush1.msra.mxu0 0.0
      %7223 = vmatprep.subr.mxu0 0.0
      %7224 = vmatpush1.msra.mxu0 0.0
      %7225 = vmatprep.subr.mxu0 0.0
      %7226 = vmatpush1.msra.mxu0 0.0
      %7227 = vmatprep.subr.mxu0 0.0
      %7228 = vmatpush1.msra.mxu0 0.0
      %7229 = vmatprep.subr.mxu0 0.0
      %7230 = vmatpush1.msra.mxu0 0.0
      %7231 = vmatprep.subr.mxu0 0.0
      %7232 = vmatpush1.msra.mxu0 0.0
      %7233 = vmatprep.subr.mxu0 0.0
      %7234 = vmatpush1.msra.mxu0 0.0
      %7235 = vmatprep.subr.mxu0 0.0
      %7236 = vmatpush1.msra.mxu0 0.0
      %7237 = vmatprep.subr.mxu0 0.0
      %7238 = vmatpush1.msra.mxu0 0.0
      %7239 = vmatprep.subr.mxu0 0.0
      %7240 = vmatpush1.msra.mxu0 0.0
      %7241 = vmatprep.subr.mxu0 0.0
      %7242 = vmatpush1.msra.mxu0 0.0
      %7243 = vmatprep.subr.mxu0 0.0
      %7244 = vmatpush1.msra.mxu0 0.0
      %7245 = vmatprep.subr.mxu0 0.0
      %7246 = vmatpush1.msra.mxu0 0.0
      %7247 = vmatprep.subr.mxu0 0.0
      %7248 = vmatpush1.msra.mxu0 0.0
      %7249 = vmatprep.subr.mxu0 0.0
      %7250 = vmatpush1.msra.mxu0 0.0
      %7251 = vmatprep.subr.mxu0 0.0
      %7252 = vmatpush1.msra.mxu0 0.0
      %7253 = vmatprep.mubr.f32.mxu0 0.0
      %7254 = vmatmul.mubr.f32.gmra.mrb[0].mxu0 %v7187
      %v7255 = vpop.f32.mrb[0].mxu0
      %v7256 = vadd.f32 %v7184, %v7255
      %v7257 = vpop.f32.mrb[0].mxu0
      %7258 = vdwg.mxu0
      %v7259 = vmax.f32 %v7256, 0.0
      %v7260 = vld [vmem:[%s69] sm:$0xff]
      %v7261 = vld [vmem:[%s69 + $0x8] sm:$0xff]
      %v7262 = vld [vmem:[%s69 + $0x10] sm:$0xff]
      %v7263 = vld [vmem:[%s69 + $0x18] sm:$0xff]
      %v7264 = vld [vmem:[%s69 + $0x20] sm:$0xff]
      %v7265 = vld [vmem:[%s69 + $0x28] sm:$0xff]
      %v7266 = vld [vmem:[%s69 + $0x30] sm:$0xff]
      %v7267 = vld [vmem:[%s69 + $0x38] sm:$0xff]
      %v7268 = vld [vmem:[%s71] sm:$0x1]
      %v7270 = vlaneseq
      %v7271 = vshrl.u32 %v7270, 7
      %v7272 = vsub.s32 0, %v7271
      %v7273 = vrot.slane %v7268, %v7272
      %vm7275 = vcmask 523264
      %v7277 = vsel %vm7275, %v7259, 0
      %7279 = vmatprep.subr.mxu0 0.0
      %7280 = vmatpush1.msra.mxu0 %v7260
      %7281 = vmatprep.subr.mxu0 0.0
      %7282 = vmatpush1.msra.mxu0 %v7261
      %7283 = vmatprep.subr.mxu0 0.0
      %7284 = vmatpush1.msra.mxu0 %v7262
      %7285 = vmatprep.subr.mxu0 0.0
      %7286 = vmatpush1.msra.mxu0 %v7263
      %7287 = vmatprep.subr.mxu0 0.0
      %7288 = vmatpush1.msra.mxu0 %v7264
      %7289 = vmatprep.subr.mxu0 0.0
      %7290 = vmatpush1.msra.mxu0 %v7265
      %7291 = vmatprep.subr.mxu0 0.0
      %7292 = vmatpush1.msra.mxu0 %v7266
      %7293 = vmatprep.subr.mxu0 0.0
      %7294 = vmatpush1.msra.mxu0 %v7267
      %7295 = vmatprep.subr.mxu0 0.0
      %7296 = vmatpush1.msra.mxu0 0.0
      %7297 = vmatprep.subr.mxu0 0.0
      %7298 = vmatpush1.msra.mxu0 0.0
      %7299 = vmatprep.subr.mxu0 0.0
      %7300 = vmatpush1.msra.mxu0 0.0
      %7301 = vmatprep.subr.mxu0 0.0
      %7302 = vmatpush1.msra.mxu0 0.0
      %7303 = vmatprep.subr.mxu0 0.0
      %7304 = vmatpush1.msra.mxu0 0.0
      %7305 = vmatprep.subr.mxu0 0.0
      %7306 = vmatpush1.msra.mxu0 0.0
      %7307 = vmatprep.subr.mxu0 0.0
      %7308 = vmatpush1.msra.mxu0 0.0
      %7309 = vmatprep.subr.mxu0 0.0
      %7310 = vmatpush1.msra.mxu0 0.0
      %7311 = vmatprep.subr.mxu0 0.0
      %7312 = vmatpush1.msra.mxu0 0.0
      %7313 = vmatprep.subr.mxu0 0.0
      %7314 = vmatpush1.msra.mxu0 0.0
      %7315 = vmatprep.subr.mxu0 0.0
      %7316 = vmatpush1.msra.mxu0 0.0
      %7317 = vmatprep.subr.mxu0 0.0
      %7318 = vmatpush1.msra.mxu0 0.0
      %7319 = vmatprep.subr.mxu0 0.0
      %7320 = vmatpush1.msra.mxu0 0.0
      %7321 = vmatprep.subr.mxu0 0.0
      %7322 = vmatpush1.msra.mxu0 0.0
      %7323 = vmatprep.subr.mxu0 0.0
      %7324 = vmatpush1.msra.mxu0 0.0
      %7325 = vmatprep.subr.mxu0 0.0
      %7326 = vmatpush1.msra.mxu0 0.0
      %7327 = vmatprep.subr.mxu0 0.0
      %7328 = vmatpush1.msra.mxu0 0.0
      %7329 = vmatprep.subr.mxu0 0.0
      %7330 = vmatpush1.msra.mxu0 0.0
      %7331 = vmatprep.subr.mxu0 0.0
      %7332 = vmatpush1.msra.mxu0 0.0
      %7333 = vmatprep.subr.mxu0 0.0
      %7334 = vmatpush1.msra.mxu0 0.0
      %7335 = vmatprep.subr.mxu0 0.0
      %7336 = vmatpush1.msra.mxu0 0.0
      %7337 = vmatprep.subr.mxu0 0.0
      %7338 = vmatpush1.msra.mxu0 0.0
      %7339 = vmatprep.subr.mxu0 0.0
      %7340 = vmatpush1.msra.mxu0 0.0
      %7341 = vmatprep.subr.mxu0 0.0
      %7342 = vmatpush1.msra.mxu0 0.0
      %7343 = vmatprep.mubr.f32.mxu0 0.0
      %7344 = vmatmul.mubr.f32.gmra.mrb[0].mxu0 %v7277
      %v7345 = vpop.f32.mrb[0].mxu0
      %v7346 = vadd.f32 %v7273, %v7345
      %v7347 = vpop.f32.mrb[0].mxu0
      %7348 = vdwg.mxu0
      %vm7349 = vcmask 193536
      %7350 = vst.msk [vmem:[%s1117] sm:$0x3f] %vm7349, %v7346
      %p7351 = scmp.lt.s32.totalorder %s88, 1
      %s7352 = scalar_select %p7351, %s88, 1
      %s7353 = smul.addr %s7352, 8
      %s7354 = scalar_lea.vmem %s73, %s7353
      // Predicated region
      $region165: #{forward.1} parent=163 // pred_check
        %p7355 = pneg %p872
      $region166: #{forward.1} parent=163 // pred_check_branch
        %7357 = sbr.rel (%p7355) target = $region168
      $region167: #{forward.1} parent=163 // pred_region
        _
      $region168: #{forward.1} parent=163 // pred_fallthru
        _
    $region164: #{forward.1} parent=5 // pred_fallthru
      _
    %p7358 = scmp.le.s32.totalorder 2, %s83
    // Predicated region
    $region169: #{forward.1} parent=5 // pred_check
      %p7359 = pneg %p7358
    $region170: #{forward.1} parent=5 // pred_check_branch
      %7361 = sbr.rel (%p7359) target = $region172
    $region171: #{forward.1} parent=5 // pred_region
      %s7362 = ssub.s32 %s83, 2
      // Predicated region
      $region173: #{forward.1} parent=171 // pred_check
        %p7363 = pneg %p878
      $region174: #{forward.1} parent=171 // pred_check_branch
        %7365 = sbr.rel (%p7363) target = $region176
      $region175: #{forward.1} parent=171 // pred_region
        %p7366 = scmp.lt.s32.totalorder %s89, 1
        %s7367 = scalar_select %p7366, %s89, 1
        %s7368 = smul.addr %s7367, 8
        %s7369 = scalar_lea.vmem %s73, %s7368
      $region176: #{forward.1} parent=171 // pred_fallthru
        _
    $region172: #{forward.1} parent=5 // pred_fallthru
      _
  $region6: #{forward.1} parent=0 // loop_footer
    %s87 = sadd.s32 1, %s83
  $region7: #{forward.1} parent=0 // loop_footer_branch
    %82 = sbr.rel target = $region3
  $region8: #{forward.1} parent=0 // loop_exit
    _

</llo_original>
